<compile_context>
chip_gen: v5e
topology: v5e:2x2
jax: 0.10.0
libtpu: 0.0.40
codegen_flags: <defaults>
</compile_context>

<pallas_src>
import functools

import numpy as np
import jax
import jax.numpy as jnp
from jax.experimental import pallas as pl
from jax.experimental.pallas import tpu as pltpu


def _pad128(v):
    return ((v + 127) // 128) * 128


# --------------------------- the single fused kernel ------------------------ #

def _decoder_kernel(x0_ref, r3_ref, r2_ref, r1_ref, r0p_ref,
                    m0_ref, m1_ref, m2_ref, s01_ref, s12_ref,
                    bw3a_ref, bw3b_ref, bb3_ref, bdww_ref, bpww_ref, bpwb_ref,
                    bwct_ref, bbct_ref,
                    pdwa_ref, pdwb_ref, ppwa_ref, ppwb_ref, ppb_ref,
                    pw3_ref, pb3_ref, ps2_ref, pt2_ref,
                    qdw_ref, qpw_ref, qpb_ref,
                    odws_ref, odwr_ref, opws_ref, opwr_ref, ob_ref,
                    out_ref, *, wps, act):
    f32 = jnp.float32

    def rot(v, off):
        # v_out[:, p] = v[:, p + off].  Wrapped lanes only land in / read from
        # the zero padding ring or the dead lane-padding, so interior pixels see
        # exact Conv2d(padding=1) taps.
        if off == 0:
            return v
        return pltpu.roll(v, shift=(-off) % v.shape[-1], axis=1)

    def taps(wp):
        return [(dh - 1) * wp + (dw - 1) for dh in range(3) for dw in range(3)]

    def mm(a, b):
        return jnp.dot(a, b, preferred_element_type=f32)

    def decoder_block(b, up, res, mask, wp, s_ref):
        offs = taps(wp)
        # Conv2d 3x3 (pad=1) + BN + ReLU, weights pre-split over [up | residual]
        h = bb3_ref[b]
        for k, off in enumerate(offs):
            h = h + mm(bw3a_ref[b * 9 + k], rot(up, off))
            h = h + mm(bw3b_ref[b * 9 + k], rot(res, off))
        h = jnp.maximum(h, 0.0) * mask                # re-zero the padding ring
        # depthwise 3x3 (its bias is folded into the 1x1 below)
        t = jnp.zeros_like(h)
        for k, off in enumerate(offs):
            t = t + bdww_ref[b * 9 + k] * rot(h, off)
        # 1x1 + BN + ReLU
        h = jnp.maximum(mm(bpww_ref[b], t) + bpwb_ref[b], 0.0)
        # ConvTranspose2d(k=2,s=2) + BN + ReLU; rows ordered (di, dj, co)
        y4 = jnp.maximum(mm(bwct_ref[b], h) + bbct_ref[b], 0.0)
        # scatter the 4 sub-pixel planes onto the zero-ringed fine padded grid
        up2 = jnp.zeros((8, s_ref.shape[-1]), f32)
        for dd in range(4):
            up2 = up2 + mm(y4[dd * 8:(dd + 1) * 8, :], s_ref[dd])
        return up2

    wp0, wp1, wp2 = wps

    # ---- decoder_block #0: bottleneck 4x4 -> 8x8 ----------------------------
    up = decoder_block(0, x0_ref[...], r3_ref[...], m0_ref[...], wp0, s01_ref)
    # ---- decoder_block #1: 8x8 -> 16x16 --------------------------------------
    up = decoder_block(1, up, r2_ref[...], m1_ref[...], wp1, s12_ref)

    # ---- prePixelShuffler + pixelShuffler (PixelShuffle itself is absorbed
    #      into the polyphase post stage below) --------------------------------
    offs = taps(wp2)
    m2 = m2_ref[...]
    res1 = r1_ref[...]
    ta = jnp.zeros_like(up)
    tb = jnp.zeros_like(up)
    for k, off in enumerate(offs):
        ta = ta + pdwa_ref[k] * rot(up, off)
        tb = tb + pdwb_ref[k] * rot(res1, off)
    h = mm(ppwa_ref[...], ta) + mm(ppwb_ref[...], tb) + ppb_ref[...]
    h = h * m2                                        # ring must be zero for the 3x3
    g = pb3_ref[...]
    for k, off in enumerate(offs):
        g = g + mm(pw3_ref[k], rot(h, off))
    g = jnp.maximum(g, 0.0)
    g = jnp.maximum(g * ps2_ref[...] + pt2_ref[...], 0.0) * m2
    t = jnp.zeros_like(g)
    for k, off in enumerate(offs):
        t = t + qdw_ref[k] * rot(g, off)
    # rows permuted to (PixelShuffle plane, channel)-major; ring zeroed because
    # it stands in for the fine-grid zero padding of the post depthwise conv.
    zsh = jnp.maximum(mm(qpw_ref[...], t) + qpb_ref[...], 0.0) * m2

    # ---- postPixelShuffler + finalActivation(activationWeight * x), evaluated
    #      per output parity plane in polyphase form on the 16x16 coarse grid --
    r0p = r0p_ref[...]                                # (4, 8, P) planes of residuals[0]
    pp = zsh.shape[-1]
    for d in range(2):
        for e in range(2):
            acc_s = jnp.zeros((2, pp), f32)
            acc_r = jnp.zeros((8, pp), f32)
            for a in (-1, 0, 1):
                rpar, alpha = (d + a) % 2, (d + a) // 2
                for c in (-1, 0, 1):
                    spar, beta = (e + c) % 2, (e + c) // 2
                    k = (a + 1) * 3 + (c + 1)
                    off = alpha * wp2 + beta
                    plane = rpar * 2 + spar
                    acc_s = acc_s + odws_ref[k] * rot(
                        zsh[2 * plane:2 * plane + 2, :], off)
                    acc_r = acc_r + odwr_ref[k] * rot(r0p[plane], off)
            pre = (jnp.sum(opws_ref[...] * acc_s, axis=0, keepdims=True)
                   + jnp.sum(opwr_ref[...] * acc_r, axis=0, keepdims=True)
                   + ob_ref[...])
            if act == "sigmoid":
                val = jax.nn.sigmoid(pre)
            else:
                val = jnp.maximum(pre, 0.0)
            out_ref[pl.ds(2 * d + e, 1), :] = val


# ----------------------------- pallas_call wrapper -------------------------- #

def _run_decoder(acts, consts, weights, *, wps, act):
    n = acts[0].shape[0]
    p2p = consts[2].shape[-1]

    def img_spec(a):
        nd = a.ndim
        return pl.BlockSpec((None,) + tuple(a.shape[1:]),
                            lambda i, _nd=nd: (i,) + (0,) * (_nd - 1))

    def cst_spec(a):
        nd = a.ndim
        return pl.BlockSpec(tuple(a.shape), lambda i, _nd=nd: (0,) * _nd)

    operands = list(acts) + list(consts) + list(weights)
    in_specs = ([img_spec(a) for a in acts]
                + [cst_spec(a) for a in list(consts) + list(weights)])
    bytes_accessed = 4 * (sum(int(np.prod(a.shape)) for a in operands)
                          + n * 4 * p2p)
    return pl.pallas_call(
        functools.partial(_decoder_kernel, wps=wps, act=act),
        out_shape=jax.ShapeDtypeStruct((n, 4, p2p), jnp.float32),
        grid=(n,),
        in_specs=in_specs,
        out_specs=pl.BlockSpec((None, 4, p2p), lambda i: (i, 0, 0)),
        compiler_params=pltpu.CompilerParams(
            dimension_semantics=("parallel",)),
        cost_estimate=pl.CostEstimate(
            flops=int(n * 1.3e7),
            transcendentals=int(n * 4 * p2p),
            bytes_accessed=int(bytes_accessed)),
    )(*operands)


# ------------------------------ host-side helpers --------------------------- #

def _interior_mask(h, w):
    wp = w + 2
    m = np.zeros((1, _pad128((h + 2) * wp)), np.float32)
    for i in range(h):
        m[0, (i + 1) * wp + 1:(i + 1) * wp + 1 + w] = 1.0
    return m


def _upsample_scatter(h, w):
    """0/1 matrices scattering each ConvTranspose2d(k=2,s=2) sub-pixel plane of a
    padded h x w grid onto the padded, zero-ringed 2h x 2w grid."""
    wp1, wp2 = w + 2, 2 * w + 2
    p1, p2 = _pad128((h + 2) * wp1), _pad128((2 * h + 2) * wp2)
    s = np.zeros((4, p1, p2), np.float32)
    for di in range(2):
        for dj in range(2):
            dd = di * 2 + dj
            for i in range(h):
                for j in range(w):
                    s[dd, (i + 1) * wp1 + j + 1,
                      (2 * i + 1 + di) * wp2 + 2 * j + 1 + dj] = 1.0
    return s


def _pad_flat(a, p_pad):
    """NCHW -> channel-major zero-padded flat slab (N, C, pad128((H+2)*(W+2)))."""
    n, c, h, w = a.shape
    a = jnp.pad(a, ((0, 0), (0, 0), (1, 1), (1, 1)))
    a = a.reshape(n, c, (h + 2) * (w + 2))
    return jnp.pad(a, ((0, 0), (0, 0), (0, p_pad - a.shape[-1])))


def _parity_planes(a, p_pad):
    """Split a (N,C,2H,2W) image into its 4 parity planes, each zero-padded and
    flattened: output (N, 4, C, pad128((H+2)*(W+2))), plane index = 2*dy + dx."""
    n, c, h, w = a.shape
    a = a.reshape(n, c, h // 2, 2, w // 2, 2).transpose(0, 3, 5, 1, 2, 4)
    a = a.reshape(n, 4, c, h // 2, w // 2)
    a = jnp.pad(a, ((0, 0), (0, 0), (0, 0), (1, 1), (1, 1)))
    a = a.reshape(n, 4, c, (h // 2 + 2) * (w // 2 + 2))
    return jnp.pad(a, ((0, 0), (0, 0), (0, 0), (0, p_pad - a.shape[-1])))


# --------------------------- eval-mode weight folding ----------------------- #

def _bn_fold(bn, eps=1e-5):
    s = bn["gamma"] / jnp.sqrt(bn["var"] + eps)
    return s, bn["beta"] - bn["mean"] * s


def _fold_block(blk):
    s1, t1 = _bn_fold(blk["bn1"])
    s2, t2 = _bn_fold(blk["bn2"])
    s3, t3 = _bn_fold(blk["bn3"])
    w3 = jnp.transpose(blk["conv_w"] * s1[:, None, None, None],
                       (2, 3, 0, 1)).reshape(9, 8, 16)
    bb3 = (blk["conv_b"] * s1 + t1).reshape(8, 1)
    dww = jnp.transpose(blk["dw_w"][:, 0], (1, 2, 0)).reshape(9, 8, 1)
    pww = blk["pw_w"] * s2[:, None]
    pwb = (s2 * (blk["pw_w"] @ blk["dw_b"] + blk["pw_b"]) + t2).reshape(8, 1)
    wct = jnp.transpose(blk["ct_w"], (2, 3, 1, 0)) * s3[None, None, :, None]
    wct = wct.reshape(32, 8)
    bct = jnp.tile(blk["ct_b"] * s3 + t3, 4).reshape(32, 1)
    return w3[:, :, :8], w3[:, :, 8:], bb3, dww, pww, pwb, wct, bct


# ----------------------------------- forward --------------------------------- #

def decoder_forward(p, x, residuals, act_weight=30.0, final_act="sigmoid"):
    # Specialised to this instantiation: two decoder_blocks, all widths == 8,
    # produce == ['height'] (one output channel).
    assert len(p["blocks"]) == 2 and x.shape[1] == 8
    assert p["post_pw_w"].shape[0] == 1

    n, _, h0, _ = x.shape                         # 4x4 bottleneck
    h1, h2, h3 = 2 * h0, 4 * h0, 8 * h0           # 8, 16, 32
    p0p = _pad128((h0 + 2) ** 2)
    p1p = _pad128((h1 + 2) ** 2)
    p2p = _pad128((h2 + 2) ** 2)

    # host prep: zero-padded, lane-padded, channel-major slabs (runs once)
    x0 = _pad_flat(x, p0p)
    r3 = _pad_flat(residuals[3], p0p)
    r2 = _pad_flat(residuals[2], p1p)
    r1 = _pad_flat(residuals[1], p2p)
    r0p = _parity_planes(residuals[0], p2p)

    # constant interior masks + ConvT sub-pixel scatter matrices
    m0, m1, m2 = (_interior_mask(h0, h0), _interior_mask(h1, h1),
                  _interior_mask(h2, h2))
    s01, s12 = _upsample_scatter(h0, h0), _upsample_scatter(h1, h1)

    # fold eval-mode BatchNorm / dw biases into matmul-ready weights
    f0, f1 = _fold_block(p["blocks"][0]), _fold_block(p["blocks"][1])
    bw3a = jnp.concatenate([f0[0], f1[0]], axis=0)      # (18, 8, 8)
    bw3b = jnp.concatenate([f0[1], f1[1]], axis=0)
    bb3 = jnp.stack([f0[2], f1[2]])
    bdww = jnp.concatenate([f0[3], f1[3]], axis=0)      # (18, 8, 1)
    bpww = jnp.stack([f0[4], f1[4]])
    bpwb = jnp.stack([f0[5], f1[5]])
    bwct = jnp.stack([f0[6], f1[6]])
    bbct = jnp.stack([f0[7], f1[7]])

    s1, t1 = _bn_fold(p["pre_bn1"])
    s2, t2 = _bn_fold(p["pre_bn2"])
    pdw = jnp.transpose(p["pre_dw_w"][:, 0], (1, 2, 0)).reshape(9, 16)
    pdwa, pdwb = pdw[:, :8, None], pdw[:, 8:, None]
    ppwa, ppwb = p["pre_pw_w"][:, :8], p["pre_pw_w"][:, 8:]
    ppb = (p["pre_pw_w"] @ p["pre_dw_b"] + p["pre_pw_b"]).reshape(8, 1)
    pw3 = jnp.transpose(p["pre_conv_w"] * s1[:, None, None, None],
                        (2, 3, 0, 1)).reshape(9, 8, 8)
    pb3 = (p["pre_conv_b"] * s1 + t1).reshape(8, 1)
    ps2, pt2 = s2.reshape(8, 1), t2.reshape(8, 1)

    s3, t3 = _bn_fold(p["ps_bn"])
    qdw = jnp.transpose(p["ps_dw_w"][:, 0], (1, 2, 0)).reshape(9, 8, 1)
    qpw = p["ps_pw_w"] * s3[:, None]
    qpb = (s3 * (p["ps_pw_w"] @ p["ps_dw_b"] + p["ps_pw_b"]) + t3).reshape(8, 1)
    perm = jnp.array([0, 4, 1, 5, 2, 6, 3, 7])          # (plane, channel)-major rows
    qpw, qpb = qpw[perm], qpb[perm]

    odw = jnp.transpose(p["post_dw_w"][:, 0], (1, 2, 0)).reshape(9, 10)
    odws, odwr = odw[:, :2, None], odw[:, 2:, None]
    pwv = p["post_pw_w"][0]
    opws = (act_weight * pwv[:2]).reshape(2, 1)
    opwr = (act_weight * pwv[2:]).reshape(8, 1)
    ob = (act_weight * (pwv @ p["post_dw_b"] + p["post_pw_b"][0])).reshape(1, 1)

    acts = (x0, r3, r2, r1, r0p)
    consts = (m0, m1, m2, s01, s12)
    weights = (bw3a, bw3b, bb3, bdww, bpww, bpwb, bwct, bbct,
               pdwa, pdwb, ppwa, ppwb, ppb, pw3, pb3, ps2, pt2,
               qdw, qpw, qpb, odws, odwr, opws, opwr, ob)

    out = _run_decoder(acts, consts, weights,
                       wps=(h0 + 2, h1 + 2, h2 + 2), act=final_act)

    # recombine the 4 output parity planes into the (N, 1, 32, 32) image
    hp2 = h2 + 2
    o = out[:, :, :hp2 * hp2].reshape(n, 2, 2, hp2, hp2)[:, :, :, 1:-1, 1:-1]
    o = o.transpose(0, 3, 1, 4, 2).reshape(n, h3, h3)
    return o[:, None]


# ------------------------------ parameters ---------------------------------- #

def init_decoder_params(layers, out_channels, key):
    ctr = [0]

    def rnd(shape, scale=0.1):
        ctr[0] += 1
        return scale * jax.random.normal(jax.random.fold_in(key, ctr[0]),
                                         shape, jnp.float32)

    def bn(c):
        return dict(gamma=1.0 + rnd((c,)), beta=rnd((c,)), mean=rnd((c,)),
                    var=1.0 + jnp.abs(rnd((c,))))

    def block(cin, cout):
        return dict(conv_w=rnd((cout, cin, 3, 3)), conv_b=rnd((cout,)), bn1=bn(cout),
                    dw_w=rnd((cout, 1, 3, 3)), dw_b=rnd((cout,)),
                    pw_w=rnd((cout, cout)), pw_b=rnd((cout,)), bn2=bn(cout),
                    ct_w=rnd((cout, cout, 2, 2)), ct_b=rnd((cout,)), bn3=bn(cout))

    p = dict(blocks=[block(2 * layers[i - 1], layers[i])
                     for i in range(1, len(layers) - 1)])
    cl = layers[-1]
    cin_pre = 2 * layers[-2]
    p.update(pre_dw_w=rnd((cin_pre, 1, 3, 3)), pre_dw_b=rnd((cin_pre,)),
             pre_pw_w=rnd((cl, cin_pre)), pre_pw_b=rnd((cl,)),
             pre_conv_w=rnd((cl, cl, 3, 3)), pre_conv_b=rnd((cl,)),
             pre_bn1=bn(cl), pre_bn2=bn(cl),
             ps_dw_w=rnd((cl, 1, 3, 3)), ps_dw_b=rnd((cl,)),
             ps_pw_w=rnd((cl, cl)), ps_pw_b=rnd((cl,)), ps_bn=bn(cl))
    cpost = cl // 4 + cl
    p.update(post_dw_w=rnd((cpost, 1, 3, 3)), post_dw_b=rnd((cpost,)),
             post_pw_w=rnd((out_channels, cpost)), post_pw_b=rnd((out_channels,)))
    return p


# ----------------------------------- main ------------------------------------ #

if __name__ == "__main__":
    layers = [8, 8, 8, 8]
    cfg = {"self_attention": False, "produce": ["height"],
           "final_activation": "steep_sigmoid"}
    out_channels = len(cfg["produce"])                 # 1
    act_weight = 30.0 if "steep" in cfg["final_activation"] else 1.0
    final_act = "sigmoid" if "sigmoid" in cfg["final_activation"] else "relu"

    p = init_decoder_params(layers, out_channels, jax.random.PRNGKey(42))

    key = jax.random.PRNGKey(0)
    kx, k0, k1, k2, k3 = jax.random.split(key, 5)
    B = 2
    x = jax.random.normal(kx, (B, layers[0], 4, 4), jnp.float32)       # bottleneck
    residuals = [
        jax.random.normal(k0, (B, layers[-1], 32, 32), jnp.float32),   # residuals[0]
        jax.random.normal(k1, (B, layers[-2], 16, 16), jnp.float32),   # residuals[1]
        jax.random.normal(k2, (B, layers[1], 8, 8), jnp.float32),      # residuals[2]
        jax.random.normal(k3, (B, layers[0], 4, 4), jnp.float32),      # residuals[3]
    ]

    fwd = jax.jit(functools.partial(decoder_forward, act_weight=act_weight,
                                    final_act=final_act))
    out = jax.block_until_ready(fwd(p, x, residuals))

    assert out.shape == (B, out_channels, 32, 32), out.shape
    assert bool(jnp.all(jnp.isfinite(out)))
    print("KERNEL_OK")
</pallas_src>

<mosaic_0001>
module attributes {stable_mosaic.version = 11 : i64} {
  func.func @_decoder_kernel(%arg0: i32, %arg1: memref<1x8x128xf32, #tpu.memory_space<vmem>>, %arg2: memref<1x8x128xf32, #tpu.memory_space<vmem>>, %arg3: memref<1x8x128xf32, #tpu.memory_space<vmem>>, %arg4: memref<1x8x384xf32, #tpu.memory_space<vmem>>, %arg5: memref<1x4x8x384xf32, #tpu.memory_space<vmem>>, %arg6: memref<1x128xf32, #tpu.memory_space<vmem>>, %arg7: memref<1x128xf32, #tpu.memory_space<vmem>>, %arg8: memref<1x384xf32, #tpu.memory_space<vmem>>, %arg9: memref<4x128x128xf32, #tpu.memory_space<vmem>>, %arg10: memref<4x128x384xf32, #tpu.memory_space<vmem>>, %arg11: memref<18x8x8xf32, #tpu.memory_space<vmem>>, %arg12: memref<18x8x8xf32, #tpu.memory_space<vmem>>, %arg13: memref<2x8x1xf32, #tpu.memory_space<vmem>>, %arg14: memref<18x8x1xf32, #tpu.memory_space<vmem>>, %arg15: memref<2x8x8xf32, #tpu.memory_space<vmem>>, %arg16: memref<2x8x1xf32, #tpu.memory_space<vmem>>, %arg17: memref<2x32x8xf32, #tpu.memory_space<vmem>>, %arg18: memref<2x32x1xf32, #tpu.memory_space<vmem>>, %arg19: memref<9x8x1xf32, #tpu.memory_space<vmem>>, %arg20: memref<9x8x1xf32, #tpu.memory_space<vmem>>, %arg21: memref<8x8xf32, #tpu.memory_space<vmem>>, %arg22: memref<8x8xf32, #tpu.memory_space<vmem>>, %arg23: memref<8x1xf32, #tpu.memory_space<vmem>>, %arg24: memref<9x8x8xf32, #tpu.memory_space<vmem>>, %arg25: memref<8x1xf32, #tpu.memory_space<vmem>>, %arg26: memref<8x1xf32, #tpu.memory_space<vmem>>, %arg27: memref<8x1xf32, #tpu.memory_space<vmem>>, %arg28: memref<9x8x1xf32, #tpu.memory_space<vmem>>, %arg29: memref<8x8xf32, #tpu.memory_space<vmem>>, %arg30: memref<8x1xf32, #tpu.memory_space<vmem>>, %arg31: memref<9x2x1xf32, #tpu.memory_space<vmem>>, %arg32: memref<9x8x1xf32, #tpu.memory_space<vmem>>, %arg33: memref<2x1xf32, #tpu.memory_space<vmem>>, %arg34: memref<8x1xf32, #tpu.memory_space<vmem>>, %arg35: memref<1x1xf32, #tpu.memory_space<vmem>>, %arg36: memref<1x4x384xf32, #tpu.memory_space<vmem>>) attributes {dimension_semantics = [#tpu.dimension_semantics<parallel>], iteration_bounds = array<i64: 2>, scalar_prefetch = 0 : i64, scratch_operands = 0 : i64, tpu.core_type = #tpu.core_type<tc>, window_params = [{transform_indices = @transform_0, window_bounds = array<i64: 1, 8, 128>}, {transform_indices = @transform_1, window_bounds = array<i64: 1, 8, 128>}, {transform_indices = @transform_2, window_bounds = array<i64: 1, 8, 128>}, {transform_indices = @transform_3, window_bounds = array<i64: 1, 8, 384>}, {transform_indices = @transform_4, window_bounds = array<i64: 1, 4, 8, 384>}, {pipeline_mode = #tpu.pipeline_mode<synchronous>, transform_indices = @transform_5, window_bounds = array<i64: 1, 128>}, {pipeline_mode = #tpu.pipeline_mode<synchronous>, transform_indices = @transform_6, window_bounds = array<i64: 1, 128>}, {pipeline_mode = #tpu.pipeline_mode<synchronous>, transform_indices = @transform_7, window_bounds = array<i64: 1, 384>}, {pipeline_mode = #tpu.pipeline_mode<synchronous>, transform_indices = @transform_8, window_bounds = array<i64: 4, 128, 128>}, {pipeline_mode = #tpu.pipeline_mode<synchronous>, transform_indices = @transform_9, window_bounds = array<i64: 4, 128, 384>}, {pipeline_mode = #tpu.pipeline_mode<synchronous>, transform_indices = @transform_10, window_bounds = array<i64: 18, 8, 8>}, {pipeline_mode = #tpu.pipeline_mode<synchronous>, transform_indices = @transform_11, window_bounds = array<i64: 18, 8, 8>}, {pipeline_mode = #tpu.pipeline_mode<synchronous>, transform_indices = @transform_12, window_bounds = array<i64: 2, 8, 1>}, {pipeline_mode = #tpu.pipeline_mode<synchronous>, transform_indices = @transform_13, window_bounds = array<i64: 18, 8, 1>}, {pipeline_mode = #tpu.pipeline_mode<synchronous>, transform_indices = @transform_14, window_bounds = array<i64: 2, 8, 8>}, {pipeline_mode = #tpu.pipeline_mode<synchronous>, transform_indices = @transform_15, window_bounds = array<i64: 2, 8, 1>}, {pipeline_mode = #tpu.pipeline_mode<synchronous>, transform_indices = @transform_16, window_bounds = array<i64: 2, 32, 8>}, {pipeline_mode = #tpu.pipeline_mode<synchronous>, transform_indices = @transform_17, window_bounds = array<i64: 2, 32, 1>}, {pipeline_mode = #tpu.pipeline_mode<synchronous>, transform_indices = @transform_18, window_bounds = array<i64: 9, 8, 1>}, {pipeline_mode = #tpu.pipeline_mode<synchronous>, transform_indices = @transform_19, window_bounds = array<i64: 9, 8, 1>}, {pipeline_mode = #tpu.pipeline_mode<synchronous>, transform_indices = @transform_20, window_bounds = array<i64: 8, 8>}, {pipeline_mode = #tpu.pipeline_mode<synchronous>, transform_indices = @transform_21, window_bounds = array<i64: 8, 8>}, {pipeline_mode = #tpu.pipeline_mode<synchronous>, transform_indices = @transform_22, window_bounds = array<i64: 8, 1>}, {pipeline_mode = #tpu.pipeline_mode<synchronous>, transform_indices = @transform_23, window_bounds = array<i64: 9, 8, 8>}, {pipeline_mode = #tpu.pipeline_mode<synchronous>, transform_indices = @transform_24, window_bounds = array<i64: 8, 1>}, {pipeline_mode = #tpu.pipeline_mode<synchronous>, transform_indices = @transform_25, window_bounds = array<i64: 8, 1>}, {pipeline_mode = #tpu.pipeline_mode<synchronous>, transform_indices = @transform_26, window_bounds = array<i64: 8, 1>}, {pipeline_mode = #tpu.pipeline_mode<synchronous>, transform_indices = @transform_27, window_bounds = array<i64: 9, 8, 1>}, {pipeline_mode = #tpu.pipeline_mode<synchronous>, transform_indices = @transform_28, window_bounds = array<i64: 8, 8>}, {pipeline_mode = #tpu.pipeline_mode<synchronous>, transform_indices = @transform_29, window_bounds = array<i64: 8, 1>}, {pipeline_mode = #tpu.pipeline_mode<synchronous>, transform_indices = @transform_30, window_bounds = array<i64: 9, 2, 1>}, {pipeline_mode = #tpu.pipeline_mode<synchronous>, transform_indices = @transform_31, window_bounds = array<i64: 9, 8, 1>}, {pipeline_mode = #tpu.pipeline_mode<synchronous>, transform_indices = @transform_32, window_bounds = array<i64: 2, 1>}, {pipeline_mode = #tpu.pipeline_mode<synchronous>, transform_indices = @transform_33, window_bounds = array<i64: 8, 1>}, {pipeline_mode = #tpu.pipeline_mode<synchronous>, transform_indices = @transform_34, window_bounds = array<i64: 1, 1>}, {transform_indices = @transform_35, window_bounds = array<i64: 1, 4, 384>}]} {
    %c0 = arith.constant 0 : index
    %c0_0 = arith.constant 0 : index
    %c0_1 = arith.constant 0 : index
    %0 = vector.load %arg1[%c0, %c0_0, %c0_1] : memref<1x8x128xf32, #tpu.memory_space<vmem>>, vector<1x8x128xf32>
    %1 = vector.shape_cast %0 : vector<1x8x128xf32> to vector<8x128xf32>
    %c0_2 = arith.constant 0 : index
    %c0_3 = arith.constant 0 : index
    %c0_4 = arith.constant 0 : index
    %2 = vector.load %arg2[%c0_2, %c0_3, %c0_4] : memref<1x8x128xf32, #tpu.memory_space<vmem>>, vector<1x8x128xf32>
    %3 = vector.shape_cast %2 : vector<1x8x128xf32> to vector<8x128xf32>
    %c0_5 = arith.constant 0 : index
    %c0_6 = arith.constant 0 : index
    %4 = vector.load %arg6[%c0_5, %c0_6] : memref<1x128xf32, #tpu.memory_space<vmem>>, vector<1x128xf32>
    %c0_7 = arith.constant 0 : index
    %c0_8 = arith.constant 0 : index
    %c0_9 = arith.constant 0 : index
    %5 = vector.load %arg13[%c0_7, %c0_8, %c0_9] : memref<2x8x1xf32, #tpu.memory_space<vmem>>, vector<1x8x1xf32>
    %6 = vector.shape_cast %5 : vector<1x8x1xf32> to vector<8x1xf32>
    %c0_10 = arith.constant 0 : index
    %c0_11 = arith.constant 0 : index
    %c0_12 = arith.constant 0 : index
    %7 = vector.load %arg11[%c0_10, %c0_11, %c0_12] : memref<18x8x8xf32, #tpu.memory_space<vmem>>, vector<1x8x8xf32>
    %8 = vector.shape_cast %7 : vector<1x8x8xf32> to vector<8x8xf32>
    %c7_i32 = arith.constant 7 : i32
    %9 = tpu.dynamic_rotate %1 by %c7_i32 dim 1 : vector<8x128xf32>, i32 -> vector<8x128xf32>
    %cst = arith.constant dense<0.000000e+00> : vector<8x128xf32>
    %10 = tpu.matmul %8, %9, %cst {dimension_numbers = #tpu.dot_dimension_numbers<[1], [0], [0], [1], [0, 0, 1, 1], [], []>} : vector<8x8xf32>, vector<8x128xf32>, vector<8x128xf32> -> vector<8x128xf32>
    %11 = vector.broadcast %6 : vector<8x1xf32> to vector<8x128xf32>
    %12 = arith.addf %11, %10 : vector<8x128xf32>
    %c0_13 = arith.constant 0 : index
    %c0_14 = arith.constant 0 : index
    %c0_15 = arith.constant 0 : index
    %13 = vector.load %arg12[%c0_13, %c0_14, %c0_15] : memref<18x8x8xf32, #tpu.memory_space<vmem>>, vector<1x8x8xf32>
    %14 = vector.shape_cast %13 : vector<1x8x8xf32> to vector<8x8xf32>
    %c7_i32_16 = arith.constant 7 : i32
    %15 = tpu.dynamic_rotate %3 by %c7_i32_16 dim 1 : vector<8x128xf32>, i32 -> vector<8x128xf32>
    %cst_17 = arith.constant dense<0.000000e+00> : vector<8x128xf32>
    %16 = tpu.matmul %14, %15, %cst_17 {dimension_numbers = #tpu.dot_dimension_numbers<[1], [0], [0], [1], [0, 0, 1, 1], [], []>} : vector<8x8xf32>, vector<8x128xf32>, vector<8x128xf32> -> vector<8x128xf32>
    %17 = arith.addf %12, %16 : vector<8x128xf32>
    %c1 = arith.constant 1 : index
    %c0_18 = arith.constant 0 : index
    %c0_19 = arith.constant 0 : index
    %18 = vector.load %arg11[%c1, %c0_18, %c0_19] : memref<18x8x8xf32, #tpu.memory_space<vmem>>, vector<1x8x8xf32>
    %19 = vector.shape_cast %18 : vector<1x8x8xf32> to vector<8x8xf32>
    %c6_i32 = arith.constant 6 : i32
    %20 = tpu.dynamic_rotate %1 by %c6_i32 dim 1 : vector<8x128xf32>, i32 -> vector<8x128xf32>
    %cst_20 = arith.constant dense<0.000000e+00> : vector<8x128xf32>
    %21 = tpu.matmul %19, %20, %cst_20 {dimension_numbers = #tpu.dot_dimension_numbers<[1], [0], [0], [1], [0, 0, 1, 1], [], []>} : vector<8x8xf32>, vector<8x128xf32>, vector<8x128xf32> -> vector<8x128xf32>
    %22 = arith.addf %17, %21 : vector<8x128xf32>
    %c1_21 = arith.constant 1 : index
    %c0_22 = arith.constant 0 : index
    %c0_23 = arith.constant 0 : index
    %23 = vector.load %arg12[%c1_21, %c0_22, %c0_23] : memref<18x8x8xf32, #tpu.memory_space<vmem>>, vector<1x8x8xf32>
    %24 = vector.shape_cast %23 : vector<1x8x8xf32> to vector<8x8xf32>
    %c6_i32_24 = arith.constant 6 : i32
    %25 = tpu.dynamic_rotate %3 by %c6_i32_24 dim 1 : vector<8x128xf32>, i32 -> vector<8x128xf32>
    %cst_25 = arith.constant dense<0.000000e+00> : vector<8x128xf32>
    %26 = tpu.matmul %24, %25, %cst_25 {dimension_numbers = #tpu.dot_dimension_numbers<[1], [0], [0], [1], [0, 0, 1, 1], [], []>} : vector<8x8xf32>, vector<8x128xf32>, vector<8x128xf32> -> vector<8x128xf32>
    %27 = arith.addf %22, %26 : vector<8x128xf32>
    %c2 = arith.constant 2 : index
    %c0_26 = arith.constant 0 : index
    %c0_27 = arith.constant 0 : index
    %28 = vector.load %arg11[%c2, %c0_26, %c0_27] : memref<18x8x8xf32, #tpu.memory_space<vmem>>, vector<1x8x8xf32>
    %29 = vector.shape_cast %28 : vector<1x8x8xf32> to vector<8x8xf32>
    %c5_i32 = arith.constant 5 : i32
    %30 = tpu.dynamic_rotate %1 by %c5_i32 dim 1 : vector<8x128xf32>, i32 -> vector<8x128xf32>
    %cst_28 = arith.constant dense<0.000000e+00> : vector<8x128xf32>
    %31 = tpu.matmul %29, %30, %cst_28 {dimension_numbers = #tpu.dot_dimension_numbers<[1], [0], [0], [1], [0, 0, 1, 1], [], []>} : vector<8x8xf32>, vector<8x128xf32>, vector<8x128xf32> -> vector<8x128xf32>
    %32 = arith.addf %27, %31 : vector<8x128xf32>
    %c2_29 = arith.constant 2 : index
    %c0_30 = arith.constant 0 : index
    %c0_31 = arith.constant 0 : index
    %33 = vector.load %arg12[%c2_29, %c0_30, %c0_31] : memref<18x8x8xf32, #tpu.memory_space<vmem>>, vector<1x8x8xf32>
    %34 = vector.shape_cast %33 : vector<1x8x8xf32> to vector<8x8xf32>
    %c5_i32_32 = arith.constant 5 : i32
    %35 = tpu.dynamic_rotate %3 by %c5_i32_32 dim 1 : vector<8x128xf32>, i32 -> vector<8x128xf32>
    %cst_33 = arith.constant dense<0.000000e+00> : vector<8x128xf32>
    %36 = tpu.matmul %34, %35, %cst_33 {dimension_numbers = #tpu.dot_dimension_numbers<[1], [0], [0], [1], [0, 0, 1, 1], [], []>} : vector<8x8xf32>, vector<8x128xf32>, vector<8x128xf32> -> vector<8x128xf32>
    %37 = arith.addf %32, %36 : vector<8x128xf32>
    %c3 = arith.constant 3 : index
    %c0_34 = arith.constant 0 : index
    %c0_35 = arith.constant 0 : index
    %38 = vector.load %arg11[%c3, %c0_34, %c0_35] : memref<18x8x8xf32, #tpu.memory_space<vmem>>, vector<1x8x8xf32>
    %39 = vector.shape_cast %38 : vector<1x8x8xf32> to vector<8x8xf32>
    %c1_i32 = arith.constant 1 : i32
    %40 = tpu.dynamic_rotate %1 by %c1_i32 dim 1 : vector<8x128xf32>, i32 -> vector<8x128xf32>
    %cst_36 = arith.constant dense<0.000000e+00> : vector<8x128xf32>
    %41 = tpu.matmul %39, %40, %cst_36 {dimension_numbers = #tpu.dot_dimension_numbers<[1], [0], [0], [1], [0, 0, 1, 1], [], []>} : vector<8x8xf32>, vector<8x128xf32>, vector<8x128xf32> -> vector<8x128xf32>
    %42 = arith.addf %37, %41 : vector<8x128xf32>
    %c3_37 = arith.constant 3 : index
    %c0_38 = arith.constant 0 : index
    %c0_39 = arith.constant 0 : index
    %43 = vector.load %arg12[%c3_37, %c0_38, %c0_39] : memref<18x8x8xf32, #tpu.memory_space<vmem>>, vector<1x8x8xf32>
    %44 = vector.shape_cast %43 : vector<1x8x8xf32> to vector<8x8xf32>
    %c1_i32_40 = arith.constant 1 : i32
    %45 = tpu.dynamic_rotate %3 by %c1_i32_40 dim 1 : vector<8x128xf32>, i32 -> vector<8x128xf32>
    %cst_41 = arith.constant dense<0.000000e+00> : vector<8x128xf32>
    %46 = tpu.matmul %44, %45, %cst_41 {dimension_numbers = #tpu.dot_dimension_numbers<[1], [0], [0], [1], [0, 0, 1, 1], [], []>} : vector<8x8xf32>, vector<8x128xf32>, vector<8x128xf32> -> vector<8x128xf32>
    %47 = arith.addf %42, %46 : vector<8x128xf32>
    %c4 = arith.constant 4 : index
    %c0_42 = arith.constant 0 : index
    %c0_43 = arith.constant 0 : index
    %48 = vector.load %arg11[%c4, %c0_42, %c0_43] : memref<18x8x8xf32, #tpu.memory_space<vmem>>, vector<1x8x8xf32>
    %49 = vector.shape_cast %48 : vector<1x8x8xf32> to vector<8x8xf32>
    %cst_44 = arith.constant dense<0.000000e+00> : vector<8x128xf32>
    %50 = tpu.matmul %49, %1, %cst_44 {dimension_numbers = #tpu.dot_dimension_numbers<[1], [0], [0], [1], [0, 0, 1, 1], [], []>} : vector<8x8xf32>, vector<8x128xf32>, vector<8x128xf32> -> vector<8x128xf32>
    %51 = arith.addf %47, %50 : vector<8x128xf32>
    %c4_45 = arith.constant 4 : index
    %c0_46 = arith.constant 0 : index
    %c0_47 = arith.constant 0 : index
    %52 = vector.load %arg12[%c4_45, %c0_46, %c0_47] : memref<18x8x8xf32, #tpu.memory_space<vmem>>, vector<1x8x8xf32>
    %53 = vector.shape_cast %52 : vector<1x8x8xf32> to vector<8x8xf32>
    %cst_48 = arith.constant dense<0.000000e+00> : vector<8x128xf32>
    %54 = tpu.matmul %53, %3, %cst_48 {dimension_numbers = #tpu.dot_dimension_numbers<[1], [0], [0], [1], [0, 0, 1, 1], [], []>} : vector<8x8xf32>, vector<8x128xf32>, vector<8x128xf32> -> vector<8x128xf32>
    %55 = arith.addf %51, %54 : vector<8x128xf32>
    %c5 = arith.constant 5 : index
    %c0_49 = arith.constant 0 : index
    %c0_50 = arith.constant 0 : index
    %56 = vector.load %arg11[%c5, %c0_49, %c0_50] : memref<18x8x8xf32, #tpu.memory_space<vmem>>, vector<1x8x8xf32>
    %57 = vector.shape_cast %56 : vector<1x8x8xf32> to vector<8x8xf32>
    %c127_i32 = arith.constant 127 : i32
    %58 = tpu.dynamic_rotate %1 by %c127_i32 dim 1 : vector<8x128xf32>, i32 -> vector<8x128xf32>
    %cst_51 = arith.constant dense<0.000000e+00> : vector<8x128xf32>
    %59 = tpu.matmul %57, %58, %cst_51 {dimension_numbers = #tpu.dot_dimension_numbers<[1], [0], [0], [1], [0, 0, 1, 1], [], []>} : vector<8x8xf32>, vector<8x128xf32>, vector<8x128xf32> -> vector<8x128xf32>
    %60 = arith.addf %55, %59 : vector<8x128xf32>
    %c5_52 = arith.constant 5 : index
    %c0_53 = arith.constant 0 : index
    %c0_54 = arith.constant 0 : index
    %61 = vector.load %arg12[%c5_52, %c0_53, %c0_54] : memref<18x8x8xf32, #tpu.memory_space<vmem>>, vector<1x8x8xf32>
    %62 = vector.shape_cast %61 : vector<1x8x8xf32> to vector<8x8xf32>
    %c127_i32_55 = arith.constant 127 : i32
    %63 = tpu.dynamic_rotate %3 by %c127_i32_55 dim 1 : vector<8x128xf32>, i32 -> vector<8x128xf32>
    %cst_56 = arith.constant dense<0.000000e+00> : vector<8x128xf32>
    %64 = tpu.matmul %62, %63, %cst_56 {dimension_numbers = #tpu.dot_dimension_numbers<[1], [0], [0], [1], [0, 0, 1, 1], [], []>} : vector<8x8xf32>, vector<8x128xf32>, vector<8x128xf32> -> vector<8x128xf32>
    %65 = arith.addf %60, %64 : vector<8x128xf32>
    %c6 = arith.constant 6 : index
    %c0_57 = arith.constant 0 : index
    %c0_58 = arith.constant 0 : index
    %66 = vector.load %arg11[%c6, %c0_57, %c0_58] : memref<18x8x8xf32, #tpu.memory_space<vmem>>, vector<1x8x8xf32>
    %67 = vector.shape_cast %66 : vector<1x8x8xf32> to vector<8x8xf32>
    %c123_i32 = arith.constant 123 : i32
    %68 = tpu.dynamic_rotate %1 by %c123_i32 dim 1 : vector<8x128xf32>, i32 -> vector<8x128xf32>
    %cst_59 = arith.constant dense<0.000000e+00> : vector<8x128xf32>
    %69 = tpu.matmul %67, %68, %cst_59 {dimension_numbers = #tpu.dot_dimension_numbers<[1], [0], [0], [1], [0, 0, 1, 1], [], []>} : vector<8x8xf32>, vector<8x128xf32>, vector<8x128xf32> -> vector<8x128xf32>
    %70 = arith.addf %65, %69 : vector<8x128xf32>
    %c6_60 = arith.constant 6 : index
    %c0_61 = arith.constant 0 : index
    %c0_62 = arith.constant 0 : index
    %71 = vector.load %arg12[%c6_60, %c0_61, %c0_62] : memref<18x8x8xf32, #tpu.memory_space<vmem>>, vector<1x8x8xf32>
    %72 = vector.shape_cast %71 : vector<1x8x8xf32> to vector<8x8xf32>
    %c123_i32_63 = arith.constant 123 : i32
    %73 = tpu.dynamic_rotate %3 by %c123_i32_63 dim 1 : vector<8x128xf32>, i32 -> vector<8x128xf32>
    %cst_64 = arith.constant dense<0.000000e+00> : vector<8x128xf32>
    %74 = tpu.matmul %72, %73, %cst_64 {dimension_numbers = #tpu.dot_dimension_numbers<[1], [0], [0], [1], [0, 0, 1, 1], [], []>} : vector<8x8xf32>, vector<8x128xf32>, vector<8x128xf32> -> vector<8x128xf32>
    %75 = arith.addf %70, %74 : vector<8x128xf32>
    %c7 = arith.constant 7 : index
    %c0_65 = arith.constant 0 : index
    %c0_66 = arith.constant 0 : index
    %76 = vector.load %arg11[%c7, %c0_65, %c0_66] : memref<18x8x8xf32, #tpu.memory_space<vmem>>, vector<1x8x8xf32>
    %77 = vector.shape_cast %76 : vector<1x8x8xf32> to vector<8x8xf32>
    %c122_i32 = arith.constant 122 : i32
    %78 = tpu.dynamic_rotate %1 by %c122_i32 dim 1 : vector<8x128xf32>, i32 -> vector<8x128xf32>
    %cst_67 = arith.constant dense<0.000000e+00> : vector<8x128xf32>
    %79 = tpu.matmul %77, %78, %cst_67 {dimension_numbers = #tpu.dot_dimension_numbers<[1], [0], [0], [1], [0, 0, 1, 1], [], []>} : vector<8x8xf32>, vector<8x128xf32>, vector<8x128xf32> -> vector<8x128xf32>
    %80 = arith.addf %75, %79 : vector<8x128xf32>
    %c7_68 = arith.constant 7 : index
    %c0_69 = arith.constant 0 : index
    %c0_70 = arith.constant 0 : index
    %81 = vector.load %arg12[%c7_68, %c0_69, %c0_70] : memref<18x8x8xf32, #tpu.memory_space<vmem>>, vector<1x8x8xf32>
    %82 = vector.shape_cast %81 : vector<1x8x8xf32> to vector<8x8xf32>
    %c122_i32_71 = arith.constant 122 : i32
    %83 = tpu.dynamic_rotate %3 by %c122_i32_71 dim 1 : vector<8x128xf32>, i32 -> vector<8x128xf32>
    %cst_72 = arith.constant dense<0.000000e+00> : vector<8x128xf32>
    %84 = tpu.matmul %82, %83, %cst_72 {dimension_numbers = #tpu.dot_dimension_numbers<[1], [0], [0], [1], [0, 0, 1, 1], [], []>} : vector<8x8xf32>, vector<8x128xf32>, vector<8x128xf32> -> vector<8x128xf32>
    %85 = arith.addf %80, %84 : vector<8x128xf32>
    %c8 = arith.constant 8 : index
    %c0_73 = arith.constant 0 : index
    %c0_74 = arith.constant 0 : index
    %86 = vector.load %arg11[%c8, %c0_73, %c0_74] : memref<18x8x8xf32, #tpu.memory_space<vmem>>, vector<1x8x8xf32>
    %87 = vector.shape_cast %86 : vector<1x8x8xf32> to vector<8x8xf32>
    %c121_i32 = arith.constant 121 : i32
    %88 = tpu.dynamic_rotate %1 by %c121_i32 dim 1 : vector<8x128xf32>, i32 -> vector<8x128xf32>
    %cst_75 = arith.constant dense<0.000000e+00> : vector<8x128xf32>
    %89 = tpu.matmul %87, %88, %cst_75 {dimension_numbers = #tpu.dot_dimension_numbers<[1], [0], [0], [1], [0, 0, 1, 1], [], []>} : vector<8x8xf32>, vector<8x128xf32>, vector<8x128xf32> -> vector<8x128xf32>
    %90 = arith.addf %85, %89 : vector<8x128xf32>
    %c8_76 = arith.constant 8 : index
    %c0_77 = arith.constant 0 : index
    %c0_78 = arith.constant 0 : index
    %91 = vector.load %arg12[%c8_76, %c0_77, %c0_78] : memref<18x8x8xf32, #tpu.memory_space<vmem>>, vector<1x8x8xf32>
    %92 = vector.shape_cast %91 : vector<1x8x8xf32> to vector<8x8xf32>
    %c121_i32_79 = arith.constant 121 : i32
    %93 = tpu.dynamic_rotate %3 by %c121_i32_79 dim 1 : vector<8x128xf32>, i32 -> vector<8x128xf32>
    %cst_80 = arith.constant dense<0.000000e+00> : vector<8x128xf32>
    %94 = tpu.matmul %92, %93, %cst_80 {dimension_numbers = #tpu.dot_dimension_numbers<[1], [0], [0], [1], [0, 0, 1, 1], [], []>} : vector<8x8xf32>, vector<8x128xf32>, vector<8x128xf32> -> vector<8x128xf32>
    %95 = arith.addf %90, %94 : vector<8x128xf32>
    %cst_81 = arith.constant 0.000000e+00 : f32
    %96 = vector.broadcast %cst_81 : f32 to vector<8x128xf32>
    %97 = arith.maximumf %95, %96 : vector<8x128xf32>
    %98 = vector.broadcast %4 : vector<1x128xf32> to vector<8x128xf32>
    %99 = arith.mulf %97, %98 : vector<8x128xf32>
    %cst_82 = arith.constant 0.000000e+00 : f32
    %100 = vector.broadcast %cst_82 : f32 to vector<8x128xf32>
    %c0_83 = arith.constant 0 : index
    %c0_84 = arith.constant 0 : index
    %c0_85 = arith.constant 0 : index
    %101 = vector.load %arg14[%c0_83, %c0_84, %c0_85] : memref<18x8x1xf32, #tpu.memory_space<vmem>>, vector<1x8x1xf32>
    %102 = vector.shape_cast %101 : vector<1x8x1xf32> to vector<8x1xf32>
    %c7_i32_86 = arith.constant 7 : i32
    %103 = tpu.dynamic_rotate %99 by %c7_i32_86 dim 1 : vector<8x128xf32>, i32 -> vector<8x128xf32>
    %104 = vector.broadcast %102 : vector<8x1xf32> to vector<8x128xf32>
    %105 = arith.mulf %104, %103 : vector<8x128xf32>
    %106 = arith.addf %100, %105 : vector<8x128xf32>
    %c1_87 = arith.constant 1 : index
    %c0_88 = arith.constant 0 : index
    %c0_89 = arith.constant 0 : index
    %107 = vector.load %arg14[%c1_87, %c0_88, %c0_89] : memref<18x8x1xf32, #tpu.memory_space<vmem>>, vector<1x8x1xf32>
    %108 = vector.shape_cast %107 : vector<1x8x1xf32> to vector<8x1xf32>
    %c6_i32_90 = arith.constant 6 : i32
    %109 = tpu.dynamic_rotate %99 by %c6_i32_90 dim 1 : vector<8x128xf32>, i32 -> vector<8x128xf32>
    %110 = vector.broadcast %108 : vector<8x1xf32> to vector<8x128xf32>
    %111 = arith.mulf %110, %109 : vector<8x128xf32>
    %112 = arith.addf %106, %111 : vector<8x128xf32>
    %c2_91 = arith.constant 2 : index
    %c0_92 = arith.constant 0 : index
    %c0_93 = arith.constant 0 : index
    %113 = vector.load %arg14[%c2_91, %c0_92, %c0_93] : memref<18x8x1xf32, #tpu.memory_space<vmem>>, vector<1x8x1xf32>
    %114 = vector.shape_cast %113 : vector<1x8x1xf32> to vector<8x1xf32>
    %c5_i32_94 = arith.constant 5 : i32
    %115 = tpu.dynamic_rotate %99 by %c5_i32_94 dim 1 : vector<8x128xf32>, i32 -> vector<8x128xf32>
    %116 = vector.broadcast %114 : vector<8x1xf32> to vector<8x128xf32>
    %117 = arith.mulf %116, %115 : vector<8x128xf32>
    %118 = arith.addf %112, %117 : vector<8x128xf32>
    %c3_95 = arith.constant 3 : index
    %c0_96 = arith.constant 0 : index
    %c0_97 = arith.constant 0 : index
    %119 = vector.load %arg14[%c3_95, %c0_96, %c0_97] : memref<18x8x1xf32, #tpu.memory_space<vmem>>, vector<1x8x1xf32>
    %120 = vector.shape_cast %119 : vector<1x8x1xf32> to vector<8x1xf32>
    %c1_i32_98 = arith.constant 1 : i32
    %121 = tpu.dynamic_rotate %99 by %c1_i32_98 dim 1 : vector<8x128xf32>, i32 -> vector<8x128xf32>
    %122 = vector.broadcast %120 : vector<8x1xf32> to vector<8x128xf32>
    %123 = arith.mulf %122, %121 : vector<8x128xf32>
    %124 = arith.addf %118, %123 : vector<8x128xf32>
    %c4_99 = arith.constant 4 : index
    %c0_100 = arith.constant 0 : index
    %c0_101 = arith.constant 0 : index
    %125 = vector.load %arg14[%c4_99, %c0_100, %c0_101] : memref<18x8x1xf32, #tpu.memory_space<vmem>>, vector<1x8x1xf32>
    %126 = vector.shape_cast %125 : vector<1x8x1xf32> to vector<8x1xf32>
    %127 = vector.broadcast %126 : vector<8x1xf32> to vector<8x128xf32>
    %128 = arith.mulf %127, %99 : vector<8x128xf32>
    %129 = arith.addf %124, %128 : vector<8x128xf32>
    %c5_102 = arith.constant 5 : index
    %c0_103 = arith.constant 0 : index
    %c0_104 = arith.constant 0 : index
    %130 = vector.load %arg14[%c5_102, %c0_103, %c0_104] : memref<18x8x1xf32, #tpu.memory_space<vmem>>, vector<1x8x1xf32>
    %131 = vector.shape_cast %130 : vector<1x8x1xf32> to vector<8x1xf32>
    %c127_i32_105 = arith.constant 127 : i32
    %132 = tpu.dynamic_rotate %99 by %c127_i32_105 dim 1 : vector<8x128xf32>, i32 -> vector<8x128xf32>
    %133 = vector.broadcast %131 : vector<8x1xf32> to vector<8x128xf32>
    %134 = arith.mulf %133, %132 : vector<8x128xf32>
    %135 = arith.addf %129, %134 : vector<8x128xf32>
    %c6_106 = arith.constant 6 : index
    %c0_107 = arith.constant 0 : index
    %c0_108 = arith.constant 0 : index
    %136 = vector.load %arg14[%c6_106, %c0_107, %c0_108] : memref<18x8x1xf32, #tpu.memory_space<vmem>>, vector<1x8x1xf32>
    %137 = vector.shape_cast %136 : vector<1x8x1xf32> to vector<8x1xf32>
    %c123_i32_109 = arith.constant 123 : i32
    %138 = tpu.dynamic_rotate %99 by %c123_i32_109 dim 1 : vector<8x128xf32>, i32 -> vector<8x128xf32>
    %139 = vector.broadcast %137 : vector<8x1xf32> to vector<8x128xf32>
    %140 = arith.mulf %139, %138 : vector<8x128xf32>
    %141 = arith.addf %135, %140 : vector<8x128xf32>
    %c7_110 = arith.constant 7 : index
    %c0_111 = arith.constant 0 : index
    %c0_112 = arith.constant 0 : index
    %142 = vector.load %arg14[%c7_110, %c0_111, %c0_112] : memref<18x8x1xf32, #tpu.memory_space<vmem>>, vector<1x8x1xf32>
    %143 = vector.shape_cast %142 : vector<1x8x1xf32> to vector<8x1xf32>
    %c122_i32_113 = arith.constant 122 : i32
    %144 = tpu.dynamic_rotate %99 by %c122_i32_113 dim 1 : vector<8x128xf32>, i32 -> vector<8x128xf32>
    %145 = vector.broadcast %143 : vector<8x1xf32> to vector<8x128xf32>
    %146 = arith.mulf %145, %144 : vector<8x128xf32>
    %147 = arith.addf %141, %146 : vector<8x128xf32>
    %c8_114 = arith.constant 8 : index
    %c0_115 = arith.constant 0 : index
    %c0_116 = arith.constant 0 : index
    %148 = vector.load %arg14[%c8_114, %c0_115, %c0_116] : memref<18x8x1xf32, #tpu.memory_space<vmem>>, vector<1x8x1xf32>
    %149 = vector.shape_cast %148 : vector<1x8x1xf32> to vector<8x1xf32>
    %c121_i32_117 = arith.constant 121 : i32
    %150 = tpu.dynamic_rotate %99 by %c121_i32_117 dim 1 : vector<8x128xf32>, i32 -> vector<8x128xf32>
    %151 = vector.broadcast %149 : vector<8x1xf32> to vector<8x128xf32>
    %152 = arith.mulf %151, %150 : vector<8x128xf32>
    %153 = arith.addf %147, %152 : vector<8x128xf32>
    %c0_118 = arith.constant 0 : index
    %c0_119 = arith.constant 0 : index
    %c0_120 = arith.constant 0 : index
    %154 = vector.load %arg15[%c0_118, %c0_119, %c0_120] : memref<2x8x8xf32, #tpu.memory_space<vmem>>, vector<1x8x8xf32>
    %155 = vector.shape_cast %154 : vector<1x8x8xf32> to vector<8x8xf32>
    %cst_121 = arith.constant dense<0.000000e+00> : vector<8x128xf32>
    %156 = tpu.matmul %155, %153, %cst_121 {dimension_numbers = #tpu.dot_dimension_numbers<[1], [0], [0], [1], [0, 0, 1, 1], [], []>} : vector<8x8xf32>, vector<8x128xf32>, vector<8x128xf32> -> vector<8x128xf32>
    %c0_122 = arith.constant 0 : index
    %c0_123 = arith.constant 0 : index
    %c0_124 = arith.constant 0 : index
    %157 = vector.load %arg16[%c0_122, %c0_123, %c0_124] : memref<2x8x1xf32, #tpu.memory_space<vmem>>, vector<1x8x1xf32>
    %158 = vector.shape_cast %157 : vector<1x8x1xf32> to vector<8x1xf32>
    %159 = vector.broadcast %158 : vector<8x1xf32> to vector<8x128xf32>
    %160 = arith.addf %156, %159 : vector<8x128xf32>
    %cst_125 = arith.constant 0.000000e+00 : f32
    %161 = vector.broadcast %cst_125 : f32 to vector<8x128xf32>
    %162 = arith.maximumf %160, %161 : vector<8x128xf32>
    %c0_126 = arith.constant 0 : index
    %c0_127 = arith.constant 0 : index
    %c0_128 = arith.constant 0 : index
    %163 = vector.load %arg17[%c0_126, %c0_127, %c0_128] : memref<2x32x8xf32, #tpu.memory_space<vmem>>, vector<1x32x8xf32>
    %164 = vector.shape_cast %163 : vector<1x32x8xf32> to vector<32x8xf32>
    %cst_129 = arith.constant dense<0.000000e+00> : vector<32x128xf32>
    %165 = tpu.matmul %164, %162, %cst_129 {dimension_numbers = #tpu.dot_dimension_numbers<[1], [0], [0], [1], [0, 0, 1, 1], [], []>} : vector<32x8xf32>, vector<8x128xf32>, vector<32x128xf32> -> vector<32x128xf32>
    %c0_130 = arith.constant 0 : index
    %c0_131 = arith.constant 0 : index
    %c0_132 = arith.constant 0 : index
    %166 = vector.load %arg18[%c0_130, %c0_131, %c0_132] : memref<2x32x1xf32, #tpu.memory_space<vmem>>, vector<1x32x1xf32>
    %167 = vector.shape_cast %166 : vector<1x32x1xf32> to vector<32x1xf32>
    %168 = vector.broadcast %167 : vector<32x1xf32> to vector<32x128xf32>
    %169 = arith.addf %165, %168 : vector<32x128xf32>
    %cst_133 = arith.constant 0.000000e+00 : f32
    %170 = vector.broadcast %cst_133 : f32 to vector<32x128xf32>
    %171 = arith.maximumf %169, %170 : vector<32x128xf32>
    %cst_134 = arith.constant 0.000000e+00 : f32
    %172 = vector.broadcast %cst_134 : f32 to vector<8x128xf32>
    %173 = vector.extract_strided_slice %171 {offsets = [0, 0], sizes = [8, 128], strides = [1, 1]} : vector<32x128xf32> to vector<8x128xf32>
    %c0_135 = arith.constant 0 : index
    %c0_136 = arith.constant 0 : index
    %c0_137 = arith.constant 0 : index
    %174 = vector.load %arg9[%c0_135, %c0_136, %c0_137] : memref<4x128x128xf32, #tpu.memory_space<vmem>>, vector<1x128x128xf32>
    %175 = vector.shape_cast %174 : vector<1x128x128xf32> to vector<128x128xf32>
    %cst_138 = arith.constant dense<0.000000e+00> : vector<8x128xf32>
    %176 = tpu.matmul %173, %175, %cst_138 {dimension_numbers = #tpu.dot_dimension_numbers<[1], [0], [0], [1], [0, 0, 1, 1], [], []>} : vector<8x128xf32>, vector<128x128xf32>, vector<8x128xf32> -> vector<8x128xf32>
    %177 = arith.addf %172, %176 : vector<8x128xf32>
    %178 = vector.extract_strided_slice %171 {offsets = [8, 0], sizes = [8, 128], strides = [1, 1]} : vector<32x128xf32> to vector<8x128xf32>
    %c1_139 = arith.constant 1 : index
    %c0_140 = arith.constant 0 : index
    %c0_141 = arith.constant 0 : index
    %179 = vector.load %arg9[%c1_139, %c0_140, %c0_141] : memref<4x128x128xf32, #tpu.memory_space<vmem>>, vector<1x128x128xf32>
    %180 = vector.shape_cast %179 : vector<1x128x128xf32> to vector<128x128xf32>
    %cst_142 = arith.constant dense<0.000000e+00> : vector<8x128xf32>
    %181 = tpu.matmul %178, %180, %cst_142 {dimension_numbers = #tpu.dot_dimension_numbers<[1], [0], [0], [1], [0, 0, 1, 1], [], []>} : vector<8x128xf32>, vector<128x128xf32>, vector<8x128xf32> -> vector<8x128xf32>
    %182 = arith.addf %177, %181 : vector<8x128xf32>
    %183 = vector.extract_strided_slice %171 {offsets = [16, 0], sizes = [8, 128], strides = [1, 1]} : vector<32x128xf32> to vector<8x128xf32>
    %c2_143 = arith.constant 2 : index
    %c0_144 = arith.constant 0 : index
    %c0_145 = arith.constant 0 : index
    %184 = vector.load %arg9[%c2_143, %c0_144, %c0_145] : memref<4x128x128xf32, #tpu.memory_space<vmem>>, vector<1x128x128xf32>
    %185 = vector.shape_cast %184 : vector<1x128x128xf32> to vector<128x128xf32>
    %cst_146 = arith.constant dense<0.000000e+00> : vector<8x128xf32>
    %186 = tpu.matmul %183, %185, %cst_146 {dimension_numbers = #tpu.dot_dimension_numbers<[1], [0], [0], [1], [0, 0, 1, 1], [], []>} : vector<8x128xf32>, vector<128x128xf32>, vector<8x128xf32> -> vector<8x128xf32>
    %187 = arith.addf %182, %186 : vector<8x128xf32>
    %188 = vector.extract_strided_slice %171 {offsets = [24, 0], sizes = [8, 128], strides = [1, 1]} : vector<32x128xf32> to vector<8x128xf32>
    %c3_147 = arith.constant 3 : index
    %c0_148 = arith.constant 0 : index
    %c0_149 = arith.constant 0 : index
    %189 = vector.load %arg9[%c3_147, %c0_148, %c0_149] : memref<4x128x128xf32, #tpu.memory_space<vmem>>, vector<1x128x128xf32>
    %190 = vector.shape_cast %189 : vector<1x128x128xf32> to vector<128x128xf32>
    %cst_150 = arith.constant dense<0.000000e+00> : vector<8x128xf32>
    %191 = tpu.matmul %188, %190, %cst_150 {dimension_numbers = #tpu.dot_dimension_numbers<[1], [0], [0], [1], [0, 0, 1, 1], [], []>} : vector<8x128xf32>, vector<128x128xf32>, vector<8x128xf32> -> vector<8x128xf32>
    %192 = arith.addf %187, %191 : vector<8x128xf32>
    %c0_151 = arith.constant 0 : index
    %c0_152 = arith.constant 0 : index
    %c0_153 = arith.constant 0 : index
    %193 = vector.load %arg3[%c0_151, %c0_152, %c0_153] : memref<1x8x128xf32, #tpu.memory_space<vmem>>, vector<1x8x128xf32>
    %194 = vector.shape_cast %193 : vector<1x8x128xf32> to vector<8x128xf32>
    %c0_154 = arith.constant 0 : index
    %c0_155 = arith.constant 0 : index
    %195 = vector.load %arg7[%c0_154, %c0_155] : memref<1x128xf32, #tpu.memory_space<vmem>>, vector<1x128xf32>
    %c1_156 = arith.constant 1 : index
    %c0_157 = arith.constant 0 : index
    %c0_158 = arith.constant 0 : index
    %196 = vector.load %arg13[%c1_156, %c0_157, %c0_158] : memref<2x8x1xf32, #tpu.memory_space<vmem>>, vector<1x8x1xf32>
    %197 = vector.shape_cast %196 : vector<1x8x1xf32> to vector<8x1xf32>
    %c9 = arith.constant 9 : index
    %c0_159 = arith.constant 0 : index
    %c0_160 = arith.constant 0 : index
    %198 = vector.load %arg11[%c9, %c0_159, %c0_160] : memref<18x8x8xf32, #tpu.memory_space<vmem>>, vector<1x8x8xf32>
    %199 = vector.shape_cast %198 : vector<1x8x8xf32> to vector<8x8xf32>
    %c11_i32 = arith.constant 11 : i32
    %200 = tpu.dynamic_rotate %192 by %c11_i32 dim 1 : vector<8x128xf32>, i32 -> vector<8x128xf32>
    %cst_161 = arith.constant dense<0.000000e+00> : vector<8x128xf32>
    %201 = tpu.matmul %199, %200, %cst_161 {dimension_numbers = #tpu.dot_dimension_numbers<[1], [0], [0], [1], [0, 0, 1, 1], [], []>} : vector<8x8xf32>, vector<8x128xf32>, vector<8x128xf32> -> vector<8x128xf32>
    %202 = vector.broadcast %197 : vector<8x1xf32> to vector<8x128xf32>
    %203 = arith.addf %202, %201 : vector<8x128xf32>
    %c9_162 = arith.constant 9 : index
    %c0_163 = arith.constant 0 : index
    %c0_164 = arith.constant 0 : index
    %204 = vector.load %arg12[%c9_162, %c0_163, %c0_164] : memref<18x8x8xf32, #tpu.memory_space<vmem>>, vector<1x8x8xf32>
    %205 = vector.shape_cast %204 : vector<1x8x8xf32> to vector<8x8xf32>
    %c11_i32_165 = arith.constant 11 : i32
    %206 = tpu.dynamic_rotate %194 by %c11_i32_165 dim 1 : vector<8x128xf32>, i32 -> vector<8x128xf32>
    %cst_166 = arith.constant dense<0.000000e+00> : vector<8x128xf32>
    %207 = tpu.matmul %205, %206, %cst_166 {dimension_numbers = #tpu.dot_dimension_numbers<[1], [0], [0], [1], [0, 0, 1, 1], [], []>} : vector<8x8xf32>, vector<8x128xf32>, vector<8x128xf32> -> vector<8x128xf32>
    %208 = arith.addf %203, %207 : vector<8x128xf32>
    %c10 = arith.constant 10 : index
    %c0_167 = arith.constant 0 : index
    %c0_168 = arith.constant 0 : index
    %209 = vector.load %arg11[%c10, %c0_167, %c0_168] : memref<18x8x8xf32, #tpu.memory_space<vmem>>, vector<1x8x8xf32>
    %210 = vector.shape_cast %209 : vector<1x8x8xf32> to vector<8x8xf32>
    %c10_i32 = arith.constant 10 : i32
    %211 = tpu.dynamic_rotate %192 by %c10_i32 dim 1 : vector<8x128xf32>, i32 -> vector<8x128xf32>
    %cst_169 = arith.constant dense<0.000000e+00> : vector<8x128xf32>
    %212 = tpu.matmul %210, %211, %cst_169 {dimension_numbers = #tpu.dot_dimension_numbers<[1], [0], [0], [1], [0, 0, 1, 1], [], []>} : vector<8x8xf32>, vector<8x128xf32>, vector<8x128xf32> -> vector<8x128xf32>
    %213 = arith.addf %208, %212 : vector<8x128xf32>
    %c10_170 = arith.constant 10 : index
    %c0_171 = arith.constant 0 : index
    %c0_172 = arith.constant 0 : index
    %214 = vector.load %arg12[%c10_170, %c0_171, %c0_172] : memref<18x8x8xf32, #tpu.memory_space<vmem>>, vector<1x8x8xf32>
    %215 = vector.shape_cast %214 : vector<1x8x8xf32> to vector<8x8xf32>
    %c10_i32_173 = arith.constant 10 : i32
    %216 = tpu.dynamic_rotate %194 by %c10_i32_173 dim 1 : vector<8x128xf32>, i32 -> vector<8x128xf32>
    %cst_174 = arith.constant dense<0.000000e+00> : vector<8x128xf32>
    %217 = tpu.matmul %215, %216, %cst_174 {dimension_numbers = #tpu.dot_dimension_numbers<[1], [0], [0], [1], [0, 0, 1, 1], [], []>} : vector<8x8xf32>, vector<8x128xf32>, vector<8x128xf32> -> vector<8x128xf32>
    %218 = arith.addf %213, %217 : vector<8x128xf32>
    %c11 = arith.constant 11 : index
    %c0_175 = arith.constant 0 : index
    %c0_176 = arith.constant 0 : index
    %219 = vector.load %arg11[%c11, %c0_175, %c0_176] : memref<18x8x8xf32, #tpu.memory_space<vmem>>, vector<1x8x8xf32>
    %220 = vector.shape_cast %219 : vector<1x8x8xf32> to vector<8x8xf32>
    %c9_i32 = arith.constant 9 : i32
    %221 = tpu.dynamic_rotate %192 by %c9_i32 dim 1 : vector<8x128xf32>, i32 -> vector<8x128xf32>
    %cst_177 = arith.constant dense<0.000000e+00> : vector<8x128xf32>
    %222 = tpu.matmul %220, %221, %cst_177 {dimension_numbers = #tpu.dot_dimension_numbers<[1], [0], [0], [1], [0, 0, 1, 1], [], []>} : vector<8x8xf32>, vector<8x128xf32>, vector<8x128xf32> -> vector<8x128xf32>
    %223 = arith.addf %218, %222 : vector<8x128xf32>
    %c11_178 = arith.constant 11 : index
    %c0_179 = arith.constant 0 : index
    %c0_180 = arith.constant 0 : index
    %224 = vector.load %arg12[%c11_178, %c0_179, %c0_180] : memref<18x8x8xf32, #tpu.memory_space<vmem>>, vector<1x8x8xf32>
    %225 = vector.shape_cast %224 : vector<1x8x8xf32> to vector<8x8xf32>
    %c9_i32_181 = arith.constant 9 : i32
    %226 = tpu.dynamic_rotate %194 by %c9_i32_181 dim 1 : vector<8x128xf32>, i32 -> vector<8x128xf32>
    %cst_182 = arith.constant dense<0.000000e+00> : vector<8x128xf32>
    %227 = tpu.matmul %225, %226, %cst_182 {dimension_numbers = #tpu.dot_dimension_numbers<[1], [0], [0], [1], [0, 0, 1, 1], [], []>} : vector<8x8xf32>, vector<8x128xf32>, vector<8x128xf32> -> vector<8x128xf32>
    %228 = arith.addf %223, %227 : vector<8x128xf32>
    %c12 = arith.constant 12 : index
    %c0_183 = arith.constant 0 : index
    %c0_184 = arith.constant 0 : index
    %229 = vector.load %arg11[%c12, %c0_183, %c0_184] : memref<18x8x8xf32, #tpu.memory_space<vmem>>, vector<1x8x8xf32>
    %230 = vector.shape_cast %229 : vector<1x8x8xf32> to vector<8x8xf32>
    %c1_i32_185 = arith.constant 1 : i32
    %231 = tpu.dynamic_rotate %192 by %c1_i32_185 dim 1 : vector<8x128xf32>, i32 -> vector<8x128xf32>
    %cst_186 = arith.constant dense<0.000000e+00> : vector<8x128xf32>
    %232 = tpu.matmul %230, %231, %cst_186 {dimension_numbers = #tpu.dot_dimension_numbers<[1], [0], [0], [1], [0, 0, 1, 1], [], []>} : vector<8x8xf32>, vector<8x128xf32>, vector<8x128xf32> -> vector<8x128xf32>
    %233 = arith.addf %228, %232 : vector<8x128xf32>
    %c12_187 = arith.constant 12 : index
    %c0_188 = arith.constant 0 : index
    %c0_189 = arith.constant 0 : index
    %234 = vector.load %arg12[%c12_187, %c0_188, %c0_189] : memref<18x8x8xf32, #tpu.memory_space<vmem>>, vector<1x8x8xf32>
    %235 = vector.shape_cast %234 : vector<1x8x8xf32> to vector<8x8xf32>
    %c1_i32_190 = arith.constant 1 : i32
    %236 = tpu.dynamic_rotate %194 by %c1_i32_190 dim 1 : vector<8x128xf32>, i32 -> vector<8x128xf32>
    %cst_191 = arith.constant dense<0.000000e+00> : vector<8x128xf32>
    %237 = tpu.matmul %235, %236, %cst_191 {dimension_numbers = #tpu.dot_dimension_numbers<[1], [0], [0], [1], [0, 0, 1, 1], [], []>} : vector<8x8xf32>, vector<8x128xf32>, vector<8x128xf32> -> vector<8x128xf32>
    %238 = arith.addf %233, %237 : vector<8x128xf32>
    %c13 = arith.constant 13 : index
    %c0_192 = arith.constant 0 : index
    %c0_193 = arith.constant 0 : index
    %239 = vector.load %arg11[%c13, %c0_192, %c0_193] : memref<18x8x8xf32, #tpu.memory_space<vmem>>, vector<1x8x8xf32>
    %240 = vector.shape_cast %239 : vector<1x8x8xf32> to vector<8x8xf32>
    %cst_194 = arith.constant dense<0.000000e+00> : vector<8x128xf32>
    %241 = tpu.matmul %240, %192, %cst_194 {dimension_numbers = #tpu.dot_dimension_numbers<[1], [0], [0], [1], [0, 0, 1, 1], [], []>} : vector<8x8xf32>, vector<8x128xf32>, vector<8x128xf32> -> vector<8x128xf32>
    %242 = arith.addf %238, %241 : vector<8x128xf32>
    %c13_195 = arith.constant 13 : index
    %c0_196 = arith.constant 0 : index
    %c0_197 = arith.constant 0 : index
    %243 = vector.load %arg12[%c13_195, %c0_196, %c0_197] : memref<18x8x8xf32, #tpu.memory_space<vmem>>, vector<1x8x8xf32>
    %244 = vector.shape_cast %243 : vector<1x8x8xf32> to vector<8x8xf32>
    %cst_198 = arith.constant dense<0.000000e+00> : vector<8x128xf32>
    %245 = tpu.matmul %244, %194, %cst_198 {dimension_numbers = #tpu.dot_dimension_numbers<[1], [0], [0], [1], [0, 0, 1, 1], [], []>} : vector<8x8xf32>, vector<8x128xf32>, vector<8x128xf32> -> vector<8x128xf32>
    %246 = arith.addf %242, %245 : vector<8x128xf32>
    %c14 = arith.constant 14 : index
    %c0_199 = arith.constant 0 : index
    %c0_200 = arith.constant 0 : index
    %247 = vector.load %arg11[%c14, %c0_199, %c0_200] : memref<18x8x8xf32, #tpu.memory_space<vmem>>, vector<1x8x8xf32>
    %248 = vector.shape_cast %247 : vector<1x8x8xf32> to vector<8x8xf32>
    %c127_i32_201 = arith.constant 127 : i32
    %249 = tpu.dynamic_rotate %192 by %c127_i32_201 dim 1 : vector<8x128xf32>, i32 -> vector<8x128xf32>
    %cst_202 = arith.constant dense<0.000000e+00> : vector<8x128xf32>
    %250 = tpu.matmul %248, %249, %cst_202 {dimension_numbers = #tpu.dot_dimension_numbers<[1], [0], [0], [1], [0, 0, 1, 1], [], []>} : vector<8x8xf32>, vector<8x128xf32>, vector<8x128xf32> -> vector<8x128xf32>
    %251 = arith.addf %246, %250 : vector<8x128xf32>
    %c14_203 = arith.constant 14 : index
    %c0_204 = arith.constant 0 : index
    %c0_205 = arith.constant 0 : index
    %252 = vector.load %arg12[%c14_203, %c0_204, %c0_205] : memref<18x8x8xf32, #tpu.memory_space<vmem>>, vector<1x8x8xf32>
    %253 = vector.shape_cast %252 : vector<1x8x8xf32> to vector<8x8xf32>
    %c127_i32_206 = arith.constant 127 : i32
    %254 = tpu.dynamic_rotate %194 by %c127_i32_206 dim 1 : vector<8x128xf32>, i32 -> vector<8x128xf32>
    %cst_207 = arith.constant dense<0.000000e+00> : vector<8x128xf32>
    %255 = tpu.matmul %253, %254, %cst_207 {dimension_numbers = #tpu.dot_dimension_numbers<[1], [0], [0], [1], [0, 0, 1, 1], [], []>} : vector<8x8xf32>, vector<8x128xf32>, vector<8x128xf32> -> vector<8x128xf32>
    %256 = arith.addf %251, %255 : vector<8x128xf32>
    %c15 = arith.constant 15 : index
    %c0_208 = arith.constant 0 : index
    %c0_209 = arith.constant 0 : index
    %257 = vector.load %arg11[%c15, %c0_208, %c0_209] : memref<18x8x8xf32, #tpu.memory_space<vmem>>, vector<1x8x8xf32>
    %258 = vector.shape_cast %257 : vector<1x8x8xf32> to vector<8x8xf32>
    %c119_i32 = arith.constant 119 : i32
    %259 = tpu.dynamic_rotate %192 by %c119_i32 dim 1 : vector<8x128xf32>, i32 -> vector<8x128xf32>
    %cst_210 = arith.constant dense<0.000000e+00> : vector<8x128xf32>
    %260 = tpu.matmul %258, %259, %cst_210 {dimension_numbers = #tpu.dot_dimension_numbers<[1], [0], [0], [1], [0, 0, 1, 1], [], []>} : vector<8x8xf32>, vector<8x128xf32>, vector<8x128xf32> -> vector<8x128xf32>
    %261 = arith.addf %256, %260 : vector<8x128xf32>
    %c15_211 = arith.constant 15 : index
    %c0_212 = arith.constant 0 : index
    %c0_213 = arith.constant 0 : index
    %262 = vector.load %arg12[%c15_211, %c0_212, %c0_213] : memref<18x8x8xf32, #tpu.memory_space<vmem>>, vector<1x8x8xf32>
    %263 = vector.shape_cast %262 : vector<1x8x8xf32> to vector<8x8xf32>
    %c119_i32_214 = arith.constant 119 : i32
    %264 = tpu.dynamic_rotate %194 by %c119_i32_214 dim 1 : vector<8x128xf32>, i32 -> vector<8x128xf32>
    %cst_215 = arith.constant dense<0.000000e+00> : vector<8x128xf32>
    %265 = tpu.matmul %263, %264, %cst_215 {dimension_numbers = #tpu.dot_dimension_numbers<[1], [0], [0], [1], [0, 0, 1, 1], [], []>} : vector<8x8xf32>, vector<8x128xf32>, vector<8x128xf32> -> vector<8x128xf32>
    %266 = arith.addf %261, %265 : vector<8x128xf32>
    %c16 = arith.constant 16 : index
    %c0_216 = arith.constant 0 : index
    %c0_217 = arith.constant 0 : index
    %267 = vector.load %arg11[%c16, %c0_216, %c0_217] : memref<18x8x8xf32, #tpu.memory_space<vmem>>, vector<1x8x8xf32>
    %268 = vector.shape_cast %267 : vector<1x8x8xf32> to vector<8x8xf32>
    %c118_i32 = arith.constant 118 : i32
    %269 = tpu.dynamic_rotate %192 by %c118_i32 dim 1 : vector<8x128xf32>, i32 -> vector<8x128xf32>
    %cst_218 = arith.constant dense<0.000000e+00> : vector<8x128xf32>
    %270 = tpu.matmul %268, %269, %cst_218 {dimension_numbers = #tpu.dot_dimension_numbers<[1], [0], [0], [1], [0, 0, 1, 1], [], []>} : vector<8x8xf32>, vector<8x128xf32>, vector<8x128xf32> -> vector<8x128xf32>
    %271 = arith.addf %266, %270 : vector<8x128xf32>
    %c16_219 = arith.constant 16 : index
    %c0_220 = arith.constant 0 : index
    %c0_221 = arith.constant 0 : index
    %272 = vector.load %arg12[%c16_219, %c0_220, %c0_221] : memref<18x8x8xf32, #tpu.memory_space<vmem>>, vector<1x8x8xf32>
    %273 = vector.shape_cast %272 : vector<1x8x8xf32> to vector<8x8xf32>
    %c118_i32_222 = arith.constant 118 : i32
    %274 = tpu.dynamic_rotate %194 by %c118_i32_222 dim 1 : vector<8x128xf32>, i32 -> vector<8x128xf32>
    %cst_223 = arith.constant dense<0.000000e+00> : vector<8x128xf32>
    %275 = tpu.matmul %273, %274, %cst_223 {dimension_numbers = #tpu.dot_dimension_numbers<[1], [0], [0], [1], [0, 0, 1, 1], [], []>} : vector<8x8xf32>, vector<8x128xf32>, vector<8x128xf32> -> vector<8x128xf32>
    %276 = arith.addf %271, %275 : vector<8x128xf32>
    %c17 = arith.constant 17 : index
    %c0_224 = arith.constant 0 : index
    %c0_225 = arith.constant 0 : index
    %277 = vector.load %arg11[%c17, %c0_224, %c0_225] : memref<18x8x8xf32, #tpu.memory_space<vmem>>, vector<1x8x8xf32>
    %278 = vector.shape_cast %277 : vector<1x8x8xf32> to vector<8x8xf32>
    %c117_i32 = arith.constant 117 : i32
    %279 = tpu.dynamic_rotate %192 by %c117_i32 dim 1 : vector<8x128xf32>, i32 -> vector<8x128xf32>
    %cst_226 = arith.constant dense<0.000000e+00> : vector<8x128xf32>
    %280 = tpu.matmul %278, %279, %cst_226 {dimension_numbers = #tpu.dot_dimension_numbers<[1], [0], [0], [1], [0, 0, 1, 1], [], []>} : vector<8x8xf32>, vector<8x128xf32>, vector<8x128xf32> -> vector<8x128xf32>
    %281 = arith.addf %276, %280 : vector<8x128xf32>
    %c17_227 = arith.constant 17 : index
    %c0_228 = arith.constant 0 : index
    %c0_229 = arith.constant 0 : index
    %282 = vector.load %arg12[%c17_227, %c0_228, %c0_229] : memref<18x8x8xf32, #tpu.memory_space<vmem>>, vector<1x8x8xf32>
    %283 = vector.shape_cast %282 : vector<1x8x8xf32> to vector<8x8xf32>
    %c117_i32_230 = arith.constant 117 : i32
    %284 = tpu.dynamic_rotate %194 by %c117_i32_230 dim 1 : vector<8x128xf32>, i32 -> vector<8x128xf32>
    %cst_231 = arith.constant dense<0.000000e+00> : vector<8x128xf32>
    %285 = tpu.matmul %283, %284, %cst_231 {dimension_numbers = #tpu.dot_dimension_numbers<[1], [0], [0], [1], [0, 0, 1, 1], [], []>} : vector<8x8xf32>, vector<8x128xf32>, vector<8x128xf32> -> vector<8x128xf32>
    %286 = arith.addf %281, %285 : vector<8x128xf32>
    %cst_232 = arith.constant 0.000000e+00 : f32
    %287 = vector.broadcast %cst_232 : f32 to vector<8x128xf32>
    %288 = arith.maximumf %286, %287 : vector<8x128xf32>
    %289 = vector.broadcast %195 : vector<1x128xf32> to vector<8x128xf32>
    %290 = arith.mulf %288, %289 : vector<8x128xf32>
    %cst_233 = arith.constant 0.000000e+00 : f32
    %291 = vector.broadcast %cst_233 : f32 to vector<8x128xf32>
    %c9_234 = arith.constant 9 : index
    %c0_235 = arith.constant 0 : index
    %c0_236 = arith.constant 0 : index
    %292 = vector.load %arg14[%c9_234, %c0_235, %c0_236] : memref<18x8x1xf32, #tpu.memory_space<vmem>>, vector<1x8x1xf32>
    %293 = vector.shape_cast %292 : vector<1x8x1xf32> to vector<8x1xf32>
    %c11_i32_237 = arith.constant 11 : i32
    %294 = tpu.dynamic_rotate %290 by %c11_i32_237 dim 1 : vector<8x128xf32>, i32 -> vector<8x128xf32>
    %295 = vector.broadcast %293 : vector<8x1xf32> to vector<8x128xf32>
    %296 = arith.mulf %295, %294 : vector<8x128xf32>
    %297 = arith.addf %291, %296 : vector<8x128xf32>
    %c10_238 = arith.constant 10 : index
    %c0_239 = arith.constant 0 : index
    %c0_240 = arith.constant 0 : index
    %298 = vector.load %arg14[%c10_238, %c0_239, %c0_240] : memref<18x8x1xf32, #tpu.memory_space<vmem>>, vector<1x8x1xf32>
    %299 = vector.shape_cast %298 : vector<1x8x1xf32> to vector<8x1xf32>
    %c10_i32_241 = arith.constant 10 : i32
    %300 = tpu.dynamic_rotate %290 by %c10_i32_241 dim 1 : vector<8x128xf32>, i32 -> vector<8x128xf32>
    %301 = vector.broadcast %299 : vector<8x1xf32> to vector<8x128xf32>
    %302 = arith.mulf %301, %300 : vector<8x128xf32>
    %303 = arith.addf %297, %302 : vector<8x128xf32>
    %c11_242 = arith.constant 11 : index
    %c0_243 = arith.constant 0 : index
    %c0_244 = arith.constant 0 : index
    %304 = vector.load %arg14[%c11_242, %c0_243, %c0_244] : memref<18x8x1xf32, #tpu.memory_space<vmem>>, vector<1x8x1xf32>
    %305 = vector.shape_cast %304 : vector<1x8x1xf32> to vector<8x1xf32>
    %c9_i32_245 = arith.constant 9 : i32
    %306 = tpu.dynamic_rotate %290 by %c9_i32_245 dim 1 : vector<8x128xf32>, i32 -> vector<8x128xf32>
    %307 = vector.broadcast %305 : vector<8x1xf32> to vector<8x128xf32>
    %308 = arith.mulf %307, %306 : vector<8x128xf32>
    %309 = arith.addf %303, %308 : vector<8x128xf32>
    %c12_246 = arith.constant 12 : index
    %c0_247 = arith.constant 0 : index
    %c0_248 = arith.constant 0 : index
    %310 = vector.load %arg14[%c12_246, %c0_247, %c0_248] : memref<18x8x1xf32, #tpu.memory_space<vmem>>, vector<1x8x1xf32>
    %311 = vector.shape_cast %310 : vector<1x8x1xf32> to vector<8x1xf32>
    %c1_i32_249 = arith.constant 1 : i32
    %312 = tpu.dynamic_rotate %290 by %c1_i32_249 dim 1 : vector<8x128xf32>, i32 -> vector<8x128xf32>
    %313 = vector.broadcast %311 : vector<8x1xf32> to vector<8x128xf32>
    %314 = arith.mulf %313, %312 : vector<8x128xf32>
    %315 = arith.addf %309, %314 : vector<8x128xf32>
    %c13_250 = arith.constant 13 : index
    %c0_251 = arith.constant 0 : index
    %c0_252 = arith.constant 0 : index
    %316 = vector.load %arg14[%c13_250, %c0_251, %c0_252] : memref<18x8x1xf32, #tpu.memory_space<vmem>>, vector<1x8x1xf32>
    %317 = vector.shape_cast %316 : vector<1x8x1xf32> to vector<8x1xf32>
    %318 = vector.broadcast %317 : vector<8x1xf32> to vector<8x128xf32>
    %319 = arith.mulf %318, %290 : vector<8x128xf32>
    %320 = arith.addf %315, %319 : vector<8x128xf32>
    %c14_253 = arith.constant 14 : index
    %c0_254 = arith.constant 0 : index
    %c0_255 = arith.constant 0 : index
    %321 = vector.load %arg14[%c14_253, %c0_254, %c0_255] : memref<18x8x1xf32, #tpu.memory_space<vmem>>, vector<1x8x1xf32>
    %322 = vector.shape_cast %321 : vector<1x8x1xf32> to vector<8x1xf32>
    %c127_i32_256 = arith.constant 127 : i32
    %323 = tpu.dynamic_rotate %290 by %c127_i32_256 dim 1 : vector<8x128xf32>, i32 -> vector<8x128xf32>
    %324 = vector.broadcast %322 : vector<8x1xf32> to vector<8x128xf32>
    %325 = arith.mulf %324, %323 : vector<8x128xf32>
    %326 = arith.addf %320, %325 : vector<8x128xf32>
    %c15_257 = arith.constant 15 : index
    %c0_258 = arith.constant 0 : index
    %c0_259 = arith.constant 0 : index
    %327 = vector.load %arg14[%c15_257, %c0_258, %c0_259] : memref<18x8x1xf32, #tpu.memory_space<vmem>>, vector<1x8x1xf32>
    %328 = vector.shape_cast %327 : vector<1x8x1xf32> to vector<8x1xf32>
    %c119_i32_260 = arith.constant 119 : i32
    %329 = tpu.dynamic_rotate %290 by %c119_i32_260 dim 1 : vector<8x128xf32>, i32 -> vector<8x128xf32>
    %330 = vector.broadcast %328 : vector<8x1xf32> to vector<8x128xf32>
    %331 = arith.mulf %330, %329 : vector<8x128xf32>
    %332 = arith.addf %326, %331 : vector<8x128xf32>
    %c16_261 = arith.constant 16 : index
    %c0_262 = arith.constant 0 : index
    %c0_263 = arith.constant 0 : index
    %333 = vector.load %arg14[%c16_261, %c0_262, %c0_263] : memref<18x8x1xf32, #tpu.memory_space<vmem>>, vector<1x8x1xf32>
    %334 = vector.shape_cast %333 : vector<1x8x1xf32> to vector<8x1xf32>
    %c118_i32_264 = arith.constant 118 : i32
    %335 = tpu.dynamic_rotate %290 by %c118_i32_264 dim 1 : vector<8x128xf32>, i32 -> vector<8x128xf32>
    %336 = vector.broadcast %334 : vector<8x1xf32> to vector<8x128xf32>
    %337 = arith.mulf %336, %335 : vector<8x128xf32>
    %338 = arith.addf %332, %337 : vector<8x128xf32>
    %c17_265 = arith.constant 17 : index
    %c0_266 = arith.constant 0 : index
    %c0_267 = arith.constant 0 : index
    %339 = vector.load %arg14[%c17_265, %c0_266, %c0_267] : memref<18x8x1xf32, #tpu.memory_space<vmem>>, vector<1x8x1xf32>
    %340 = vector.shape_cast %339 : vector<1x8x1xf32> to vector<8x1xf32>
    %c117_i32_268 = arith.constant 117 : i32
    %341 = tpu.dynamic_rotate %290 by %c117_i32_268 dim 1 : vector<8x128xf32>, i32 -> vector<8x128xf32>
    %342 = vector.broadcast %340 : vector<8x1xf32> to vector<8x128xf32>
    %343 = arith.mulf %342, %341 : vector<8x128xf32>
    %344 = arith.addf %338, %343 : vector<8x128xf32>
    %c1_269 = arith.constant 1 : index
    %c0_270 = arith.constant 0 : index
    %c0_271 = arith.constant 0 : index
    %345 = vector.load %arg15[%c1_269, %c0_270, %c0_271] : memref<2x8x8xf32, #tpu.memory_space<vmem>>, vector<1x8x8xf32>
    %346 = vector.shape_cast %345 : vector<1x8x8xf32> to vector<8x8xf32>
    %cst_272 = arith.constant dense<0.000000e+00> : vector<8x128xf32>
    %347 = tpu.matmul %346, %344, %cst_272 {dimension_numbers = #tpu.dot_dimension_numbers<[1], [0], [0], [1], [0, 0, 1, 1], [], []>} : vector<8x8xf32>, vector<8x128xf32>, vector<8x128xf32> -> vector<8x128xf32>
    %c1_273 = arith.constant 1 : index
    %c0_274 = arith.constant 0 : index
    %c0_275 = arith.constant 0 : index
    %348 = vector.load %arg16[%c1_273, %c0_274, %c0_275] : memref<2x8x1xf32, #tpu.memory_space<vmem>>, vector<1x8x1xf32>
    %349 = vector.shape_cast %348 : vector<1x8x1xf32> to vector<8x1xf32>
    %350 = vector.broadcast %349 : vector<8x1xf32> to vector<8x128xf32>
    %351 = arith.addf %347, %350 : vector<8x128xf32>
    %cst_276 = arith.constant 0.000000e+00 : f32
    %352 = vector.broadcast %cst_276 : f32 to vector<8x128xf32>
    %353 = arith.maximumf %351, %352 : vector<8x128xf32>
    %c1_277 = arith.constant 1 : index
    %c0_278 = arith.constant 0 : index
    %c0_279 = arith.constant 0 : index
    %354 = vector.load %arg17[%c1_277, %c0_278, %c0_279] : memref<2x32x8xf32, #tpu.memory_space<vmem>>, vector<1x32x8xf32>
    %355 = vector.shape_cast %354 : vector<1x32x8xf32> to vector<32x8xf32>
    %cst_280 = arith.constant dense<0.000000e+00> : vector<32x128xf32>
    %356 = tpu.matmul %355, %353, %cst_280 {dimension_numbers = #tpu.dot_dimension_numbers<[1], [0], [0], [1], [0, 0, 1, 1], [], []>} : vector<32x8xf32>, vector<8x128xf32>, vector<32x128xf32> -> vector<32x128xf32>
    %c1_281 = arith.constant 1 : index
    %c0_282 = arith.constant 0 : index
    %c0_283 = arith.constant 0 : index
    %357 = vector.load %arg18[%c1_281, %c0_282, %c0_283] : memref<2x32x1xf32, #tpu.memory_space<vmem>>, vector<1x32x1xf32>
    %358 = vector.shape_cast %357 : vector<1x32x1xf32> to vector<32x1xf32>
    %359 = vector.broadcast %358 : vector<32x1xf32> to vector<32x128xf32>
    %360 = arith.addf %356, %359 : vector<32x128xf32>
    %cst_284 = arith.constant 0.000000e+00 : f32
    %361 = vector.broadcast %cst_284 : f32 to vector<32x128xf32>
    %362 = arith.maximumf %360, %361 : vector<32x128xf32>
    %cst_285 = arith.constant 0.000000e+00 : f32
    %363 = vector.broadcast %cst_285 : f32 to vector<8x384xf32>
    %364 = vector.extract_strided_slice %362 {offsets = [0, 0], sizes = [8, 128], strides = [1, 1]} : vector<32x128xf32> to vector<8x128xf32>
    %c0_286 = arith.constant 0 : index
    %c0_287 = arith.constant 0 : index
    %c0_288 = arith.constant 0 : index
    %365 = vector.load %arg10[%c0_286, %c0_287, %c0_288] : memref<4x128x384xf32, #tpu.memory_space<vmem>>, vector<1x128x384xf32>
    %366 = vector.shape_cast %365 : vector<1x128x384xf32> to vector<128x384xf32>
    %cst_289 = arith.constant dense<0.000000e+00> : vector<8x384xf32>
    %367 = tpu.matmul %364, %366, %cst_289 {dimension_numbers = #tpu.dot_dimension_numbers<[1], [0], [0], [1], [0, 0, 1, 1], [], []>} : vector<8x128xf32>, vector<128x384xf32>, vector<8x384xf32> -> vector<8x384xf32>
    %368 = arith.addf %363, %367 : vector<8x384xf32>
    %369 = vector.extract_strided_slice %362 {offsets = [8, 0], sizes = [8, 128], strides = [1, 1]} : vector<32x128xf32> to vector<8x128xf32>
    %c1_290 = arith.constant 1 : index
    %c0_291 = arith.constant 0 : index
    %c0_292 = arith.constant 0 : index
    %370 = vector.load %arg10[%c1_290, %c0_291, %c0_292] : memref<4x128x384xf32, #tpu.memory_space<vmem>>, vector<1x128x384xf32>
    %371 = vector.shape_cast %370 : vector<1x128x384xf32> to vector<128x384xf32>
    %cst_293 = arith.constant dense<0.000000e+00> : vector<8x384xf32>
    %372 = tpu.matmul %369, %371, %cst_293 {dimension_numbers = #tpu.dot_dimension_numbers<[1], [0], [0], [1], [0, 0, 1, 1], [], []>} : vector<8x128xf32>, vector<128x384xf32>, vector<8x384xf32> -> vector<8x384xf32>
    %373 = arith.addf %368, %372 : vector<8x384xf32>
    %374 = vector.extract_strided_slice %362 {offsets = [16, 0], sizes = [8, 128], strides = [1, 1]} : vector<32x128xf32> to vector<8x128xf32>
    %c2_294 = arith.constant 2 : index
    %c0_295 = arith.constant 0 : index
    %c0_296 = arith.constant 0 : index
    %375 = vector.load %arg10[%c2_294, %c0_295, %c0_296] : memref<4x128x384xf32, #tpu.memory_space<vmem>>, vector<1x128x384xf32>
    %376 = vector.shape_cast %375 : vector<1x128x384xf32> to vector<128x384xf32>
    %cst_297 = arith.constant dense<0.000000e+00> : vector<8x384xf32>
    %377 = tpu.matmul %374, %376, %cst_297 {dimension_numbers = #tpu.dot_dimension_numbers<[1], [0], [0], [1], [0, 0, 1, 1], [], []>} : vector<8x128xf32>, vector<128x384xf32>, vector<8x384xf32> -> vector<8x384xf32>
    %378 = arith.addf %373, %377 : vector<8x384xf32>
    %379 = vector.extract_strided_slice %362 {offsets = [24, 0], sizes = [8, 128], strides = [1, 1]} : vector<32x128xf32> to vector<8x128xf32>
    %c3_298 = arith.constant 3 : index
    %c0_299 = arith.constant 0 : index
    %c0_300 = arith.constant 0 : index
    %380 = vector.load %arg10[%c3_298, %c0_299, %c0_300] : memref<4x128x384xf32, #tpu.memory_space<vmem>>, vector<1x128x384xf32>
    %381 = vector.shape_cast %380 : vector<1x128x384xf32> to vector<128x384xf32>
    %cst_301 = arith.constant dense<0.000000e+00> : vector<8x384xf32>
    %382 = tpu.matmul %379, %381, %cst_301 {dimension_numbers = #tpu.dot_dimension_numbers<[1], [0], [0], [1], [0, 0, 1, 1], [], []>} : vector<8x128xf32>, vector<128x384xf32>, vector<8x384xf32> -> vector<8x384xf32>
    %383 = arith.addf %378, %382 : vector<8x384xf32>
    %c0_302 = arith.constant 0 : index
    %c0_303 = arith.constant 0 : index
    %384 = vector.load %arg8[%c0_302, %c0_303] : memref<1x384xf32, #tpu.memory_space<vmem>>, vector<1x384xf32>
    %c0_304 = arith.constant 0 : index
    %c0_305 = arith.constant 0 : index
    %c0_306 = arith.constant 0 : index
    %385 = vector.load %arg4[%c0_304, %c0_305, %c0_306] : memref<1x8x384xf32, #tpu.memory_space<vmem>>, vector<1x8x384xf32>
    %386 = vector.shape_cast %385 : vector<1x8x384xf32> to vector<8x384xf32>
    %cst_307 = arith.constant 0.000000e+00 : f32
    %387 = vector.broadcast %cst_307 : f32 to vector<8x384xf32>
    %cst_308 = arith.constant 0.000000e+00 : f32
    %388 = vector.broadcast %cst_308 : f32 to vector<8x384xf32>
    %c0_309 = arith.constant 0 : index
    %c0_310 = arith.constant 0 : index
    %c0_311 = arith.constant 0 : index
    %389 = vector.load %arg19[%c0_309, %c0_310, %c0_311] : memref<9x8x1xf32, #tpu.memory_space<vmem>>, vector<1x8x1xf32>
    %390 = vector.shape_cast %389 : vector<1x8x1xf32> to vector<8x1xf32>
    %c19_i32 = arith.constant 19 : i32
    %391 = tpu.dynamic_rotate %383 by %c19_i32 dim 1 : vector<8x384xf32>, i32 -> vector<8x384xf32>
    %392 = vector.broadcast %390 : vector<8x1xf32> to vector<8x384xf32>
    %393 = arith.mulf %392, %391 : vector<8x384xf32>
    %394 = arith.addf %387, %393 : vector<8x384xf32>
    %c0_312 = arith.constant 0 : index
    %c0_313 = arith.constant 0 : index
    %c0_314 = arith.constant 0 : index
    %395 = vector.load %arg20[%c0_312, %c0_313, %c0_314] : memref<9x8x1xf32, #tpu.memory_space<vmem>>, vector<1x8x1xf32>
    %396 = vector.shape_cast %395 : vector<1x8x1xf32> to vector<8x1xf32>
    %c19_i32_315 = arith.constant 19 : i32
    %397 = tpu.dynamic_rotate %386 by %c19_i32_315 dim 1 : vector<8x384xf32>, i32 -> vector<8x384xf32>
    %398 = vector.broadcast %396 : vector<8x1xf32> to vector<8x384xf32>
    %399 = arith.mulf %398, %397 : vector<8x384xf32>
    %400 = arith.addf %388, %399 : vector<8x384xf32>
    %c1_316 = arith.constant 1 : index
    %c0_317 = arith.constant 0 : index
    %c0_318 = arith.constant 0 : index
    %401 = vector.load %arg19[%c1_316, %c0_317, %c0_318] : memref<9x8x1xf32, #tpu.memory_space<vmem>>, vector<1x8x1xf32>
    %402 = vector.shape_cast %401 : vector<1x8x1xf32> to vector<8x1xf32>
    %c18_i32 = arith.constant 18 : i32
    %403 = tpu.dynamic_rotate %383 by %c18_i32 dim 1 : vector<8x384xf32>, i32 -> vector<8x384xf32>
    %404 = vector.broadcast %402 : vector<8x1xf32> to vector<8x384xf32>
    %405 = arith.mulf %404, %403 : vector<8x384xf32>
    %406 = arith.addf %394, %405 : vector<8x384xf32>
    %c1_319 = arith.constant 1 : index
    %c0_320 = arith.constant 0 : index
    %c0_321 = arith.constant 0 : index
    %407 = vector.load %arg20[%c1_319, %c0_320, %c0_321] : memref<9x8x1xf32, #tpu.memory_space<vmem>>, vector<1x8x1xf32>
    %408 = vector.shape_cast %407 : vector<1x8x1xf32> to vector<8x1xf32>
    %c18_i32_322 = arith.constant 18 : i32
    %409 = tpu.dynamic_rotate %386 by %c18_i32_322 dim 1 : vector<8x384xf32>, i32 -> vector<8x384xf32>
    %410 = vector.broadcast %408 : vector<8x1xf32> to vector<8x384xf32>
    %411 = arith.mulf %410, %409 : vector<8x384xf32>
    %412 = arith.addf %400, %411 : vector<8x384xf32>
    %c2_323 = arith.constant 2 : index
    %c0_324 = arith.constant 0 : index
    %c0_325 = arith.constant 0 : index
    %413 = vector.load %arg19[%c2_323, %c0_324, %c0_325] : memref<9x8x1xf32, #tpu.memory_space<vmem>>, vector<1x8x1xf32>
    %414 = vector.shape_cast %413 : vector<1x8x1xf32> to vector<8x1xf32>
    %c17_i32 = arith.constant 17 : i32
    %415 = tpu.dynamic_rotate %383 by %c17_i32 dim 1 : vector<8x384xf32>, i32 -> vector<8x384xf32>
    %416 = vector.broadcast %414 : vector<8x1xf32> to vector<8x384xf32>
    %417 = arith.mulf %416, %415 : vector<8x384xf32>
    %418 = arith.addf %406, %417 : vector<8x384xf32>
    %c2_326 = arith.constant 2 : index
    %c0_327 = arith.constant 0 : index
    %c0_328 = arith.constant 0 : index
    %419 = vector.load %arg20[%c2_326, %c0_327, %c0_328] : memref<9x8x1xf32, #tpu.memory_space<vmem>>, vector<1x8x1xf32>
    %420 = vector.shape_cast %419 : vector<1x8x1xf32> to vector<8x1xf32>
    %c17_i32_329 = arith.constant 17 : i32
    %421 = tpu.dynamic_rotate %386 by %c17_i32_329 dim 1 : vector<8x384xf32>, i32 -> vector<8x384xf32>
    %422 = vector.broadcast %420 : vector<8x1xf32> to vector<8x384xf32>
    %423 = arith.mulf %422, %421 : vector<8x384xf32>
    %424 = arith.addf %412, %423 : vector<8x384xf32>
    %c3_330 = arith.constant 3 : index
    %c0_331 = arith.constant 0 : index
    %c0_332 = arith.constant 0 : index
    %425 = vector.load %arg19[%c3_330, %c0_331, %c0_332] : memref<9x8x1xf32, #tpu.memory_space<vmem>>, vector<1x8x1xf32>
    %426 = vector.shape_cast %425 : vector<1x8x1xf32> to vector<8x1xf32>
    %c1_i32_333 = arith.constant 1 : i32
    %427 = tpu.dynamic_rotate %383 by %c1_i32_333 dim 1 : vector<8x384xf32>, i32 -> vector<8x384xf32>
    %428 = vector.broadcast %426 : vector<8x1xf32> to vector<8x384xf32>
    %429 = arith.mulf %428, %427 : vector<8x384xf32>
    %430 = arith.addf %418, %429 : vector<8x384xf32>
    %c3_334 = arith.constant 3 : index
    %c0_335 = arith.constant 0 : index
    %c0_336 = arith.constant 0 : index
    %431 = vector.load %arg20[%c3_334, %c0_335, %c0_336] : memref<9x8x1xf32, #tpu.memory_space<vmem>>, vector<1x8x1xf32>
    %432 = vector.shape_cast %431 : vector<1x8x1xf32> to vector<8x1xf32>
    %c1_i32_337 = arith.constant 1 : i32
    %433 = tpu.dynamic_rotate %386 by %c1_i32_337 dim 1 : vector<8x384xf32>, i32 -> vector<8x384xf32>
    %434 = vector.broadcast %432 : vector<8x1xf32> to vector<8x384xf32>
    %435 = arith.mulf %434, %433 : vector<8x384xf32>
    %436 = arith.addf %424, %435 : vector<8x384xf32>
    %c4_338 = arith.constant 4 : index
    %c0_339 = arith.constant 0 : index
    %c0_340 = arith.constant 0 : index
    %437 = vector.load %arg19[%c4_338, %c0_339, %c0_340] : memref<9x8x1xf32, #tpu.memory_space<vmem>>, vector<1x8x1xf32>
    %438 = vector.shape_cast %437 : vector<1x8x1xf32> to vector<8x1xf32>
    %439 = vector.broadcast %438 : vector<8x1xf32> to vector<8x384xf32>
    %440 = arith.mulf %439, %383 : vector<8x384xf32>
    %441 = arith.addf %430, %440 : vector<8x384xf32>
    %c4_341 = arith.constant 4 : index
    %c0_342 = arith.constant 0 : index
    %c0_343 = arith.constant 0 : index
    %442 = vector.load %arg20[%c4_341, %c0_342, %c0_343] : memref<9x8x1xf32, #tpu.memory_space<vmem>>, vector<1x8x1xf32>
    %443 = vector.shape_cast %442 : vector<1x8x1xf32> to vector<8x1xf32>
    %444 = vector.broadcast %443 : vector<8x1xf32> to vector<8x384xf32>
    %445 = arith.mulf %444, %386 : vector<8x384xf32>
    %446 = arith.addf %436, %445 : vector<8x384xf32>
    %c5_344 = arith.constant 5 : index
    %c0_345 = arith.constant 0 : index
    %c0_346 = arith.constant 0 : index
    %447 = vector.load %arg19[%c5_344, %c0_345, %c0_346] : memref<9x8x1xf32, #tpu.memory_space<vmem>>, vector<1x8x1xf32>
    %448 = vector.shape_cast %447 : vector<1x8x1xf32> to vector<8x1xf32>
    %c383_i32 = arith.constant 383 : i32
    %449 = tpu.dynamic_rotate %383 by %c383_i32 dim 1 : vector<8x384xf32>, i32 -> vector<8x384xf32>
    %450 = vector.broadcast %448 : vector<8x1xf32> to vector<8x384xf32>
    %451 = arith.mulf %450, %449 : vector<8x384xf32>
    %452 = arith.addf %441, %451 : vector<8x384xf32>
    %c5_347 = arith.constant 5 : index
    %c0_348 = arith.constant 0 : index
    %c0_349 = arith.constant 0 : index
    %453 = vector.load %arg20[%c5_347, %c0_348, %c0_349] : memref<9x8x1xf32, #tpu.memory_space<vmem>>, vector<1x8x1xf32>
    %454 = vector.shape_cast %453 : vector<1x8x1xf32> to vector<8x1xf32>
    %c383_i32_350 = arith.constant 383 : i32
    %455 = tpu.dynamic_rotate %386 by %c383_i32_350 dim 1 : vector<8x384xf32>, i32 -> vector<8x384xf32>
    %456 = vector.broadcast %454 : vector<8x1xf32> to vector<8x384xf32>
    %457 = arith.mulf %456, %455 : vector<8x384xf32>
    %458 = arith.addf %446, %457 : vector<8x384xf32>
    %c6_351 = arith.constant 6 : index
    %c0_352 = arith.constant 0 : index
    %c0_353 = arith.constant 0 : index
    %459 = vector.load %arg19[%c6_351, %c0_352, %c0_353] : memref<9x8x1xf32, #tpu.memory_space<vmem>>, vector<1x8x1xf32>
    %460 = vector.shape_cast %459 : vector<1x8x1xf32> to vector<8x1xf32>
    %c367_i32 = arith.constant 367 : i32
    %461 = tpu.dynamic_rotate %383 by %c367_i32 dim 1 : vector<8x384xf32>, i32 -> vector<8x384xf32>
    %462 = vector.broadcast %460 : vector<8x1xf32> to vector<8x384xf32>
    %463 = arith.mulf %462, %461 : vector<8x384xf32>
    %464 = arith.addf %452, %463 : vector<8x384xf32>
    %c6_354 = arith.constant 6 : index
    %c0_355 = arith.constant 0 : index
    %c0_356 = arith.constant 0 : index
    %465 = vector.load %arg20[%c6_354, %c0_355, %c0_356] : memref<9x8x1xf32, #tpu.memory_space<vmem>>, vector<1x8x1xf32>
    %466 = vector.shape_cast %465 : vector<1x8x1xf32> to vector<8x1xf32>
    %c367_i32_357 = arith.constant 367 : i32
    %467 = tpu.dynamic_rotate %386 by %c367_i32_357 dim 1 : vector<8x384xf32>, i32 -> vector<8x384xf32>
    %468 = vector.broadcast %466 : vector<8x1xf32> to vector<8x384xf32>
    %469 = arith.mulf %468, %467 : vector<8x384xf32>
    %470 = arith.addf %458, %469 : vector<8x384xf32>
    %c7_358 = arith.constant 7 : index
    %c0_359 = arith.constant 0 : index
    %c0_360 = arith.constant 0 : index
    %471 = vector.load %arg19[%c7_358, %c0_359, %c0_360] : memref<9x8x1xf32, #tpu.memory_space<vmem>>, vector<1x8x1xf32>
    %472 = vector.shape_cast %471 : vector<1x8x1xf32> to vector<8x1xf32>
    %c366_i32 = arith.constant 366 : i32
    %473 = tpu.dynamic_rotate %383 by %c366_i32 dim 1 : vector<8x384xf32>, i32 -> vector<8x384xf32>
    %474 = vector.broadcast %472 : vector<8x1xf32> to vector<8x384xf32>
    %475 = arith.mulf %474, %473 : vector<8x384xf32>
    %476 = arith.addf %464, %475 : vector<8x384xf32>
    %c7_361 = arith.constant 7 : index
    %c0_362 = arith.constant 0 : index
    %c0_363 = arith.constant 0 : index
    %477 = vector.load %arg20[%c7_361, %c0_362, %c0_363] : memref<9x8x1xf32, #tpu.memory_space<vmem>>, vector<1x8x1xf32>
    %478 = vector.shape_cast %477 : vector<1x8x1xf32> to vector<8x1xf32>
    %c366_i32_364 = arith.constant 366 : i32
    %479 = tpu.dynamic_rotate %386 by %c366_i32_364 dim 1 : vector<8x384xf32>, i32 -> vector<8x384xf32>
    %480 = vector.broadcast %478 : vector<8x1xf32> to vector<8x384xf32>
    %481 = arith.mulf %480, %479 : vector<8x384xf32>
    %482 = arith.addf %470, %481 : vector<8x384xf32>
    %c8_365 = arith.constant 8 : index
    %c0_366 = arith.constant 0 : index
    %c0_367 = arith.constant 0 : index
    %483 = vector.load %arg19[%c8_365, %c0_366, %c0_367] : memref<9x8x1xf32, #tpu.memory_space<vmem>>, vector<1x8x1xf32>
    %484 = vector.shape_cast %483 : vector<1x8x1xf32> to vector<8x1xf32>
    %c365_i32 = arith.constant 365 : i32
    %485 = tpu.dynamic_rotate %383 by %c365_i32 dim 1 : vector<8x384xf32>, i32 -> vector<8x384xf32>
    %486 = vector.broadcast %484 : vector<8x1xf32> to vector<8x384xf32>
    %487 = arith.mulf %486, %485 : vector<8x384xf32>
    %488 = arith.addf %476, %487 : vector<8x384xf32>
    %c8_368 = arith.constant 8 : index
    %c0_369 = arith.constant 0 : index
    %c0_370 = arith.constant 0 : index
    %489 = vector.load %arg20[%c8_368, %c0_369, %c0_370] : memref<9x8x1xf32, #tpu.memory_space<vmem>>, vector<1x8x1xf32>
    %490 = vector.shape_cast %489 : vector<1x8x1xf32> to vector<8x1xf32>
    %c365_i32_371 = arith.constant 365 : i32
    %491 = tpu.dynamic_rotate %386 by %c365_i32_371 dim 1 : vector<8x384xf32>, i32 -> vector<8x384xf32>
    %492 = vector.broadcast %490 : vector<8x1xf32> to vector<8x384xf32>
    %493 = arith.mulf %492, %491 : vector<8x384xf32>
    %494 = arith.addf %482, %493 : vector<8x384xf32>
    %c0_372 = arith.constant 0 : index
    %c0_373 = arith.constant 0 : index
    %495 = vector.load %arg21[%c0_372, %c0_373] : memref<8x8xf32, #tpu.memory_space<vmem>>, vector<8x8xf32>
    %cst_374 = arith.constant dense<0.000000e+00> : vector<8x384xf32>
    %496 = tpu.matmul %495, %488, %cst_374 {dimension_numbers = #tpu.dot_dimension_numbers<[1], [0], [0], [1], [0, 0, 1, 1], [], []>} : vector<8x8xf32>, vector<8x384xf32>, vector<8x384xf32> -> vector<8x384xf32>
    %c0_375 = arith.constant 0 : index
    %c0_376 = arith.constant 0 : index
    %497 = vector.load %arg22[%c0_375, %c0_376] : memref<8x8xf32, #tpu.memory_space<vmem>>, vector<8x8xf32>
    %cst_377 = arith.constant dense<0.000000e+00> : vector<8x384xf32>
    %498 = tpu.matmul %497, %494, %cst_377 {dimension_numbers = #tpu.dot_dimension_numbers<[1], [0], [0], [1], [0, 0, 1, 1], [], []>} : vector<8x8xf32>, vector<8x384xf32>, vector<8x384xf32> -> vector<8x384xf32>
    %499 = arith.addf %496, %498 : vector<8x384xf32>
    %c0_378 = arith.constant 0 : index
    %c0_379 = arith.constant 0 : index
    %500 = vector.load %arg23[%c0_378, %c0_379] : memref<8x1xf32, #tpu.memory_space<vmem>>, vector<8x1xf32>
    %501 = vector.broadcast %500 : vector<8x1xf32> to vector<8x384xf32>
    %502 = arith.addf %499, %501 : vector<8x384xf32>
    %503 = vector.broadcast %384 : vector<1x384xf32> to vector<8x384xf32>
    %504 = arith.mulf %502, %503 : vector<8x384xf32>
    %c0_380 = arith.constant 0 : index
    %c0_381 = arith.constant 0 : index
    %505 = vector.load %arg25[%c0_380, %c0_381] : memref<8x1xf32, #tpu.memory_space<vmem>>, vector<8x1xf32>
    %c0_382 = arith.constant 0 : index
    %c0_383 = arith.constant 0 : index
    %c0_384 = arith.constant 0 : index
    %506 = vector.load %arg24[%c0_382, %c0_383, %c0_384] : memref<9x8x8xf32, #tpu.memory_space<vmem>>, vector<1x8x8xf32>
    %507 = vector.shape_cast %506 : vector<1x8x8xf32> to vector<8x8xf32>
    %c19_i32_385 = arith.constant 19 : i32
    %508 = tpu.dynamic_rotate %504 by %c19_i32_385 dim 1 : vector<8x384xf32>, i32 -> vector<8x384xf32>
    %cst_386 = arith.constant dense<0.000000e+00> : vector<8x384xf32>
    %509 = tpu.matmul %507, %508, %cst_386 {dimension_numbers = #tpu.dot_dimension_numbers<[1], [0], [0], [1], [0, 0, 1, 1], [], []>} : vector<8x8xf32>, vector<8x384xf32>, vector<8x384xf32> -> vector<8x384xf32>
    %510 = vector.broadcast %505 : vector<8x1xf32> to vector<8x384xf32>
    %511 = arith.addf %510, %509 : vector<8x384xf32>
    %c1_387 = arith.constant 1 : index
    %c0_388 = arith.constant 0 : index
    %c0_389 = arith.constant 0 : index
    %512 = vector.load %arg24[%c1_387, %c0_388, %c0_389] : memref<9x8x8xf32, #tpu.memory_space<vmem>>, vector<1x8x8xf32>
    %513 = vector.shape_cast %512 : vector<1x8x8xf32> to vector<8x8xf32>
    %c18_i32_390 = arith.constant 18 : i32
    %514 = tpu.dynamic_rotate %504 by %c18_i32_390 dim 1 : vector<8x384xf32>, i32 -> vector<8x384xf32>
    %cst_391 = arith.constant dense<0.000000e+00> : vector<8x384xf32>
    %515 = tpu.matmul %513, %514, %cst_391 {dimension_numbers = #tpu.dot_dimension_numbers<[1], [0], [0], [1], [0, 0, 1, 1], [], []>} : vector<8x8xf32>, vector<8x384xf32>, vector<8x384xf32> -> vector<8x384xf32>
    %516 = arith.addf %511, %515 : vector<8x384xf32>
    %c2_392 = arith.constant 2 : index
    %c0_393 = arith.constant 0 : index
    %c0_394 = arith.constant 0 : index
    %517 = vector.load %arg24[%c2_392, %c0_393, %c0_394] : memref<9x8x8xf32, #tpu.memory_space<vmem>>, vector<1x8x8xf32>
    %518 = vector.shape_cast %517 : vector<1x8x8xf32> to vector<8x8xf32>
    %c17_i32_395 = arith.constant 17 : i32
    %519 = tpu.dynamic_rotate %504 by %c17_i32_395 dim 1 : vector<8x384xf32>, i32 -> vector<8x384xf32>
    %cst_396 = arith.constant dense<0.000000e+00> : vector<8x384xf32>
    %520 = tpu.matmul %518, %519, %cst_396 {dimension_numbers = #tpu.dot_dimension_numbers<[1], [0], [0], [1], [0, 0, 1, 1], [], []>} : vector<8x8xf32>, vector<8x384xf32>, vector<8x384xf32> -> vector<8x384xf32>
    %521 = arith.addf %516, %520 : vector<8x384xf32>
    %c3_397 = arith.constant 3 : index
    %c0_398 = arith.constant 0 : index
    %c0_399 = arith.constant 0 : index
    %522 = vector.load %arg24[%c3_397, %c0_398, %c0_399] : memref<9x8x8xf32, #tpu.memory_space<vmem>>, vector<1x8x8xf32>
    %523 = vector.shape_cast %522 : vector<1x8x8xf32> to vector<8x8xf32>
    %c1_i32_400 = arith.constant 1 : i32
    %524 = tpu.dynamic_rotate %504 by %c1_i32_400 dim 1 : vector<8x384xf32>, i32 -> vector<8x384xf32>
    %cst_401 = arith.constant dense<0.000000e+00> : vector<8x384xf32>
    %525 = tpu.matmul %523, %524, %cst_401 {dimension_numbers = #tpu.dot_dimension_numbers<[1], [0], [0], [1], [0, 0, 1, 1], [], []>} : vector<8x8xf32>, vector<8x384xf32>, vector<8x384xf32> -> vector<8x384xf32>
    %526 = arith.addf %521, %525 : vector<8x384xf32>
    %c4_402 = arith.constant 4 : index
    %c0_403 = arith.constant 0 : index
    %c0_404 = arith.constant 0 : index
    %527 = vector.load %arg24[%c4_402, %c0_403, %c0_404] : memref<9x8x8xf32, #tpu.memory_space<vmem>>, vector<1x8x8xf32>
    %528 = vector.shape_cast %527 : vector<1x8x8xf32> to vector<8x8xf32>
    %cst_405 = arith.constant dense<0.000000e+00> : vector<8x384xf32>
    %529 = tpu.matmul %528, %504, %cst_405 {dimension_numbers = #tpu.dot_dimension_numbers<[1], [0], [0], [1], [0, 0, 1, 1], [], []>} : vector<8x8xf32>, vector<8x384xf32>, vector<8x384xf32> -> vector<8x384xf32>
    %530 = arith.addf %526, %529 : vector<8x384xf32>
    %c5_406 = arith.constant 5 : index
    %c0_407 = arith.constant 0 : index
    %c0_408 = arith.constant 0 : index
    %531 = vector.load %arg24[%c5_406, %c0_407, %c0_408] : memref<9x8x8xf32, #tpu.memory_space<vmem>>, vector<1x8x8xf32>
    %532 = vector.shape_cast %531 : vector<1x8x8xf32> to vector<8x8xf32>
    %c383_i32_409 = arith.constant 383 : i32
    %533 = tpu.dynamic_rotate %504 by %c383_i32_409 dim 1 : vector<8x384xf32>, i32 -> vector<8x384xf32>
    %cst_410 = arith.constant dense<0.000000e+00> : vector<8x384xf32>
    %534 = tpu.matmul %532, %533, %cst_410 {dimension_numbers = #tpu.dot_dimension_numbers<[1], [0], [0], [1], [0, 0, 1, 1], [], []>} : vector<8x8xf32>, vector<8x384xf32>, vector<8x384xf32> -> vector<8x384xf32>
    %535 = arith.addf %530, %534 : vector<8x384xf32>
    %c6_411 = arith.constant 6 : index
    %c0_412 = arith.constant 0 : index
    %c0_413 = arith.constant 0 : index
    %536 = vector.load %arg24[%c6_411, %c0_412, %c0_413] : memref<9x8x8xf32, #tpu.memory_space<vmem>>, vector<1x8x8xf32>
    %537 = vector.shape_cast %536 : vector<1x8x8xf32> to vector<8x8xf32>
    %c367_i32_414 = arith.constant 367 : i32
    %538 = tpu.dynamic_rotate %504 by %c367_i32_414 dim 1 : vector<8x384xf32>, i32 -> vector<8x384xf32>
    %cst_415 = arith.constant dense<0.000000e+00> : vector<8x384xf32>
    %539 = tpu.matmul %537, %538, %cst_415 {dimension_numbers = #tpu.dot_dimension_numbers<[1], [0], [0], [1], [0, 0, 1, 1], [], []>} : vector<8x8xf32>, vector<8x384xf32>, vector<8x384xf32> -> vector<8x384xf32>
    %540 = arith.addf %535, %539 : vector<8x384xf32>
    %c7_416 = arith.constant 7 : index
    %c0_417 = arith.constant 0 : index
    %c0_418 = arith.constant 0 : index
    %541 = vector.load %arg24[%c7_416, %c0_417, %c0_418] : memref<9x8x8xf32, #tpu.memory_space<vmem>>, vector<1x8x8xf32>
    %542 = vector.shape_cast %541 : vector<1x8x8xf32> to vector<8x8xf32>
    %c366_i32_419 = arith.constant 366 : i32
    %543 = tpu.dynamic_rotate %504 by %c366_i32_419 dim 1 : vector<8x384xf32>, i32 -> vector<8x384xf32>
    %cst_420 = arith.constant dense<0.000000e+00> : vector<8x384xf32>
    %544 = tpu.matmul %542, %543, %cst_420 {dimension_numbers = #tpu.dot_dimension_numbers<[1], [0], [0], [1], [0, 0, 1, 1], [], []>} : vector<8x8xf32>, vector<8x384xf32>, vector<8x384xf32> -> vector<8x384xf32>
    %545 = arith.addf %540, %544 : vector<8x384xf32>
    %c8_421 = arith.constant 8 : index
    %c0_422 = arith.constant 0 : index
    %c0_423 = arith.constant 0 : index
    %546 = vector.load %arg24[%c8_421, %c0_422, %c0_423] : memref<9x8x8xf32, #tpu.memory_space<vmem>>, vector<1x8x8xf32>
    %547 = vector.shape_cast %546 : vector<1x8x8xf32> to vector<8x8xf32>
    %c365_i32_424 = arith.constant 365 : i32
    %548 = tpu.dynamic_rotate %504 by %c365_i32_424 dim 1 : vector<8x384xf32>, i32 -> vector<8x384xf32>
    %cst_425 = arith.constant dense<0.000000e+00> : vector<8x384xf32>
    %549 = tpu.matmul %547, %548, %cst_425 {dimension_numbers = #tpu.dot_dimension_numbers<[1], [0], [0], [1], [0, 0, 1, 1], [], []>} : vector<8x8xf32>, vector<8x384xf32>, vector<8x384xf32> -> vector<8x384xf32>
    %550 = arith.addf %545, %549 : vector<8x384xf32>
    %cst_426 = arith.constant 0.000000e+00 : f32
    %551 = vector.broadcast %cst_426 : f32 to vector<8x384xf32>
    %552 = arith.maximumf %550, %551 : vector<8x384xf32>
    %c0_427 = arith.constant 0 : index
    %c0_428 = arith.constant 0 : index
    %553 = vector.load %arg26[%c0_427, %c0_428] : memref<8x1xf32, #tpu.memory_space<vmem>>, vector<8x1xf32>
    %554 = vector.broadcast %553 : vector<8x1xf32> to vector<8x384xf32>
    %555 = arith.mulf %552, %554 : vector<8x384xf32>
    %c0_429 = arith.constant 0 : index
    %c0_430 = arith.constant 0 : index
    %556 = vector.load %arg27[%c0_429, %c0_430] : memref<8x1xf32, #tpu.memory_space<vmem>>, vector<8x1xf32>
    %557 = vector.broadcast %556 : vector<8x1xf32> to vector<8x384xf32>
    %558 = arith.addf %555, %557 : vector<8x384xf32>
    %cst_431 = arith.constant 0.000000e+00 : f32
    %559 = vector.broadcast %cst_431 : f32 to vector<8x384xf32>
    %560 = arith.maximumf %558, %559 : vector<8x384xf32>
    %561 = vector.broadcast %384 : vector<1x384xf32> to vector<8x384xf32>
    %562 = arith.mulf %560, %561 : vector<8x384xf32>
    %cst_432 = arith.constant 0.000000e+00 : f32
    %563 = vector.broadcast %cst_432 : f32 to vector<8x384xf32>
    %c0_433 = arith.constant 0 : index
    %c0_434 = arith.constant 0 : index
    %c0_435 = arith.constant 0 : index
    %564 = vector.load %arg28[%c0_433, %c0_434, %c0_435] : memref<9x8x1xf32, #tpu.memory_space<vmem>>, vector<1x8x1xf32>
    %565 = vector.shape_cast %564 : vector<1x8x1xf32> to vector<8x1xf32>
    %c19_i32_436 = arith.constant 19 : i32
    %566 = tpu.dynamic_rotate %562 by %c19_i32_436 dim 1 : vector<8x384xf32>, i32 -> vector<8x384xf32>
    %567 = vector.broadcast %565 : vector<8x1xf32> to vector<8x384xf32>
    %568 = arith.mulf %567, %566 : vector<8x384xf32>
    %569 = arith.addf %563, %568 : vector<8x384xf32>
    %c1_437 = arith.constant 1 : index
    %c0_438 = arith.constant 0 : index
    %c0_439 = arith.constant 0 : index
    %570 = vector.load %arg28[%c1_437, %c0_438, %c0_439] : memref<9x8x1xf32, #tpu.memory_space<vmem>>, vector<1x8x1xf32>
    %571 = vector.shape_cast %570 : vector<1x8x1xf32> to vector<8x1xf32>
    %c18_i32_440 = arith.constant 18 : i32
    %572 = tpu.dynamic_rotate %562 by %c18_i32_440 dim 1 : vector<8x384xf32>, i32 -> vector<8x384xf32>
    %573 = vector.broadcast %571 : vector<8x1xf32> to vector<8x384xf32>
    %574 = arith.mulf %573, %572 : vector<8x384xf32>
    %575 = arith.addf %569, %574 : vector<8x384xf32>
    %c2_441 = arith.constant 2 : index
    %c0_442 = arith.constant 0 : index
    %c0_443 = arith.constant 0 : index
    %576 = vector.load %arg28[%c2_441, %c0_442, %c0_443] : memref<9x8x1xf32, #tpu.memory_space<vmem>>, vector<1x8x1xf32>
    %577 = vector.shape_cast %576 : vector<1x8x1xf32> to vector<8x1xf32>
    %c17_i32_444 = arith.constant 17 : i32
    %578 = tpu.dynamic_rotate %562 by %c17_i32_444 dim 1 : vector<8x384xf32>, i32 -> vector<8x384xf32>
    %579 = vector.broadcast %577 : vector<8x1xf32> to vector<8x384xf32>
    %580 = arith.mulf %579, %578 : vector<8x384xf32>
    %581 = arith.addf %575, %580 : vector<8x384xf32>
    %c3_445 = arith.constant 3 : index
    %c0_446 = arith.constant 0 : index
    %c0_447 = arith.constant 0 : index
    %582 = vector.load %arg28[%c3_445, %c0_446, %c0_447] : memref<9x8x1xf32, #tpu.memory_space<vmem>>, vector<1x8x1xf32>
    %583 = vector.shape_cast %582 : vector<1x8x1xf32> to vector<8x1xf32>
    %c1_i32_448 = arith.constant 1 : i32
    %584 = tpu.dynamic_rotate %562 by %c1_i32_448 dim 1 : vector<8x384xf32>, i32 -> vector<8x384xf32>
    %585 = vector.broadcast %583 : vector<8x1xf32> to vector<8x384xf32>
    %586 = arith.mulf %585, %584 : vector<8x384xf32>
    %587 = arith.addf %581, %586 : vector<8x384xf32>
    %c4_449 = arith.constant 4 : index
    %c0_450 = arith.constant 0 : index
    %c0_451 = arith.constant 0 : index
    %588 = vector.load %arg28[%c4_449, %c0_450, %c0_451] : memref<9x8x1xf32, #tpu.memory_space<vmem>>, vector<1x8x1xf32>
    %589 = vector.shape_cast %588 : vector<1x8x1xf32> to vector<8x1xf32>
    %590 = vector.broadcast %589 : vector<8x1xf32> to vector<8x384xf32>
    %591 = arith.mulf %590, %562 : vector<8x384xf32>
    %592 = arith.addf %587, %591 : vector<8x384xf32>
    %c5_452 = arith.constant 5 : index
    %c0_453 = arith.constant 0 : index
    %c0_454 = arith.constant 0 : index
    %593 = vector.load %arg28[%c5_452, %c0_453, %c0_454] : memref<9x8x1xf32, #tpu.memory_space<vmem>>, vector<1x8x1xf32>
    %594 = vector.shape_cast %593 : vector<1x8x1xf32> to vector<8x1xf32>
    %c383_i32_455 = arith.constant 383 : i32
    %595 = tpu.dynamic_rotate %562 by %c383_i32_455 dim 1 : vector<8x384xf32>, i32 -> vector<8x384xf32>
    %596 = vector.broadcast %594 : vector<8x1xf32> to vector<8x384xf32>
    %597 = arith.mulf %596, %595 : vector<8x384xf32>
    %598 = arith.addf %592, %597 : vector<8x384xf32>
    %c6_456 = arith.constant 6 : index
    %c0_457 = arith.constant 0 : index
    %c0_458 = arith.constant 0 : index
    %599 = vector.load %arg28[%c6_456, %c0_457, %c0_458] : memref<9x8x1xf32, #tpu.memory_space<vmem>>, vector<1x8x1xf32>
    %600 = vector.shape_cast %599 : vector<1x8x1xf32> to vector<8x1xf32>
    %c367_i32_459 = arith.constant 367 : i32
    %601 = tpu.dynamic_rotate %562 by %c367_i32_459 dim 1 : vector<8x384xf32>, i32 -> vector<8x384xf32>
    %602 = vector.broadcast %600 : vector<8x1xf32> to vector<8x384xf32>
    %603 = arith.mulf %602, %601 : vector<8x384xf32>
    %604 = arith.addf %598, %603 : vector<8x384xf32>
    %c7_460 = arith.constant 7 : index
    %c0_461 = arith.constant 0 : index
    %c0_462 = arith.constant 0 : index
    %605 = vector.load %arg28[%c7_460, %c0_461, %c0_462] : memref<9x8x1xf32, #tpu.memory_space<vmem>>, vector<1x8x1xf32>
    %606 = vector.shape_cast %605 : vector<1x8x1xf32> to vector<8x1xf32>
    %c366_i32_463 = arith.constant 366 : i32
    %607 = tpu.dynamic_rotate %562 by %c366_i32_463 dim 1 : vector<8x384xf32>, i32 -> vector<8x384xf32>
    %608 = vector.broadcast %606 : vector<8x1xf32> to vector<8x384xf32>
    %609 = arith.mulf %608, %607 : vector<8x384xf32>
    %610 = arith.addf %604, %609 : vector<8x384xf32>
    %c8_464 = arith.constant 8 : index
    %c0_465 = arith.constant 0 : index
    %c0_466 = arith.constant 0 : index
    %611 = vector.load %arg28[%c8_464, %c0_465, %c0_466] : memref<9x8x1xf32, #tpu.memory_space<vmem>>, vector<1x8x1xf32>
    %612 = vector.shape_cast %611 : vector<1x8x1xf32> to vector<8x1xf32>
    %c365_i32_467 = arith.constant 365 : i32
    %613 = tpu.dynamic_rotate %562 by %c365_i32_467 dim 1 : vector<8x384xf32>, i32 -> vector<8x384xf32>
    %614 = vector.broadcast %612 : vector<8x1xf32> to vector<8x384xf32>
    %615 = arith.mulf %614, %613 : vector<8x384xf32>
    %616 = arith.addf %610, %615 : vector<8x384xf32>
    %c0_468 = arith.constant 0 : index
    %c0_469 = arith.constant 0 : index
    %617 = vector.load %arg29[%c0_468, %c0_469] : memref<8x8xf32, #tpu.memory_space<vmem>>, vector<8x8xf32>
    %cst_470 = arith.constant dense<0.000000e+00> : vector<8x384xf32>
    %618 = tpu.matmul %617, %616, %cst_470 {dimension_numbers = #tpu.dot_dimension_numbers<[1], [0], [0], [1], [0, 0, 1, 1], [], []>} : vector<8x8xf32>, vector<8x384xf32>, vector<8x384xf32> -> vector<8x384xf32>
    %c0_471 = arith.constant 0 : index
    %c0_472 = arith.constant 0 : index
    %619 = vector.load %arg30[%c0_471, %c0_472] : memref<8x1xf32, #tpu.memory_space<vmem>>, vector<8x1xf32>
    %620 = vector.broadcast %619 : vector<8x1xf32> to vector<8x384xf32>
    %621 = arith.addf %618, %620 : vector<8x384xf32>
    %cst_473 = arith.constant 0.000000e+00 : f32
    %622 = vector.broadcast %cst_473 : f32 to vector<8x384xf32>
    %623 = arith.maximumf %621, %622 : vector<8x384xf32>
    %624 = vector.broadcast %384 : vector<1x384xf32> to vector<8x384xf32>
    %625 = arith.mulf %623, %624 : vector<8x384xf32>
    %c0_474 = arith.constant 0 : index
    %c0_475 = arith.constant 0 : index
    %c0_476 = arith.constant 0 : index
    %c0_477 = arith.constant 0 : index
    %626 = vector.load %arg5[%c0_474, %c0_475, %c0_476, %c0_477] : memref<1x4x8x384xf32, #tpu.memory_space<vmem>>, vector<1x4x8x384xf32>
    %627 = vector.shape_cast %626 : vector<1x4x8x384xf32> to vector<4x8x384xf32>
    %cst_478 = arith.constant 0.000000e+00 : f32
    %628 = vector.broadcast %cst_478 : f32 to vector<2x384xf32>
    %cst_479 = arith.constant 0.000000e+00 : f32
    %629 = vector.broadcast %cst_479 : f32 to vector<8x384xf32>
    %c0_480 = arith.constant 0 : index
    %c0_481 = arith.constant 0 : index
    %c0_482 = arith.constant 0 : index
    %630 = vector.load %arg31[%c0_480, %c0_481, %c0_482] : memref<9x2x1xf32, #tpu.memory_space<vmem>>, vector<1x2x1xf32>
    %631 = vector.shape_cast %630 : vector<1x2x1xf32> to vector<2x1xf32>
    %632 = vector.extract_strided_slice %625 {offsets = [6, 0], sizes = [2, 384], strides = [1, 1]} : vector<8x384xf32> to vector<2x384xf32>
    %c19_i32_483 = arith.constant 19 : i32
    %633 = tpu.dynamic_rotate %632 by %c19_i32_483 dim 1 : vector<2x384xf32>, i32 -> vector<2x384xf32>
    %634 = vector.broadcast %631 : vector<2x1xf32> to vector<2x384xf32>
    %635 = arith.mulf %634, %633 : vector<2x384xf32>
    %636 = arith.addf %628, %635 : vector<2x384xf32>
    %c0_484 = arith.constant 0 : index
    %c0_485 = arith.constant 0 : index
    %c0_486 = arith.constant 0 : index
    %637 = vector.load %arg32[%c0_484, %c0_485, %c0_486] : memref<9x8x1xf32, #tpu.memory_space<vmem>>, vector<1x8x1xf32>
    %638 = vector.shape_cast %637 : vector<1x8x1xf32> to vector<8x1xf32>
    %639 = vector.extract_strided_slice %627 {offsets = [3, 0, 0], sizes = [1, 8, 384], strides = [1, 1, 1]} : vector<4x8x384xf32> to vector<1x8x384xf32>
    %640 = vector.shape_cast %639 : vector<1x8x384xf32> to vector<8x384xf32>
    %c19_i32_487 = arith.constant 19 : i32
    %641 = tpu.dynamic_rotate %640 by %c19_i32_487 dim 1 : vector<8x384xf32>, i32 -> vector<8x384xf32>
    %642 = vector.broadcast %638 : vector<8x1xf32> to vector<8x384xf32>
    %643 = arith.mulf %642, %641 : vector<8x384xf32>
    %644 = arith.addf %629, %643 : vector<8x384xf32>
    %c1_488 = arith.constant 1 : index
    %c0_489 = arith.constant 0 : index
    %c0_490 = arith.constant 0 : index
    %645 = vector.load %arg31[%c1_488, %c0_489, %c0_490] : memref<9x2x1xf32, #tpu.memory_space<vmem>>, vector<1x2x1xf32>
    %646 = vector.shape_cast %645 : vector<1x2x1xf32> to vector<2x1xf32>
    %647 = vector.extract_strided_slice %625 {offsets = [4, 0], sizes = [2, 384], strides = [1, 1]} : vector<8x384xf32> to vector<2x384xf32>
    %c18_i32_491 = arith.constant 18 : i32
    %648 = tpu.dynamic_rotate %647 by %c18_i32_491 dim 1 : vector<2x384xf32>, i32 -> vector<2x384xf32>
    %649 = vector.broadcast %646 : vector<2x1xf32> to vector<2x384xf32>
    %650 = arith.mulf %649, %648 : vector<2x384xf32>
    %651 = arith.addf %636, %650 : vector<2x384xf32>
    %c1_492 = arith.constant 1 : index
    %c0_493 = arith.constant 0 : index
    %c0_494 = arith.constant 0 : index
    %652 = vector.load %arg32[%c1_492, %c0_493, %c0_494] : memref<9x8x1xf32, #tpu.memory_space<vmem>>, vector<1x8x1xf32>
    %653 = vector.shape_cast %652 : vector<1x8x1xf32> to vector<8x1xf32>
    %654 = vector.extract_strided_slice %627 {offsets = [2, 0, 0], sizes = [1, 8, 384], strides = [1, 1, 1]} : vector<4x8x384xf32> to vector<1x8x384xf32>
    %655 = vector.shape_cast %654 : vector<1x8x384xf32> to vector<8x384xf32>
    %c18_i32_495 = arith.constant 18 : i32
    %656 = tpu.dynamic_rotate %655 by %c18_i32_495 dim 1 : vector<8x384xf32>, i32 -> vector<8x384xf32>
    %657 = vector.broadcast %653 : vector<8x1xf32> to vector<8x384xf32>
    %658 = arith.mulf %657, %656 : vector<8x384xf32>
    %659 = arith.addf %644, %658 : vector<8x384xf32>
    %c2_496 = arith.constant 2 : index
    %c0_497 = arith.constant 0 : index
    %c0_498 = arith.constant 0 : index
    %660 = vector.load %arg31[%c2_496, %c0_497, %c0_498] : memref<9x2x1xf32, #tpu.memory_space<vmem>>, vector<1x2x1xf32>
    %661 = vector.shape_cast %660 : vector<1x2x1xf32> to vector<2x1xf32>
    %662 = vector.extract_strided_slice %625 {offsets = [6, 0], sizes = [2, 384], strides = [1, 1]} : vector<8x384xf32> to vector<2x384xf32>
    %c18_i32_499 = arith.constant 18 : i32
    %663 = tpu.dynamic_rotate %662 by %c18_i32_499 dim 1 : vector<2x384xf32>, i32 -> vector<2x384xf32>
    %664 = vector.broadcast %661 : vector<2x1xf32> to vector<2x384xf32>
    %665 = arith.mulf %664, %663 : vector<2x384xf32>
    %666 = arith.addf %651, %665 : vector<2x384xf32>
    %c2_500 = arith.constant 2 : index
    %c0_501 = arith.constant 0 : index
    %c0_502 = arith.constant 0 : index
    %667 = vector.load %arg32[%c2_500, %c0_501, %c0_502] : memref<9x8x1xf32, #tpu.memory_space<vmem>>, vector<1x8x1xf32>
    %668 = vector.shape_cast %667 : vector<1x8x1xf32> to vector<8x1xf32>
    %669 = vector.extract_strided_slice %627 {offsets = [3, 0, 0], sizes = [1, 8, 384], strides = [1, 1, 1]} : vector<4x8x384xf32> to vector<1x8x384xf32>
    %670 = vector.shape_cast %669 : vector<1x8x384xf32> to vector<8x384xf32>
    %c18_i32_503 = arith.constant 18 : i32
    %671 = tpu.dynamic_rotate %670 by %c18_i32_503 dim 1 : vector<8x384xf32>, i32 -> vector<8x384xf32>
    %672 = vector.broadcast %668 : vector<8x1xf32> to vector<8x384xf32>
    %673 = arith.mulf %672, %671 : vector<8x384xf32>
    %674 = arith.addf %659, %673 : vector<8x384xf32>
    %c3_504 = arith.constant 3 : index
    %c0_505 = arith.constant 0 : index
    %c0_506 = arith.constant 0 : index
    %675 = vector.load %arg31[%c3_504, %c0_505, %c0_506] : memref<9x2x1xf32, #tpu.memory_space<vmem>>, vector<1x2x1xf32>
    %676 = vector.shape_cast %675 : vector<1x2x1xf32> to vector<2x1xf32>
    %677 = vector.extract_strided_slice %625 {offsets = [2, 0], sizes = [2, 384], strides = [1, 1]} : vector<8x384xf32> to vector<2x384xf32>
    %c1_i32_507 = arith.constant 1 : i32
    %678 = tpu.dynamic_rotate %677 by %c1_i32_507 dim 1 : vector<2x384xf32>, i32 -> vector<2x384xf32>
    %679 = vector.broadcast %676 : vector<2x1xf32> to vector<2x384xf32>
    %680 = arith.mulf %679, %678 : vector<2x384xf32>
    %681 = arith.addf %666, %680 : vector<2x384xf32>
    %c3_508 = arith.constant 3 : index
    %c0_509 = arith.constant 0 : index
    %c0_510 = arith.constant 0 : index
    %682 = vector.load %arg32[%c3_508, %c0_509, %c0_510] : memref<9x8x1xf32, #tpu.memory_space<vmem>>, vector<1x8x1xf32>
    %683 = vector.shape_cast %682 : vector<1x8x1xf32> to vector<8x1xf32>
    %684 = vector.extract_strided_slice %627 {offsets = [1, 0, 0], sizes = [1, 8, 384], strides = [1, 1, 1]} : vector<4x8x384xf32> to vector<1x8x384xf32>
    %685 = vector.shape_cast %684 : vector<1x8x384xf32> to vector<8x384xf32>
    %c1_i32_511 = arith.constant 1 : i32
    %686 = tpu.dynamic_rotate %685 by %c1_i32_511 dim 1 : vector<8x384xf32>, i32 -> vector<8x384xf32>
    %687 = vector.broadcast %683 : vector<8x1xf32> to vector<8x384xf32>
    %688 = arith.mulf %687, %686 : vector<8x384xf32>
    %689 = arith.addf %674, %688 : vector<8x384xf32>
    %c4_512 = arith.constant 4 : index
    %c0_513 = arith.constant 0 : index
    %c0_514 = arith.constant 0 : index
    %690 = vector.load %arg31[%c4_512, %c0_513, %c0_514] : memref<9x2x1xf32, #tpu.memory_space<vmem>>, vector<1x2x1xf32>
    %691 = vector.shape_cast %690 : vector<1x2x1xf32> to vector<2x1xf32>
    %692 = vector.extract_strided_slice %625 {offsets = [0, 0], sizes = [2, 384], strides = [1, 1]} : vector<8x384xf32> to vector<2x384xf32>
    %693 = vector.broadcast %691 : vector<2x1xf32> to vector<2x384xf32>
    %694 = arith.mulf %693, %692 : vector<2x384xf32>
    %695 = arith.addf %681, %694 : vector<2x384xf32>
    %c4_515 = arith.constant 4 : index
    %c0_516 = arith.constant 0 : index
    %c0_517 = arith.constant 0 : index
    %696 = vector.load %arg32[%c4_515, %c0_516, %c0_517] : memref<9x8x1xf32, #tpu.memory_space<vmem>>, vector<1x8x1xf32>
    %697 = vector.shape_cast %696 : vector<1x8x1xf32> to vector<8x1xf32>
    %698 = vector.extract_strided_slice %627 {offsets = [0, 0, 0], sizes = [1, 8, 384], strides = [1, 1, 1]} : vector<4x8x384xf32> to vector<1x8x384xf32>
    %699 = vector.shape_cast %698 : vector<1x8x384xf32> to vector<8x384xf32>
    %700 = vector.broadcast %697 : vector<8x1xf32> to vector<8x384xf32>
    %701 = arith.mulf %700, %699 : vector<8x384xf32>
    %702 = arith.addf %689, %701 : vector<8x384xf32>
    %c5_518 = arith.constant 5 : index
    %c0_519 = arith.constant 0 : index
    %c0_520 = arith.constant 0 : index
    %703 = vector.load %arg31[%c5_518, %c0_519, %c0_520] : memref<9x2x1xf32, #tpu.memory_space<vmem>>, vector<1x2x1xf32>
    %704 = vector.shape_cast %703 : vector<1x2x1xf32> to vector<2x1xf32>
    %705 = vector.extract_strided_slice %625 {offsets = [2, 0], sizes = [2, 384], strides = [1, 1]} : vector<8x384xf32> to vector<2x384xf32>
    %706 = vector.broadcast %704 : vector<2x1xf32> to vector<2x384xf32>
    %707 = arith.mulf %706, %705 : vector<2x384xf32>
    %708 = arith.addf %695, %707 : vector<2x384xf32>
    %c5_521 = arith.constant 5 : index
    %c0_522 = arith.constant 0 : index
    %c0_523 = arith.constant 0 : index
    %709 = vector.load %arg32[%c5_521, %c0_522, %c0_523] : memref<9x8x1xf32, #tpu.memory_space<vmem>>, vector<1x8x1xf32>
    %710 = vector.shape_cast %709 : vector<1x8x1xf32> to vector<8x1xf32>
    %711 = vector.extract_strided_slice %627 {offsets = [1, 0, 0], sizes = [1, 8, 384], strides = [1, 1, 1]} : vector<4x8x384xf32> to vector<1x8x384xf32>
    %712 = vector.shape_cast %711 : vector<1x8x384xf32> to vector<8x384xf32>
    %713 = vector.broadcast %710 : vector<8x1xf32> to vector<8x384xf32>
    %714 = arith.mulf %713, %712 : vector<8x384xf32>
    %715 = arith.addf %702, %714 : vector<8x384xf32>
    %c6_524 = arith.constant 6 : index
    %c0_525 = arith.constant 0 : index
    %c0_526 = arith.constant 0 : index
    %716 = vector.load %arg31[%c6_524, %c0_525, %c0_526] : memref<9x2x1xf32, #tpu.memory_space<vmem>>, vector<1x2x1xf32>
    %717 = vector.shape_cast %716 : vector<1x2x1xf32> to vector<2x1xf32>
    %718 = vector.extract_strided_slice %625 {offsets = [6, 0], sizes = [2, 384], strides = [1, 1]} : vector<8x384xf32> to vector<2x384xf32>
    %c1_i32_527 = arith.constant 1 : i32
    %719 = tpu.dynamic_rotate %718 by %c1_i32_527 dim 1 : vector<2x384xf32>, i32 -> vector<2x384xf32>
    %720 = vector.broadcast %717 : vector<2x1xf32> to vector<2x384xf32>
    %721 = arith.mulf %720, %719 : vector<2x384xf32>
    %722 = arith.addf %708, %721 : vector<2x384xf32>
    %c6_528 = arith.constant 6 : index
    %c0_529 = arith.constant 0 : index
    %c0_530 = arith.constant 0 : index
    %723 = vector.load %arg32[%c6_528, %c0_529, %c0_530] : memref<9x8x1xf32, #tpu.memory_space<vmem>>, vector<1x8x1xf32>
    %724 = vector.shape_cast %723 : vector<1x8x1xf32> to vector<8x1xf32>
    %725 = vector.extract_strided_slice %627 {offsets = [3, 0, 0], sizes = [1, 8, 384], strides = [1, 1, 1]} : vector<4x8x384xf32> to vector<1x8x384xf32>
    %726 = vector.shape_cast %725 : vector<1x8x384xf32> to vector<8x384xf32>
    %c1_i32_531 = arith.constant 1 : i32
    %727 = tpu.dynamic_rotate %726 by %c1_i32_531 dim 1 : vector<8x384xf32>, i32 -> vector<8x384xf32>
    %728 = vector.broadcast %724 : vector<8x1xf32> to vector<8x384xf32>
    %729 = arith.mulf %728, %727 : vector<8x384xf32>
    %730 = arith.addf %715, %729 : vector<8x384xf32>
    %c7_532 = arith.constant 7 : index
    %c0_533 = arith.constant 0 : index
    %c0_534 = arith.constant 0 : index
    %731 = vector.load %arg31[%c7_532, %c0_533, %c0_534] : memref<9x2x1xf32, #tpu.memory_space<vmem>>, vector<1x2x1xf32>
    %732 = vector.shape_cast %731 : vector<1x2x1xf32> to vector<2x1xf32>
    %733 = vector.extract_strided_slice %625 {offsets = [4, 0], sizes = [2, 384], strides = [1, 1]} : vector<8x384xf32> to vector<2x384xf32>
    %734 = vector.broadcast %732 : vector<2x1xf32> to vector<2x384xf32>
    %735 = arith.mulf %734, %733 : vector<2x384xf32>
    %736 = arith.addf %722, %735 : vector<2x384xf32>
    %c7_535 = arith.constant 7 : index
    %c0_536 = arith.constant 0 : index
    %c0_537 = arith.constant 0 : index
    %737 = vector.load %arg32[%c7_535, %c0_536, %c0_537] : memref<9x8x1xf32, #tpu.memory_space<vmem>>, vector<1x8x1xf32>
    %738 = vector.shape_cast %737 : vector<1x8x1xf32> to vector<8x1xf32>
    %739 = vector.extract_strided_slice %627 {offsets = [2, 0, 0], sizes = [1, 8, 384], strides = [1, 1, 1]} : vector<4x8x384xf32> to vector<1x8x384xf32>
    %740 = vector.shape_cast %739 : vector<1x8x384xf32> to vector<8x384xf32>
    %741 = vector.broadcast %738 : vector<8x1xf32> to vector<8x384xf32>
    %742 = arith.mulf %741, %740 : vector<8x384xf32>
    %743 = arith.addf %730, %742 : vector<8x384xf32>
    %c8_538 = arith.constant 8 : index
    %c0_539 = arith.constant 0 : index
    %c0_540 = arith.constant 0 : index
    %744 = vector.load %arg31[%c8_538, %c0_539, %c0_540] : memref<9x2x1xf32, #tpu.memory_space<vmem>>, vector<1x2x1xf32>
    %745 = vector.shape_cast %744 : vector<1x2x1xf32> to vector<2x1xf32>
    %746 = vector.extract_strided_slice %625 {offsets = [6, 0], sizes = [2, 384], strides = [1, 1]} : vector<8x384xf32> to vector<2x384xf32>
    %747 = vector.broadcast %745 : vector<2x1xf32> to vector<2x384xf32>
    %748 = arith.mulf %747, %746 : vector<2x384xf32>
    %749 = arith.addf %736, %748 : vector<2x384xf32>
    %c8_541 = arith.constant 8 : index
    %c0_542 = arith.constant 0 : index
    %c0_543 = arith.constant 0 : index
    %750 = vector.load %arg32[%c8_541, %c0_542, %c0_543] : memref<9x8x1xf32, #tpu.memory_space<vmem>>, vector<1x8x1xf32>
    %751 = vector.shape_cast %750 : vector<1x8x1xf32> to vector<8x1xf32>
    %752 = vector.extract_strided_slice %627 {offsets = [3, 0, 0], sizes = [1, 8, 384], strides = [1, 1, 1]} : vector<4x8x384xf32> to vector<1x8x384xf32>
    %753 = vector.shape_cast %752 : vector<1x8x384xf32> to vector<8x384xf32>
    %754 = vector.broadcast %751 : vector<8x1xf32> to vector<8x384xf32>
    %755 = arith.mulf %754, %753 : vector<8x384xf32>
    %756 = arith.addf %743, %755 : vector<8x384xf32>
    %c0_544 = arith.constant 0 : index
    %c0_545 = arith.constant 0 : index
    %757 = vector.load %arg33[%c0_544, %c0_545] : memref<2x1xf32, #tpu.memory_space<vmem>>, vector<2x1xf32>
    %758 = vector.broadcast %757 : vector<2x1xf32> to vector<2x384xf32>
    %759 = arith.mulf %758, %749 : vector<2x384xf32>
    %cst_546 = arith.constant dense<0.000000e+00> : vector<384xf32>
    %760 = vector.multi_reduction <add>, %759, %cst_546 [0] : vector<2x384xf32> to vector<384xf32>
    %761 = vector.shape_cast %760 : vector<384xf32> to vector<1x384xf32>
    %c0_547 = arith.constant 0 : index
    %c0_548 = arith.constant 0 : index
    %762 = vector.load %arg34[%c0_547, %c0_548] : memref<8x1xf32, #tpu.memory_space<vmem>>, vector<8x1xf32>
    %763 = vector.broadcast %762 : vector<8x1xf32> to vector<8x384xf32>
    %764 = arith.mulf %763, %756 : vector<8x384xf32>
    %cst_549 = arith.constant dense<0.000000e+00> : vector<384xf32>
    %765 = vector.multi_reduction <add>, %764, %cst_549 [0] : vector<8x384xf32> to vector<384xf32>
    %766 = vector.shape_cast %765 : vector<384xf32> to vector<1x384xf32>
    %767 = arith.addf %761, %766 : vector<1x384xf32>
    %c0_550 = arith.constant 0 : index
    %c0_551 = arith.constant 0 : index
    %768 = vector.load %arg35[%c0_550, %c0_551] : memref<1x1xf32, #tpu.memory_space<vmem>>, vector<1x1xf32>
    %769 = vector.broadcast %768 : vector<1x1xf32> to vector<1x384xf32>
    %770 = arith.addf %767, %769 : vector<1x384xf32>
    %771 = arith.negf %770 : vector<1x384xf32>
    %772 = math.exp %771 : vector<1x384xf32>
    %cst_552 = arith.constant 1.000000e+00 : f32
    %773 = vector.broadcast %cst_552 : f32 to vector<1x384xf32>
    %774 = arith.addf %773, %772 : vector<1x384xf32>
    %775 = arith.divf %773, %774 : vector<1x384xf32>
    %c0_553 = arith.constant 0 : index
    %c0_554 = arith.constant 0 : index
    %c0_555 = arith.constant 0 : index
    %776 = vector.load %arg36[%c0_553, %c0_554, %c0_555] : memref<1x4x384xf32, #tpu.memory_space<vmem>>, vector<1x1x384xf32>
    %777 = vector.shape_cast %776 : vector<1x1x384xf32> to vector<1x384xf32>
    %778 = vector.shape_cast %775 : vector<1x384xf32> to vector<1x1x384xf32>
    tpu.vector_store %arg36[%c0_553, %c0_554, %c0_555], %778 {strides = array<i32>} : memref<1x4x384xf32, #tpu.memory_space<vmem>>, vector<1x1x384xf32>,
    %cst_556 = arith.constant 0.000000e+00 : f32
    %779 = vector.broadcast %cst_556 : f32 to vector<2x384xf32>
    %cst_557 = arith.constant 0.000000e+00 : f32
    %780 = vector.broadcast %cst_557 : f32 to vector<8x384xf32>
    %c0_558 = arith.constant 0 : index
    %c0_559 = arith.constant 0 : index
    %c0_560 = arith.constant 0 : index
    %781 = vector.load %arg31[%c0_558, %c0_559, %c0_560] : memref<9x2x1xf32, #tpu.memory_space<vmem>>, vector<1x2x1xf32>
    %782 = vector.shape_cast %781 : vector<1x2x1xf32> to vector<2x1xf32>
    %783 = vector.extract_strided_slice %625 {offsets = [4, 0], sizes = [2, 384], strides = [1, 1]} : vector<8x384xf32> to vector<2x384xf32>
    %c18_i32_561 = arith.constant 18 : i32
    %784 = tpu.dynamic_rotate %783 by %c18_i32_561 dim 1 : vector<2x384xf32>, i32 -> vector<2x384xf32>
    %785 = vector.broadcast %782 : vector<2x1xf32> to vector<2x384xf32>
    %786 = arith.mulf %785, %784 : vector<2x384xf32>
    %787 = arith.addf %779, %786 : vector<2x384xf32>
    %c0_562 = arith.constant 0 : index
    %c0_563 = arith.constant 0 : index
    %c0_564 = arith.constant 0 : index
    %788 = vector.load %arg32[%c0_562, %c0_563, %c0_564] : memref<9x8x1xf32, #tpu.memory_space<vmem>>, vector<1x8x1xf32>
    %789 = vector.shape_cast %788 : vector<1x8x1xf32> to vector<8x1xf32>
    %790 = vector.extract_strided_slice %627 {offsets = [2, 0, 0], sizes = [1, 8, 384], strides = [1, 1, 1]} : vector<4x8x384xf32> to vector<1x8x384xf32>
    %791 = vector.shape_cast %790 : vector<1x8x384xf32> to vector<8x384xf32>
    %c18_i32_565 = arith.constant 18 : i32
    %792 = tpu.dynamic_rotate %791 by %c18_i32_565 dim 1 : vector<8x384xf32>, i32 -> vector<8x384xf32>
    %793 = vector.broadcast %789 : vector<8x1xf32> to vector<8x384xf32>
    %794 = arith.mulf %793, %792 : vector<8x384xf32>
    %795 = arith.addf %780, %794 : vector<8x384xf32>
    %c1_566 = arith.constant 1 : index
    %c0_567 = arith.constant 0 : index
    %c0_568 = arith.constant 0 : index
    %796 = vector.load %arg31[%c1_566, %c0_567, %c0_568] : memref<9x2x1xf32, #tpu.memory_space<vmem>>, vector<1x2x1xf32>
    %797 = vector.shape_cast %796 : vector<1x2x1xf32> to vector<2x1xf32>
    %798 = vector.extract_strided_slice %625 {offsets = [6, 0], sizes = [2, 384], strides = [1, 1]} : vector<8x384xf32> to vector<2x384xf32>
    %c18_i32_569 = arith.constant 18 : i32
    %799 = tpu.dynamic_rotate %798 by %c18_i32_569 dim 1 : vector<2x384xf32>, i32 -> vector<2x384xf32>
    %800 = vector.broadcast %797 : vector<2x1xf32> to vector<2x384xf32>
    %801 = arith.mulf %800, %799 : vector<2x384xf32>
    %802 = arith.addf %787, %801 : vector<2x384xf32>
    %c1_570 = arith.constant 1 : index
    %c0_571 = arith.constant 0 : index
    %c0_572 = arith.constant 0 : index
    %803 = vector.load %arg32[%c1_570, %c0_571, %c0_572] : memref<9x8x1xf32, #tpu.memory_space<vmem>>, vector<1x8x1xf32>
    %804 = vector.shape_cast %803 : vector<1x8x1xf32> to vector<8x1xf32>
    %805 = vector.extract_strided_slice %627 {offsets = [3, 0, 0], sizes = [1, 8, 384], strides = [1, 1, 1]} : vector<4x8x384xf32> to vector<1x8x384xf32>
    %806 = vector.shape_cast %805 : vector<1x8x384xf32> to vector<8x384xf32>
    %c18_i32_573 = arith.constant 18 : i32
    %807 = tpu.dynamic_rotate %806 by %c18_i32_573 dim 1 : vector<8x384xf32>, i32 -> vector<8x384xf32>
    %808 = vector.broadcast %804 : vector<8x1xf32> to vector<8x384xf32>
    %809 = arith.mulf %808, %807 : vector<8x384xf32>
    %810 = arith.addf %795, %809 : vector<8x384xf32>
    %c2_574 = arith.constant 2 : index
    %c0_575 = arith.constant 0 : index
    %c0_576 = arith.constant 0 : index
    %811 = vector.load %arg31[%c2_574, %c0_575, %c0_576] : memref<9x2x1xf32, #tpu.memory_space<vmem>>, vector<1x2x1xf32>
    %812 = vector.shape_cast %811 : vector<1x2x1xf32> to vector<2x1xf32>
    %813 = vector.extract_strided_slice %625 {offsets = [4, 0], sizes = [2, 384], strides = [1, 1]} : vector<8x384xf32> to vector<2x384xf32>
    %c17_i32_577 = arith.constant 17 : i32
    %814 = tpu.dynamic_rotate %813 by %c17_i32_577 dim 1 : vector<2x384xf32>, i32 -> vector<2x384xf32>
    %815 = vector.broadcast %812 : vector<2x1xf32> to vector<2x384xf32>
    %816 = arith.mulf %815, %814 : vector<2x384xf32>
    %817 = arith.addf %802, %816 : vector<2x384xf32>
    %c2_578 = arith.constant 2 : index
    %c0_579 = arith.constant 0 : index
    %c0_580 = arith.constant 0 : index
    %818 = vector.load %arg32[%c2_578, %c0_579, %c0_580] : memref<9x8x1xf32, #tpu.memory_space<vmem>>, vector<1x8x1xf32>
    %819 = vector.shape_cast %818 : vector<1x8x1xf32> to vector<8x1xf32>
    %820 = vector.extract_strided_slice %627 {offsets = [2, 0, 0], sizes = [1, 8, 384], strides = [1, 1, 1]} : vector<4x8x384xf32> to vector<1x8x384xf32>
    %821 = vector.shape_cast %820 : vector<1x8x384xf32> to vector<8x384xf32>
    %c17_i32_581 = arith.constant 17 : i32
    %822 = tpu.dynamic_rotate %821 by %c17_i32_581 dim 1 : vector<8x384xf32>, i32 -> vector<8x384xf32>
    %823 = vector.broadcast %819 : vector<8x1xf32> to vector<8x384xf32>
    %824 = arith.mulf %823, %822 : vector<8x384xf32>
    %825 = arith.addf %810, %824 : vector<8x384xf32>
    %c3_582 = arith.constant 3 : index
    %c0_583 = arith.constant 0 : index
    %c0_584 = arith.constant 0 : index
    %826 = vector.load %arg31[%c3_582, %c0_583, %c0_584] : memref<9x2x1xf32, #tpu.memory_space<vmem>>, vector<1x2x1xf32>
    %827 = vector.shape_cast %826 : vector<1x2x1xf32> to vector<2x1xf32>
    %828 = vector.extract_strided_slice %625 {offsets = [0, 0], sizes = [2, 384], strides = [1, 1]} : vector<8x384xf32> to vector<2x384xf32>
    %829 = vector.broadcast %827 : vector<2x1xf32> to vector<2x384xf32>
    %830 = arith.mulf %829, %828 : vector<2x384xf32>
    %831 = arith.addf %817, %830 : vector<2x384xf32>
    %c3_585 = arith.constant 3 : index
    %c0_586 = arith.constant 0 : index
    %c0_587 = arith.constant 0 : index
    %832 = vector.load %arg32[%c3_585, %c0_586, %c0_587] : memref<9x8x1xf32, #tpu.memory_space<vmem>>, vector<1x8x1xf32>
    %833 = vector.shape_cast %832 : vector<1x8x1xf32> to vector<8x1xf32>
    %834 = vector.extract_strided_slice %627 {offsets = [0, 0, 0], sizes = [1, 8, 384], strides = [1, 1, 1]} : vector<4x8x384xf32> to vector<1x8x384xf32>
    %835 = vector.shape_cast %834 : vector<1x8x384xf32> to vector<8x384xf32>
    %836 = vector.broadcast %833 : vector<8x1xf32> to vector<8x384xf32>
    %837 = arith.mulf %836, %835 : vector<8x384xf32>
    %838 = arith.addf %825, %837 : vector<8x384xf32>
    %c4_588 = arith.constant 4 : index
    %c0_589 = arith.constant 0 : index
    %c0_590 = arith.constant 0 : index
    %839 = vector.load %arg31[%c4_588, %c0_589, %c0_590] : memref<9x2x1xf32, #tpu.memory_space<vmem>>, vector<1x2x1xf32>
    %840 = vector.shape_cast %839 : vector<1x2x1xf32> to vector<2x1xf32>
    %841 = vector.extract_strided_slice %625 {offsets = [2, 0], sizes = [2, 384], strides = [1, 1]} : vector<8x384xf32> to vector<2x384xf32>
    %842 = vector.broadcast %840 : vector<2x1xf32> to vector<2x384xf32>
    %843 = arith.mulf %842, %841 : vector<2x384xf32>
    %844 = arith.addf %831, %843 : vector<2x384xf32>
    %c4_591 = arith.constant 4 : index
    %c0_592 = arith.constant 0 : index
    %c0_593 = arith.constant 0 : index
    %845 = vector.load %arg32[%c4_591, %c0_592, %c0_593] : memref<9x8x1xf32, #tpu.memory_space<vmem>>, vector<1x8x1xf32>
    %846 = vector.shape_cast %845 : vector<1x8x1xf32> to vector<8x1xf32>
    %847 = vector.extract_strided_slice %627 {offsets = [1, 0, 0], sizes = [1, 8, 384], strides = [1, 1, 1]} : vector<4x8x384xf32> to vector<1x8x384xf32>
    %848 = vector.shape_cast %847 : vector<1x8x384xf32> to vector<8x384xf32>
    %849 = vector.broadcast %846 : vector<8x1xf32> to vector<8x384xf32>
    %850 = arith.mulf %849, %848 : vector<8x384xf32>
    %851 = arith.addf %838, %850 : vector<8x384xf32>
    %c5_594 = arith.constant 5 : index
    %c0_595 = arith.constant 0 : index
    %c0_596 = arith.constant 0 : index
    %852 = vector.load %arg31[%c5_594, %c0_595, %c0_596] : memref<9x2x1xf32, #tpu.memory_space<vmem>>, vector<1x2x1xf32>
    %853 = vector.shape_cast %852 : vector<1x2x1xf32> to vector<2x1xf32>
    %854 = vector.extract_strided_slice %625 {offsets = [0, 0], sizes = [2, 384], strides = [1, 1]} : vector<8x384xf32> to vector<2x384xf32>
    %c383_i32_597 = arith.constant 383 : i32
    %855 = tpu.dynamic_rotate %854 by %c383_i32_597 dim 1 : vector<2x384xf32>, i32 -> vector<2x384xf32>
    %856 = vector.broadcast %853 : vector<2x1xf32> to vector<2x384xf32>
    %857 = arith.mulf %856, %855 : vector<2x384xf32>
    %858 = arith.addf %844, %857 : vector<2x384xf32>
    %c5_598 = arith.constant 5 : index
    %c0_599 = arith.constant 0 : index
    %c0_600 = arith.constant 0 : index
    %859 = vector.load %arg32[%c5_598, %c0_599, %c0_600] : memref<9x8x1xf32, #tpu.memory_space<vmem>>, vector<1x8x1xf32>
    %860 = vector.shape_cast %859 : vector<1x8x1xf32> to vector<8x1xf32>
    %861 = vector.extract_strided_slice %627 {offsets = [0, 0, 0], sizes = [1, 8, 384], strides = [1, 1, 1]} : vector<4x8x384xf32> to vector<1x8x384xf32>
    %862 = vector.shape_cast %861 : vector<1x8x384xf32> to vector<8x384xf32>
    %c383_i32_601 = arith.constant 383 : i32
    %863 = tpu.dynamic_rotate %862 by %c383_i32_601 dim 1 : vector<8x384xf32>, i32 -> vector<8x384xf32>
    %864 = vector.broadcast %860 : vector<8x1xf32> to vector<8x384xf32>
    %865 = arith.mulf %864, %863 : vector<8x384xf32>
    %866 = arith.addf %851, %865 : vector<8x384xf32>
    %c6_602 = arith.constant 6 : index
    %c0_603 = arith.constant 0 : index
    %c0_604 = arith.constant 0 : index
    %867 = vector.load %arg31[%c6_602, %c0_603, %c0_604] : memref<9x2x1xf32, #tpu.memory_space<vmem>>, vector<1x2x1xf32>
    %868 = vector.shape_cast %867 : vector<1x2x1xf32> to vector<2x1xf32>
    %869 = vector.extract_strided_slice %625 {offsets = [4, 0], sizes = [2, 384], strides = [1, 1]} : vector<8x384xf32> to vector<2x384xf32>
    %870 = vector.broadcast %868 : vector<2x1xf32> to vector<2x384xf32>
    %871 = arith.mulf %870, %869 : vector<2x384xf32>
    %872 = arith.addf %858, %871 : vector<2x384xf32>
    %c6_605 = arith.constant 6 : index
    %c0_606 = arith.constant 0 : index
    %c0_607 = arith.constant 0 : index
    %873 = vector.load %arg32[%c6_605, %c0_606, %c0_607] : memref<9x8x1xf32, #tpu.memory_space<vmem>>, vector<1x8x1xf32>
    %874 = vector.shape_cast %873 : vector<1x8x1xf32> to vector<8x1xf32>
    %875 = vector.extract_strided_slice %627 {offsets = [2, 0, 0], sizes = [1, 8, 384], strides = [1, 1, 1]} : vector<4x8x384xf32> to vector<1x8x384xf32>
    %876 = vector.shape_cast %875 : vector<1x8x384xf32> to vector<8x384xf32>
    %877 = vector.broadcast %874 : vector<8x1xf32> to vector<8x384xf32>
    %878 = arith.mulf %877, %876 : vector<8x384xf32>
    %879 = arith.addf %866, %878 : vector<8x384xf32>
    %c7_608 = arith.constant 7 : index
    %c0_609 = arith.constant 0 : index
    %c0_610 = arith.constant 0 : index
    %880 = vector.load %arg31[%c7_608, %c0_609, %c0_610] : memref<9x2x1xf32, #tpu.memory_space<vmem>>, vector<1x2x1xf32>
    %881 = vector.shape_cast %880 : vector<1x2x1xf32> to vector<2x1xf32>
    %882 = vector.extract_strided_slice %625 {offsets = [6, 0], sizes = [2, 384], strides = [1, 1]} : vector<8x384xf32> to vector<2x384xf32>
    %883 = vector.broadcast %881 : vector<2x1xf32> to vector<2x384xf32>
    %884 = arith.mulf %883, %882 : vector<2x384xf32>
    %885 = arith.addf %872, %884 : vector<2x384xf32>
    %c7_611 = arith.constant 7 : index
    %c0_612 = arith.constant 0 : index
    %c0_613 = arith.constant 0 : index
    %886 = vector.load %arg32[%c7_611, %c0_612, %c0_613] : memref<9x8x1xf32, #tpu.memory_space<vmem>>, vector<1x8x1xf32>
    %887 = vector.shape_cast %886 : vector<1x8x1xf32> to vector<8x1xf32>
    %888 = vector.extract_strided_slice %627 {offsets = [3, 0, 0], sizes = [1, 8, 384], strides = [1, 1, 1]} : vector<4x8x384xf32> to vector<1x8x384xf32>
    %889 = vector.shape_cast %888 : vector<1x8x384xf32> to vector<8x384xf32>
    %890 = vector.broadcast %887 : vector<8x1xf32> to vector<8x384xf32>
    %891 = arith.mulf %890, %889 : vector<8x384xf32>
    %892 = arith.addf %879, %891 : vector<8x384xf32>
    %c8_614 = arith.constant 8 : index
    %c0_615 = arith.constant 0 : index
    %c0_616 = arith.constant 0 : index
    %893 = vector.load %arg31[%c8_614, %c0_615, %c0_616] : memref<9x2x1xf32, #tpu.memory_space<vmem>>, vector<1x2x1xf32>
    %894 = vector.shape_cast %893 : vector<1x2x1xf32> to vector<2x1xf32>
    %895 = vector.extract_strided_slice %625 {offsets = [4, 0], sizes = [2, 384], strides = [1, 1]} : vector<8x384xf32> to vector<2x384xf32>
    %c383_i32_617 = arith.constant 383 : i32
    %896 = tpu.dynamic_rotate %895 by %c383_i32_617 dim 1 : vector<2x384xf32>, i32 -> vector<2x384xf32>
    %897 = vector.broadcast %894 : vector<2x1xf32> to vector<2x384xf32>
    %898 = arith.mulf %897, %896 : vector<2x384xf32>
    %899 = arith.addf %885, %898 : vector<2x384xf32>
    %c8_618 = arith.constant 8 : index
    %c0_619 = arith.constant 0 : index
    %c0_620 = arith.constant 0 : index
    %900 = vector.load %arg32[%c8_618, %c0_619, %c0_620] : memref<9x8x1xf32, #tpu.memory_space<vmem>>, vector<1x8x1xf32>
    %901 = vector.shape_cast %900 : vector<1x8x1xf32> to vector<8x1xf32>
    %902 = vector.extract_strided_slice %627 {offsets = [2, 0, 0], sizes = [1, 8, 384], strides = [1, 1, 1]} : vector<4x8x384xf32> to vector<1x8x384xf32>
    %903 = vector.shape_cast %902 : vector<1x8x384xf32> to vector<8x384xf32>
    %c383_i32_621 = arith.constant 383 : i32
    %904 = tpu.dynamic_rotate %903 by %c383_i32_621 dim 1 : vector<8x384xf32>, i32 -> vector<8x384xf32>
    %905 = vector.broadcast %901 : vector<8x1xf32> to vector<8x384xf32>
    %906 = arith.mulf %905, %904 : vector<8x384xf32>
    %907 = arith.addf %892, %906 : vector<8x384xf32>
    %c0_622 = arith.constant 0 : index
    %c0_623 = arith.constant 0 : index
    %908 = vector.load %arg33[%c0_622, %c0_623] : memref<2x1xf32, #tpu.memory_space<vmem>>, vector<2x1xf32>
    %909 = vector.broadcast %908 : vector<2x1xf32> to vector<2x384xf32>
    %910 = arith.mulf %909, %899 : vector<2x384xf32>
    %cst_624 = arith.constant dense<0.000000e+00> : vector<384xf32>
    %911 = vector.multi_reduction <add>, %910, %cst_624 [0] : vector<2x384xf32> to vector<384xf32>
    %912 = vector.shape_cast %911 : vector<384xf32> to vector<1x384xf32>
    %c0_625 = arith.constant 0 : index
    %c0_626 = arith.constant 0 : index
    %913 = vector.load %arg34[%c0_625, %c0_626] : memref<8x1xf32, #tpu.memory_space<vmem>>, vector<8x1xf32>
    %914 = vector.broadcast %913 : vector<8x1xf32> to vector<8x384xf32>
    %915 = arith.mulf %914, %907 : vector<8x384xf32>
    %cst_627 = arith.constant dense<0.000000e+00> : vector<384xf32>
    %916 = vector.multi_reduction <add>, %915, %cst_627 [0] : vector<8x384xf32> to vector<384xf32>
    %917 = vector.shape_cast %916 : vector<384xf32> to vector<1x384xf32>
    %918 = arith.addf %912, %917 : vector<1x384xf32>
    %c0_628 = arith.constant 0 : index
    %c0_629 = arith.constant 0 : index
    %919 = vector.load %arg35[%c0_628, %c0_629] : memref<1x1xf32, #tpu.memory_space<vmem>>, vector<1x1xf32>
    %920 = vector.broadcast %919 : vector<1x1xf32> to vector<1x384xf32>
    %921 = arith.addf %918, %920 : vector<1x384xf32>
    %922 = arith.negf %921 : vector<1x384xf32>
    %923 = math.exp %922 : vector<1x384xf32>
    %cst_630 = arith.constant 1.000000e+00 : f32
    %924 = vector.broadcast %cst_630 : f32 to vector<1x384xf32>
    %925 = arith.addf %924, %923 : vector<1x384xf32>
    %926 = arith.divf %924, %925 : vector<1x384xf32>
    %c0_631 = arith.constant 0 : index
    %c1_632 = arith.constant 1 : index
    %c0_633 = arith.constant 0 : index
    %927 = vector.load %arg36[%c0_631, %c1_632, %c0_633] : memref<1x4x384xf32, #tpu.memory_space<vmem>>, vector<1x1x384xf32>
    %928 = vector.shape_cast %927 : vector<1x1x384xf32> to vector<1x384xf32>
    %929 = vector.shape_cast %926 : vector<1x384xf32> to vector<1x1x384xf32>
    tpu.vector_store %arg36[%c0_631, %c1_632, %c0_633], %929 {strides = array<i32>} : memref<1x4x384xf32, #tpu.memory_space<vmem>>, vector<1x1x384xf32>,
    %cst_634 = arith.constant 0.000000e+00 : f32
    %930 = vector.broadcast %cst_634 : f32 to vector<2x384xf32>
    %cst_635 = arith.constant 0.000000e+00 : f32
    %931 = vector.broadcast %cst_635 : f32 to vector<8x384xf32>
    %c0_636 = arith.constant 0 : index
    %c0_637 = arith.constant 0 : index
    %c0_638 = arith.constant 0 : index
    %932 = vector.load %arg31[%c0_636, %c0_637, %c0_638] : memref<9x2x1xf32, #tpu.memory_space<vmem>>, vector<1x2x1xf32>
    %933 = vector.shape_cast %932 : vector<1x2x1xf32> to vector<2x1xf32>
    %934 = vector.extract_strided_slice %625 {offsets = [2, 0], sizes = [2, 384], strides = [1, 1]} : vector<8x384xf32> to vector<2x384xf32>
    %c1_i32_639 = arith.constant 1 : i32
    %935 = tpu.dynamic_rotate %934 by %c1_i32_639 dim 1 : vector<2x384xf32>, i32 -> vector<2x384xf32>
    %936 = vector.broadcast %933 : vector<2x1xf32> to vector<2x384xf32>
    %937 = arith.mulf %936, %935 : vector<2x384xf32>
    %938 = arith.addf %930, %937 : vector<2x384xf32>
    %c0_640 = arith.constant 0 : index
    %c0_641 = arith.constant 0 : index
    %c0_642 = arith.constant 0 : index
    %939 = vector.load %arg32[%c0_640, %c0_641, %c0_642] : memref<9x8x1xf32, #tpu.memory_space<vmem>>, vector<1x8x1xf32>
    %940 = vector.shape_cast %939 : vector<1x8x1xf32> to vector<8x1xf32>
    %941 = vector.extract_strided_slice %627 {offsets = [1, 0, 0], sizes = [1, 8, 384], strides = [1, 1, 1]} : vector<4x8x384xf32> to vector<1x8x384xf32>
    %942 = vector.shape_cast %941 : vector<1x8x384xf32> to vector<8x384xf32>
    %c1_i32_643 = arith.constant 1 : i32
    %943 = tpu.dynamic_rotate %942 by %c1_i32_643 dim 1 : vector<8x384xf32>, i32 -> vector<8x384xf32>
    %944 = vector.broadcast %940 : vector<8x1xf32> to vector<8x384xf32>
    %945 = arith.mulf %944, %943 : vector<8x384xf32>
    %946 = arith.addf %931, %945 : vector<8x384xf32>
    %c1_644 = arith.constant 1 : index
    %c0_645 = arith.constant 0 : index
    %c0_646 = arith.constant 0 : index
    %947 = vector.load %arg31[%c1_644, %c0_645, %c0_646] : memref<9x2x1xf32, #tpu.memory_space<vmem>>, vector<1x2x1xf32>
    %948 = vector.shape_cast %947 : vector<1x2x1xf32> to vector<2x1xf32>
    %949 = vector.extract_strided_slice %625 {offsets = [0, 0], sizes = [2, 384], strides = [1, 1]} : vector<8x384xf32> to vector<2x384xf32>
    %950 = vector.broadcast %948 : vector<2x1xf32> to vector<2x384xf32>
    %951 = arith.mulf %950, %949 : vector<2x384xf32>
    %952 = arith.addf %938, %951 : vector<2x384xf32>
    %c1_647 = arith.constant 1 : index
    %c0_648 = arith.constant 0 : index
    %c0_649 = arith.constant 0 : index
    %953 = vector.load %arg32[%c1_647, %c0_648, %c0_649] : memref<9x8x1xf32, #tpu.memory_space<vmem>>, vector<1x8x1xf32>
    %954 = vector.shape_cast %953 : vector<1x8x1xf32> to vector<8x1xf32>
    %955 = vector.extract_strided_slice %627 {offsets = [0, 0, 0], sizes = [1, 8, 384], strides = [1, 1, 1]} : vector<4x8x384xf32> to vector<1x8x384xf32>
    %956 = vector.shape_cast %955 : vector<1x8x384xf32> to vector<8x384xf32>
    %957 = vector.broadcast %954 : vector<8x1xf32> to vector<8x384xf32>
    %958 = arith.mulf %957, %956 : vector<8x384xf32>
    %959 = arith.addf %946, %958 : vector<8x384xf32>
    %c2_650 = arith.constant 2 : index
    %c0_651 = arith.constant 0 : index
    %c0_652 = arith.constant 0 : index
    %960 = vector.load %arg31[%c2_650, %c0_651, %c0_652] : memref<9x2x1xf32, #tpu.memory_space<vmem>>, vector<1x2x1xf32>
    %961 = vector.shape_cast %960 : vector<1x2x1xf32> to vector<2x1xf32>
    %962 = vector.extract_strided_slice %625 {offsets = [2, 0], sizes = [2, 384], strides = [1, 1]} : vector<8x384xf32> to vector<2x384xf32>
    %963 = vector.broadcast %961 : vector<2x1xf32> to vector<2x384xf32>
    %964 = arith.mulf %963, %962 : vector<2x384xf32>
    %965 = arith.addf %952, %964 : vector<2x384xf32>
    %c2_653 = arith.constant 2 : index
    %c0_654 = arith.constant 0 : index
    %c0_655 = arith.constant 0 : index
    %966 = vector.load %arg32[%c2_653, %c0_654, %c0_655] : memref<9x8x1xf32, #tpu.memory_space<vmem>>, vector<1x8x1xf32>
    %967 = vector.shape_cast %966 : vector<1x8x1xf32> to vector<8x1xf32>
    %968 = vector.extract_strided_slice %627 {offsets = [1, 0, 0], sizes = [1, 8, 384], strides = [1, 1, 1]} : vector<4x8x384xf32> to vector<1x8x384xf32>
    %969 = vector.shape_cast %968 : vector<1x8x384xf32> to vector<8x384xf32>
    %970 = vector.broadcast %967 : vector<8x1xf32> to vector<8x384xf32>
    %971 = arith.mulf %970, %969 : vector<8x384xf32>
    %972 = arith.addf %959, %971 : vector<8x384xf32>
    %c3_656 = arith.constant 3 : index
    %c0_657 = arith.constant 0 : index
    %c0_658 = arith.constant 0 : index
    %973 = vector.load %arg31[%c3_656, %c0_657, %c0_658] : memref<9x2x1xf32, #tpu.memory_space<vmem>>, vector<1x2x1xf32>
    %974 = vector.shape_cast %973 : vector<1x2x1xf32> to vector<2x1xf32>
    %975 = vector.extract_strided_slice %625 {offsets = [6, 0], sizes = [2, 384], strides = [1, 1]} : vector<8x384xf32> to vector<2x384xf32>
    %c1_i32_659 = arith.constant 1 : i32
    %976 = tpu.dynamic_rotate %975 by %c1_i32_659 dim 1 : vector<2x384xf32>, i32 -> vector<2x384xf32>
    %977 = vector.broadcast %974 : vector<2x1xf32> to vector<2x384xf32>
    %978 = arith.mulf %977, %976 : vector<2x384xf32>
    %979 = arith.addf %965, %978 : vector<2x384xf32>
    %c3_660 = arith.constant 3 : index
    %c0_661 = arith.constant 0 : index
    %c0_662 = arith.constant 0 : index
    %980 = vector.load %arg32[%c3_660, %c0_661, %c0_662] : memref<9x8x1xf32, #tpu.memory_space<vmem>>, vector<1x8x1xf32>
    %981 = vector.shape_cast %980 : vector<1x8x1xf32> to vector<8x1xf32>
    %982 = vector.extract_strided_slice %627 {offsets = [3, 0, 0], sizes = [1, 8, 384], strides = [1, 1, 1]} : vector<4x8x384xf32> to vector<1x8x384xf32>
    %983 = vector.shape_cast %982 : vector<1x8x384xf32> to vector<8x384xf32>
    %c1_i32_663 = arith.constant 1 : i32
    %984 = tpu.dynamic_rotate %983 by %c1_i32_663 dim 1 : vector<8x384xf32>, i32 -> vector<8x384xf32>
    %985 = vector.broadcast %981 : vector<8x1xf32> to vector<8x384xf32>
    %986 = arith.mulf %985, %984 : vector<8x384xf32>
    %987 = arith.addf %972, %986 : vector<8x384xf32>
    %c4_664 = arith.constant 4 : index
    %c0_665 = arith.constant 0 : index
    %c0_666 = arith.constant 0 : index
    %988 = vector.load %arg31[%c4_664, %c0_665, %c0_666] : memref<9x2x1xf32, #tpu.memory_space<vmem>>, vector<1x2x1xf32>
    %989 = vector.shape_cast %988 : vector<1x2x1xf32> to vector<2x1xf32>
    %990 = vector.extract_strided_slice %625 {offsets = [4, 0], sizes = [2, 384], strides = [1, 1]} : vector<8x384xf32> to vector<2x384xf32>
    %991 = vector.broadcast %989 : vector<2x1xf32> to vector<2x384xf32>
    %992 = arith.mulf %991, %990 : vector<2x384xf32>
    %993 = arith.addf %979, %992 : vector<2x384xf32>
    %c4_667 = arith.constant 4 : index
    %c0_668 = arith.constant 0 : index
    %c0_669 = arith.constant 0 : index
    %994 = vector.load %arg32[%c4_667, %c0_668, %c0_669] : memref<9x8x1xf32, #tpu.memory_space<vmem>>, vector<1x8x1xf32>
    %995 = vector.shape_cast %994 : vector<1x8x1xf32> to vector<8x1xf32>
    %996 = vector.extract_strided_slice %627 {offsets = [2, 0, 0], sizes = [1, 8, 384], strides = [1, 1, 1]} : vector<4x8x384xf32> to vector<1x8x384xf32>
    %997 = vector.shape_cast %996 : vector<1x8x384xf32> to vector<8x384xf32>
    %998 = vector.broadcast %995 : vector<8x1xf32> to vector<8x384xf32>
    %999 = arith.mulf %998, %997 : vector<8x384xf32>
    %1000 = arith.addf %987, %999 : vector<8x384xf32>
    %c5_670 = arith.constant 5 : index
    %c0_671 = arith.constant 0 : index
    %c0_672 = arith.constant 0 : index
    %1001 = vector.load %arg31[%c5_670, %c0_671, %c0_672] : memref<9x2x1xf32, #tpu.memory_space<vmem>>, vector<1x2x1xf32>
    %1002 = vector.shape_cast %1001 : vector<1x2x1xf32> to vector<2x1xf32>
    %1003 = vector.extract_strided_slice %625 {offsets = [6, 0], sizes = [2, 384], strides = [1, 1]} : vector<8x384xf32> to vector<2x384xf32>
    %1004 = vector.broadcast %1002 : vector<2x1xf32> to vector<2x384xf32>
    %1005 = arith.mulf %1004, %1003 : vector<2x384xf32>
    %1006 = arith.addf %993, %1005 : vector<2x384xf32>
    %c5_673 = arith.constant 5 : index
    %c0_674 = arith.constant 0 : index
    %c0_675 = arith.constant 0 : index
    %1007 = vector.load %arg32[%c5_673, %c0_674, %c0_675] : memref<9x8x1xf32, #tpu.memory_space<vmem>>, vector<1x8x1xf32>
    %1008 = vector.shape_cast %1007 : vector<1x8x1xf32> to vector<8x1xf32>
    %1009 = vector.extract_strided_slice %627 {offsets = [3, 0, 0], sizes = [1, 8, 384], strides = [1, 1, 1]} : vector<4x8x384xf32> to vector<1x8x384xf32>
    %1010 = vector.shape_cast %1009 : vector<1x8x384xf32> to vector<8x384xf32>
    %1011 = vector.broadcast %1008 : vector<8x1xf32> to vector<8x384xf32>
    %1012 = arith.mulf %1011, %1010 : vector<8x384xf32>
    %1013 = arith.addf %1000, %1012 : vector<8x384xf32>
    %c6_676 = arith.constant 6 : index
    %c0_677 = arith.constant 0 : index
    %c0_678 = arith.constant 0 : index
    %1014 = vector.load %arg31[%c6_676, %c0_677, %c0_678] : memref<9x2x1xf32, #tpu.memory_space<vmem>>, vector<1x2x1xf32>
    %1015 = vector.shape_cast %1014 : vector<1x2x1xf32> to vector<2x1xf32>
    %1016 = vector.extract_strided_slice %625 {offsets = [2, 0], sizes = [2, 384], strides = [1, 1]} : vector<8x384xf32> to vector<2x384xf32>
    %c367_i32_679 = arith.constant 367 : i32
    %1017 = tpu.dynamic_rotate %1016 by %c367_i32_679 dim 1 : vector<2x384xf32>, i32 -> vector<2x384xf32>
    %1018 = vector.broadcast %1015 : vector<2x1xf32> to vector<2x384xf32>
    %1019 = arith.mulf %1018, %1017 : vector<2x384xf32>
    %1020 = arith.addf %1006, %1019 : vector<2x384xf32>
    %c6_680 = arith.constant 6 : index
    %c0_681 = arith.constant 0 : index
    %c0_682 = arith.constant 0 : index
    %1021 = vector.load %arg32[%c6_680, %c0_681, %c0_682] : memref<9x8x1xf32, #tpu.memory_space<vmem>>, vector<1x8x1xf32>
    %1022 = vector.shape_cast %1021 : vector<1x8x1xf32> to vector<8x1xf32>
    %1023 = vector.extract_strided_slice %627 {offsets = [1, 0, 0], sizes = [1, 8, 384], strides = [1, 1, 1]} : vector<4x8x384xf32> to vector<1x8x384xf32>
    %1024 = vector.shape_cast %1023 : vector<1x8x384xf32> to vector<8x384xf32>
    %c367_i32_683 = arith.constant 367 : i32
    %1025 = tpu.dynamic_rotate %1024 by %c367_i32_683 dim 1 : vector<8x384xf32>, i32 -> vector<8x384xf32>
    %1026 = vector.broadcast %1022 : vector<8x1xf32> to vector<8x384xf32>
    %1027 = arith.mulf %1026, %1025 : vector<8x384xf32>
    %1028 = arith.addf %1013, %1027 : vector<8x384xf32>
    %c7_684 = arith.constant 7 : index
    %c0_685 = arith.constant 0 : index
    %c0_686 = arith.constant 0 : index
    %1029 = vector.load %arg31[%c7_684, %c0_685, %c0_686] : memref<9x2x1xf32, #tpu.memory_space<vmem>>, vector<1x2x1xf32>
    %1030 = vector.shape_cast %1029 : vector<1x2x1xf32> to vector<2x1xf32>
    %1031 = vector.extract_strided_slice %625 {offsets = [0, 0], sizes = [2, 384], strides = [1, 1]} : vector<8x384xf32> to vector<2x384xf32>
    %c366_i32_687 = arith.constant 366 : i32
    %1032 = tpu.dynamic_rotate %1031 by %c366_i32_687 dim 1 : vector<2x384xf32>, i32 -> vector<2x384xf32>
    %1033 = vector.broadcast %1030 : vector<2x1xf32> to vector<2x384xf32>
    %1034 = arith.mulf %1033, %1032 : vector<2x384xf32>
    %1035 = arith.addf %1020, %1034 : vector<2x384xf32>
    %c7_688 = arith.constant 7 : index
    %c0_689 = arith.constant 0 : index
    %c0_690 = arith.constant 0 : index
    %1036 = vector.load %arg32[%c7_688, %c0_689, %c0_690] : memref<9x8x1xf32, #tpu.memory_space<vmem>>, vector<1x8x1xf32>
    %1037 = vector.shape_cast %1036 : vector<1x8x1xf32> to vector<8x1xf32>
    %1038 = vector.extract_strided_slice %627 {offsets = [0, 0, 0], sizes = [1, 8, 384], strides = [1, 1, 1]} : vector<4x8x384xf32> to vector<1x8x384xf32>
    %1039 = vector.shape_cast %1038 : vector<1x8x384xf32> to vector<8x384xf32>
    %c366_i32_691 = arith.constant 366 : i32
    %1040 = tpu.dynamic_rotate %1039 by %c366_i32_691 dim 1 : vector<8x384xf32>, i32 -> vector<8x384xf32>
    %1041 = vector.broadcast %1037 : vector<8x1xf32> to vector<8x384xf32>
    %1042 = arith.mulf %1041, %1040 : vector<8x384xf32>
    %1043 = arith.addf %1028, %1042 : vector<8x384xf32>
    %c8_692 = arith.constant 8 : index
    %c0_693 = arith.constant 0 : index
    %c0_694 = arith.constant 0 : index
    %1044 = vector.load %arg31[%c8_692, %c0_693, %c0_694] : memref<9x2x1xf32, #tpu.memory_space<vmem>>, vector<1x2x1xf32>
    %1045 = vector.shape_cast %1044 : vector<1x2x1xf32> to vector<2x1xf32>
    %1046 = vector.extract_strided_slice %625 {offsets = [2, 0], sizes = [2, 384], strides = [1, 1]} : vector<8x384xf32> to vector<2x384xf32>
    %c366_i32_695 = arith.constant 366 : i32
    %1047 = tpu.dynamic_rotate %1046 by %c366_i32_695 dim 1 : vector<2x384xf32>, i32 -> vector<2x384xf32>
    %1048 = vector.broadcast %1045 : vector<2x1xf32> to vector<2x384xf32>
    %1049 = arith.mulf %1048, %1047 : vector<2x384xf32>
    %1050 = arith.addf %1035, %1049 : vector<2x384xf32>
    %c8_696 = arith.constant 8 : index
    %c0_697 = arith.constant 0 : index
    %c0_698 = arith.constant 0 : index
    %1051 = vector.load %arg32[%c8_696, %c0_697, %c0_698] : memref<9x8x1xf32, #tpu.memory_space<vmem>>, vector<1x8x1xf32>
    %1052 = vector.shape_cast %1051 : vector<1x8x1xf32> to vector<8x1xf32>
    %1053 = vector.extract_strided_slice %627 {offsets = [1, 0, 0], sizes = [1, 8, 384], strides = [1, 1, 1]} : vector<4x8x384xf32> to vector<1x8x384xf32>
    %1054 = vector.shape_cast %1053 : vector<1x8x384xf32> to vector<8x384xf32>
    %c366_i32_699 = arith.constant 366 : i32
    %1055 = tpu.dynamic_rotate %1054 by %c366_i32_699 dim 1 : vector<8x384xf32>, i32 -> vector<8x384xf32>
    %1056 = vector.broadcast %1052 : vector<8x1xf32> to vector<8x384xf32>
    %1057 = arith.mulf %1056, %1055 : vector<8x384xf32>
    %1058 = arith.addf %1043, %1057 : vector<8x384xf32>
    %c0_700 = arith.constant 0 : index
    %c0_701 = arith.constant 0 : index
    %1059 = vector.load %arg33[%c0_700, %c0_701] : memref<2x1xf32, #tpu.memory_space<vmem>>, vector<2x1xf32>
    %1060 = vector.broadcast %1059 : vector<2x1xf32> to vector<2x384xf32>
    %1061 = arith.mulf %1060, %1050 : vector<2x384xf32>
    %cst_702 = arith.constant dense<0.000000e+00> : vector<384xf32>
    %1062 = vector.multi_reduction <add>, %1061, %cst_702 [0] : vector<2x384xf32> to vector<384xf32>
    %1063 = vector.shape_cast %1062 : vector<384xf32> to vector<1x384xf32>
    %c0_703 = arith.constant 0 : index
    %c0_704 = arith.constant 0 : index
    %1064 = vector.load %arg34[%c0_703, %c0_704] : memref<8x1xf32, #tpu.memory_space<vmem>>, vector<8x1xf32>
    %1065 = vector.broadcast %1064 : vector<8x1xf32> to vector<8x384xf32>
    %1066 = arith.mulf %1065, %1058 : vector<8x384xf32>
    %cst_705 = arith.constant dense<0.000000e+00> : vector<384xf32>
    %1067 = vector.multi_reduction <add>, %1066, %cst_705 [0] : vector<8x384xf32> to vector<384xf32>
    %1068 = vector.shape_cast %1067 : vector<384xf32> to vector<1x384xf32>
    %1069 = arith.addf %1063, %1068 : vector<1x384xf32>
    %c0_706 = arith.constant 0 : index
    %c0_707 = arith.constant 0 : index
    %1070 = vector.load %arg35[%c0_706, %c0_707] : memref<1x1xf32, #tpu.memory_space<vmem>>, vector<1x1xf32>
    %1071 = vector.broadcast %1070 : vector<1x1xf32> to vector<1x384xf32>
    %1072 = arith.addf %1069, %1071 : vector<1x384xf32>
    %1073 = arith.negf %1072 : vector<1x384xf32>
    %1074 = math.exp %1073 : vector<1x384xf32>
    %cst_708 = arith.constant 1.000000e+00 : f32
    %1075 = vector.broadcast %cst_708 : f32 to vector<1x384xf32>
    %1076 = arith.addf %1075, %1074 : vector<1x384xf32>
    %1077 = arith.divf %1075, %1076 : vector<1x384xf32>
    %c0_709 = arith.constant 0 : index
    %c2_710 = arith.constant 2 : index
    %c0_711 = arith.constant 0 : index
    %1078 = vector.load %arg36[%c0_709, %c2_710, %c0_711] : memref<1x4x384xf32, #tpu.memory_space<vmem>>, vector<1x1x384xf32>
    %1079 = vector.shape_cast %1078 : vector<1x1x384xf32> to vector<1x384xf32>
    %1080 = vector.shape_cast %1077 : vector<1x384xf32> to vector<1x1x384xf32>
    tpu.vector_store %arg36[%c0_709, %c2_710, %c0_711], %1080 {strides = array<i32>} : memref<1x4x384xf32, #tpu.memory_space<vmem>>, vector<1x1x384xf32>,
    %cst_712 = arith.constant 0.000000e+00 : f32
    %1081 = vector.broadcast %cst_712 : f32 to vector<2x384xf32>
    %cst_713 = arith.constant 0.000000e+00 : f32
    %1082 = vector.broadcast %cst_713 : f32 to vector<8x384xf32>
    %c0_714 = arith.constant 0 : index
    %c0_715 = arith.constant 0 : index
    %c0_716 = arith.constant 0 : index
    %1083 = vector.load %arg31[%c0_714, %c0_715, %c0_716] : memref<9x2x1xf32, #tpu.memory_space<vmem>>, vector<1x2x1xf32>
    %1084 = vector.shape_cast %1083 : vector<1x2x1xf32> to vector<2x1xf32>
    %1085 = vector.extract_strided_slice %625 {offsets = [0, 0], sizes = [2, 384], strides = [1, 1]} : vector<8x384xf32> to vector<2x384xf32>
    %1086 = vector.broadcast %1084 : vector<2x1xf32> to vector<2x384xf32>
    %1087 = arith.mulf %1086, %1085 : vector<2x384xf32>
    %1088 = arith.addf %1081, %1087 : vector<2x384xf32>
    %c0_717 = arith.constant 0 : index
    %c0_718 = arith.constant 0 : index
    %c0_719 = arith.constant 0 : index
    %1089 = vector.load %arg32[%c0_717, %c0_718, %c0_719] : memref<9x8x1xf32, #tpu.memory_space<vmem>>, vector<1x8x1xf32>
    %1090 = vector.shape_cast %1089 : vector<1x8x1xf32> to vector<8x1xf32>
    %1091 = vector.extract_strided_slice %627 {offsets = [0, 0, 0], sizes = [1, 8, 384], strides = [1, 1, 1]} : vector<4x8x384xf32> to vector<1x8x384xf32>
    %1092 = vector.shape_cast %1091 : vector<1x8x384xf32> to vector<8x384xf32>
    %1093 = vector.broadcast %1090 : vector<8x1xf32> to vector<8x384xf32>
    %1094 = arith.mulf %1093, %1092 : vector<8x384xf32>
    %1095 = arith.addf %1082, %1094 : vector<8x384xf32>
    %c1_720 = arith.constant 1 : index
    %c0_721 = arith.constant 0 : index
    %c0_722 = arith.constant 0 : index
    %1096 = vector.load %arg31[%c1_720, %c0_721, %c0_722] : memref<9x2x1xf32, #tpu.memory_space<vmem>>, vector<1x2x1xf32>
    %1097 = vector.shape_cast %1096 : vector<1x2x1xf32> to vector<2x1xf32>
    %1098 = vector.extract_strided_slice %625 {offsets = [2, 0], sizes = [2, 384], strides = [1, 1]} : vector<8x384xf32> to vector<2x384xf32>
    %1099 = vector.broadcast %1097 : vector<2x1xf32> to vector<2x384xf32>
    %1100 = arith.mulf %1099, %1098 : vector<2x384xf32>
    %1101 = arith.addf %1088, %1100 : vector<2x384xf32>
    %c1_723 = arith.constant 1 : index
    %c0_724 = arith.constant 0 : index
    %c0_725 = arith.constant 0 : index
    %1102 = vector.load %arg32[%c1_723, %c0_724, %c0_725] : memref<9x8x1xf32, #tpu.memory_space<vmem>>, vector<1x8x1xf32>
    %1103 = vector.shape_cast %1102 : vector<1x8x1xf32> to vector<8x1xf32>
    %1104 = vector.extract_strided_slice %627 {offsets = [1, 0, 0], sizes = [1, 8, 384], strides = [1, 1, 1]} : vector<4x8x384xf32> to vector<1x8x384xf32>
    %1105 = vector.shape_cast %1104 : vector<1x8x384xf32> to vector<8x384xf32>
    %1106 = vector.broadcast %1103 : vector<8x1xf32> to vector<8x384xf32>
    %1107 = arith.mulf %1106, %1105 : vector<8x384xf32>
    %1108 = arith.addf %1095, %1107 : vector<8x384xf32>
    %c2_726 = arith.constant 2 : index
    %c0_727 = arith.constant 0 : index
    %c0_728 = arith.constant 0 : index
    %1109 = vector.load %arg31[%c2_726, %c0_727, %c0_728] : memref<9x2x1xf32, #tpu.memory_space<vmem>>, vector<1x2x1xf32>
    %1110 = vector.shape_cast %1109 : vector<1x2x1xf32> to vector<2x1xf32>
    %1111 = vector.extract_strided_slice %625 {offsets = [0, 0], sizes = [2, 384], strides = [1, 1]} : vector<8x384xf32> to vector<2x384xf32>
    %c383_i32_729 = arith.constant 383 : i32
    %1112 = tpu.dynamic_rotate %1111 by %c383_i32_729 dim 1 : vector<2x384xf32>, i32 -> vector<2x384xf32>
    %1113 = vector.broadcast %1110 : vector<2x1xf32> to vector<2x384xf32>
    %1114 = arith.mulf %1113, %1112 : vector<2x384xf32>
    %1115 = arith.addf %1101, %1114 : vector<2x384xf32>
    %c2_730 = arith.constant 2 : index
    %c0_731 = arith.constant 0 : index
    %c0_732 = arith.constant 0 : index
    %1116 = vector.load %arg32[%c2_730, %c0_731, %c0_732] : memref<9x8x1xf32, #tpu.memory_space<vmem>>, vector<1x8x1xf32>
    %1117 = vector.shape_cast %1116 : vector<1x8x1xf32> to vector<8x1xf32>
    %1118 = vector.extract_strided_slice %627 {offsets = [0, 0, 0], sizes = [1, 8, 384], strides = [1, 1, 1]} : vector<4x8x384xf32> to vector<1x8x384xf32>
    %1119 = vector.shape_cast %1118 : vector<1x8x384xf32> to vector<8x384xf32>
    %c383_i32_733 = arith.constant 383 : i32
    %1120 = tpu.dynamic_rotate %1119 by %c383_i32_733 dim 1 : vector<8x384xf32>, i32 -> vector<8x384xf32>
    %1121 = vector.broadcast %1117 : vector<8x1xf32> to vector<8x384xf32>
    %1122 = arith.mulf %1121, %1120 : vector<8x384xf32>
    %1123 = arith.addf %1108, %1122 : vector<8x384xf32>
    %c3_734 = arith.constant 3 : index
    %c0_735 = arith.constant 0 : index
    %c0_736 = arith.constant 0 : index
    %1124 = vector.load %arg31[%c3_734, %c0_735, %c0_736] : memref<9x2x1xf32, #tpu.memory_space<vmem>>, vector<1x2x1xf32>
    %1125 = vector.shape_cast %1124 : vector<1x2x1xf32> to vector<2x1xf32>
    %1126 = vector.extract_strided_slice %625 {offsets = [4, 0], sizes = [2, 384], strides = [1, 1]} : vector<8x384xf32> to vector<2x384xf32>
    %1127 = vector.broadcast %1125 : vector<2x1xf32> to vector<2x384xf32>
    %1128 = arith.mulf %1127, %1126 : vector<2x384xf32>
    %1129 = arith.addf %1115, %1128 : vector<2x384xf32>
    %c3_737 = arith.constant 3 : index
    %c0_738 = arith.constant 0 : index
    %c0_739 = arith.constant 0 : index
    %1130 = vector.load %arg32[%c3_737, %c0_738, %c0_739] : memref<9x8x1xf32, #tpu.memory_space<vmem>>, vector<1x8x1xf32>
    %1131 = vector.shape_cast %1130 : vector<1x8x1xf32> to vector<8x1xf32>
    %1132 = vector.extract_strided_slice %627 {offsets = [2, 0, 0], sizes = [1, 8, 384], strides = [1, 1, 1]} : vector<4x8x384xf32> to vector<1x8x384xf32>
    %1133 = vector.shape_cast %1132 : vector<1x8x384xf32> to vector<8x384xf32>
    %1134 = vector.broadcast %1131 : vector<8x1xf32> to vector<8x384xf32>
    %1135 = arith.mulf %1134, %1133 : vector<8x384xf32>
    %1136 = arith.addf %1123, %1135 : vector<8x384xf32>
    %c4_740 = arith.constant 4 : index
    %c0_741 = arith.constant 0 : index
    %c0_742 = arith.constant 0 : index
    %1137 = vector.load %arg31[%c4_740, %c0_741, %c0_742] : memref<9x2x1xf32, #tpu.memory_space<vmem>>, vector<1x2x1xf32>
    %1138 = vector.shape_cast %1137 : vector<1x2x1xf32> to vector<2x1xf32>
    %1139 = vector.extract_strided_slice %625 {offsets = [6, 0], sizes = [2, 384], strides = [1, 1]} : vector<8x384xf32> to vector<2x384xf32>
    %1140 = vector.broadcast %1138 : vector<2x1xf32> to vector<2x384xf32>
    %1141 = arith.mulf %1140, %1139 : vector<2x384xf32>
    %1142 = arith.addf %1129, %1141 : vector<2x384xf32>
    %c4_743 = arith.constant 4 : index
    %c0_744 = arith.constant 0 : index
    %c0_745 = arith.constant 0 : index
    %1143 = vector.load %arg32[%c4_743, %c0_744, %c0_745] : memref<9x8x1xf32, #tpu.memory_space<vmem>>, vector<1x8x1xf32>
    %1144 = vector.shape_cast %1143 : vector<1x8x1xf32> to vector<8x1xf32>
    %1145 = vector.extract_strided_slice %627 {offsets = [3, 0, 0], sizes = [1, 8, 384], strides = [1, 1, 1]} : vector<4x8x384xf32> to vector<1x8x384xf32>
    %1146 = vector.shape_cast %1145 : vector<1x8x384xf32> to vector<8x384xf32>
    %1147 = vector.broadcast %1144 : vector<8x1xf32> to vector<8x384xf32>
    %1148 = arith.mulf %1147, %1146 : vector<8x384xf32>
    %1149 = arith.addf %1136, %1148 : vector<8x384xf32>
    %c5_746 = arith.constant 5 : index
    %c0_747 = arith.constant 0 : index
    %c0_748 = arith.constant 0 : index
    %1150 = vector.load %arg31[%c5_746, %c0_747, %c0_748] : memref<9x2x1xf32, #tpu.memory_space<vmem>>, vector<1x2x1xf32>
    %1151 = vector.shape_cast %1150 : vector<1x2x1xf32> to vector<2x1xf32>
    %1152 = vector.extract_strided_slice %625 {offsets = [4, 0], sizes = [2, 384], strides = [1, 1]} : vector<8x384xf32> to vector<2x384xf32>
    %c383_i32_749 = arith.constant 383 : i32
    %1153 = tpu.dynamic_rotate %1152 by %c383_i32_749 dim 1 : vector<2x384xf32>, i32 -> vector<2x384xf32>
    %1154 = vector.broadcast %1151 : vector<2x1xf32> to vector<2x384xf32>
    %1155 = arith.mulf %1154, %1153 : vector<2x384xf32>
    %1156 = arith.addf %1142, %1155 : vector<2x384xf32>
    %c5_750 = arith.constant 5 : index
    %c0_751 = arith.constant 0 : index
    %c0_752 = arith.constant 0 : index
    %1157 = vector.load %arg32[%c5_750, %c0_751, %c0_752] : memref<9x8x1xf32, #tpu.memory_space<vmem>>, vector<1x8x1xf32>
    %1158 = vector.shape_cast %1157 : vector<1x8x1xf32> to vector<8x1xf32>
    %1159 = vector.extract_strided_slice %627 {offsets = [2, 0, 0], sizes = [1, 8, 384], strides = [1, 1, 1]} : vector<4x8x384xf32> to vector<1x8x384xf32>
    %1160 = vector.shape_cast %1159 : vector<1x8x384xf32> to vector<8x384xf32>
    %c383_i32_753 = arith.constant 383 : i32
    %1161 = tpu.dynamic_rotate %1160 by %c383_i32_753 dim 1 : vector<8x384xf32>, i32 -> vector<8x384xf32>
    %1162 = vector.broadcast %1158 : vector<8x1xf32> to vector<8x384xf32>
    %1163 = arith.mulf %1162, %1161 : vector<8x384xf32>
    %1164 = arith.addf %1149, %1163 : vector<8x384xf32>
    %c6_754 = arith.constant 6 : index
    %c0_755 = arith.constant 0 : index
    %c0_756 = arith.constant 0 : index
    %1165 = vector.load %arg31[%c6_754, %c0_755, %c0_756] : memref<9x2x1xf32, #tpu.memory_space<vmem>>, vector<1x2x1xf32>
    %1166 = vector.shape_cast %1165 : vector<1x2x1xf32> to vector<2x1xf32>
    %1167 = vector.extract_strided_slice %625 {offsets = [0, 0], sizes = [2, 384], strides = [1, 1]} : vector<8x384xf32> to vector<2x384xf32>
    %c366_i32_757 = arith.constant 366 : i32
    %1168 = tpu.dynamic_rotate %1167 by %c366_i32_757 dim 1 : vector<2x384xf32>, i32 -> vector<2x384xf32>
    %1169 = vector.broadcast %1166 : vector<2x1xf32> to vector<2x384xf32>
    %1170 = arith.mulf %1169, %1168 : vector<2x384xf32>
    %1171 = arith.addf %1156, %1170 : vector<2x384xf32>
    %c6_758 = arith.constant 6 : index
    %c0_759 = arith.constant 0 : index
    %c0_760 = arith.constant 0 : index
    %1172 = vector.load %arg32[%c6_758, %c0_759, %c0_760] : memref<9x8x1xf32, #tpu.memory_space<vmem>>, vector<1x8x1xf32>
    %1173 = vector.shape_cast %1172 : vector<1x8x1xf32> to vector<8x1xf32>
    %1174 = vector.extract_strided_slice %627 {offsets = [0, 0, 0], sizes = [1, 8, 384], strides = [1, 1, 1]} : vector<4x8x384xf32> to vector<1x8x384xf32>
    %1175 = vector.shape_cast %1174 : vector<1x8x384xf32> to vector<8x384xf32>
    %c366_i32_761 = arith.constant 366 : i32
    %1176 = tpu.dynamic_rotate %1175 by %c366_i32_761 dim 1 : vector<8x384xf32>, i32 -> vector<8x384xf32>
    %1177 = vector.broadcast %1173 : vector<8x1xf32> to vector<8x384xf32>
    %1178 = arith.mulf %1177, %1176 : vector<8x384xf32>
    %1179 = arith.addf %1164, %1178 : vector<8x384xf32>
    %c7_762 = arith.constant 7 : index
    %c0_763 = arith.constant 0 : index
    %c0_764 = arith.constant 0 : index
    %1180 = vector.load %arg31[%c7_762, %c0_763, %c0_764] : memref<9x2x1xf32, #tpu.memory_space<vmem>>, vector<1x2x1xf32>
    %1181 = vector.shape_cast %1180 : vector<1x2x1xf32> to vector<2x1xf32>
    %1182 = vector.extract_strided_slice %625 {offsets = [2, 0], sizes = [2, 384], strides = [1, 1]} : vector<8x384xf32> to vector<2x384xf32>
    %c366_i32_765 = arith.constant 366 : i32
    %1183 = tpu.dynamic_rotate %1182 by %c366_i32_765 dim 1 : vector<2x384xf32>, i32 -> vector<2x384xf32>
    %1184 = vector.broadcast %1181 : vector<2x1xf32> to vector<2x384xf32>
    %1185 = arith.mulf %1184, %1183 : vector<2x384xf32>
    %1186 = arith.addf %1171, %1185 : vector<2x384xf32>
    %c7_766 = arith.constant 7 : index
    %c0_767 = arith.constant 0 : index
    %c0_768 = arith.constant 0 : index
    %1187 = vector.load %arg32[%c7_766, %c0_767, %c0_768] : memref<9x8x1xf32, #tpu.memory_space<vmem>>, vector<1x8x1xf32>
    %1188 = vector.shape_cast %1187 : vector<1x8x1xf32> to vector<8x1xf32>
    %1189 = vector.extract_strided_slice %627 {offsets = [1, 0, 0], sizes = [1, 8, 384], strides = [1, 1, 1]} : vector<4x8x384xf32> to vector<1x8x384xf32>
    %1190 = vector.shape_cast %1189 : vector<1x8x384xf32> to vector<8x384xf32>
    %c366_i32_769 = arith.constant 366 : i32
    %1191 = tpu.dynamic_rotate %1190 by %c366_i32_769 dim 1 : vector<8x384xf32>, i32 -> vector<8x384xf32>
    %1192 = vector.broadcast %1188 : vector<8x1xf32> to vector<8x384xf32>
    %1193 = arith.mulf %1192, %1191 : vector<8x384xf32>
    %1194 = arith.addf %1179, %1193 : vector<8x384xf32>
    %c8_770 = arith.constant 8 : index
    %c0_771 = arith.constant 0 : index
    %c0_772 = arith.constant 0 : index
    %1195 = vector.load %arg31[%c8_770, %c0_771, %c0_772] : memref<9x2x1xf32, #tpu.memory_space<vmem>>, vector<1x2x1xf32>
    %1196 = vector.shape_cast %1195 : vector<1x2x1xf32> to vector<2x1xf32>
    %1197 = vector.extract_strided_slice %625 {offsets = [0, 0], sizes = [2, 384], strides = [1, 1]} : vector<8x384xf32> to vector<2x384xf32>
    %c365_i32_773 = arith.constant 365 : i32
    %1198 = tpu.dynamic_rotate %1197 by %c365_i32_773 dim 1 : vector<2x384xf32>, i32 -> vector<2x384xf32>
    %1199 = vector.broadcast %1196 : vector<2x1xf32> to vector<2x384xf32>
    %1200 = arith.mulf %1199, %1198 : vector<2x384xf32>
    %1201 = arith.addf %1186, %1200 : vector<2x384xf32>
    %c8_774 = arith.constant 8 : index
    %c0_775 = arith.constant 0 : index
    %c0_776 = arith.constant 0 : index
    %1202 = vector.load %arg32[%c8_774, %c0_775, %c0_776] : memref<9x8x1xf32, #tpu.memory_space<vmem>>, vector<1x8x1xf32>
    %1203 = vector.shape_cast %1202 : vector<1x8x1xf32> to vector<8x1xf32>
    %1204 = vector.extract_strided_slice %627 {offsets = [0, 0, 0], sizes = [1, 8, 384], strides = [1, 1, 1]} : vector<4x8x384xf32> to vector<1x8x384xf32>
    %1205 = vector.shape_cast %1204 : vector<1x8x384xf32> to vector<8x384xf32>
    %c365_i32_777 = arith.constant 365 : i32
    %1206 = tpu.dynamic_rotate %1205 by %c365_i32_777 dim 1 : vector<8x384xf32>, i32 -> vector<8x384xf32>
    %1207 = vector.broadcast %1203 : vector<8x1xf32> to vector<8x384xf32>
    %1208 = arith.mulf %1207, %1206 : vector<8x384xf32>
    %1209 = arith.addf %1194, %1208 : vector<8x384xf32>
    %c0_778 = arith.constant 0 : index
    %c0_779 = arith.constant 0 : index
    %1210 = vector.load %arg33[%c0_778, %c0_779] : memref<2x1xf32, #tpu.memory_space<vmem>>, vector<2x1xf32>
    %1211 = vector.broadcast %1210 : vector<2x1xf32> to vector<2x384xf32>
    %1212 = arith.mulf %1211, %1201 : vector<2x384xf32>
    %cst_780 = arith.constant dense<0.000000e+00> : vector<384xf32>
    %1213 = vector.multi_reduction <add>, %1212, %cst_780 [0] : vector<2x384xf32> to vector<384xf32>
    %1214 = vector.shape_cast %1213 : vector<384xf32> to vector<1x384xf32>
    %c0_781 = arith.constant 0 : index
    %c0_782 = arith.constant 0 : index
    %1215 = vector.load %arg34[%c0_781, %c0_782] : memref<8x1xf32, #tpu.memory_space<vmem>>, vector<8x1xf32>
    %1216 = vector.broadcast %1215 : vector<8x1xf32> to vector<8x384xf32>
    %1217 = arith.mulf %1216, %1209 : vector<8x384xf32>
    %cst_783 = arith.constant dense<0.000000e+00> : vector<384xf32>
    %1218 = vector.multi_reduction <add>, %1217, %cst_783 [0] : vector<8x384xf32> to vector<384xf32>
    %1219 = vector.shape_cast %1218 : vector<384xf32> to vector<1x384xf32>
    %1220 = arith.addf %1214, %1219 : vector<1x384xf32>
    %c0_784 = arith.constant 0 : index
    %c0_785 = arith.constant 0 : index
    %1221 = vector.load %arg35[%c0_784, %c0_785] : memref<1x1xf32, #tpu.memory_space<vmem>>, vector<1x1xf32>
    %1222 = vector.broadcast %1221 : vector<1x1xf32> to vector<1x384xf32>
    %1223 = arith.addf %1220, %1222 : vector<1x384xf32>
    %1224 = arith.negf %1223 : vector<1x384xf32>
    %1225 = math.exp %1224 : vector<1x384xf32>
    %cst_786 = arith.constant 1.000000e+00 : f32
    %1226 = vector.broadcast %cst_786 : f32 to vector<1x384xf32>
    %1227 = arith.addf %1226, %1225 : vector<1x384xf32>
    %1228 = arith.divf %1226, %1227 : vector<1x384xf32>
    %c0_787 = arith.constant 0 : index
    %c3_788 = arith.constant 3 : index
    %c0_789 = arith.constant 0 : index
    %1229 = vector.load %arg36[%c0_787, %c3_788, %c0_789] : memref<1x4x384xf32, #tpu.memory_space<vmem>>, vector<1x1x384xf32>
    %1230 = vector.shape_cast %1229 : vector<1x1x384xf32> to vector<1x384xf32>
    %1231 = vector.shape_cast %1228 : vector<1x384xf32> to vector<1x1x384xf32>
    tpu.vector_store %arg36[%c0_787, %c3_788, %c0_789], %1231 {strides = array<i32>} : memref<1x4x384xf32, #tpu.memory_space<vmem>>, vector<1x1x384xf32>,
    return
  }
  func.func @transform_0(%arg0: i32) -> (i32, i32, i32) {
    %c0_i32 = arith.constant 0 : i32
    %c0_i32_0 = arith.constant 0 : i32
    %c0_i32_1 = arith.constant 0 : i32
    return %arg0, %c0_i32, %c0_i32_0 : i32, i32, i32
  }
  func.func @transform_1(%arg0: i32) -> (i32, i32, i32) {
    %c0_i32 = arith.constant 0 : i32
    %c0_i32_0 = arith.constant 0 : i32
    %c0_i32_1 = arith.constant 0 : i32
    return %arg0, %c0_i32, %c0_i32_0 : i32, i32, i32
  }
  func.func @transform_2(%arg0: i32) -> (i32, i32, i32) {
    %c0_i32 = arith.constant 0 : i32
    %c0_i32_0 = arith.constant 0 : i32
    %c0_i32_1 = arith.constant 0 : i32
    return %arg0, %c0_i32, %c0_i32_0 : i32, i32, i32
  }
  func.func @transform_3(%arg0: i32) -> (i32, i32, i32) {
    %c0_i32 = arith.constant 0 : i32
    %c0_i32_0 = arith.constant 0 : i32
    %c0_i32_1 = arith.constant 0 : i32
    return %arg0, %c0_i32, %c0_i32_0 : i32, i32, i32
  }
  func.func @transform_4(%arg0: i32) -> (i32, i32, i32, i32) {
    %c0_i32 = arith.constant 0 : i32
    %c0_i32_0 = arith.constant 0 : i32
    %c0_i32_1 = arith.constant 0 : i32
    %c0_i32_2 = arith.constant 0 : i32
    return %arg0, %c0_i32, %c0_i32_0, %c0_i32_1 : i32, i32, i32, i32
  }
  func.func @transform_5(%arg0: i32) -> (i32, i32) {
    %c0_i32 = arith.constant 0 : i32
    %c0_i32_0 = arith.constant 0 : i32
    %c0_i32_1 = arith.constant 0 : i32
    return %c0_i32, %c0_i32_0 : i32, i32
  }
  func.func @transform_6(%arg0: i32) -> (i32, i32) {
    %c0_i32 = arith.constant 0 : i32
    %c0_i32_0 = arith.constant 0 : i32
    %c0_i32_1 = arith.constant 0 : i32
    return %c0_i32, %c0_i32_0 : i32, i32
  }
  func.func @transform_7(%arg0: i32) -> (i32, i32) {
    %c0_i32 = arith.constant 0 : i32
    %c0_i32_0 = arith.constant 0 : i32
    %c0_i32_1 = arith.constant 0 : i32
    return %c0_i32, %c0_i32_0 : i32, i32
  }
  func.func @transform_8(%arg0: i32) -> (i32, i32, i32) {
    %c0_i32 = arith.constant 0 : i32
    %c0_i32_0 = arith.constant 0 : i32
    %c0_i32_1 = arith.constant 0 : i32
    %c0_i32_2 = arith.constant 0 : i32
    return %c0_i32, %c0_i32_0, %c0_i32_1 : i32, i32, i32
  }
  func.func @transform_9(%arg0: i32) -> (i32, i32, i32) {
    %c0_i32 = arith.constant 0 : i32
    %c0_i32_0 = arith.constant 0 : i32
    %c0_i32_1 = arith.constant 0 : i32
    %c0_i32_2 = arith.constant 0 : i32
    return %c0_i32, %c0_i32_0, %c0_i32_1 : i32, i32, i32
  }
  func.func @transform_10(%arg0: i32) -> (i32, i32, i32) {
    %c0_i32 = arith.constant 0 : i32
    %c0_i32_0 = arith.constant 0 : i32
    %c0_i32_1 = arith.constant 0 : i32
    %c0_i32_2 = arith.constant 0 : i32
    return %c0_i32, %c0_i32_0, %c0_i32_1 : i32, i32, i32
  }
  func.func @transform_11(%arg0: i32) -> (i32, i32, i32) {
    %c0_i32 = arith.constant 0 : i32
    %c0_i32_0 = arith.constant 0 : i32
    %c0_i32_1 = arith.constant 0 : i32
    %c0_i32_2 = arith.constant 0 : i32
    return %c0_i32, %c0_i32_0, %c0_i32_1 : i32, i32, i32
  }
  func.func @transform_12(%arg0: i32) -> (i32, i32, i32) {
    %c0_i32 = arith.constant 0 : i32
    %c0_i32_0 = arith.constant 0 : i32
    %c0_i32_1 = arith.constant 0 : i32
    %c0_i32_2 = arith.constant 0 : i32
    return %c0_i32, %c0_i32_0, %c0_i32_1 : i32, i32, i32
  }
  func.func @transform_13(%arg0: i32) -> (i32, i32, i32) {
    %c0_i32 = arith.constant 0 : i32
    %c0_i32_0 = arith.constant 0 : i32
    %c0_i32_1 = arith.constant 0 : i32
    %c0_i32_2 = arith.constant 0 : i32
    return %c0_i32, %c0_i32_0, %c0_i32_1 : i32, i32, i32
  }
  func.func @transform_14(%arg0: i32) -> (i32, i32, i32) {
    %c0_i32 = arith.constant 0 : i32
    %c0_i32_0 = arith.constant 0 : i32
    %c0_i32_1 = arith.constant 0 : i32
    %c0_i32_2 = arith.constant 0 : i32
    return %c0_i32, %c0_i32_0, %c0_i32_1 : i32, i32, i32
  }
  func.func @transform_15(%arg0: i32) -> (i32, i32, i32) {
    %c0_i32 = arith.constant 0 : i32
    %c0_i32_0 = arith.constant 0 : i32
    %c0_i32_1 = arith.constant 0 : i32
    %c0_i32_2 = arith.constant 0 : i32
    return %c0_i32, %c0_i32_0, %c0_i32_1 : i32, i32, i32
  }
  func.func @transform_16(%arg0: i32) -> (i32, i32, i32) {
    %c0_i32 = arith.constant 0 : i32
    %c0_i32_0 = arith.constant 0 : i32
    %c0_i32_1 = arith.constant 0 : i32
    %c0_i32_2 = arith.constant 0 : i32
    return %c0_i32, %c0_i32_0, %c0_i32_1 : i32, i32, i32
  }
  func.func @transform_17(%arg0: i32) -> (i32, i32, i32) {
    %c0_i32 = arith.constant 0 : i32
    %c0_i32_0 = arith.constant 0 : i32
    %c0_i32_1 = arith.constant 0 : i32
    %c0_i32_2 = arith.constant 0 : i32
    return %c0_i32, %c0_i32_0, %c0_i32_1 : i32, i32, i32
  }
  func.func @transform_18(%arg0: i32) -> (i32, i32, i32) {
    %c0_i32 = arith.constant 0 : i32
    %c0_i32_0 = arith.constant 0 : i32
    %c0_i32_1 = arith.constant 0 : i32
    %c0_i32_2 = arith.constant 0 : i32
    return %c0_i32, %c0_i32_0, %c0_i32_1 : i32, i32, i32
  }
  func.func @transform_19(%arg0: i32) -> (i32, i32, i32) {
    %c0_i32 = arith.constant 0 : i32
    %c0_i32_0 = arith.constant 0 : i32
    %c0_i32_1 = arith.constant 0 : i32
    %c0_i32_2 = arith.constant 0 : i32
    return %c0_i32, %c0_i32_0, %c0_i32_1 : i32, i32, i32
  }
  func.func @transform_20(%arg0: i32) -> (i32, i32) {
    %c0_i32 = arith.constant 0 : i32
    %c0_i32_0 = arith.constant 0 : i32
    %c0_i32_1 = arith.constant 0 : i32
    return %c0_i32, %c0_i32_0 : i32, i32
  }
  func.func @transform_21(%arg0: i32) -> (i32, i32) {
    %c0_i32 = arith.constant 0 : i32
    %c0_i32_0 = arith.constant 0 : i32
    %c0_i32_1 = arith.constant 0 : i32
    return %c0_i32, %c0_i32_0 : i32, i32
  }
  func.func @transform_22(%arg0: i32) -> (i32, i32) {
    %c0_i32 = arith.constant 0 : i32
    %c0_i32_0 = arith.constant 0 : i32
    %c0_i32_1 = arith.constant 0 : i32
    return %c0_i32, %c0_i32_0 : i32, i32
  }
  func.func @transform_23(%arg0: i32) -> (i32, i32, i32) {
    %c0_i32 = arith.constant 0 : i32
    %c0_i32_0 = arith.constant 0 : i32
    %c0_i32_1 = arith.constant 0 : i32
    %c0_i32_2 = arith.constant 0 : i32
    return %c0_i32, %c0_i32_0, %c0_i32_1 : i32, i32, i32
  }
  func.func @transform_24(%arg0: i32) -> (i32, i32) {
    %c0_i32 = arith.constant 0 : i32
    %c0_i32_0 = arith.constant 0 : i32
    %c0_i32_1 = arith.constant 0 : i32
    return %c0_i32, %c0_i32_0 : i32, i32
  }
  func.func @transform_25(%arg0: i32) -> (i32, i32) {
    %c0_i32 = arith.constant 0 : i32
    %c0_i32_0 = arith.constant 0 : i32
    %c0_i32_1 = arith.constant 0 : i32
    return %c0_i32, %c0_i32_0 : i32, i32
  }
  func.func @transform_26(%arg0: i32) -> (i32, i32) {
    %c0_i32 = arith.constant 0 : i32
    %c0_i32_0 = arith.constant 0 : i32
    %c0_i32_1 = arith.constant 0 : i32
    return %c0_i32, %c0_i32_0 : i32, i32
  }
  func.func @transform_27(%arg0: i32) -> (i32, i32, i32) {
    %c0_i32 = arith.constant 0 : i32
    %c0_i32_0 = arith.constant 0 : i32
    %c0_i32_1 = arith.constant 0 : i32
    %c0_i32_2 = arith.constant 0 : i32
    return %c0_i32, %c0_i32_0, %c0_i32_1 : i32, i32, i32
  }
  func.func @transform_28(%arg0: i32) -> (i32, i32) {
    %c0_i32 = arith.constant 0 : i32
    %c0_i32_0 = arith.constant 0 : i32
    %c0_i32_1 = arith.constant 0 : i32
    return %c0_i32, %c0_i32_0 : i32, i32
  }
  func.func @transform_29(%arg0: i32) -> (i32, i32) {
    %c0_i32 = arith.constant 0 : i32
    %c0_i32_0 = arith.constant 0 : i32
    %c0_i32_1 = arith.constant 0 : i32
    return %c0_i32, %c0_i32_0 : i32, i32
  }
  func.func @transform_30(%arg0: i32) -> (i32, i32, i32) {
    %c0_i32 = arith.constant 0 : i32
    %c0_i32_0 = arith.constant 0 : i32
    %c0_i32_1 = arith.constant 0 : i32
    %c0_i32_2 = arith.constant 0 : i32
    return %c0_i32, %c0_i32_0, %c0_i32_1 : i32, i32, i32
  }
  func.func @transform_31(%arg0: i32) -> (i32, i32, i32) {
    %c0_i32 = arith.constant 0 : i32
    %c0_i32_0 = arith.constant 0 : i32
    %c0_i32_1 = arith.constant 0 : i32
    %c0_i32_2 = arith.constant 0 : i32
    return %c0_i32, %c0_i32_0, %c0_i32_1 : i32, i32, i32
  }
  func.func @transform_32(%arg0: i32) -> (i32, i32) {
    %c0_i32 = arith.constant 0 : i32
    %c0_i32_0 = arith.constant 0 : i32
    %c0_i32_1 = arith.constant 0 : i32
    return %c0_i32, %c0_i32_0 : i32, i32
  }
  func.func @transform_33(%arg0: i32) -> (i32, i32) {
    %c0_i32 = arith.constant 0 : i32
    %c0_i32_0 = arith.constant 0 : i32
    %c0_i32_1 = arith.constant 0 : i32
    return %c0_i32, %c0_i32_0 : i32, i32
  }
  func.func @transform_34(%arg0: i32) -> (i32, i32) {
    %c0_i32 = arith.constant 0 : i32
    %c0_i32_0 = arith.constant 0 : i32
    %c0_i32_1 = arith.constant 0 : i32
    return %c0_i32, %c0_i32_0 : i32, i32
  }
  func.func @transform_35(%arg0: i32) -> (i32, i32, i32) {
    %c0_i32 = arith.constant 0 : i32
    %c0_i32_0 = arith.constant 0 : i32
    %c0_i32_1 = arith.constant 0 : i32
    return %arg0, %c0_i32, %c0_i32_0 : i32, i32, i32
  }
}

</mosaic_0001>

<llo_original>
// kernel: tile.17
$region0: #{tile.17}
  #allocation0 [shape = 's32[1]{0}', space=sflag, size = 0x4, scoped, tag = 'scoped memory for tile.17']
  %s0 = inlined_call_operand.vmem [shape: f32[8], index: 0, kind: input, shape index: {}]
  %s1 = inlined_call_operand.vmem [shape: f32[4,8], index: 1, kind: output, shape index: {}]
  // Predicated region
  $region2: #{tile.17} parent=0 // pred_check
    _
  $region3: #{tile.17} parent=0 // pred_check_branch
    %3 = sbr.rel (0) target = $region5
  $region4: #{tile.17} parent=0 // pred_region
    _
  $region5: #{tile.17} parent=0 // pred_fallthru
    _
  %v4 = vld [vmem:[%s0] ss:$0 sm:$0xff]
  %5 = vst [vmem:[%s1] sm:$0xf] %v4

// kernel: tile.1
$region0: #{tile.1}
  %s0 = inlined_call_operand.vmem [shape: f32[4,8], index: 0, kind: input, shape index: {}]
  %s1 = inlined_call_operand.vmem [shape: f32[1,32,1], index: 1, kind: output, shape index: {}]
  $region1: #{tile.1} parent=0
    #allocation0 [shape = 'u8[4096]{0}', space=vmem, size = 0x1000, scoped, tag = 'scoped mem for input reshape']
    %s3 = ssub.s32 16, 1
    %v4 = vld [vmem:[%s0] sm:%s3]
    %5 = vst [vmem:[#allocation0] sm:%s3] %v4
    %v6 = vld [vmem:[#allocation0] sm:$0xf]
    %vm7 = vcmask 7168
    %8 = vst.msk [vmem:[%s1] ss:$8 sm:$0xf] %vm7, %v6
    %v9 = vld [vmem:[#allocation0] sm:$0xf]
    %10 = vrot.lane.b32.xlu0 %v9, 127
    %v11 = vpop.permute.xlu0 %10
    %vm12 = vcmask 7168
    %s13 = scalar_lea.vmem %s1, 1
    %14 = vst.msk [vmem:[%s13] ss:$8 sm:$0xf] %vm12, %v11
    %v15 = vld [vmem:[#allocation0] sm:$0xf]
    %16 = vrot.lane.b32.xlu0 %v15, 126
    %v17 = vpop.permute.xlu0 %16
    %vm18 = vcmask 7168
    %s19 = scalar_lea.vmem %s1, 2
    %20 = vst.msk [vmem:[%s19] ss:$8 sm:$0xf] %vm18, %v17
    %v21 = vld [vmem:[#allocation0] sm:$0xf]
    %22 = vrot.lane.b32.xlu0 %v21, 125
    %v23 = vpop.permute.xlu0 %22
    %vm24 = vcmask 7168
    %s25 = scalar_lea.vmem %s1, 3
    %26 = vst.msk [vmem:[%s25] ss:$8 sm:$0xf] %vm24, %v23
    %v27 = vld [vmem:[#allocation0] sm:$0xf]
    %28 = vrot.lane.b32.xlu0 %v27, 124
    %v29 = vpop.permute.xlu0 %28
    %vm30 = vcmask 7168
    %s31 = scalar_lea.vmem %s1, 4
    %32 = vst.msk [vmem:[%s31] ss:$8 sm:$0xf] %vm30, %v29
    %v33 = vld [vmem:[#allocation0] sm:$0xf]
    %34 = vrot.lane.b32.xlu0 %v33, 123
    %v35 = vpop.permute.xlu0 %34
    %vm36 = vcmask 7168
    %s37 = scalar_lea.vmem %s1, 5
    %38 = vst.msk [vmem:[%s37] ss:$8 sm:$0xf] %vm36, %v35
    %v39 = vld [vmem:[#allocation0] sm:$0xf]
    %40 = vrot.lane.b32.xlu0 %v39, 122
    %v41 = vpop.permute.xlu0 %40
    %vm42 = vcmask 7168
    %s43 = scalar_lea.vmem %s1, 6
    %44 = vst.msk [vmem:[%s43] ss:$8 sm:$0xf] %vm42, %v41
    %v45 = vld [vmem:[#allocation0] sm:$0xf]
    %46 = vrot.lane.b32.xlu0 %v45, 121
    %v47 = vpop.permute.xlu0 %46
    %vm48 = vcmask 7168
    %s49 = scalar_lea.vmem %s1, 7
    %50 = vst.msk [vmem:[%s49] ss:$8 sm:$0xf] %vm48, %v47

// kernel: decoder_forward.1
$region0: #{decoder_forward.1}
  #allocation0 [shape = 'u32[]', space=smem, size = 0x4, offset = 0x4, fixed_abs, tag = 'smem constant byte address 0x4 - core index']
  #allocation1 [shape = 'u32[72,128]{1,0:T(1,128)}', space=vmem, size = 0x9000, scoped, tag = 'internal scratch']
  #allocation2 [shape = 'f32[1,1]{1,0:T(1,128)S(1)}', space=vmem, size = 0x200, scoped, tag = 'scoped memory for decoder_forward.1']
  %s0 = inlined_call_operand.smem [shape: u32[36], index: -1, kind: input, shape index: {}]
  %s1 = sld [smem:[%s0]]
  %s2 = scalar_lea.smem %s0, 1
  %s3 = sld [smem:[%s2]]
  %s4 = scalar_lea.smem %s0, 2
  %s5 = sld [smem:[%s4]]
  %s6 = scalar_lea.smem %s0, 3
  %s7 = sld [smem:[%s6]]
  %s8 = scalar_lea.smem %s0, 4
  %s9 = sld [smem:[%s8]]
  %s10 = scalar_lea.smem %s0, 5
  %s11 = sld [smem:[%s10]]
  %s12 = scalar_lea.smem %s0, 6
  %s13 = sld [smem:[%s12]]
  %s14 = scalar_lea.smem %s0, 7
  %s15 = sld [smem:[%s14]]
  %s16 = scalar_lea.smem %s0, 8
  %s17 = sld [smem:[%s16]]
  %s18 = scalar_lea.smem %s0, 9
  %s19 = sld [smem:[%s18]]
  %s20 = scalar_lea.smem %s0, 10
  %s21 = sld [smem:[%s20]]
  %s22 = scalar_lea.smem %s0, 11
  %s23 = sld [smem:[%s22]]
  %s24 = scalar_lea.smem %s0, 12
  %s25 = sld [smem:[%s24]]
  %s26 = scalar_lea.smem %s0, 13
  %s27 = sld [smem:[%s26]]
  %s28 = scalar_lea.smem %s0, 14
  %s29 = sld [smem:[%s28]]
  %s30 = scalar_lea.smem %s0, 15
  %s31 = sld [smem:[%s30]]
  %s32 = scalar_lea.smem %s0, 16
  %s33 = sld [smem:[%s32]]
  %s34 = scalar_lea.smem %s0, 17
  %s35 = sld [smem:[%s34]]
  %s36 = scalar_lea.smem %s0, 18
  %s37 = sld [smem:[%s36]]
  %s38 = scalar_lea.smem %s0, 19
  %s39 = sld [smem:[%s38]]
  %s40 = scalar_lea.smem %s0, 20
  %s41 = sld [smem:[%s40]]
  %s42 = scalar_lea.smem %s0, 21
  %s43 = sld [smem:[%s42]]
  %s44 = scalar_lea.smem %s0, 22
  %s45 = sld [smem:[%s44]]
  %s46 = scalar_lea.smem %s0, 23
  %s47 = sld [smem:[%s46]]
  %s48 = scalar_lea.smem %s0, 24
  %s49 = sld [smem:[%s48]]
  %s50 = scalar_lea.smem %s0, 25
  %s51 = sld [smem:[%s50]]
  %s52 = scalar_lea.smem %s0, 26
  %s53 = sld [smem:[%s52]]
  %s54 = scalar_lea.smem %s0, 27
  %s55 = sld [smem:[%s54]]
  %s56 = scalar_lea.smem %s0, 28
  %s57 = sld [smem:[%s56]]
  %s58 = scalar_lea.smem %s0, 29
  %s59 = sld [smem:[%s58]]
  %s60 = scalar_lea.smem %s0, 30
  %s61 = sld [smem:[%s60]]
  %s62 = scalar_lea.smem %s0, 31
  %s63 = sld [smem:[%s62]]
  %s64 = scalar_lea.smem %s0, 32
  %s65 = sld [smem:[%s64]]
  %s66 = scalar_lea.smem %s0, 33
  %s67 = sld [smem:[%s66]]
  %s68 = scalar_lea.smem %s0, 34
  %s69 = sld [smem:[%s68]]
  %s70 = scalar_lea.smem %s0, 35
  %s71 = sld [smem:[%s70]]
  %s72 = sld [smem:[#allocation0]]
  $region173: #{decoder_forward.1} parent=0
    _
  %s74 = ssub.s32 1, %s72
  %s75 = scalar_select 0, %s74, %s72
  %v76 = vstv %s69
  %77 = vst [vmem:[#allocation2] sm:$0x1] %v76
  loop: start=0, step=1, limit=4
  $region2: #{decoder_forward.1} parent=0 // loop_pre_header
    _
  $region3: #{decoder_forward.1} parent=0 // loop_header
    %s79 = sphi 0, %s83
    %p80 = scmp.ge.s32.totalorder %s79, 4
    %s89 = sphi 0, %s91
    %s92 = sphi 0, %s89
    %s93 = sphi 0, %s92
    %s109 = sphi 0, %s93
    %s115 = sphi 0, %s117
    %s118 = sphi 0, %s115
    %s119 = sphi 0, %s118
    %s135 = sphi 0, %s119
    %s141 = sphi 0, %s143
    %s144 = sphi 0, %s141
    %s145 = sphi 0, %s144
    %s161 = sphi 0, %s145
    %s167 = sphi 0, %s169
    %s170 = sphi 0, %s167
    %s171 = sphi 0, %s170
    %s187 = sphi 0, %s171
    %s193 = sphi 0, %s195
    %s196 = sphi 0, %s193
    %s197 = sphi 0, %s196
    %s213 = sphi 0, %s197
    %s217 = sphi 0, %s217
    %s219 = sphi 0, %s217
    %s220 = sphi 0, %s219
    %s234 = sphi 0, %s220
    %s238 = sphi 0, %s238
    %s240 = sphi 0, %s238
    %s241 = sphi 0, %s240
    %s255 = sphi 0, %s241
    %s259 = sphi 0, %s259
    %s261 = sphi 0, %s259
    %s262 = sphi 0, %s261
    %s276 = sphi 0, %s262
    %s280 = sphi 0, %s280
    %s282 = sphi 0, %s280
    %s283 = sphi 0, %s282
    %s297 = sphi 0, %s283
    %s301 = sphi 0, %s301
    %s303 = sphi 0, %s301
    %s304 = sphi 0, %s303
    %s318 = sphi 0, %s304
    %s322 = sphi 0, %s322
    %s324 = sphi 0, %s322
    %s325 = sphi 0, %s324
    %s339 = sphi 0, %s325
    %s343 = sphi 0, %s343
    %s345 = sphi 0, %s343
    %s346 = sphi 0, %s345
    %s360 = sphi 0, %s346
    %s364 = sphi 0, %s364
    %s366 = sphi 0, %s364
    %s367 = sphi 0, %s366
    %s381 = sphi 0, %s367
    %s385 = sphi 0, %s385
    %s387 = sphi 0, %s385
    %s388 = sphi 0, %s387
    %s402 = sphi 0, %s388
    %s406 = sphi 0, %s406
    %s408 = sphi 0, %s406
    %s409 = sphi 0, %s408
    %s423 = sphi 0, %s409
    %s427 = sphi 0, %s427
    %s429 = sphi 0, %s427
    %s430 = sphi 0, %s429
    %s444 = sphi 0, %s430
    %s448 = sphi 0, %s448
    %s450 = sphi 0, %s448
    %s451 = sphi 0, %s450
    %s465 = sphi 0, %s451
    %s469 = sphi 0, %s469
    %s471 = sphi 0, %s469
    %s472 = sphi 0, %s471
    %s486 = sphi 0, %s472
    %s490 = sphi 0, %s490
    %s492 = sphi 0, %s490
    %s493 = sphi 0, %s492
    %s507 = sphi 0, %s493
    %s511 = sphi 0, %s511
    %s513 = sphi 0, %s511
    %s514 = sphi 0, %s513
    %s528 = sphi 0, %s514
    %s532 = sphi 0, %s532
    %s534 = sphi 0, %s532
    %s535 = sphi 0, %s534
    %s549 = sphi 0, %s535
    %s553 = sphi 0, %s553
    %s555 = sphi 0, %s553
    %s556 = sphi 0, %s555
    %s570 = sphi 0, %s556
    %s574 = sphi 0, %s574
    %s576 = sphi 0, %s574
    %s577 = sphi 0, %s576
    %s591 = sphi 0, %s577
    %s595 = sphi 0, %s595
    %s597 = sphi 0, %s595
    %s598 = sphi 0, %s597
    %s612 = sphi 0, %s598
    %s616 = sphi 0, %s616
    %s618 = sphi 0, %s616
    %s619 = sphi 0, %s618
    %s633 = sphi 0, %s619
    %s637 = sphi 0, %s637
    %s639 = sphi 0, %s637
    %s640 = sphi 0, %s639
    %s654 = sphi 0, %s640
    %s658 = sphi 0, %s658
    %s660 = sphi 0, %s658
    %s661 = sphi 0, %s660
    %s675 = sphi 0, %s661
    %s679 = sphi 0, %s679
    %s681 = sphi 0, %s679
    %s682 = sphi 0, %s681
    %s696 = sphi 0, %s682
    %s700 = sphi 0, %s700
    %s702 = sphi 0, %s700
    %s703 = sphi 0, %s702
    %s717 = sphi 0, %s703
    %s721 = sphi 0, %s721
    %s723 = sphi 0, %s721
    %s724 = sphi 0, %s723
    %s738 = sphi 0, %s724
    %s742 = sphi 0, %s742
    %s744 = sphi 0, %s742
    %s745 = sphi 0, %s744
    %s759 = sphi 0, %s745
    %s763 = sphi 0, %s763
    %s765 = sphi 0, %s763
    %s766 = sphi 0, %s765
    %s780 = sphi 0, %s766
    %s784 = sphi 0, %s784
    %s786 = sphi 0, %s784
    %s787 = sphi 0, %s786
    %s801 = sphi 0, %s787
    %s805 = sphi 0, %s805
    %s807 = sphi 0, %s805
    %s808 = sphi 0, %s807
    %s822 = sphi 0, %s808
    %s826 = sphi 0, %s826
    %s828 = sphi 0, %s826
    %s829 = sphi 0, %s828
    %s843 = sphi 0, %s829
    %s849 = sphi 0, %s851
    %s852 = sphi 0, %s849
    %s853 = sphi 0, %s852
    %s869 = sphi 0, %s853
  $region4: #{decoder_forward.1} parent=0 // loop_header_branch
    %82 = sbr.rel (%p80) target = $region8
  $region5: #{decoder_forward.1} parent=0 // loop_body
    %s84 = ssub.s32 %s79, 1
    %s85 = ssub.s32 %s79, 2
    %s86 = sadd.s32 %s79, 1
    %s87 = ssub.s32 %s79, %s86
    %p88 = scmp.eq.s32.totalorder %s87, 0
    %s90 = sadd.s32 %s89, 1
    %s91 = scalar_select %p88, %s89, %s90
    %p94 = pneg %p88
    %p95 = scmp.eq.s32.totalorder %s79, 1
    %p96 = por %p94, %p95
    %p97 = scmp.ne.s32.totalorder %s89, %s92
    %p98 = scmp.eq.s32.totalorder %s79, 0
    %p99 = por %p97, %p98
    %p100 = scmp.ne.s32.totalorder %s89, %s92
    %p101 = scmp.eq.s32.totalorder %s84, 1
    %p102 = por %p100, %p101
    %p103 = scmp.ne.s32.totalorder %s92, %s93
    %p104 = scmp.eq.s32.totalorder %s84, 0
    %p105 = por %p103, %p104
    %p106 = scmp.ne.s32.totalorder %s92, %s93
    %p107 = scmp.eq.s32.totalorder %s85, 1
    %p108 = por %p106, %p107
    %p110 = scmp.ne.s32.totalorder %s93, %s109
    %p111 = scmp.eq.s32.totalorder %s85, 0
    %p112 = por %p110, %p111
    %s113 = ssub.s32 %s79, %s86
    %p114 = scmp.eq.s32.totalorder %s113, 0
    %s116 = sadd.s32 %s115, 1
    %s117 = scalar_select %p114, %s115, %s116
    %p120 = pneg %p114
    %p121 = scmp.eq.s32.totalorder %s79, 1
    %p122 = por %p120, %p121
    %p123 = scmp.ne.s32.totalorder %s115, %s118
    %p124 = scmp.eq.s32.totalorder %s79, 0
    %p125 = por %p123, %p124
    %p126 = scmp.ne.s32.totalorder %s115, %s118
    %p127 = scmp.eq.s32.totalorder %s84, 1
    %p128 = por %p126, %p127
    %p129 = scmp.ne.s32.totalorder %s118, %s119
    %p130 = scmp.eq.s32.totalorder %s84, 0
    %p131 = por %p129, %p130
    %p132 = scmp.ne.s32.totalorder %s118, %s119
    %p133 = scmp.eq.s32.totalorder %s85, 1
    %p134 = por %p132, %p133
    %p136 = scmp.ne.s32.totalorder %s119, %s135
    %p137 = scmp.eq.s32.totalorder %s85, 0
    %p138 = por %p136, %p137
    %s139 = ssub.s32 %s79, %s86
    %p140 = scmp.eq.s32.totalorder %s139, 0
    %s142 = sadd.s32 %s141, 1
    %s143 = scalar_select %p140, %s141, %s142
    %p146 = pneg %p140
    %p147 = scmp.eq.s32.totalorder %s79, 1
    %p148 = por %p146, %p147
    %p149 = scmp.ne.s32.totalorder %s141, %s144
    %p150 = scmp.eq.s32.totalorder %s79, 0
    %p151 = por %p149, %p150
    %p152 = scmp.ne.s32.totalorder %s141, %s144
    %p153 = scmp.eq.s32.totalorder %s84, 1
    %p154 = por %p152, %p153
    %p155 = scmp.ne.s32.totalorder %s144, %s145
    %p156 = scmp.eq.s32.totalorder %s84, 0
    %p157 = por %p155, %p156
    %p158 = scmp.ne.s32.totalorder %s144, %s145
    %p159 = scmp.eq.s32.totalorder %s85, 1
    %p160 = por %p158, %p159
    %p162 = scmp.ne.s32.totalorder %s145, %s161
    %p163 = scmp.eq.s32.totalorder %s85, 0
    %p164 = por %p162, %p163
    %s165 = ssub.s32 %s79, %s86
    %p166 = scmp.eq.s32.totalorder %s165, 0
    %s168 = sadd.s32 %s167, 1
    %s169 = scalar_select %p166, %s167, %s168
    %p172 = pneg %p166
    %p173 = scmp.eq.s32.totalorder %s79, 1
    %p174 = por %p172, %p173
    %p175 = scmp.ne.s32.totalorder %s167, %s170
    %p176 = scmp.eq.s32.totalorder %s79, 0
    %p177 = por %p175, %p176
    %p178 = scmp.ne.s32.totalorder %s167, %s170
    %p179 = scmp.eq.s32.totalorder %s84, 1
    %p180 = por %p178, %p179
    %p181 = scmp.ne.s32.totalorder %s170, %s171
    %p182 = scmp.eq.s32.totalorder %s84, 0
    %p183 = por %p181, %p182
    %p184 = scmp.ne.s32.totalorder %s170, %s171
    %p185 = scmp.eq.s32.totalorder %s85, 1
    %p186 = por %p184, %p185
    %p188 = scmp.ne.s32.totalorder %s171, %s187
    %p189 = scmp.eq.s32.totalorder %s85, 0
    %p190 = por %p188, %p189
    %s191 = ssub.s32 %s79, %s86
    %p192 = scmp.eq.s32.totalorder %s191, 0
    %s194 = sadd.s32 %s193, 1
    %s195 = scalar_select %p192, %s193, %s194
    %p198 = pneg %p192
    %p199 = scmp.eq.s32.totalorder %s79, 1
    %p200 = por %p198, %p199
    %p201 = scmp.ne.s32.totalorder %s193, %s196
    %p202 = scmp.eq.s32.totalorder %s79, 0
    %p203 = por %p201, %p202
    %p204 = scmp.ne.s32.totalorder %s193, %s196
    %p205 = scmp.eq.s32.totalorder %s84, 1
    %p206 = por %p204, %p205
    %p207 = scmp.ne.s32.totalorder %s196, %s197
    %p208 = scmp.eq.s32.totalorder %s84, 0
    %p209 = por %p207, %p208
    %p210 = scmp.ne.s32.totalorder %s196, %s197
    %p211 = scmp.eq.s32.totalorder %s85, 1
    %p212 = por %p210, %p211
    %p214 = scmp.ne.s32.totalorder %s197, %s213
    %p215 = scmp.eq.s32.totalorder %s85, 0
    %p216 = por %p214, %p215
    %s218 = sadd.s32 %s217, 1
    %p221 = scmp.eq.s32.totalorder %s79, 1
    %p222 = scmp.ne.s32.totalorder %s217, %s219
    %p223 = scmp.eq.s32.totalorder %s79, 0
    %p224 = por %p222, %p223
    %p225 = scmp.ne.s32.totalorder %s217, %s219
    %p226 = scmp.eq.s32.totalorder %s84, 1
    %p227 = por %p225, %p226
    %p228 = scmp.ne.s32.totalorder %s219, %s220
    %p229 = scmp.eq.s32.totalorder %s84, 0
    %p230 = por %p228, %p229
    %p231 = scmp.ne.s32.totalorder %s219, %s220
    %p232 = scmp.eq.s32.totalorder %s85, 1
    %p233 = por %p231, %p232
    %p235 = scmp.ne.s32.totalorder %s220, %s234
    %p236 = scmp.eq.s32.totalorder %s85, 0
    %p237 = por %p235, %p236
    %s239 = sadd.s32 %s238, 1
    %p242 = scmp.eq.s32.totalorder %s79, 1
    %p243 = scmp.ne.s32.totalorder %s238, %s240
    %p244 = scmp.eq.s32.totalorder %s79, 0
    %p245 = por %p243, %p244
    %p246 = scmp.ne.s32.totalorder %s238, %s240
    %p247 = scmp.eq.s32.totalorder %s84, 1
    %p248 = por %p246, %p247
    %p249 = scmp.ne.s32.totalorder %s240, %s241
    %p250 = scmp.eq.s32.totalorder %s84, 0
    %p251 = por %p249, %p250
    %p252 = scmp.ne.s32.totalorder %s240, %s241
    %p253 = scmp.eq.s32.totalorder %s85, 1
    %p254 = por %p252, %p253
    %p256 = scmp.ne.s32.totalorder %s241, %s255
    %p257 = scmp.eq.s32.totalorder %s85, 0
    %p258 = por %p256, %p257
    %s260 = sadd.s32 %s259, 1
    %p263 = scmp.eq.s32.totalorder %s79, 1
    %p264 = scmp.ne.s32.totalorder %s259, %s261
    %p265 = scmp.eq.s32.totalorder %s79, 0
    %p266 = por %p264, %p265
    %p267 = scmp.ne.s32.totalorder %s259, %s261
    %p268 = scmp.eq.s32.totalorder %s84, 1
    %p269 = por %p267, %p268
    %p270 = scmp.ne.s32.totalorder %s261, %s262
    %p271 = scmp.eq.s32.totalorder %s84, 0
    %p272 = por %p270, %p271
    %p273 = scmp.ne.s32.totalorder %s261, %s262
    %p274 = scmp.eq.s32.totalorder %s85, 1
    %p275 = por %p273, %p274
    %p277 = scmp.ne.s32.totalorder %s262, %s276
    %p278 = scmp.eq.s32.totalorder %s85, 0
    %p279 = por %p277, %p278
    %s281 = sadd.s32 %s280, 1
    %p284 = scmp.eq.s32.totalorder %s79, 1
    %p285 = scmp.ne.s32.totalorder %s280, %s282
    %p286 = scmp.eq.s32.totalorder %s79, 0
    %p287 = por %p285, %p286
    %p288 = scmp.ne.s32.totalorder %s280, %s282
    %p289 = scmp.eq.s32.totalorder %s84, 1
    %p290 = por %p288, %p289
    %p291 = scmp.ne.s32.totalorder %s282, %s283
    %p292 = scmp.eq.s32.totalorder %s84, 0
    %p293 = por %p291, %p292
    %p294 = scmp.ne.s32.totalorder %s282, %s283
    %p295 = scmp.eq.s32.totalorder %s85, 1
    %p296 = por %p294, %p295
    %p298 = scmp.ne.s32.totalorder %s283, %s297
    %p299 = scmp.eq.s32.totalorder %s85, 0
    %p300 = por %p298, %p299
    %s302 = sadd.s32 %s301, 1
    %p305 = scmp.eq.s32.totalorder %s79, 1
    %p306 = scmp.ne.s32.totalorder %s301, %s303
    %p307 = scmp.eq.s32.totalorder %s79, 0
    %p308 = por %p306, %p307
    %p309 = scmp.ne.s32.totalorder %s301, %s303
    %p310 = scmp.eq.s32.totalorder %s84, 1
    %p311 = por %p309, %p310
    %p312 = scmp.ne.s32.totalorder %s303, %s304
    %p313 = scmp.eq.s32.totalorder %s84, 0
    %p314 = por %p312, %p313
    %p315 = scmp.ne.s32.totalorder %s303, %s304
    %p316 = scmp.eq.s32.totalorder %s85, 1
    %p317 = por %p315, %p316
    %p319 = scmp.ne.s32.totalorder %s304, %s318
    %p320 = scmp.eq.s32.totalorder %s85, 0
    %p321 = por %p319, %p320
    %s323 = sadd.s32 %s322, 1
    %p326 = scmp.eq.s32.totalorder %s79, 1
    %p327 = scmp.ne.s32.totalorder %s322, %s324
    %p328 = scmp.eq.s32.totalorder %s79, 0
    %p329 = por %p327, %p328
    %p330 = scmp.ne.s32.totalorder %s322, %s324
    %p331 = scmp.eq.s32.totalorder %s84, 1
    %p332 = por %p330, %p331
    %p333 = scmp.ne.s32.totalorder %s324, %s325
    %p334 = scmp.eq.s32.totalorder %s84, 0
    %p335 = por %p333, %p334
    %p336 = scmp.ne.s32.totalorder %s324, %s325
    %p337 = scmp.eq.s32.totalorder %s85, 1
    %p338 = por %p336, %p337
    %p340 = scmp.ne.s32.totalorder %s325, %s339
    %p341 = scmp.eq.s32.totalorder %s85, 0
    %p342 = por %p340, %p341
    %s344 = sadd.s32 %s343, 1
    %p347 = scmp.eq.s32.totalorder %s79, 1
    %p348 = scmp.ne.s32.totalorder %s343, %s345
    %p349 = scmp.eq.s32.totalorder %s79, 0
    %p350 = por %p348, %p349
    %p351 = scmp.ne.s32.totalorder %s343, %s345
    %p352 = scmp.eq.s32.totalorder %s84, 1
    %p353 = por %p351, %p352
    %p354 = scmp.ne.s32.totalorder %s345, %s346
    %p355 = scmp.eq.s32.totalorder %s84, 0
    %p356 = por %p354, %p355
    %p357 = scmp.ne.s32.totalorder %s345, %s346
    %p358 = scmp.eq.s32.totalorder %s85, 1
    %p359 = por %p357, %p358
    %p361 = scmp.ne.s32.totalorder %s346, %s360
    %p362 = scmp.eq.s32.totalorder %s85, 0
    %p363 = por %p361, %p362
    %s365 = sadd.s32 %s364, 1
    %p368 = scmp.eq.s32.totalorder %s79, 1
    %p369 = scmp.ne.s32.totalorder %s364, %s366
    %p370 = scmp.eq.s32.totalorder %s79, 0
    %p371 = por %p369, %p370
    %p372 = scmp.ne.s32.totalorder %s364, %s366
    %p373 = scmp.eq.s32.totalorder %s84, 1
    %p374 = por %p372, %p373
    %p375 = scmp.ne.s32.totalorder %s366, %s367
    %p376 = scmp.eq.s32.totalorder %s84, 0
    %p377 = por %p375, %p376
    %p378 = scmp.ne.s32.totalorder %s366, %s367
    %p379 = scmp.eq.s32.totalorder %s85, 1
    %p380 = por %p378, %p379
    %p382 = scmp.ne.s32.totalorder %s367, %s381
    %p383 = scmp.eq.s32.totalorder %s85, 0
    %p384 = por %p382, %p383
    %s386 = sadd.s32 %s385, 1
    %p389 = scmp.eq.s32.totalorder %s79, 1
    %p390 = scmp.ne.s32.totalorder %s385, %s387
    %p391 = scmp.eq.s32.totalorder %s79, 0
    %p392 = por %p390, %p391
    %p393 = scmp.ne.s32.totalorder %s385, %s387
    %p394 = scmp.eq.s32.totalorder %s84, 1
    %p395 = por %p393, %p394
    %p396 = scmp.ne.s32.totalorder %s387, %s388
    %p397 = scmp.eq.s32.totalorder %s84, 0
    %p398 = por %p396, %p397
    %p399 = scmp.ne.s32.totalorder %s387, %s388
    %p400 = scmp.eq.s32.totalorder %s85, 1
    %p401 = por %p399, %p400
    %p403 = scmp.ne.s32.totalorder %s388, %s402
    %p404 = scmp.eq.s32.totalorder %s85, 0
    %p405 = por %p403, %p404
    %s407 = sadd.s32 %s406, 1
    %p410 = scmp.eq.s32.totalorder %s79, 1
    %p411 = scmp.ne.s32.totalorder %s406, %s408
    %p412 = scmp.eq.s32.totalorder %s79, 0
    %p413 = por %p411, %p412
    %p414 = scmp.ne.s32.totalorder %s406, %s408
    %p415 = scmp.eq.s32.totalorder %s84, 1
    %p416 = por %p414, %p415
    %p417 = scmp.ne.s32.totalorder %s408, %s409
    %p418 = scmp.eq.s32.totalorder %s84, 0
    %p419 = por %p417, %p418
    %p420 = scmp.ne.s32.totalorder %s408, %s409
    %p421 = scmp.eq.s32.totalorder %s85, 1
    %p422 = por %p420, %p421
    %p424 = scmp.ne.s32.totalorder %s409, %s423
    %p425 = scmp.eq.s32.totalorder %s85, 0
    %p426 = por %p424, %p425
    %s428 = sadd.s32 %s427, 1
    %p431 = scmp.eq.s32.totalorder %s79, 1
    %p432 = scmp.ne.s32.totalorder %s427, %s429
    %p433 = scmp.eq.s32.totalorder %s79, 0
    %p434 = por %p432, %p433
    %p435 = scmp.ne.s32.totalorder %s427, %s429
    %p436 = scmp.eq.s32.totalorder %s84, 1
    %p437 = por %p435, %p436
    %p438 = scmp.ne.s32.totalorder %s429, %s430
    %p439 = scmp.eq.s32.totalorder %s84, 0
    %p440 = por %p438, %p439
    %p441 = scmp.ne.s32.totalorder %s429, %s430
    %p442 = scmp.eq.s32.totalorder %s85, 1
    %p443 = por %p441, %p442
    %p445 = scmp.ne.s32.totalorder %s430, %s444
    %p446 = scmp.eq.s32.totalorder %s85, 0
    %p447 = por %p445, %p446
    %s449 = sadd.s32 %s448, 1
    %p452 = scmp.eq.s32.totalorder %s79, 1
    %p453 = scmp.ne.s32.totalorder %s448, %s450
    %p454 = scmp.eq.s32.totalorder %s79, 0
    %p455 = por %p453, %p454
    %p456 = scmp.ne.s32.totalorder %s448, %s450
    %p457 = scmp.eq.s32.totalorder %s84, 1
    %p458 = por %p456, %p457
    %p459 = scmp.ne.s32.totalorder %s450, %s451
    %p460 = scmp.eq.s32.totalorder %s84, 0
    %p461 = por %p459, %p460
    %p462 = scmp.ne.s32.totalorder %s450, %s451
    %p463 = scmp.eq.s32.totalorder %s85, 1
    %p464 = por %p462, %p463
    %p466 = scmp.ne.s32.totalorder %s451, %s465
    %p467 = scmp.eq.s32.totalorder %s85, 0
    %p468 = por %p466, %p467
    %s470 = sadd.s32 %s469, 1
    %p473 = scmp.eq.s32.totalorder %s79, 1
    %p474 = scmp.ne.s32.totalorder %s469, %s471
    %p475 = scmp.eq.s32.totalorder %s79, 0
    %p476 = por %p474, %p475
    %p477 = scmp.ne.s32.totalorder %s469, %s471
    %p478 = scmp.eq.s32.totalorder %s84, 1
    %p479 = por %p477, %p478
    %p480 = scmp.ne.s32.totalorder %s471, %s472
    %p481 = scmp.eq.s32.totalorder %s84, 0
    %p482 = por %p480, %p481
    %p483 = scmp.ne.s32.totalorder %s471, %s472
    %p484 = scmp.eq.s32.totalorder %s85, 1
    %p485 = por %p483, %p484
    %p487 = scmp.ne.s32.totalorder %s472, %s486
    %p488 = scmp.eq.s32.totalorder %s85, 0
    %p489 = por %p487, %p488
    %s491 = sadd.s32 %s490, 1
    %p494 = scmp.eq.s32.totalorder %s79, 1
    %p495 = scmp.ne.s32.totalorder %s490, %s492
    %p496 = scmp.eq.s32.totalorder %s79, 0
    %p497 = por %p495, %p496
    %p498 = scmp.ne.s32.totalorder %s490, %s492
    %p499 = scmp.eq.s32.totalorder %s84, 1
    %p500 = por %p498, %p499
    %p501 = scmp.ne.s32.totalorder %s492, %s493
    %p502 = scmp.eq.s32.totalorder %s84, 0
    %p503 = por %p501, %p502
    %p504 = scmp.ne.s32.totalorder %s492, %s493
    %p505 = scmp.eq.s32.totalorder %s85, 1
    %p506 = por %p504, %p505
    %p508 = scmp.ne.s32.totalorder %s493, %s507
    %p509 = scmp.eq.s32.totalorder %s85, 0
    %p510 = por %p508, %p509
    %s512 = sadd.s32 %s511, 1
    %p515 = scmp.eq.s32.totalorder %s79, 1
    %p516 = scmp.ne.s32.totalorder %s511, %s513
    %p517 = scmp.eq.s32.totalorder %s79, 0
    %p518 = por %p516, %p517
    %p519 = scmp.ne.s32.totalorder %s511, %s513
    %p520 = scmp.eq.s32.totalorder %s84, 1
    %p521 = por %p519, %p520
    %p522 = scmp.ne.s32.totalorder %s513, %s514
    %p523 = scmp.eq.s32.totalorder %s84, 0
    %p524 = por %p522, %p523
    %p525 = scmp.ne.s32.totalorder %s513, %s514
    %p526 = scmp.eq.s32.totalorder %s85, 1
    %p527 = por %p525, %p526
    %p529 = scmp.ne.s32.totalorder %s514, %s528
    %p530 = scmp.eq.s32.totalorder %s85, 0
    %p531 = por %p529, %p530
    %s533 = sadd.s32 %s532, 1
    %p536 = scmp.eq.s32.totalorder %s79, 1
    %p537 = scmp.ne.s32.totalorder %s532, %s534
    %p538 = scmp.eq.s32.totalorder %s79, 0
    %p539 = por %p537, %p538
    %p540 = scmp.ne.s32.totalorder %s532, %s534
    %p541 = scmp.eq.s32.totalorder %s84, 1
    %p542 = por %p540, %p541
    %p543 = scmp.ne.s32.totalorder %s534, %s535
    %p544 = scmp.eq.s32.totalorder %s84, 0
    %p545 = por %p543, %p544
    %p546 = scmp.ne.s32.totalorder %s534, %s535
    %p547 = scmp.eq.s32.totalorder %s85, 1
    %p548 = por %p546, %p547
    %p550 = scmp.ne.s32.totalorder %s535, %s549
    %p551 = scmp.eq.s32.totalorder %s85, 0
    %p552 = por %p550, %p551
    %s554 = sadd.s32 %s553, 1
    %p557 = scmp.eq.s32.totalorder %s79, 1
    %p558 = scmp.ne.s32.totalorder %s553, %s555
    %p559 = scmp.eq.s32.totalorder %s79, 0
    %p560 = por %p558, %p559
    %p561 = scmp.ne.s32.totalorder %s553, %s555
    %p562 = scmp.eq.s32.totalorder %s84, 1
    %p563 = por %p561, %p562
    %p564 = scmp.ne.s32.totalorder %s555, %s556
    %p565 = scmp.eq.s32.totalorder %s84, 0
    %p566 = por %p564, %p565
    %p567 = scmp.ne.s32.totalorder %s555, %s556
    %p568 = scmp.eq.s32.totalorder %s85, 1
    %p569 = por %p567, %p568
    %p571 = scmp.ne.s32.totalorder %s556, %s570
    %p572 = scmp.eq.s32.totalorder %s85, 0
    %p573 = por %p571, %p572
    %s575 = sadd.s32 %s574, 1
    %p578 = scmp.eq.s32.totalorder %s79, 1
    %p579 = scmp.ne.s32.totalorder %s574, %s576
    %p580 = scmp.eq.s32.totalorder %s79, 0
    %p581 = por %p579, %p580
    %p582 = scmp.ne.s32.totalorder %s574, %s576
    %p583 = scmp.eq.s32.totalorder %s84, 1
    %p584 = por %p582, %p583
    %p585 = scmp.ne.s32.totalorder %s576, %s577
    %p586 = scmp.eq.s32.totalorder %s84, 0
    %p587 = por %p585, %p586
    %p588 = scmp.ne.s32.totalorder %s576, %s577
    %p589 = scmp.eq.s32.totalorder %s85, 1
    %p590 = por %p588, %p589
    %p592 = scmp.ne.s32.totalorder %s577, %s591
    %p593 = scmp.eq.s32.totalorder %s85, 0
    %p594 = por %p592, %p593
    %s596 = sadd.s32 %s595, 1
    %p599 = scmp.eq.s32.totalorder %s79, 1
    %p600 = scmp.ne.s32.totalorder %s595, %s597
    %p601 = scmp.eq.s32.totalorder %s79, 0
    %p602 = por %p600, %p601
    %p603 = scmp.ne.s32.totalorder %s595, %s597
    %p604 = scmp.eq.s32.totalorder %s84, 1
    %p605 = por %p603, %p604
    %p606 = scmp.ne.s32.totalorder %s597, %s598
    %p607 = scmp.eq.s32.totalorder %s84, 0
    %p608 = por %p606, %p607
    %p609 = scmp.ne.s32.totalorder %s597, %s598
    %p610 = scmp.eq.s32.totalorder %s85, 1
    %p611 = por %p609, %p610
    %p613 = scmp.ne.s32.totalorder %s598, %s612
    %p614 = scmp.eq.s32.totalorder %s85, 0
    %p615 = por %p613, %p614
    %s617 = sadd.s32 %s616, 1
    %p620 = scmp.eq.s32.totalorder %s79, 1
    %p621 = scmp.ne.s32.totalorder %s616, %s618
    %p622 = scmp.eq.s32.totalorder %s79, 0
    %p623 = por %p621, %p622
    %p624 = scmp.ne.s32.totalorder %s616, %s618
    %p625 = scmp.eq.s32.totalorder %s84, 1
    %p626 = por %p624, %p625
    %p627 = scmp.ne.s32.totalorder %s618, %s619
    %p628 = scmp.eq.s32.totalorder %s84, 0
    %p629 = por %p627, %p628
    %p630 = scmp.ne.s32.totalorder %s618, %s619
    %p631 = scmp.eq.s32.totalorder %s85, 1
    %p632 = por %p630, %p631
    %p634 = scmp.ne.s32.totalorder %s619, %s633
    %p635 = scmp.eq.s32.totalorder %s85, 0
    %p636 = por %p634, %p635
    %s638 = sadd.s32 %s637, 1
    %p641 = scmp.eq.s32.totalorder %s79, 1
    %p642 = scmp.ne.s32.totalorder %s637, %s639
    %p643 = scmp.eq.s32.totalorder %s79, 0
    %p644 = por %p642, %p643
    %p645 = scmp.ne.s32.totalorder %s637, %s639
    %p646 = scmp.eq.s32.totalorder %s84, 1
    %p647 = por %p645, %p646
    %p648 = scmp.ne.s32.totalorder %s639, %s640
    %p649 = scmp.eq.s32.totalorder %s84, 0
    %p650 = por %p648, %p649
    %p651 = scmp.ne.s32.totalorder %s639, %s640
    %p652 = scmp.eq.s32.totalorder %s85, 1
    %p653 = por %p651, %p652
    %p655 = scmp.ne.s32.totalorder %s640, %s654
    %p656 = scmp.eq.s32.totalorder %s85, 0
    %p657 = por %p655, %p656
    %s659 = sadd.s32 %s658, 1
    %p662 = scmp.eq.s32.totalorder %s79, 1
    %p663 = scmp.ne.s32.totalorder %s658, %s660
    %p664 = scmp.eq.s32.totalorder %s79, 0
    %p665 = por %p663, %p664
    %p666 = scmp.ne.s32.totalorder %s658, %s660
    %p667 = scmp.eq.s32.totalorder %s84, 1
    %p668 = por %p666, %p667
    %p669 = scmp.ne.s32.totalorder %s660, %s661
    %p670 = scmp.eq.s32.totalorder %s84, 0
    %p671 = por %p669, %p670
    %p672 = scmp.ne.s32.totalorder %s660, %s661
    %p673 = scmp.eq.s32.totalorder %s85, 1
    %p674 = por %p672, %p673
    %p676 = scmp.ne.s32.totalorder %s661, %s675
    %p677 = scmp.eq.s32.totalorder %s85, 0
    %p678 = por %p676, %p677
    %s680 = sadd.s32 %s679, 1
    %p683 = scmp.eq.s32.totalorder %s79, 1
    %p684 = scmp.ne.s32.totalorder %s679, %s681
    %p685 = scmp.eq.s32.totalorder %s79, 0
    %p686 = por %p684, %p685
    %p687 = scmp.ne.s32.totalorder %s679, %s681
    %p688 = scmp.eq.s32.totalorder %s84, 1
    %p689 = por %p687, %p688
    %p690 = scmp.ne.s32.totalorder %s681, %s682
    %p691 = scmp.eq.s32.totalorder %s84, 0
    %p692 = por %p690, %p691
    %p693 = scmp.ne.s32.totalorder %s681, %s682
    %p694 = scmp.eq.s32.totalorder %s85, 1
    %p695 = por %p693, %p694
    %p697 = scmp.ne.s32.totalorder %s682, %s696
    %p698 = scmp.eq.s32.totalorder %s85, 0
    %p699 = por %p697, %p698
    %s701 = sadd.s32 %s700, 1
    %p704 = scmp.eq.s32.totalorder %s79, 1
    %p705 = scmp.ne.s32.totalorder %s700, %s702
    %p706 = scmp.eq.s32.totalorder %s79, 0
    %p707 = por %p705, %p706
    %p708 = scmp.ne.s32.totalorder %s700, %s702
    %p709 = scmp.eq.s32.totalorder %s84, 1
    %p710 = por %p708, %p709
    %p711 = scmp.ne.s32.totalorder %s702, %s703
    %p712 = scmp.eq.s32.totalorder %s84, 0
    %p713 = por %p711, %p712
    %p714 = scmp.ne.s32.totalorder %s702, %s703
    %p715 = scmp.eq.s32.totalorder %s85, 1
    %p716 = por %p714, %p715
    %p718 = scmp.ne.s32.totalorder %s703, %s717
    %p719 = scmp.eq.s32.totalorder %s85, 0
    %p720 = por %p718, %p719
    %s722 = sadd.s32 %s721, 1
    %p725 = scmp.eq.s32.totalorder %s79, 1
    %p726 = scmp.ne.s32.totalorder %s721, %s723
    %p727 = scmp.eq.s32.totalorder %s79, 0
    %p728 = por %p726, %p727
    %p729 = scmp.ne.s32.totalorder %s721, %s723
    %p730 = scmp.eq.s32.totalorder %s84, 1
    %p731 = por %p729, %p730
    %p732 = scmp.ne.s32.totalorder %s723, %s724
    %p733 = scmp.eq.s32.totalorder %s84, 0
    %p734 = por %p732, %p733
    %p735 = scmp.ne.s32.totalorder %s723, %s724
    %p736 = scmp.eq.s32.totalorder %s85, 1
    %p737 = por %p735, %p736
    %p739 = scmp.ne.s32.totalorder %s724, %s738
    %p740 = scmp.eq.s32.totalorder %s85, 0
    %p741 = por %p739, %p740
    %s743 = sadd.s32 %s742, 1
    %p746 = scmp.eq.s32.totalorder %s79, 1
    %p747 = scmp.ne.s32.totalorder %s742, %s744
    %p748 = scmp.eq.s32.totalorder %s79, 0
    %p749 = por %p747, %p748
    %p750 = scmp.ne.s32.totalorder %s742, %s744
    %p751 = scmp.eq.s32.totalorder %s84, 1
    %p752 = por %p750, %p751
    %p753 = scmp.ne.s32.totalorder %s744, %s745
    %p754 = scmp.eq.s32.totalorder %s84, 0
    %p755 = por %p753, %p754
    %p756 = scmp.ne.s32.totalorder %s744, %s745
    %p757 = scmp.eq.s32.totalorder %s85, 1
    %p758 = por %p756, %p757
    %p760 = scmp.ne.s32.totalorder %s745, %s759
    %p761 = scmp.eq.s32.totalorder %s85, 0
    %p762 = por %p760, %p761
    %s764 = sadd.s32 %s763, 1
    %p767 = scmp.eq.s32.totalorder %s79, 1
    %p768 = scmp.ne.s32.totalorder %s763, %s765
    %p769 = scmp.eq.s32.totalorder %s79, 0
    %p770 = por %p768, %p769
    %p771 = scmp.ne.s32.totalorder %s763, %s765
    %p772 = scmp.eq.s32.totalorder %s84, 1
    %p773 = por %p771, %p772
    %p774 = scmp.ne.s32.totalorder %s765, %s766
    %p775 = scmp.eq.s32.totalorder %s84, 0
    %p776 = por %p774, %p775
    %p777 = scmp.ne.s32.totalorder %s765, %s766
    %p778 = scmp.eq.s32.totalorder %s85, 1
    %p779 = por %p777, %p778
    %p781 = scmp.ne.s32.totalorder %s766, %s780
    %p782 = scmp.eq.s32.totalorder %s85, 0
    %p783 = por %p781, %p782
    %s785 = sadd.s32 %s784, 1
    %p788 = scmp.eq.s32.totalorder %s79, 1
    %p789 = scmp.ne.s32.totalorder %s784, %s786
    %p790 = scmp.eq.s32.totalorder %s79, 0
    %p791 = por %p789, %p790
    %p792 = scmp.ne.s32.totalorder %s784, %s786
    %p793 = scmp.eq.s32.totalorder %s84, 1
    %p794 = por %p792, %p793
    %p795 = scmp.ne.s32.totalorder %s786, %s787
    %p796 = scmp.eq.s32.totalorder %s84, 0
    %p797 = por %p795, %p796
    %p798 = scmp.ne.s32.totalorder %s786, %s787
    %p799 = scmp.eq.s32.totalorder %s85, 1
    %p800 = por %p798, %p799
    %p802 = scmp.ne.s32.totalorder %s787, %s801
    %p803 = scmp.eq.s32.totalorder %s85, 0
    %p804 = por %p802, %p803
    %s806 = sadd.s32 %s805, 1
    %p809 = scmp.eq.s32.totalorder %s79, 1
    %p810 = scmp.ne.s32.totalorder %s805, %s807
    %p811 = scmp.eq.s32.totalorder %s79, 0
    %p812 = por %p810, %p811
    %p813 = scmp.ne.s32.totalorder %s805, %s807
    %p814 = scmp.eq.s32.totalorder %s84, 1
    %p815 = por %p813, %p814
    %p816 = scmp.ne.s32.totalorder %s807, %s808
    %p817 = scmp.eq.s32.totalorder %s84, 0
    %p818 = por %p816, %p817
    %p819 = scmp.ne.s32.totalorder %s807, %s808
    %p820 = scmp.eq.s32.totalorder %s85, 1
    %p821 = por %p819, %p820
    %p823 = scmp.ne.s32.totalorder %s808, %s822
    %p824 = scmp.eq.s32.totalorder %s85, 0
    %p825 = por %p823, %p824
    %s827 = sadd.s32 %s826, 1
    %p830 = scmp.eq.s32.totalorder %s79, 1
    %p831 = scmp.ne.s32.totalorder %s826, %s828
    %p832 = scmp.eq.s32.totalorder %s79, 0
    %p833 = por %p831, %p832
    %p834 = scmp.ne.s32.totalorder %s826, %s828
    %p835 = scmp.eq.s32.totalorder %s84, 1
    %p836 = por %p834, %p835
    %p837 = scmp.ne.s32.totalorder %s828, %s829
    %p838 = scmp.eq.s32.totalorder %s84, 0
    %p839 = por %p837, %p838
    %p840 = scmp.ne.s32.totalorder %s828, %s829
    %p841 = scmp.eq.s32.totalorder %s85, 1
    %p842 = por %p840, %p841
    %p844 = scmp.ne.s32.totalorder %s829, %s843
    %p845 = scmp.eq.s32.totalorder %s85, 0
    %p846 = por %p844, %p845
    %s847 = ssub.s32 %s79, %s86
    %p848 = scmp.eq.s32.totalorder %s847, 0
    %s850 = sadd.s32 %s849, 1
    %s851 = scalar_select %p848, %s849, %s850
    %p854 = pneg %p848
    %p855 = scmp.eq.s32.totalorder %s79, 1
    %p856 = por %p854, %p855
    %p857 = scmp.ne.s32.totalorder %s849, %s852
    %p858 = scmp.eq.s32.totalorder %s79, 0
    %p859 = por %p857, %p858
    %p860 = scmp.ne.s32.totalorder %s849, %s852
    %p861 = scmp.eq.s32.totalorder %s84, 1
    %p862 = por %p860, %p861
    %p863 = scmp.ne.s32.totalorder %s852, %s853
    %p864 = scmp.eq.s32.totalorder %s84, 0
    %p865 = por %p863, %p864
    %p866 = scmp.ne.s32.totalorder %s852, %s853
    %p867 = scmp.eq.s32.totalorder %s85, 1
    %p868 = por %p866, %p867
    %p870 = scmp.ne.s32.totalorder %s853, %s869
    %p871 = scmp.eq.s32.totalorder %s85, 0
    %p872 = por %p870, %p871
    %p873 = scmp.le.s32.totalorder 1, %s79
    %p874 = scmp.lt.s32.totalorder %s79, 3
    %p875 = pnand %p873, %p874
    %p876 = pneg %p875
    // Predicated region
    $region9: #{decoder_forward.1} parent=5 // pred_check
      _
    $region10: #{decoder_forward.1} parent=5 // pred_check_branch
      %878 = sbr.rel (%p875) target = $region12
    $region11: #{decoder_forward.1} parent=5 // pred_region
      %s879 = ssub.s32 %s79, 1
      // Predicated region
      $region13: #{decoder_forward.1} parent=11 // pred_check
        %p880 = pneg %p230
      $region14: #{decoder_forward.1} parent=11 // pred_check_branch
        %882 = sbr.rel (%p880) target = $region16
      $region15: #{decoder_forward.1} parent=11 // pred_region
        _
      $region16: #{decoder_forward.1} parent=11 // pred_fallthru
        _
      // Predicated region
      $region17: #{decoder_forward.1} parent=11 // pred_check
        %p883 = pneg %p251
      $region18: #{decoder_forward.1} parent=11 // pred_check_branch
        %885 = sbr.rel (%p883) target = $region20
      $region19: #{decoder_forward.1} parent=11 // pred_region
        _
      $region20: #{decoder_forward.1} parent=11 // pred_fallthru
        _
      // Predicated region
      $region21: #{decoder_forward.1} parent=11 // pred_check
        %p886 = pneg %p272
      $region22: #{decoder_forward.1} parent=11 // pred_check_branch
        %888 = sbr.rel (%p886) target = $region24
      $region23: #{decoder_forward.1} parent=11 // pred_region
        _
      $region24: #{decoder_forward.1} parent=11 // pred_fallthru
        _
      // Predicated region
      $region25: #{decoder_forward.1} parent=11 // pred_check
        %p889 = pneg %p293
      $region26: #{decoder_forward.1} parent=11 // pred_check_branch
        %891 = sbr.rel (%p889) target = $region28
      $region27: #{decoder_forward.1} parent=11 // pred_region
        _
      $region28: #{decoder_forward.1} parent=11 // pred_fallthru
        _
      // Predicated region
      $region29: #{decoder_forward.1} parent=11 // pred_check
        %p892 = pneg %p314
      $region30: #{decoder_forward.1} parent=11 // pred_check_branch
        %894 = sbr.rel (%p892) target = $region32
      $region31: #{decoder_forward.1} parent=11 // pred_region
        _
      $region32: #{decoder_forward.1} parent=11 // pred_fallthru
        _
      // Predicated region
      $region33: #{decoder_forward.1} parent=11 // pred_check
        %p895 = pneg %p335
      $region34: #{decoder_forward.1} parent=11 // pred_check_branch
        %897 = sbr.rel (%p895) target = $region36
      $region35: #{decoder_forward.1} parent=11 // pred_region
        _
      $region36: #{decoder_forward.1} parent=11 // pred_fallthru
        _
      // Predicated region
      $region37: #{decoder_forward.1} parent=11 // pred_check
        %p898 = pneg %p356
      $region38: #{decoder_forward.1} parent=11 // pred_check_branch
        %900 = sbr.rel (%p898) target = $region40
      $region39: #{decoder_forward.1} parent=11 // pred_region
        _
      $region40: #{decoder_forward.1} parent=11 // pred_fallthru
        _
      // Predicated region
      $region41: #{decoder_forward.1} parent=11 // pred_check
        %p901 = pneg %p377
      $region42: #{decoder_forward.1} parent=11 // pred_check_branch
        %903 = sbr.rel (%p901) target = $region44
      $region43: #{decoder_forward.1} parent=11 // pred_region
        _
      $region44: #{decoder_forward.1} parent=11 // pred_fallthru
        _
      // Predicated region
      $region45: #{decoder_forward.1} parent=11 // pred_check
        %p904 = pneg %p398
      $region46: #{decoder_forward.1} parent=11 // pred_check_branch
        %906 = sbr.rel (%p904) target = $region48
      $region47: #{decoder_forward.1} parent=11 // pred_region
        _
      $region48: #{decoder_forward.1} parent=11 // pred_fallthru
        _
      // Predicated region
      $region49: #{decoder_forward.1} parent=11 // pred_check
        %p907 = pneg %p419
      $region50: #{decoder_forward.1} parent=11 // pred_check_branch
        %909 = sbr.rel (%p907) target = $region52
      $region51: #{decoder_forward.1} parent=11 // pred_region
        _
      $region52: #{decoder_forward.1} parent=11 // pred_fallthru
        _
      // Predicated region
      $region53: #{decoder_forward.1} parent=11 // pred_check
        %p910 = pneg %p440
      $region54: #{decoder_forward.1} parent=11 // pred_check_branch
        %912 = sbr.rel (%p910) target = $region56
      $region55: #{decoder_forward.1} parent=11 // pred_region
        _
      $region56: #{decoder_forward.1} parent=11 // pred_fallthru
        _
      // Predicated region
      $region57: #{decoder_forward.1} parent=11 // pred_check
        %p913 = pneg %p461
      $region58: #{decoder_forward.1} parent=11 // pred_check_branch
        %915 = sbr.rel (%p913) target = $region60
      $region59: #{decoder_forward.1} parent=11 // pred_region
        _
      $region60: #{decoder_forward.1} parent=11 // pred_fallthru
        _
      // Predicated region
      $region61: #{decoder_forward.1} parent=11 // pred_check
        %p916 = pneg %p482
      $region62: #{decoder_forward.1} parent=11 // pred_check_branch
        %918 = sbr.rel (%p916) target = $region64
      $region63: #{decoder_forward.1} parent=11 // pred_region
        _
      $region64: #{decoder_forward.1} parent=11 // pred_fallthru
        _
      // Predicated region
      $region65: #{decoder_forward.1} parent=11 // pred_check
        %p919 = pneg %p503
      $region66: #{decoder_forward.1} parent=11 // pred_check_branch
        %921 = sbr.rel (%p919) target = $region68
      $region67: #{decoder_forward.1} parent=11 // pred_region
        _
      $region68: #{decoder_forward.1} parent=11 // pred_fallthru
        _
      // Predicated region
      $region69: #{decoder_forward.1} parent=11 // pred_check
        %p922 = pneg %p524
      $region70: #{decoder_forward.1} parent=11 // pred_check_branch
        %924 = sbr.rel (%p922) target = $region72
      $region71: #{decoder_forward.1} parent=11 // pred_region
        _
      $region72: #{decoder_forward.1} parent=11 // pred_fallthru
        _
      // Predicated region
      $region73: #{decoder_forward.1} parent=11 // pred_check
        %p925 = pneg %p545
      $region74: #{decoder_forward.1} parent=11 // pred_check_branch
        %927 = sbr.rel (%p925) target = $region76
      $region75: #{decoder_forward.1} parent=11 // pred_region
        _
      $region76: #{decoder_forward.1} parent=11 // pred_fallthru
        _
      // Predicated region
      $region77: #{decoder_forward.1} parent=11 // pred_check
        %p928 = pneg %p566
      $region78: #{decoder_forward.1} parent=11 // pred_check_branch
        %930 = sbr.rel (%p928) target = $region80
      $region79: #{decoder_forward.1} parent=11 // pred_region
        _
      $region80: #{decoder_forward.1} parent=11 // pred_fallthru
        _
      // Predicated region
      $region81: #{decoder_forward.1} parent=11 // pred_check
        %p931 = pneg %p587
      $region82: #{decoder_forward.1} parent=11 // pred_check_branch
        %933 = sbr.rel (%p931) target = $region84
      $region83: #{decoder_forward.1} parent=11 // pred_region
        _
      $region84: #{decoder_forward.1} parent=11 // pred_fallthru
        _
      // Predicated region
      $region85: #{decoder_forward.1} parent=11 // pred_check
        %p934 = pneg %p608
      $region86: #{decoder_forward.1} parent=11 // pred_check_branch
        %936 = sbr.rel (%p934) target = $region88
      $region87: #{decoder_forward.1} parent=11 // pred_region
        _
      $region88: #{decoder_forward.1} parent=11 // pred_fallthru
        _
      // Predicated region
      $region89: #{decoder_forward.1} parent=11 // pred_check
        %p937 = pneg %p629
      $region90: #{decoder_forward.1} parent=11 // pred_check_branch
        %939 = sbr.rel (%p937) target = $region92
      $region91: #{decoder_forward.1} parent=11 // pred_region
        _
      $region92: #{decoder_forward.1} parent=11 // pred_fallthru
        _
      // Predicated region
      $region93: #{decoder_forward.1} parent=11 // pred_check
        %p940 = pneg %p650
      $region94: #{decoder_forward.1} parent=11 // pred_check_branch
        %942 = sbr.rel (%p940) target = $region96
      $region95: #{decoder_forward.1} parent=11 // pred_region
        _
      $region96: #{decoder_forward.1} parent=11 // pred_fallthru
        _
      // Predicated region
      $region97: #{decoder_forward.1} parent=11 // pred_check
        %p943 = pneg %p671
      $region98: #{decoder_forward.1} parent=11 // pred_check_branch
        %945 = sbr.rel (%p943) target = $region100
      $region99: #{decoder_forward.1} parent=11 // pred_region
        _
      $region100: #{decoder_forward.1} parent=11 // pred_fallthru
        _
      // Predicated region
      $region101: #{decoder_forward.1} parent=11 // pred_check
        %p946 = pneg %p692
      $region102: #{decoder_forward.1} parent=11 // pred_check_branch
        %948 = sbr.rel (%p946) target = $region104
      $region103: #{decoder_forward.1} parent=11 // pred_region
        _
      $region104: #{decoder_forward.1} parent=11 // pred_fallthru
        _
      // Predicated region
      $region105: #{decoder_forward.1} parent=11 // pred_check
        %p949 = pneg %p713
      $region106: #{decoder_forward.1} parent=11 // pred_check_branch
        %951 = sbr.rel (%p949) target = $region108
      $region107: #{decoder_forward.1} parent=11 // pred_region
        _
      $region108: #{decoder_forward.1} parent=11 // pred_fallthru
        _
      // Predicated region
      $region109: #{decoder_forward.1} parent=11 // pred_check
        %p952 = pneg %p734
      $region110: #{decoder_forward.1} parent=11 // pred_check_branch
        %954 = sbr.rel (%p952) target = $region112
      $region111: #{decoder_forward.1} parent=11 // pred_region
        _
      $region112: #{decoder_forward.1} parent=11 // pred_fallthru
        _
      // Predicated region
      $region113: #{decoder_forward.1} parent=11 // pred_check
        %p955 = pneg %p755
      $region114: #{decoder_forward.1} parent=11 // pred_check_branch
        %957 = sbr.rel (%p955) target = $region116
      $region115: #{decoder_forward.1} parent=11 // pred_region
        _
      $region116: #{decoder_forward.1} parent=11 // pred_fallthru
        _
      // Predicated region
      $region117: #{decoder_forward.1} parent=11 // pred_check
        %p958 = pneg %p776
      $region118: #{decoder_forward.1} parent=11 // pred_check_branch
        %960 = sbr.rel (%p958) target = $region120
      $region119: #{decoder_forward.1} parent=11 // pred_region
        _
      $region120: #{decoder_forward.1} parent=11 // pred_fallthru
        _
      // Predicated region
      $region121: #{decoder_forward.1} parent=11 // pred_check
        %p961 = pneg %p797
      $region122: #{decoder_forward.1} parent=11 // pred_check_branch
        %963 = sbr.rel (%p961) target = $region124
      $region123: #{decoder_forward.1} parent=11 // pred_region
        _
      $region124: #{decoder_forward.1} parent=11 // pred_fallthru
        _
      // Predicated region
      $region125: #{decoder_forward.1} parent=11 // pred_check
        %p964 = pneg %p818
      $region126: #{decoder_forward.1} parent=11 // pred_check_branch
        %966 = sbr.rel (%p964) target = $region128
      $region127: #{decoder_forward.1} parent=11 // pred_region
        _
      $region128: #{decoder_forward.1} parent=11 // pred_fallthru
        _
      // Predicated region
      $region129: #{decoder_forward.1} parent=11 // pred_check
        %p967 = pneg %p839
      $region130: #{decoder_forward.1} parent=11 // pred_check_branch
        %969 = sbr.rel (%p967) target = $region132
      $region131: #{decoder_forward.1} parent=11 // pred_region
        _
      $region132: #{decoder_forward.1} parent=11 // pred_fallthru
        _
    $region12: #{decoder_forward.1} parent=5 // pred_fallthru
      _
    %p970 = scmp.lt.s32.totalorder %s79, 2
    // Predicated region
    $region133: #{decoder_forward.1} parent=5 // pred_check
      %p971 = pneg %p970
    $region134: #{decoder_forward.1} parent=5 // pred_check_branch
      %973 = sbr.rel (%p971) target = $region136
    $region135: #{decoder_forward.1} parent=5 // pred_region
      // Predicated region
      $region137: #{decoder_forward.1} parent=135 // pred_check
        %p974 = pneg %p99
      $region138: #{decoder_forward.1} parent=135 // pred_check_branch
        %976 = sbr.rel (%p974) target = $region140
      $region139: #{decoder_forward.1} parent=135 // pred_region
        %p977 = scmp.lt.s32.totalorder %s79, 1
        %s978 = scalar_select %p977, %s79, 1
        %s979 = smul.addr %s978, 8
        %s980 = scalar_lea.vmem %s1, %s979
      $region140: #{decoder_forward.1} parent=135 // pred_fallthru
        _
      // Predicated region
      $region141: #{decoder_forward.1} parent=135 // pred_check
        %p981 = pneg %p125
      $region142: #{decoder_forward.1} parent=135 // pred_check_branch
        %983 = sbr.rel (%p981) target = $region144
      $region143: #{decoder_forward.1} parent=135 // pred_region
        %p984 = scmp.lt.s32.totalorder %s79, 1
        %s985 = scalar_select %p984, %s79, 1
        %s986 = smul.addr %s985, 8
        %s987 = scalar_lea.vmem %s3, %s986
      $region144: #{decoder_forward.1} parent=135 // pred_fallthru
        _
      // Predicated region
      $region145: #{decoder_forward.1} parent=135 // pred_check
        %p988 = pneg %p151
      $region146: #{decoder_forward.1} parent=135 // pred_check_branch
        %990 = sbr.rel (%p988) target = $region148
      $region147: #{decoder_forward.1} parent=135 // pred_region
        %p991 = scmp.lt.s32.totalorder %s79, 1
        %s992 = scalar_select %p991, %s79, 1
        %s993 = smul.addr %s992, 8
        %s994 = scalar_lea.vmem %s5, %s993
      $region148: #{decoder_forward.1} parent=135 // pred_fallthru
        _
      // Predicated region
      $region149: #{decoder_forward.1} parent=135 // pred_check
        %p995 = pneg %p177
      $region150: #{decoder_forward.1} parent=135 // pred_check_branch
        %997 = sbr.rel (%p995) target = $region152
      $region151: #{decoder_forward.1} parent=135 // pred_region
        %p998 = scmp.lt.s32.totalorder %s79, 1
        %s999 = scalar_select %p998, %s79, 1
        %s1000 = smul.addr %s999, 3
        %s1001 = smul.addr %s1000, 8
        %s1002 = scalar_lea.vmem %s7, %s1001
      $region152: #{decoder_forward.1} parent=135 // pred_fallthru
        _
      // Predicated region
      $region153: #{decoder_forward.1} parent=135 // pred_check
        %p1003 = pneg %p203
      $region154: #{decoder_forward.1} parent=135 // pred_check_branch
        %1005 = sbr.rel (%p1003) target = $region156
      $region155: #{decoder_forward.1} parent=135 // pred_region
        %p1006 = scmp.lt.s32.totalorder %s79, 1
        %s1007 = scalar_select %p1006, %s79, 1
        %s1008 = smul.addr %s1007, 12
        %s1009 = smul.addr %s1008, 8
        %s1010 = scalar_lea.vmem %s9, %s1009
      $region156: #{decoder_forward.1} parent=135 // pred_fallthru
        _
    $region136: #{decoder_forward.1} parent=5 // pred_fallthru
      _
    %p1011 = scmp.le.s32.totalorder 1, %s79
    %p1012 = scmp.lt.s32.totalorder %s79, 3
    %p1013 = pnand %p1011, %p1012
    %p1014 = pneg %p1013
    // Predicated region
    $region157: #{decoder_forward.1} parent=5 // pred_check
      _
    $region158: #{decoder_forward.1} parent=5 // pred_check_branch
      %1016 = sbr.rel (%p1013) target = $region160
    $region159: #{decoder_forward.1} parent=5 // pred_region
      %s1017 = ssub.s32 %s79, 1
      %p1018 = scmp.lt.s32.totalorder %s84, 1
      %s1019 = scalar_select %p1018, %s84, 1
      %s1020 = smul.addr %s1019, 8
      %s1021 = scalar_lea.vmem %s1, %s1020
      %p1022 = pneg %p105
      %p1023 = pneg %p102
      %p1024 = scmp.lt.s32.totalorder %s84, 1
      %s1025 = scalar_select %p1024, %s84, 1
      %s1026 = smul.addr %s1025, 8
      %s1027 = scalar_lea.vmem %s3, %s1026
      %p1028 = pneg %p131
      %p1029 = pneg %p128
      %p1030 = scmp.lt.s32.totalorder %s84, 1
      %s1031 = scalar_select %p1030, %s84, 1
      %s1032 = smul.addr %s1031, 8
      %s1033 = scalar_lea.vmem %s5, %s1032
      %p1034 = pneg %p157
      %p1035 = pneg %p154
      %p1036 = scmp.lt.s32.totalorder %s84, 1
      %s1037 = scalar_select %p1036, %s84, 1
      %s1038 = smul.addr %s1037, 3
      %s1039 = smul.addr %s1038, 8
      %s1040 = scalar_lea.vmem %s7, %s1039
      %p1041 = pneg %p183
      %p1042 = pneg %p180
      %p1043 = scmp.lt.s32.totalorder %s84, 1
      %s1044 = scalar_select %p1043, %s84, 1
      %s1045 = smul.addr %s1044, 12
      %s1046 = smul.addr %s1045, 8
      %s1047 = scalar_lea.vmem %s9, %s1046
      %p1048 = pneg %p209
      %p1049 = pneg %p206
      %p1050 = pneg %p230
      %p1051 = pneg %p227
      %p1052 = pneg %p251
      %p1053 = pneg %p248
      %p1054 = pneg %p272
      %p1055 = pneg %p269
      %p1056 = pneg %p293
      %p1057 = pneg %p290
      %p1058 = pneg %p314
      %p1059 = pneg %p311
      %p1060 = pneg %p335
      %p1061 = pneg %p332
      %p1062 = pneg %p356
      %p1063 = pneg %p353
      %p1064 = pneg %p377
      %p1065 = pneg %p374
      %p1066 = pneg %p398
      %p1067 = pneg %p395
      %p1068 = pneg %p419
      %p1069 = pneg %p416
      %p1070 = pneg %p440
      %p1071 = pneg %p437
      %p1072 = pneg %p461
      %p1073 = pneg %p458
      %p1074 = pneg %p482
      %p1075 = pneg %p479
      %p1076 = pneg %p503
      %p1077 = pneg %p500
      %p1078 = pneg %p524
      %p1079 = pneg %p521
      %p1080 = pneg %p545
      %p1081 = pneg %p542
      %p1082 = pneg %p566
      %p1083 = pneg %p563
      %p1084 = pneg %p587
      %p1085 = pneg %p584
      %p1086 = pneg %p608
      %p1087 = pneg %p605
      %p1088 = pneg %p629
      %p1089 = pneg %p626
      %p1090 = pneg %p650
      %p1091 = pneg %p647
      %p1092 = pneg %p671
      %p1093 = pneg %p668
      %p1094 = pneg %p692
      %p1095 = pneg %p689
      %p1096 = pneg %p713
      %p1097 = pneg %p710
      %p1098 = pneg %p734
      %p1099 = pneg %p731
      %p1100 = pneg %p755
      %p1101 = pneg %p752
      %p1102 = pneg %p776
      %p1103 = pneg %p773
      %p1104 = pneg %p797
      %p1105 = pneg %p794
      %p1106 = pneg %p818
      %p1107 = pneg %p815
      %p1108 = pneg %p839
      %p1109 = pneg %p836
      %p1110 = pneg %p865
      %p1111 = pneg %p862
      %p1112 = scmp.lt.s32.totalorder %s84, 1
      %s1113 = scalar_select %p1112, %s84, 1
      %s1114 = smul.addr %s1113, 3
      %s1115 = smul.addr %s1114, 4
      %s1116 = scalar_lea.vmem %s71, %s1115
      %p1117 = scmp.lt.s32.totalorder %s84, 1
      %s1118 = scalar_select %p1117, %s84, 1
      %s1119 = smul.addr %s1118, 8
      %s1120 = scalar_lea.vmem %s1, %s1119
      %p1121 = scmp.lt.s32.totalorder %s84, 1
      %s1122 = scalar_select %p1121, %s84, 1
      %s1123 = smul.addr %s1122, 8
      %s1124 = scalar_lea.vmem %s3, %s1123
      %p1125 = scmp.lt.s32.totalorder %s84, 1
      %s1126 = scalar_select %p1125, %s84, 1
      %s1127 = smul.addr %s1126, 8
      %s1128 = scalar_lea.vmem %s5, %s1127
      %p1129 = scmp.lt.s32.totalorder %s84, 1
      %s1130 = scalar_select %p1129, %s84, 1
      %s1131 = smul.addr %s1130, 3
      %s1132 = smul.addr %s1131, 8
      %s1133 = scalar_lea.vmem %s7, %s1132
      %p1134 = scmp.lt.s32.totalorder %s84, 1
      %s1135 = scalar_select %p1134, %s84, 1
      %s1136 = smul.addr %s1135, 12
      %s1137 = smul.addr %s1136, 8
      %s1138 = scalar_lea.vmem %s9, %s1137
      %p1139 = scmp.lt.s32.totalorder %s84, 1
      %s1140 = scalar_select %p1139, %s84, 1
      %s1141 = smul.addr %s1140, 3
      %s1142 = smul.addr %s1141, 4
      %s1143 = scalar_lea.vmem %s71, %s1142
      %v1144 = vld [vmem:[%s1120] sm:$0xff]
      %v1145 = vld [vmem:[%s1124] sm:$0xff]
      %v1146 = vld [vmem:[%s11] sm:$0x1]
      %v1147 = vld [vmem:[%s25] sm:$0xff]
      %v1148 = vld [vmem:[%s21] sm:$0xff]
      %1149 = vrot.lane.b32.xlu0 %v1144, 7
      %v1150 = vpop.permute.xlu0 %1149
      %vm1151 = vcmask 64512
      %v1153 = vsel %vm1151, %v1148, 0
      %1155 = vmatpush.msra.mxu0 0.0
      %1156 = vmatpush.msra.mxu0 0.0
      %1157 = vmatpush.msra.mxu0 0.0
      %1158 = vmatpush.msra.mxu0 0.0
      %1159 = vmatpush.msra.mxu0 0.0
      %1160 = vmatpush.msra.mxu0 0.0
      %1161 = vmatpush.msra.mxu0 0.0
      %1162 = vmatpush.msra.mxu0 0.0
      %1163 = vmatpush.msra.mxu0 0.0
      %1164 = vmatpush.msra.mxu0 0.0
      %1165 = vmatpush.msra.mxu0 0.0
      %1166 = vmatpush.msra.mxu0 0.0
      %1167 = vmatpush.msra.mxu0 0.0
      %1168 = vmatpush.msra.mxu0 0.0
      %1169 = vmatpush.msra.mxu0 0.0
      %1170 = vmatpush.msra.mxu0 %v1150
      %1171 = vmatmul.f32.gmra.mxu0 %v1153
      %v1172 = vpop.f32.mrf.mxu0
      %v1173 = vadd.f32 0.0, %v1172
      %1174 = vdwg.mxu0
      %1176 = vset.pattern.permute.xlu0 0
      %1177 = vperm.xlu0 %1176, %v1147
      %v1178 = vpop.permute.xlu0 %1177
      %v1180 = vadd.f32 %v1178, %v1173
      %v1181 = vld [vmem:[%s23] sm:$0xff]
      %1182 = vrot.lane.b32.xlu0 %v1145, 7
      %v1183 = vpop.permute.xlu0 %1182
      %v1185 = vsel %vm1151, %v1181, 0
      %1187 = vmatpush.msra.mxu0 0.0
      %1188 = vmatpush.msra.mxu0 0.0
      %1189 = vmatpush.msra.mxu0 0.0
      %1190 = vmatpush.msra.mxu0 0.0
      %1191 = vmatpush.msra.mxu0 0.0
      %1192 = vmatpush.msra.mxu0 0.0
      %1193 = vmatpush.msra.mxu0 0.0
      %1194 = vmatpush.msra.mxu0 0.0
      %1195 = vmatpush.msra.mxu0 0.0
      %1196 = vmatpush.msra.mxu0 0.0
      %1197 = vmatpush.msra.mxu0 0.0
      %1198 = vmatpush.msra.mxu0 0.0
      %1199 = vmatpush.msra.mxu0 0.0
      %1200 = vmatpush.msra.mxu0 0.0
      %1201 = vmatpush.msra.mxu0 0.0
      %1202 = vmatpush.msra.mxu0 %v1183
      %1203 = vmatmul.f32.gmra.mxu0 %v1185
      %v1204 = vpop.f32.mrf.mxu0
      %v1205 = vadd.f32 0.0, %v1204
      %1206 = vdwg.mxu0
      %v1207 = vadd.f32 %v1180, %v1205
      %s1208 = scalar_lea.vmem %s21, 8
      %v1209 = vld [vmem:[%s1208] sm:$0xff]
      %1210 = vrot.lane.b32.xlu0 %v1144, 6
      %v1211 = vpop.permute.xlu0 %1210
      %v1213 = vsel %vm1151, %v1209, 0
      %1215 = vmatpush.msra.mxu0 0.0
      %1216 = vmatpush.msra.mxu0 0.0
      %1217 = vmatpush.msra.mxu0 0.0
      %1218 = vmatpush.msra.mxu0 0.0
      %1219 = vmatpush.msra.mxu0 0.0
      %1220 = vmatpush.msra.mxu0 0.0
      %1221 = vmatpush.msra.mxu0 0.0
      %1222 = vmatpush.msra.mxu0 0.0
      %1223 = vmatpush.msra.mxu0 0.0
      %1224 = vmatpush.msra.mxu0 0.0
      %1225 = vmatpush.msra.mxu0 0.0
      %1226 = vmatpush.msra.mxu0 0.0
      %1227 = vmatpush.msra.mxu0 0.0
      %1228 = vmatpush.msra.mxu0 0.0
      %1229 = vmatpush.msra.mxu0 0.0
      %1230 = vmatpush.msra.mxu0 %v1211
      %1231 = vmatmul.f32.gmra.mxu0 %v1213
      %v1232 = vpop.f32.mrf.mxu0
      %v1233 = vadd.f32 0.0, %v1232
      %1234 = vdwg.mxu0
      %v1235 = vadd.f32 %v1207, %v1233
      %s1236 = scalar_lea.vmem %s23, 8
      %v1237 = vld [vmem:[%s1236] sm:$0xff]
      %1238 = vrot.lane.b32.xlu0 %v1145, 6
      %v1239 = vpop.permute.xlu0 %1238
      %v1241 = vsel %vm1151, %v1237, 0
      %1243 = vmatpush.msra.mxu0 0.0
      %1244 = vmatpush.msra.mxu0 0.0
      %1245 = vmatpush.msra.mxu0 0.0
      %1246 = vmatpush.msra.mxu0 0.0
      %1247 = vmatpush.msra.mxu0 0.0
      %1248 = vmatpush.msra.mxu0 0.0
      %1249 = vmatpush.msra.mxu0 0.0
      %1250 = vmatpush.msra.mxu0 0.0
      %1251 = vmatpush.msra.mxu0 0.0
      %1252 = vmatpush.msra.mxu0 0.0
      %1253 = vmatpush.msra.mxu0 0.0
      %1254 = vmatpush.msra.mxu0 0.0
      %1255 = vmatpush.msra.mxu0 0.0
      %1256 = vmatpush.msra.mxu0 0.0
      %1257 = vmatpush.msra.mxu0 0.0
      %1258 = vmatpush.msra.mxu0 %v1239
      %1259 = vmatmul.f32.gmra.mxu0 %v1241
      %v1260 = vpop.f32.mrf.mxu0
      %v1261 = vadd.f32 0.0, %v1260
      %1262 = vdwg.mxu0
      %v1263 = vadd.f32 %v1235, %v1261
      %s1264 = scalar_lea.vmem %s21, 16
      %v1265 = vld [vmem:[%s1264] sm:$0xff]
      %1266 = vrot.lane.b32.xlu0 %v1144, 5
      %v1267 = vpop.permute.xlu0 %1266
      %v1269 = vsel %vm1151, %v1265, 0
      %1271 = vmatpush.msra.mxu0 0.0
      %1272 = vmatpush.msra.mxu0 0.0
      %1273 = vmatpush.msra.mxu0 0.0
      %1274 = vmatpush.msra.mxu0 0.0
      %1275 = vmatpush.msra.mxu0 0.0
      %1276 = vmatpush.msra.mxu0 0.0
      %1277 = vmatpush.msra.mxu0 0.0
      %1278 = vmatpush.msra.mxu0 0.0
      %1279 = vmatpush.msra.mxu0 0.0
      %1280 = vmatpush.msra.mxu0 0.0
      %1281 = vmatpush.msra.mxu0 0.0
      %1282 = vmatpush.msra.mxu0 0.0
      %1283 = vmatpush.msra.mxu0 0.0
      %1284 = vmatpush.msra.mxu0 0.0
      %1285 = vmatpush.msra.mxu0 0.0
      %1286 = vmatpush.msra.mxu0 %v1267
      %1287 = vmatmul.f32.gmra.mxu0 %v1269
      %v1288 = vpop.f32.mrf.mxu0
      %v1289 = vadd.f32 0.0, %v1288
      %1290 = vdwg.mxu0
      %v1291 = vadd.f32 %v1263, %v1289
      %s1292 = scalar_lea.vmem %s23, 16
      %v1293 = vld [vmem:[%s1292] sm:$0xff]
      %1294 = vrot.lane.b32.xlu0 %v1145, 5
      %v1295 = vpop.permute.xlu0 %1294
      %v1297 = vsel %vm1151, %v1293, 0
      %1299 = vmatpush.msra.mxu0 0.0
      %1300 = vmatpush.msra.mxu0 0.0
      %1301 = vmatpush.msra.mxu0 0.0
      %1302 = vmatpush.msra.mxu0 0.0
      %1303 = vmatpush.msra.mxu0 0.0
      %1304 = vmatpush.msra.mxu0 0.0
      %1305 = vmatpush.msra.mxu0 0.0
      %1306 = vmatpush.msra.mxu0 0.0
      %1307 = vmatpush.msra.mxu0 0.0
      %1308 = vmatpush.msra.mxu0 0.0
      %1309 = vmatpush.msra.mxu0 0.0
      %1310 = vmatpush.msra.mxu0 0.0
      %1311 = vmatpush.msra.mxu0 0.0
      %1312 = vmatpush.msra.mxu0 0.0
      %1313 = vmatpush.msra.mxu0 0.0
      %1314 = vmatpush.msra.mxu0 %v1295
      %1315 = vmatmul.f32.gmra.mxu0 %v1297
      %v1316 = vpop.f32.mrf.mxu0
      %v1317 = vadd.f32 0.0, %v1316
      %1318 = vdwg.mxu0
      %v1319 = vadd.f32 %v1291, %v1317
      %s1320 = scalar_lea.vmem %s21, 24
      %v1321 = vld [vmem:[%s1320] sm:$0xff]
      %1322 = vrot.lane.b32.xlu0 %v1144, 1
      %v1323 = vpop.permute.xlu0 %1322
      %v1325 = vsel %vm1151, %v1321, 0
      %1327 = vmatpush.msra.mxu0 0.0
      %1328 = vmatpush.msra.mxu0 0.0
      %1329 = vmatpush.msra.mxu0 0.0
      %1330 = vmatpush.msra.mxu0 0.0
      %1331 = vmatpush.msra.mxu0 0.0
      %1332 = vmatpush.msra.mxu0 0.0
      %1333 = vmatpush.msra.mxu0 0.0
      %1334 = vmatpush.msra.mxu0 0.0
      %1335 = vmatpush.msra.mxu0 0.0
      %1336 = vmatpush.msra.mxu0 0.0
      %1337 = vmatpush.msra.mxu0 0.0
      %1338 = vmatpush.msra.mxu0 0.0
      %1339 = vmatpush.msra.mxu0 0.0
      %1340 = vmatpush.msra.mxu0 0.0
      %1341 = vmatpush.msra.mxu0 0.0
      %1342 = vmatpush.msra.mxu0 %v1323
      %1343 = vmatmul.f32.gmra.mxu0 %v1325
      %v1344 = vpop.f32.mrf.mxu0
      %v1345 = vadd.f32 0.0, %v1344
      %1346 = vdwg.mxu0
      %v1347 = vadd.f32 %v1319, %v1345
      %s1348 = scalar_lea.vmem %s23, 24
      %v1349 = vld [vmem:[%s1348] sm:$0xff]
      %1350 = vrot.lane.b32.xlu0 %v1145, 1
      %v1351 = vpop.permute.xlu0 %1350
      %v1353 = vsel %vm1151, %v1349, 0
      %1355 = vmatpush.msra.mxu0 0.0
      %1356 = vmatpush.msra.mxu0 0.0
      %1357 = vmatpush.msra.mxu0 0.0
      %1358 = vmatpush.msra.mxu0 0.0
      %1359 = vmatpush.msra.mxu0 0.0
      %1360 = vmatpush.msra.mxu0 0.0
      %1361 = vmatpush.msra.mxu0 0.0
      %1362 = vmatpush.msra.mxu0 0.0
      %1363 = vmatpush.msra.mxu0 0.0
      %1364 = vmatpush.msra.mxu0 0.0
      %1365 = vmatpush.msra.mxu0 0.0
      %1366 = vmatpush.msra.mxu0 0.0
      %1367 = vmatpush.msra.mxu0 0.0
      %1368 = vmatpush.msra.mxu0 0.0
      %1369 = vmatpush.msra.mxu0 0.0
      %1370 = vmatpush.msra.mxu0 %v1351
      %1371 = vmatmul.f32.gmra.mxu0 %v1353
      %v1372 = vpop.f32.mrf.mxu0
      %v1373 = vadd.f32 0.0, %v1372
      %1374 = vdwg.mxu0
      %v1375 = vadd.f32 %v1347, %v1373
      %s1376 = scalar_lea.vmem %s21, 32
      %v1377 = vld [vmem:[%s1376] sm:$0xff]
      %v1379 = vsel %vm1151, %v1377, 0
      %1381 = vmatpush.msra.mxu0 0.0
      %1382 = vmatpush.msra.mxu0 0.0
      %1383 = vmatpush.msra.mxu0 0.0
      %1384 = vmatpush.msra.mxu0 0.0
      %1385 = vmatpush.msra.mxu0 0.0
      %1386 = vmatpush.msra.mxu0 0.0
      %1387 = vmatpush.msra.mxu0 0.0
      %1388 = vmatpush.msra.mxu0 0.0
      %1389 = vmatpush.msra.mxu0 0.0
      %1390 = vmatpush.msra.mxu0 0.0
      %1391 = vmatpush.msra.mxu0 0.0
      %1392 = vmatpush.msra.mxu0 0.0
      %1393 = vmatpush.msra.mxu0 0.0
      %1394 = vmatpush.msra.mxu0 0.0
      %1395 = vmatpush.msra.mxu0 0.0
      %1396 = vmatpush.msra.mxu0 %v1144
      %1397 = vmatmul.f32.gmra.mxu0 %v1379
      %v1398 = vpop.f32.mrf.mxu0
      %v1399 = vadd.f32 0.0, %v1398
      %1400 = vdwg.mxu0
      %v1401 = vadd.f32 %v1375, %v1399
      %s1402 = scalar_lea.vmem %s23, 32
      %v1403 = vld [vmem:[%s1402] sm:$0xff]
      %v1405 = vsel %vm1151, %v1403, 0
      %1407 = vmatpush.msra.mxu0 0.0
      %1408 = vmatpush.msra.mxu0 0.0
      %1409 = vmatpush.msra.mxu0 0.0
      %1410 = vmatpush.msra.mxu0 0.0
      %1411 = vmatpush.msra.mxu0 0.0
      %1412 = vmatpush.msra.mxu0 0.0
      %1413 = vmatpush.msra.mxu0 0.0
      %1414 = vmatpush.msra.mxu0 0.0
      %1415 = vmatpush.msra.mxu0 0.0
      %1416 = vmatpush.msra.mxu0 0.0
      %1417 = vmatpush.msra.mxu0 0.0
      %1418 = vmatpush.msra.mxu0 0.0
      %1419 = vmatpush.msra.mxu0 0.0
      %1420 = vmatpush.msra.mxu0 0.0
      %1421 = vmatpush.msra.mxu0 0.0
      %1422 = vmatpush.msra.mxu0 %v1145
      %1423 = vmatmul.f32.gmra.mxu0 %v1405
      %v1424 = vpop.f32.mrf.mxu0
      %v1425 = vadd.f32 0.0, %v1424
      %1426 = vdwg.mxu0
      %v1427 = vadd.f32 %v1401, %v1425
      %s1428 = scalar_lea.vmem %s21, 40
      %v1429 = vld [vmem:[%s1428] sm:$0xff]
      %1430 = vrot.lane.b32.xlu0 %v1144, 127
      %v1431 = vpop.permute.xlu0 %1430
      %v1433 = vsel %vm1151, %v1429, 0
      %1435 = vmatpush.msra.mxu0 0.0
      %1436 = vmatpush.msra.mxu0 0.0
      %1437 = vmatpush.msra.mxu0 0.0
      %1438 = vmatpush.msra.mxu0 0.0
      %1439 = vmatpush.msra.mxu0 0.0
      %1440 = vmatpush.msra.mxu0 0.0
      %1441 = vmatpush.msra.mxu0 0.0
      %1442 = vmatpush.msra.mxu0 0.0
      %1443 = vmatpush.msra.mxu0 0.0
      %1444 = vmatpush.msra.mxu0 0.0
      %1445 = vmatpush.msra.mxu0 0.0
      %1446 = vmatpush.msra.mxu0 0.0
      %1447 = vmatpush.msra.mxu0 0.0
      %1448 = vmatpush.msra.mxu0 0.0
      %1449 = vmatpush.msra.mxu0 0.0
      %1450 = vmatpush.msra.mxu0 %v1431
      %1451 = vmatmul.f32.gmra.mxu0 %v1433
      %v1452 = vpop.f32.mrf.mxu0
      %v1453 = vadd.f32 0.0, %v1452
      %1454 = vdwg.mxu0
      %v1455 = vadd.f32 %v1427, %v1453
      %s1456 = scalar_lea.vmem %s23, 40
      %v1457 = vld [vmem:[%s1456] sm:$0xff]
      %1458 = vrot.lane.b32.xlu0 %v1145, 127
      %v1459 = vpop.permute.xlu0 %1458
      %v1461 = vsel %vm1151, %v1457, 0
      %1463 = vmatpush.msra.mxu0 0.0
      %1464 = vmatpush.msra.mxu0 0.0
      %1465 = vmatpush.msra.mxu0 0.0
      %1466 = vmatpush.msra.mxu0 0.0
      %1467 = vmatpush.msra.mxu0 0.0
      %1468 = vmatpush.msra.mxu0 0.0
      %1469 = vmatpush.msra.mxu0 0.0
      %1470 = vmatpush.msra.mxu0 0.0
      %1471 = vmatpush.msra.mxu0 0.0
      %1472 = vmatpush.msra.mxu0 0.0
      %1473 = vmatpush.msra.mxu0 0.0
      %1474 = vmatpush.msra.mxu0 0.0
      %1475 = vmatpush.msra.mxu0 0.0
      %1476 = vmatpush.msra.mxu0 0.0
      %1477 = vmatpush.msra.mxu0 0.0
      %1478 = vmatpush.msra.mxu0 %v1459
      %1479 = vmatmul.f32.gmra.mxu0 %v1461
      %v1480 = vpop.f32.mrf.mxu0
      %v1481 = vadd.f32 0.0, %v1480
      %1482 = vdwg.mxu0
      %v1483 = vadd.f32 %v1455, %v1481
      %s1484 = scalar_lea.vmem %s21, 48
      %v1485 = vld [vmem:[%s1484] sm:$0xff]
      %1486 = vrot.lane.b32.xlu0 %v1144, 123
      %v1487 = vpop.permute.xlu0 %1486
      %v1489 = vsel %vm1151, %v1485, 0
      %1491 = vmatpush.msra.mxu0 0.0
      %1492 = vmatpush.msra.mxu0 0.0
      %1493 = vmatpush.msra.mxu0 0.0
      %1494 = vmatpush.msra.mxu0 0.0
      %1495 = vmatpush.msra.mxu0 0.0
      %1496 = vmatpush.msra.mxu0 0.0
      %1497 = vmatpush.msra.mxu0 0.0
      %1498 = vmatpush.msra.mxu0 0.0
      %1499 = vmatpush.msra.mxu0 0.0
      %1500 = vmatpush.msra.mxu0 0.0
      %1501 = vmatpush.msra.mxu0 0.0
      %1502 = vmatpush.msra.mxu0 0.0
      %1503 = vmatpush.msra.mxu0 0.0
      %1504 = vmatpush.msra.mxu0 0.0
      %1505 = vmatpush.msra.mxu0 0.0
      %1506 = vmatpush.msra.mxu0 %v1487
      %1507 = vmatmul.f32.gmra.mxu0 %v1489
      %v1508 = vpop.f32.mrf.mxu0
      %v1509 = vadd.f32 0.0, %v1508
      %1510 = vdwg.mxu0
      %v1511 = vadd.f32 %v1483, %v1509
      %s1512 = scalar_lea.vmem %s23, 48
      %v1513 = vld [vmem:[%s1512] sm:$0xff]
      %1514 = vrot.lane.b32.xlu0 %v1145, 123
      %v1515 = vpop.permute.xlu0 %1514
      %v1517 = vsel %vm1151, %v1513, 0
      %1519 = vmatpush.msra.mxu0 0.0
      %1520 = vmatpush.msra.mxu0 0.0
      %1521 = vmatpush.msra.mxu0 0.0
      %1522 = vmatpush.msra.mxu0 0.0
      %1523 = vmatpush.msra.mxu0 0.0
      %1524 = vmatpush.msra.mxu0 0.0
      %1525 = vmatpush.msra.mxu0 0.0
      %1526 = vmatpush.msra.mxu0 0.0
      %1527 = vmatpush.msra.mxu0 0.0
      %1528 = vmatpush.msra.mxu0 0.0
      %1529 = vmatpush.msra.mxu0 0.0
      %1530 = vmatpush.msra.mxu0 0.0
      %1531 = vmatpush.msra.mxu0 0.0
      %1532 = vmatpush.msra.mxu0 0.0
      %1533 = vmatpush.msra.mxu0 0.0
      %1534 = vmatpush.msra.mxu0 %v1515
      %1535 = vmatmul.f32.gmra.mxu0 %v1517
      %v1536 = vpop.f32.mrf.mxu0
      %v1537 = vadd.f32 0.0, %v1536
      %1538 = vdwg.mxu0
      %v1539 = vadd.f32 %v1511, %v1537
      %s1540 = scalar_lea.vmem %s21, 56
      %v1541 = vld [vmem:[%s1540] sm:$0xff]
      %1542 = vrot.lane.b32.xlu0 %v1144, 122
      %v1543 = vpop.permute.xlu0 %1542
      %v1545 = vsel %vm1151, %v1541, 0
      %1547 = vmatpush.msra.mxu0 0.0
      %1548 = vmatpush.msra.mxu0 0.0
      %1549 = vmatpush.msra.mxu0 0.0
      %1550 = vmatpush.msra.mxu0 0.0
      %1551 = vmatpush.msra.mxu0 0.0
      %1552 = vmatpush.msra.mxu0 0.0
      %1553 = vmatpush.msra.mxu0 0.0
      %1554 = vmatpush.msra.mxu0 0.0
      %1555 = vmatpush.msra.mxu0 0.0
      %1556 = vmatpush.msra.mxu0 0.0
      %1557 = vmatpush.msra.mxu0 0.0
      %1558 = vmatpush.msra.mxu0 0.0
      %1559 = vmatpush.msra.mxu0 0.0
      %1560 = vmatpush.msra.mxu0 0.0
      %1561 = vmatpush.msra.mxu0 0.0
      %1562 = vmatpush.msra.mxu0 %v1543
      %1563 = vmatmul.f32.gmra.mxu0 %v1545
      %v1564 = vpop.f32.mrf.mxu0
      %v1565 = vadd.f32 0.0, %v1564
      %1566 = vdwg.mxu0
      %v1567 = vadd.f32 %v1539, %v1565
      %s1568 = scalar_lea.vmem %s23, 56
      %v1569 = vld [vmem:[%s1568] sm:$0xff]
      %1570 = vrot.lane.b32.xlu0 %v1145, 122
      %v1571 = vpop.permute.xlu0 %1570
      %v1573 = vsel %vm1151, %v1569, 0
      %1575 = vmatpush.msra.mxu0 0.0
      %1576 = vmatpush.msra.mxu0 0.0
      %1577 = vmatpush.msra.mxu0 0.0
      %1578 = vmatpush.msra.mxu0 0.0
      %1579 = vmatpush.msra.mxu0 0.0
      %1580 = vmatpush.msra.mxu0 0.0
      %1581 = vmatpush.msra.mxu0 0.0
      %1582 = vmatpush.msra.mxu0 0.0
      %1583 = vmatpush.msra.mxu0 0.0
      %1584 = vmatpush.msra.mxu0 0.0
      %1585 = vmatpush.msra.mxu0 0.0
      %1586 = vmatpush.msra.mxu0 0.0
      %1587 = vmatpush.msra.mxu0 0.0
      %1588 = vmatpush.msra.mxu0 0.0
      %1589 = vmatpush.msra.mxu0 0.0
      %1590 = vmatpush.msra.mxu0 %v1571
      %1591 = vmatmul.f32.gmra.mxu0 %v1573
      %v1592 = vpop.f32.mrf.mxu0
      %v1593 = vadd.f32 0.0, %v1592
      %1594 = vdwg.mxu0
      %v1595 = vadd.f32 %v1567, %v1593
      %s1596 = scalar_lea.vmem %s21, 64
      %v1597 = vld [vmem:[%s1596] sm:$0xff]
      %1598 = vrot.lane.b32.xlu0 %v1144, 121
      %v1599 = vpop.permute.xlu0 %1598
      %v1601 = vsel %vm1151, %v1597, 0
      %1603 = vmatpush.msra.mxu0 0.0
      %1604 = vmatpush.msra.mxu0 0.0
      %1605 = vmatpush.msra.mxu0 0.0
      %1606 = vmatpush.msra.mxu0 0.0
      %1607 = vmatpush.msra.mxu0 0.0
      %1608 = vmatpush.msra.mxu0 0.0
      %1609 = vmatpush.msra.mxu0 0.0
      %1610 = vmatpush.msra.mxu0 0.0
      %1611 = vmatpush.msra.mxu0 0.0
      %1612 = vmatpush.msra.mxu0 0.0
      %1613 = vmatpush.msra.mxu0 0.0
      %1614 = vmatpush.msra.mxu0 0.0
      %1615 = vmatpush.msra.mxu0 0.0
      %1616 = vmatpush.msra.mxu0 0.0
      %1617 = vmatpush.msra.mxu0 0.0
      %1618 = vmatpush.msra.mxu0 %v1599
      %1619 = vmatmul.f32.gmra.mxu0 %v1601
      %v1620 = vpop.f32.mrf.mxu0
      %v1621 = vadd.f32 0.0, %v1620
      %1622 = vdwg.mxu0
      %v1623 = vadd.f32 %v1595, %v1621
      %s1624 = scalar_lea.vmem %s23, 64
      %v1625 = vld [vmem:[%s1624] sm:$0xff]
      %1626 = vrot.lane.b32.xlu0 %v1145, 121
      %v1627 = vpop.permute.xlu0 %1626
      %v1629 = vsel %vm1151, %v1625, 0
      %1631 = vmatpush.msra.mxu0 0.0
      %1632 = vmatpush.msra.mxu0 0.0
      %1633 = vmatpush.msra.mxu0 0.0
      %1634 = vmatpush.msra.mxu0 0.0
      %1635 = vmatpush.msra.mxu0 0.0
      %1636 = vmatpush.msra.mxu0 0.0
      %1637 = vmatpush.msra.mxu0 0.0
      %1638 = vmatpush.msra.mxu0 0.0
      %1639 = vmatpush.msra.mxu0 0.0
      %1640 = vmatpush.msra.mxu0 0.0
      %1641 = vmatpush.msra.mxu0 0.0
      %1642 = vmatpush.msra.mxu0 0.0
      %1643 = vmatpush.msra.mxu0 0.0
      %1644 = vmatpush.msra.mxu0 0.0
      %1645 = vmatpush.msra.mxu0 0.0
      %1646 = vmatpush.msra.mxu0 %v1627
      %1647 = vmatmul.f32.gmra.mxu0 %v1629
      %v1648 = vpop.f32.mrf.mxu0
      %v1649 = vadd.f32 0.0, %v1648
      %1650 = vdwg.mxu0
      %v1651 = vadd.f32 %v1623, %v1649
      %v1652 = vmax.f32 %v1651, 0.0
      %v1654 = vperm.slane %v1146, 0
      %v1656 = vmul.f32 %v1652, %v1654
      %v1657 = vld [vmem:[%s27] sm:$0xff]
      %1658 = vrot.lane.b32.xlu0 %v1656, 7
      %v1659 = vpop.permute.xlu0 %1658
      %1661 = vset.pattern.permute.xlu0 0
      %1662 = vperm.xlu0 %1661, %v1657
      %v1663 = vpop.permute.xlu0 %1662
      %v1665 = vmul.f32 %v1663, %v1659
      %v1666 = vadd.f32 %v1665, 0.0
      %s1667 = scalar_lea.vmem %s27, 8
      %v1668 = vld [vmem:[%s1667] sm:$0xff]
      %1669 = vrot.lane.b32.xlu0 %v1656, 6
      %v1670 = vpop.permute.xlu0 %1669
      %1672 = vset.pattern.permute.xlu0 0
      %1673 = vperm.xlu0 %1672, %v1668
      %v1674 = vpop.permute.xlu0 %1673
      %v1676 = vmul.f32 %v1674, %v1670
      %v1677 = vadd.f32 %v1666, %v1676
      %s1678 = scalar_lea.vmem %s27, 16
      %v1679 = vld [vmem:[%s1678] sm:$0xff]
      %1680 = vrot.lane.b32.xlu0 %v1656, 5
      %v1681 = vpop.permute.xlu0 %1680
      %1683 = vset.pattern.permute.xlu0 0
      %1684 = vperm.xlu0 %1683, %v1679
      %v1685 = vpop.permute.xlu0 %1684
      %v1687 = vmul.f32 %v1685, %v1681
      %v1688 = vadd.f32 %v1677, %v1687
      %s1689 = scalar_lea.vmem %s27, 24
      %v1690 = vld [vmem:[%s1689] sm:$0xff]
      %1691 = vrot.lane.b32.xlu0 %v1656, 1
      %v1692 = vpop.permute.xlu0 %1691
      %1694 = vset.pattern.permute.xlu0 0
      %1695 = vperm.xlu0 %1694, %v1690
      %v1696 = vpop.permute.xlu0 %1695
      %v1698 = vmul.f32 %v1696, %v1692
      %v1699 = vadd.f32 %v1688, %v1698
      %s1700 = scalar_lea.vmem %s27, 32
      %v1701 = vld [vmem:[%s1700] sm:$0xff]
      %1703 = vset.pattern.permute.xlu0 0
      %1704 = vperm.xlu0 %1703, %v1701
      %v1705 = vpop.permute.xlu0 %1704
      %v1707 = vmul.f32 %v1705, %v1656
      %v1708 = vadd.f32 %v1699, %v1707
      %s1709 = scalar_lea.vmem %s27, 40
      %v1710 = vld [vmem:[%s1709] sm:$0xff]
      %1711 = vrot.lane.b32.xlu0 %v1656, 127
      %v1712 = vpop.permute.xlu0 %1711
      %1714 = vset.pattern.permute.xlu0 0
      %1715 = vperm.xlu0 %1714, %v1710
      %v1716 = vpop.permute.xlu0 %1715
      %v1718 = vmul.f32 %v1716, %v1712
      %v1719 = vadd.f32 %v1708, %v1718
      %s1720 = scalar_lea.vmem %s27, 48
      %v1721 = vld [vmem:[%s1720] sm:$0xff]
      %1722 = vrot.lane.b32.xlu0 %v1656, 123
      %v1723 = vpop.permute.xlu0 %1722
      %1725 = vset.pattern.permute.xlu0 0
      %1726 = vperm.xlu0 %1725, %v1721
      %v1727 = vpop.permute.xlu0 %1726
      %v1729 = vmul.f32 %v1727, %v1723
      %v1730 = vadd.f32 %v1719, %v1729
      %s1731 = scalar_lea.vmem %s27, 56
      %v1732 = vld [vmem:[%s1731] sm:$0xff]
      %1733 = vrot.lane.b32.xlu0 %v1656, 122
      %v1734 = vpop.permute.xlu0 %1733
      %1736 = vset.pattern.permute.xlu0 0
      %1737 = vperm.xlu0 %1736, %v1732
      %v1738 = vpop.permute.xlu0 %1737
      %v1740 = vmul.f32 %v1738, %v1734
      %v1741 = vadd.f32 %v1730, %v1740
      %s1742 = scalar_lea.vmem %s27, 64
      %v1743 = vld [vmem:[%s1742] sm:$0xff]
      %1744 = vrot.lane.b32.xlu0 %v1656, 121
      %v1745 = vpop.permute.xlu0 %1744
      %1747 = vset.pattern.permute.xlu0 0
      %1748 = vperm.xlu0 %1747, %v1743
      %v1749 = vpop.permute.xlu0 %1748
      %v1751 = vmul.f32 %v1749, %v1745
      %v1752 = vadd.f32 %v1741, %v1751
      %v1753 = vld [vmem:[%s29] sm:$0xff]
      %v1754 = vld [vmem:[%s31] sm:$0xff]
      %1756 = vset.pattern.permute.xlu0 0
      %1757 = vperm.xlu0 %1756, %v1754
      %v1758 = vpop.permute.xlu0 %1757
      %v1761 = vsel %vm1151, %v1753, 0
      %1763 = vmatpush.msra.mxu0 0.0
      %1764 = vmatpush.msra.mxu0 0.0
      %1765 = vmatpush.msra.mxu0 0.0
      %1766 = vmatpush.msra.mxu0 0.0
      %1767 = vmatpush.msra.mxu0 0.0
      %1768 = vmatpush.msra.mxu0 0.0
      %1769 = vmatpush.msra.mxu0 0.0
      %1770 = vmatpush.msra.mxu0 0.0
      %1771 = vmatpush.msra.mxu0 0.0
      %1772 = vmatpush.msra.mxu0 0.0
      %1773 = vmatpush.msra.mxu0 0.0
      %1774 = vmatpush.msra.mxu0 0.0
      %1775 = vmatpush.msra.mxu0 0.0
      %1776 = vmatpush.msra.mxu0 0.0
      %1777 = vmatpush.msra.mxu0 0.0
      %1778 = vmatpush.msra.mxu0 %v1752
      %1779 = vmatmul.f32.gmra.mxu0 %v1761
      %v1780 = vpop.f32.mrf.mxu0
      %v1781 = vadd.f32 %v1758, %v1780
      %1782 = vdwg.mxu0
      %v1783 = vmax.f32 %v1781, 0.0
      %v1784 = vld [vmem:[%s33] sm:$0xff]
      %v1785 = vld [vmem:[%s33 + $0x8] sm:$0xff]
      %v1786 = vld [vmem:[%s33 + $0x10] sm:$0xff]
      %v1787 = vld [vmem:[%s33 + $0x18] sm:$0xff]
      %v1788 = vld [vmem:[%s35] sm:$0xff]
      %v1789 = vld [vmem:[%s35 + $0x8] sm:$0xff]
      %v1790 = vld [vmem:[%s35 + $0x10] sm:$0xff]
      %v1791 = vld [vmem:[%s35 + $0x18] sm:$0xff]
      %1793 = vset.pattern.permute.xlu0 0
      %1794 = vperm.xlu0 %1793, %v1788
      %v1795 = vpop.permute.xlu0 %1794
      %1798 = vset.pattern.permute.xlu0 0
      %1799 = vperm.xlu0 %1798, %v1789
      %v1800 = vpop.permute.xlu0 %1799
      %1803 = vset.pattern.permute.xlu0 0
      %1804 = vperm.xlu0 %1803, %v1790
      %v1805 = vpop.permute.xlu0 %1804
      %1808 = vset.pattern.permute.xlu0 0
      %1809 = vperm.xlu0 %1808, %v1791
      %v1810 = vpop.permute.xlu0 %1809
      %v1813 = vsel %vm1151, %v1784, 0
      %v1816 = vsel %vm1151, %v1785, 0
      %v1819 = vsel %vm1151, %v1786, 0
      %v1822 = vsel %vm1151, %v1787, 0
      %1824 = vmatpush.msra.mxu0 0.0
      %1825 = vmatpush.msra.mxu0 0.0
      %1826 = vmatpush.msra.mxu0 0.0
      %1827 = vmatpush.msra.mxu0 0.0
      %1828 = vmatpush.msra.mxu0 0.0
      %1829 = vmatpush.msra.mxu0 0.0
      %1830 = vmatpush.msra.mxu0 0.0
      %1831 = vmatpush.msra.mxu0 0.0
      %1832 = vmatpush.msra.mxu0 0.0
      %1833 = vmatpush.msra.mxu0 0.0
      %1834 = vmatpush.msra.mxu0 0.0
      %1835 = vmatpush.msra.mxu0 0.0
      %1836 = vmatpush.msra.mxu0 0.0
      %1837 = vmatpush.msra.mxu0 0.0
      %1838 = vmatpush.msra.mxu0 0.0
      %1839 = vmatpush.msra.mxu0 %v1783
      %1840 = vmatmul.f32.gmra.mxu0 %v1813
      %v1841 = vpop.f32.mrf.mxu0
      %v1842 = vadd.f32 %v1795, %v1841
      %1843 = vmatmul.f32.gmra.mxu0 %v1816
      %v1844 = vpop.f32.mrf.mxu0
      %v1845 = vadd.f32 %v1800, %v1844
      %1846 = vmatmul.f32.gmra.mxu0 %v1819
      %v1847 = vpop.f32.mrf.mxu0
      %v1848 = vadd.f32 %v1805, %v1847
      %1849 = vmatmul.f32.gmra.mxu0 %v1822
      %v1850 = vpop.f32.mrf.mxu0
      %v1851 = vadd.f32 %v1810, %v1850
      %1852 = vdwg.mxu0
      %v1853 = vmax.f32 %v1842, 0.0
      %v1854 = vmax.f32 %v1845, 0.0
      %v1855 = vmax.f32 %v1848, 0.0
      %v1856 = vmax.f32 %v1851, 0.0
      %v1857 = vld [vmem:[%s17] sm:$0xff]
      %v1858 = vld [vmem:[%s17 + $0x8] sm:$0xff]
      %v1859 = vld [vmem:[%s17 + $0x10] sm:$0xff]
      %v1860 = vld [vmem:[%s17 + $0x18] sm:$0xff]
      %v1861 = vld [vmem:[%s17 + $0x20] sm:$0xff]
      %v1862 = vld [vmem:[%s17 + $0x28] sm:$0xff]
      %v1863 = vld [vmem:[%s17 + $0x30] sm:$0xff]
      %v1864 = vld [vmem:[%s17 + $0x38] sm:$0xff]
      %v1865 = vld [vmem:[%s17 + $0x40] sm:$0xff]
      %v1866 = vld [vmem:[%s17 + $0x48] sm:$0xff]
      %v1867 = vld [vmem:[%s17 + $0x50] sm:$0xff]
      %v1868 = vld [vmem:[%s17 + $0x58] sm:$0xff]
      %v1869 = vld [vmem:[%s17 + $0x60] sm:$0xff]
      %v1870 = vld [vmem:[%s17 + $0x68] sm:$0xff]
      %v1871 = vld [vmem:[%s17 + $0x70] sm:$0xff]
      %v1872 = vld [vmem:[%s17 + $0x78] sm:$0xff]
      %s1873 = scalar_lea.vmem %s17, 128
      %v1874 = vld [vmem:[%s1873] sm:$0xff]
      %v1875 = vld [vmem:[%s1873 + $0x8] sm:$0xff]
      %v1876 = vld [vmem:[%s1873 + $0x10] sm:$0xff]
      %v1877 = vld [vmem:[%s1873 + $0x18] sm:$0xff]
      %v1878 = vld [vmem:[%s1873 + $0x20] sm:$0xff]
      %v1879 = vld [vmem:[%s1873 + $0x28] sm:$0xff]
      %v1880 = vld [vmem:[%s1873 + $0x30] sm:$0xff]
      %v1881 = vld [vmem:[%s1873 + $0x38] sm:$0xff]
      %v1882 = vld [vmem:[%s1873 + $0x40] sm:$0xff]
      %v1883 = vld [vmem:[%s1873 + $0x48] sm:$0xff]
      %v1884 = vld [vmem:[%s1873 + $0x50] sm:$0xff]
      %v1885 = vld [vmem:[%s1873 + $0x58] sm:$0xff]
      %v1886 = vld [vmem:[%s1873 + $0x60] sm:$0xff]
      %v1887 = vld [vmem:[%s1873 + $0x68] sm:$0xff]
      %v1888 = vld [vmem:[%s1873 + $0x70] sm:$0xff]
      %v1889 = vld [vmem:[%s1873 + $0x78] sm:$0xff]
      %1890 = vmatpush.msra.mxu0 %v1889
      %1891 = vmatpush.msra.mxu0 %v1888
      %1892 = vmatpush.msra.mxu0 %v1887
      %1893 = vmatpush.msra.mxu0 %v1886
      %1894 = vmatpush.msra.mxu0 %v1885
      %1895 = vmatpush.msra.mxu0 %v1884
      %1896 = vmatpush.msra.mxu0 %v1883
      %1897 = vmatpush.msra.mxu0 %v1882
      %1898 = vmatpush.msra.mxu0 %v1881
      %1899 = vmatpush.msra.mxu0 %v1880
      %1900 = vmatpush.msra.mxu0 %v1879
      %1901 = vmatpush.msra.mxu0 %v1878
      %1902 = vmatpush.msra.mxu0 %v1877
      %1903 = vmatpush.msra.mxu0 %v1876
      %1904 = vmatpush.msra.mxu0 %v1875
      %1905 = vmatpush.msra.mxu0 %v1874
      %1906 = vmatmul.f32.gmra.mxu0 %v1854
      %v1907 = vpop.f32.mrf.mxu0
      %v1908 = vadd.f32 0.0, %v1907
      %1909 = vdwg.mxu0
      %1910 = vmatpush.msra.mxu0 %v1872
      %1911 = vmatpush.msra.mxu0 %v1871
      %1912 = vmatpush.msra.mxu0 %v1870
      %1913 = vmatpush.msra.mxu0 %v1869
      %1914 = vmatpush.msra.mxu0 %v1868
      %1915 = vmatpush.msra.mxu0 %v1867
      %1916 = vmatpush.msra.mxu0 %v1866
      %1917 = vmatpush.msra.mxu0 %v1865
      %1918 = vmatpush.msra.mxu0 %v1864
      %1919 = vmatpush.msra.mxu0 %v1863
      %1920 = vmatpush.msra.mxu0 %v1862
      %1921 = vmatpush.msra.mxu0 %v1861
      %1922 = vmatpush.msra.mxu0 %v1860
      %1923 = vmatpush.msra.mxu0 %v1859
      %1924 = vmatpush.msra.mxu0 %v1858
      %1925 = vmatpush.msra.mxu0 %v1857
      %1926 = vmatmul.f32.gmra.mxu0 %v1853
      %v1927 = vpop.f32.mrf.mxu0
      %v1928 = vadd.f32 %v1908, %v1927
      %1929 = vdwg.mxu0
      %s1930 = scalar_lea.vmem %s17, 256
      %v1931 = vld [vmem:[%s1930] sm:$0xff]
      %v1932 = vld [vmem:[%s1930 + $0x8] sm:$0xff]
      %v1933 = vld [vmem:[%s1930 + $0x10] sm:$0xff]
      %v1934 = vld [vmem:[%s1930 + $0x18] sm:$0xff]
      %v1935 = vld [vmem:[%s1930 + $0x20] sm:$0xff]
      %v1936 = vld [vmem:[%s1930 + $0x28] sm:$0xff]
      %v1937 = vld [vmem:[%s1930 + $0x30] sm:$0xff]
      %v1938 = vld [vmem:[%s1930 + $0x38] sm:$0xff]
      %v1939 = vld [vmem:[%s1930 + $0x40] sm:$0xff]
      %v1940 = vld [vmem:[%s1930 + $0x48] sm:$0xff]
      %v1941 = vld [vmem:[%s1930 + $0x50] sm:$0xff]
      %v1942 = vld [vmem:[%s1930 + $0x58] sm:$0xff]
      %v1943 = vld [vmem:[%s1930 + $0x60] sm:$0xff]
      %v1944 = vld [vmem:[%s1930 + $0x68] sm:$0xff]
      %v1945 = vld [vmem:[%s1930 + $0x70] sm:$0xff]
      %v1946 = vld [vmem:[%s1930 + $0x78] sm:$0xff]
      %1947 = vmatpush.msra.mxu0 %v1946
      %1948 = vmatpush.msra.mxu0 %v1945
      %1949 = vmatpush.msra.mxu0 %v1944
      %1950 = vmatpush.msra.mxu0 %v1943
      %1951 = vmatpush.msra.mxu0 %v1942
      %1952 = vmatpush.msra.mxu0 %v1941
      %1953 = vmatpush.msra.mxu0 %v1940
      %1954 = vmatpush.msra.mxu0 %v1939
      %1955 = vmatpush.msra.mxu0 %v1938
      %1956 = vmatpush.msra.mxu0 %v1937
      %1957 = vmatpush.msra.mxu0 %v1936
      %1958 = vmatpush.msra.mxu0 %v1935
      %1959 = vmatpush.msra.mxu0 %v1934
      %1960 = vmatpush.msra.mxu0 %v1933
      %1961 = vmatpush.msra.mxu0 %v1932
      %1962 = vmatpush.msra.mxu0 %v1931
      %1963 = vmatmul.f32.gmra.mxu0 %v1855
      %v1964 = vpop.f32.mrf.mxu0
      %v1965 = vadd.f32 0.0, %v1964
      %1966 = vdwg.mxu0
      %v1967 = vadd.f32 %v1928, %v1965
      %s1968 = scalar_lea.vmem %s17, 384
      %v1969 = vld [vmem:[%s1968] sm:$0xff]
      %v1970 = vld [vmem:[%s1968 + $0x8] sm:$0xff]
      %v1971 = vld [vmem:[%s1968 + $0x10] sm:$0xff]
      %v1972 = vld [vmem:[%s1968 + $0x18] sm:$0xff]
      %v1973 = vld [vmem:[%s1968 + $0x20] sm:$0xff]
      %v1974 = vld [vmem:[%s1968 + $0x28] sm:$0xff]
      %v1975 = vld [vmem:[%s1968 + $0x30] sm:$0xff]
      %v1976 = vld [vmem:[%s1968 + $0x38] sm:$0xff]
      %v1977 = vld [vmem:[%s1968 + $0x40] sm:$0xff]
      %v1978 = vld [vmem:[%s1968 + $0x48] sm:$0xff]
      %v1979 = vld [vmem:[%s1968 + $0x50] sm:$0xff]
      %v1980 = vld [vmem:[%s1968 + $0x58] sm:$0xff]
      %v1981 = vld [vmem:[%s1968 + $0x60] sm:$0xff]
      %v1982 = vld [vmem:[%s1968 + $0x68] sm:$0xff]
      %v1983 = vld [vmem:[%s1968 + $0x70] sm:$0xff]
      %v1984 = vld [vmem:[%s1968 + $0x78] sm:$0xff]
      %1985 = vmatpush.msra.mxu0 %v1984
      %1986 = vmatpush.msra.mxu0 %v1983
      %1987 = vmatpush.msra.mxu0 %v1982
      %1988 = vmatpush.msra.mxu0 %v1981
      %1989 = vmatpush.msra.mxu0 %v1980
      %1990 = vmatpush.msra.mxu0 %v1979
      %1991 = vmatpush.msra.mxu0 %v1978
      %1992 = vmatpush.msra.mxu0 %v1977
      %1993 = vmatpush.msra.mxu0 %v1976
      %1994 = vmatpush.msra.mxu0 %v1975
      %1995 = vmatpush.msra.mxu0 %v1974
      %1996 = vmatpush.msra.mxu0 %v1973
      %1997 = vmatpush.msra.mxu0 %v1972
      %1998 = vmatpush.msra.mxu0 %v1971
      %1999 = vmatpush.msra.mxu0 %v1970
      %2000 = vmatpush.msra.mxu0 %v1969
      %2001 = vmatmul.f32.gmra.mxu0 %v1856
      %v2002 = vpop.f32.mrf.mxu0
      %v2003 = vadd.f32 0.0, %v2002
      %2004 = vdwg.mxu0
      %v2005 = vadd.f32 %v1967, %v2003
      %v2006 = vld [vmem:[%s1128] sm:$0xff]
      %v2007 = vld [vmem:[%s13] sm:$0x1]
      %s2008 = scalar_lea.vmem %s25, 8
      %v2009 = vld [vmem:[%s2008] sm:$0xff]
      %s2010 = scalar_lea.vmem %s21, 72
      %v2011 = vld [vmem:[%s2010] sm:$0xff]
      %2012 = vrot.lane.b32.xlu0 %v2005, 11
      %v2013 = vpop.permute.xlu0 %2012
      %v2015 = vsel %vm1151, %v2011, 0
      %2017 = vmatpush.msra.mxu0 0.0
      %2018 = vmatpush.msra.mxu0 0.0
      %2019 = vmatpush.msra.mxu0 0.0
      %2020 = vmatpush.msra.mxu0 0.0
      %2021 = vmatpush.msra.mxu0 0.0
      %2022 = vmatpush.msra.mxu0 0.0
      %2023 = vmatpush.msra.mxu0 0.0
      %2024 = vmatpush.msra.mxu0 0.0
      %2025 = vmatpush.msra.mxu0 0.0
      %2026 = vmatpush.msra.mxu0 0.0
      %2027 = vmatpush.msra.mxu0 0.0
      %2028 = vmatpush.msra.mxu0 0.0
      %2029 = vmatpush.msra.mxu0 0.0
      %2030 = vmatpush.msra.mxu0 0.0
      %2031 = vmatpush.msra.mxu0 0.0
      %2032 = vmatpush.msra.mxu0 %v2013
      %2033 = vmatmul.f32.gmra.mxu0 %v2015
      %v2034 = vpop.f32.mrf.mxu0
      %v2035 = vadd.f32 0.0, %v2034
      %2036 = vdwg.mxu0
      %2038 = vset.pattern.permute.xlu0 0
      %2039 = vperm.xlu0 %2038, %v2009
      %v2040 = vpop.permute.xlu0 %2039
      %v2042 = vadd.f32 %v2040, %v2035
      %s2043 = scalar_lea.vmem %s23, 72
      %v2044 = vld [vmem:[%s2043] sm:$0xff]
      %2045 = vrot.lane.b32.xlu0 %v2006, 11
      %v2046 = vpop.permute.xlu0 %2045
      %v2048 = vsel %vm1151, %v2044, 0
      %2050 = vmatpush.msra.mxu0 0.0
      %2051 = vmatpush.msra.mxu0 0.0
      %2052 = vmatpush.msra.mxu0 0.0
      %2053 = vmatpush.msra.mxu0 0.0
      %2054 = vmatpush.msra.mxu0 0.0
      %2055 = vmatpush.msra.mxu0 0.0
      %2056 = vmatpush.msra.mxu0 0.0
      %2057 = vmatpush.msra.mxu0 0.0
      %2058 = vmatpush.msra.mxu0 0.0
      %2059 = vmatpush.msra.mxu0 0.0
      %2060 = vmatpush.msra.mxu0 0.0
      %2061 = vmatpush.msra.mxu0 0.0
      %2062 = vmatpush.msra.mxu0 0.0
      %2063 = vmatpush.msra.mxu0 0.0
      %2064 = vmatpush.msra.mxu0 0.0
      %2065 = vmatpush.msra.mxu0 %v2046
      %2066 = vmatmul.f32.gmra.mxu0 %v2048
      %v2067 = vpop.f32.mrf.mxu0
      %v2068 = vadd.f32 0.0, %v2067
      %2069 = vdwg.mxu0
      %v2070 = vadd.f32 %v2042, %v2068
      %s2071 = scalar_lea.vmem %s21, 80
      %v2072 = vld [vmem:[%s2071] sm:$0xff]
      %2073 = vrot.lane.b32.xlu0 %v2005, 10
      %v2074 = vpop.permute.xlu0 %2073
      %v2076 = vsel %vm1151, %v2072, 0
      %2078 = vmatpush.msra.mxu0 0.0
      %2079 = vmatpush.msra.mxu0 0.0
      %2080 = vmatpush.msra.mxu0 0.0
      %2081 = vmatpush.msra.mxu0 0.0
      %2082 = vmatpush.msra.mxu0 0.0
      %2083 = vmatpush.msra.mxu0 0.0
      %2084 = vmatpush.msra.mxu0 0.0
      %2085 = vmatpush.msra.mxu0 0.0
      %2086 = vmatpush.msra.mxu0 0.0
      %2087 = vmatpush.msra.mxu0 0.0
      %2088 = vmatpush.msra.mxu0 0.0
      %2089 = vmatpush.msra.mxu0 0.0
      %2090 = vmatpush.msra.mxu0 0.0
      %2091 = vmatpush.msra.mxu0 0.0
      %2092 = vmatpush.msra.mxu0 0.0
      %2093 = vmatpush.msra.mxu0 %v2074
      %2094 = vmatmul.f32.gmra.mxu0 %v2076
      %v2095 = vpop.f32.mrf.mxu0
      %v2096 = vadd.f32 0.0, %v2095
      %2097 = vdwg.mxu0
      %v2098 = vadd.f32 %v2070, %v2096
      %s2099 = scalar_lea.vmem %s23, 80
      %v2100 = vld [vmem:[%s2099] sm:$0xff]
      %2101 = vrot.lane.b32.xlu0 %v2006, 10
      %v2102 = vpop.permute.xlu0 %2101
      %v2104 = vsel %vm1151, %v2100, 0
      %2106 = vmatpush.msra.mxu0 0.0
      %2107 = vmatpush.msra.mxu0 0.0
      %2108 = vmatpush.msra.mxu0 0.0
      %2109 = vmatpush.msra.mxu0 0.0
      %2110 = vmatpush.msra.mxu0 0.0
      %2111 = vmatpush.msra.mxu0 0.0
      %2112 = vmatpush.msra.mxu0 0.0
      %2113 = vmatpush.msra.mxu0 0.0
      %2114 = vmatpush.msra.mxu0 0.0
      %2115 = vmatpush.msra.mxu0 0.0
      %2116 = vmatpush.msra.mxu0 0.0
      %2117 = vmatpush.msra.mxu0 0.0
      %2118 = vmatpush.msra.mxu0 0.0
      %2119 = vmatpush.msra.mxu0 0.0
      %2120 = vmatpush.msra.mxu0 0.0
      %2121 = vmatpush.msra.mxu0 %v2102
      %2122 = vmatmul.f32.gmra.mxu0 %v2104
      %v2123 = vpop.f32.mrf.mxu0
      %v2124 = vadd.f32 0.0, %v2123
      %2125 = vdwg.mxu0
      %v2126 = vadd.f32 %v2098, %v2124
      %s2127 = scalar_lea.vmem %s21, 88
      %v2128 = vld [vmem:[%s2127] sm:$0xff]
      %2129 = vrot.lane.b32.xlu0 %v2005, 9
      %v2130 = vpop.permute.xlu0 %2129
      %v2132 = vsel %vm1151, %v2128, 0
      %2134 = vmatpush.msra.mxu0 0.0
      %2135 = vmatpush.msra.mxu0 0.0
      %2136 = vmatpush.msra.mxu0 0.0
      %2137 = vmatpush.msra.mxu0 0.0
      %2138 = vmatpush.msra.mxu0 0.0
      %2139 = vmatpush.msra.mxu0 0.0
      %2140 = vmatpush.msra.mxu0 0.0
      %2141 = vmatpush.msra.mxu0 0.0
      %2142 = vmatpush.msra.mxu0 0.0
      %2143 = vmatpush.msra.mxu0 0.0
      %2144 = vmatpush.msra.mxu0 0.0
      %2145 = vmatpush.msra.mxu0 0.0
      %2146 = vmatpush.msra.mxu0 0.0
      %2147 = vmatpush.msra.mxu0 0.0
      %2148 = vmatpush.msra.mxu0 0.0
      %2149 = vmatpush.msra.mxu0 %v2130
      %2150 = vmatmul.f32.gmra.mxu0 %v2132
      %v2151 = vpop.f32.mrf.mxu0
      %v2152 = vadd.f32 0.0, %v2151
      %2153 = vdwg.mxu0
      %v2154 = vadd.f32 %v2126, %v2152
      %s2155 = scalar_lea.vmem %s23, 88
      %v2156 = vld [vmem:[%s2155] sm:$0xff]
      %2157 = vrot.lane.b32.xlu0 %v2006, 9
      %v2158 = vpop.permute.xlu0 %2157
      %v2160 = vsel %vm1151, %v2156, 0
      %2162 = vmatpush.msra.mxu0 0.0
      %2163 = vmatpush.msra.mxu0 0.0
      %2164 = vmatpush.msra.mxu0 0.0
      %2165 = vmatpush.msra.mxu0 0.0
      %2166 = vmatpush.msra.mxu0 0.0
      %2167 = vmatpush.msra.mxu0 0.0
      %2168 = vmatpush.msra.mxu0 0.0
      %2169 = vmatpush.msra.mxu0 0.0
      %2170 = vmatpush.msra.mxu0 0.0
      %2171 = vmatpush.msra.mxu0 0.0
      %2172 = vmatpush.msra.mxu0 0.0
      %2173 = vmatpush.msra.mxu0 0.0
      %2174 = vmatpush.msra.mxu0 0.0
      %2175 = vmatpush.msra.mxu0 0.0
      %2176 = vmatpush.msra.mxu0 0.0
      %2177 = vmatpush.msra.mxu0 %v2158
      %2178 = vmatmul.f32.gmra.mxu0 %v2160
      %v2179 = vpop.f32.mrf.mxu0
      %v2180 = vadd.f32 0.0, %v2179
      %2181 = vdwg.mxu0
      %v2182 = vadd.f32 %v2154, %v2180
      %s2183 = scalar_lea.vmem %s21, 96
      %v2184 = vld [vmem:[%s2183] sm:$0xff]
      %2185 = vrot.lane.b32.xlu0 %v2005, 1
      %v2186 = vpop.permute.xlu0 %2185
      %v2188 = vsel %vm1151, %v2184, 0
      %2190 = vmatpush.msra.mxu0 0.0
      %2191 = vmatpush.msra.mxu0 0.0
      %2192 = vmatpush.msra.mxu0 0.0
      %2193 = vmatpush.msra.mxu0 0.0
      %2194 = vmatpush.msra.mxu0 0.0
      %2195 = vmatpush.msra.mxu0 0.0
      %2196 = vmatpush.msra.mxu0 0.0
      %2197 = vmatpush.msra.mxu0 0.0
      %2198 = vmatpush.msra.mxu0 0.0
      %2199 = vmatpush.msra.mxu0 0.0
      %2200 = vmatpush.msra.mxu0 0.0
      %2201 = vmatpush.msra.mxu0 0.0
      %2202 = vmatpush.msra.mxu0 0.0
      %2203 = vmatpush.msra.mxu0 0.0
      %2204 = vmatpush.msra.mxu0 0.0
      %2205 = vmatpush.msra.mxu0 %v2186
      %2206 = vmatmul.f32.gmra.mxu0 %v2188
      %v2207 = vpop.f32.mrf.mxu0
      %v2208 = vadd.f32 0.0, %v2207
      %2209 = vdwg.mxu0
      %v2210 = vadd.f32 %v2182, %v2208
      %s2211 = scalar_lea.vmem %s23, 96
      %v2212 = vld [vmem:[%s2211] sm:$0xff]
      %2213 = vrot.lane.b32.xlu0 %v2006, 1
      %v2214 = vpop.permute.xlu0 %2213
      %v2216 = vsel %vm1151, %v2212, 0
      %2218 = vmatpush.msra.mxu0 0.0
      %2219 = vmatpush.msra.mxu0 0.0
      %2220 = vmatpush.msra.mxu0 0.0
      %2221 = vmatpush.msra.mxu0 0.0
      %2222 = vmatpush.msra.mxu0 0.0
      %2223 = vmatpush.msra.mxu0 0.0
      %2224 = vmatpush.msra.mxu0 0.0
      %2225 = vmatpush.msra.mxu0 0.0
      %2226 = vmatpush.msra.mxu0 0.0
      %2227 = vmatpush.msra.mxu0 0.0
      %2228 = vmatpush.msra.mxu0 0.0
      %2229 = vmatpush.msra.mxu0 0.0
      %2230 = vmatpush.msra.mxu0 0.0
      %2231 = vmatpush.msra.mxu0 0.0
      %2232 = vmatpush.msra.mxu0 0.0
      %2233 = vmatpush.msra.mxu0 %v2214
      %2234 = vmatmul.f32.gmra.mxu0 %v2216
      %v2235 = vpop.f32.mrf.mxu0
      %v2236 = vadd.f32 0.0, %v2235
      %2237 = vdwg.mxu0
      %v2238 = vadd.f32 %v2210, %v2236
      %s2239 = scalar_lea.vmem %s21, 104
      %v2240 = vld [vmem:[%s2239] sm:$0xff]
      %v2242 = vsel %vm1151, %v2240, 0
      %2244 = vmatpush.msra.mxu0 0.0
      %2245 = vmatpush.msra.mxu0 0.0
      %2246 = vmatpush.msra.mxu0 0.0
      %2247 = vmatpush.msra.mxu0 0.0
      %2248 = vmatpush.msra.mxu0 0.0
      %2249 = vmatpush.msra.mxu0 0.0
      %2250 = vmatpush.msra.mxu0 0.0
      %2251 = vmatpush.msra.mxu0 0.0
      %2252 = vmatpush.msra.mxu0 0.0
      %2253 = vmatpush.msra.mxu0 0.0
      %2254 = vmatpush.msra.mxu0 0.0
      %2255 = vmatpush.msra.mxu0 0.0
      %2256 = vmatpush.msra.mxu0 0.0
      %2257 = vmatpush.msra.mxu0 0.0
      %2258 = vmatpush.msra.mxu0 0.0
      %2259 = vmatpush.msra.mxu0 %v2005
      %2260 = vmatmul.f32.gmra.mxu0 %v2242
      %v2261 = vpop.f32.mrf.mxu0
      %v2262 = vadd.f32 0.0, %v2261
      %2263 = vdwg.mxu0
      %v2264 = vadd.f32 %v2238, %v2262
      %s2265 = scalar_lea.vmem %s23, 104
      %v2266 = vld [vmem:[%s2265] sm:$0xff]
      %v2268 = vsel %vm1151, %v2266, 0
      %2270 = vmatpush.msra.mxu0 0.0
      %2271 = vmatpush.msra.mxu0 0.0
      %2272 = vmatpush.msra.mxu0 0.0
      %2273 = vmatpush.msra.mxu0 0.0
      %2274 = vmatpush.msra.mxu0 0.0
      %2275 = vmatpush.msra.mxu0 0.0
      %2276 = vmatpush.msra.mxu0 0.0
      %2277 = vmatpush.msra.mxu0 0.0
      %2278 = vmatpush.msra.mxu0 0.0
      %2279 = vmatpush.msra.mxu0 0.0
      %2280 = vmatpush.msra.mxu0 0.0
      %2281 = vmatpush.msra.mxu0 0.0
      %2282 = vmatpush.msra.mxu0 0.0
      %2283 = vmatpush.msra.mxu0 0.0
      %2284 = vmatpush.msra.mxu0 0.0
      %2285 = vmatpush.msra.mxu0 %v2006
      %2286 = vmatmul.f32.gmra.mxu0 %v2268
      %v2287 = vpop.f32.mrf.mxu0
      %v2288 = vadd.f32 0.0, %v2287
      %2289 = vdwg.mxu0
      %v2290 = vadd.f32 %v2264, %v2288
      %s2291 = scalar_lea.vmem %s21, 112
      %v2292 = vld [vmem:[%s2291] sm:$0xff]
      %2293 = vrot.lane.b32.xlu0 %v2005, 127
      %v2294 = vpop.permute.xlu0 %2293
      %v2296 = vsel %vm1151, %v2292, 0
      %2298 = vmatpush.msra.mxu0 0.0
      %2299 = vmatpush.msra.mxu0 0.0
      %2300 = vmatpush.msra.mxu0 0.0
      %2301 = vmatpush.msra.mxu0 0.0
      %2302 = vmatpush.msra.mxu0 0.0
      %2303 = vmatpush.msra.mxu0 0.0
      %2304 = vmatpush.msra.mxu0 0.0
      %2305 = vmatpush.msra.mxu0 0.0
      %2306 = vmatpush.msra.mxu0 0.0
      %2307 = vmatpush.msra.mxu0 0.0
      %2308 = vmatpush.msra.mxu0 0.0
      %2309 = vmatpush.msra.mxu0 0.0
      %2310 = vmatpush.msra.mxu0 0.0
      %2311 = vmatpush.msra.mxu0 0.0
      %2312 = vmatpush.msra.mxu0 0.0
      %2313 = vmatpush.msra.mxu0 %v2294
      %2314 = vmatmul.f32.gmra.mxu0 %v2296
      %v2315 = vpop.f32.mrf.mxu0
      %v2316 = vadd.f32 0.0, %v2315
      %2317 = vdwg.mxu0
      %v2318 = vadd.f32 %v2290, %v2316
      %s2319 = scalar_lea.vmem %s23, 112
      %v2320 = vld [vmem:[%s2319] sm:$0xff]
      %2321 = vrot.lane.b32.xlu0 %v2006, 127
      %v2322 = vpop.permute.xlu0 %2321
      %v2324 = vsel %vm1151, %v2320, 0
      %2326 = vmatpush.msra.mxu0 0.0
      %2327 = vmatpush.msra.mxu0 0.0
      %2328 = vmatpush.msra.mxu0 0.0
      %2329 = vmatpush.msra.mxu0 0.0
      %2330 = vmatpush.msra.mxu0 0.0
      %2331 = vmatpush.msra.mxu0 0.0
      %2332 = vmatpush.msra.mxu0 0.0
      %2333 = vmatpush.msra.mxu0 0.0
      %2334 = vmatpush.msra.mxu0 0.0
      %2335 = vmatpush.msra.mxu0 0.0
      %2336 = vmatpush.msra.mxu0 0.0
      %2337 = vmatpush.msra.mxu0 0.0
      %2338 = vmatpush.msra.mxu0 0.0
      %2339 = vmatpush.msra.mxu0 0.0
      %2340 = vmatpush.msra.mxu0 0.0
      %2341 = vmatpush.msra.mxu0 %v2322
      %2342 = vmatmul.f32.gmra.mxu0 %v2324
      %v2343 = vpop.f32.mrf.mxu0
      %v2344 = vadd.f32 0.0, %v2343
      %2345 = vdwg.mxu0
      %v2346 = vadd.f32 %v2318, %v2344
      %s2347 = scalar_lea.vmem %s21, 120
      %v2348 = vld [vmem:[%s2347] sm:$0xff]
      %2349 = vrot.lane.b32.xlu0 %v2005, 119
      %v2350 = vpop.permute.xlu0 %2349
      %v2352 = vsel %vm1151, %v2348, 0
      %2354 = vmatpush.msra.mxu0 0.0
      %2355 = vmatpush.msra.mxu0 0.0
      %2356 = vmatpush.msra.mxu0 0.0
      %2357 = vmatpush.msra.mxu0 0.0
      %2358 = vmatpush.msra.mxu0 0.0
      %2359 = vmatpush.msra.mxu0 0.0
      %2360 = vmatpush.msra.mxu0 0.0
      %2361 = vmatpush.msra.mxu0 0.0
      %2362 = vmatpush.msra.mxu0 0.0
      %2363 = vmatpush.msra.mxu0 0.0
      %2364 = vmatpush.msra.mxu0 0.0
      %2365 = vmatpush.msra.mxu0 0.0
      %2366 = vmatpush.msra.mxu0 0.0
      %2367 = vmatpush.msra.mxu0 0.0
      %2368 = vmatpush.msra.mxu0 0.0
      %2369 = vmatpush.msra.mxu0 %v2350
      %2370 = vmatmul.f32.gmra.mxu0 %v2352
      %v2371 = vpop.f32.mrf.mxu0
      %v2372 = vadd.f32 0.0, %v2371
      %2373 = vdwg.mxu0
      %v2374 = vadd.f32 %v2346, %v2372
      %s2375 = scalar_lea.vmem %s23, 120
      %v2376 = vld [vmem:[%s2375] sm:$0xff]
      %2377 = vrot.lane.b32.xlu0 %v2006, 119
      %v2378 = vpop.permute.xlu0 %2377
      %v2380 = vsel %vm1151, %v2376, 0
      %2382 = vmatpush.msra.mxu0 0.0
      %2383 = vmatpush.msra.mxu0 0.0
      %2384 = vmatpush.msra.mxu0 0.0
      %2385 = vmatpush.msra.mxu0 0.0
      %2386 = vmatpush.msra.mxu0 0.0
      %2387 = vmatpush.msra.mxu0 0.0
      %2388 = vmatpush.msra.mxu0 0.0
      %2389 = vmatpush.msra.mxu0 0.0
      %2390 = vmatpush.msra.mxu0 0.0
      %2391 = vmatpush.msra.mxu0 0.0
      %2392 = vmatpush.msra.mxu0 0.0
      %2393 = vmatpush.msra.mxu0 0.0
      %2394 = vmatpush.msra.mxu0 0.0
      %2395 = vmatpush.msra.mxu0 0.0
      %2396 = vmatpush.msra.mxu0 0.0
      %2397 = vmatpush.msra.mxu0 %v2378
      %2398 = vmatmul.f32.gmra.mxu0 %v2380
      %v2399 = vpop.f32.mrf.mxu0
      %v2400 = vadd.f32 0.0, %v2399
      %2401 = vdwg.mxu0
      %v2402 = vadd.f32 %v2374, %v2400
      %s2403 = scalar_lea.vmem %s21, 128
      %v2404 = vld [vmem:[%s2403] sm:$0xff]
      %2405 = vrot.lane.b32.xlu0 %v2005, 118
      %v2406 = vpop.permute.xlu0 %2405
      %v2408 = vsel %vm1151, %v2404, 0
      %2410 = vmatpush.msra.mxu0 0.0
      %2411 = vmatpush.msra.mxu0 0.0
      %2412 = vmatpush.msra.mxu0 0.0
      %2413 = vmatpush.msra.mxu0 0.0
      %2414 = vmatpush.msra.mxu0 0.0
      %2415 = vmatpush.msra.mxu0 0.0
      %2416 = vmatpush.msra.mxu0 0.0
      %2417 = vmatpush.msra.mxu0 0.0
      %2418 = vmatpush.msra.mxu0 0.0
      %2419 = vmatpush.msra.mxu0 0.0
      %2420 = vmatpush.msra.mxu0 0.0
      %2421 = vmatpush.msra.mxu0 0.0
      %2422 = vmatpush.msra.mxu0 0.0
      %2423 = vmatpush.msra.mxu0 0.0
      %2424 = vmatpush.msra.mxu0 0.0
      %2425 = vmatpush.msra.mxu0 %v2406
      %2426 = vmatmul.f32.gmra.mxu0 %v2408
      %v2427 = vpop.f32.mrf.mxu0
      %v2428 = vadd.f32 0.0, %v2427
      %2429 = vdwg.mxu0
      %v2430 = vadd.f32 %v2402, %v2428
      %s2431 = scalar_lea.vmem %s23, 128
      %v2432 = vld [vmem:[%s2431] sm:$0xff]
      %2433 = vrot.lane.b32.xlu0 %v2006, 118
      %v2434 = vpop.permute.xlu0 %2433
      %v2436 = vsel %vm1151, %v2432, 0
      %2438 = vmatpush.msra.mxu0 0.0
      %2439 = vmatpush.msra.mxu0 0.0
      %2440 = vmatpush.msra.mxu0 0.0
      %2441 = vmatpush.msra.mxu0 0.0
      %2442 = vmatpush.msra.mxu0 0.0
      %2443 = vmatpush.msra.mxu0 0.0
      %2444 = vmatpush.msra.mxu0 0.0
      %2445 = vmatpush.msra.mxu0 0.0
      %2446 = vmatpush.msra.mxu0 0.0
      %2447 = vmatpush.msra.mxu0 0.0
      %2448 = vmatpush.msra.mxu0 0.0
      %2449 = vmatpush.msra.mxu0 0.0
      %2450 = vmatpush.msra.mxu0 0.0
      %2451 = vmatpush.msra.mxu0 0.0
      %2452 = vmatpush.msra.mxu0 0.0
      %2453 = vmatpush.msra.mxu0 %v2434
      %2454 = vmatmul.f32.gmra.mxu0 %v2436
      %v2455 = vpop.f32.mrf.mxu0
      %v2456 = vadd.f32 0.0, %v2455
      %2457 = vdwg.mxu0
      %v2458 = vadd.f32 %v2430, %v2456
      %s2459 = scalar_lea.vmem %s21, 136
      %v2460 = vld [vmem:[%s2459] sm:$0xff]
      %2461 = vrot.lane.b32.xlu0 %v2005, 117
      %v2462 = vpop.permute.xlu0 %2461
      %v2464 = vsel %vm1151, %v2460, 0
      %2466 = vmatpush.msra.mxu0 0.0
      %2467 = vmatpush.msra.mxu0 0.0
      %2468 = vmatpush.msra.mxu0 0.0
      %2469 = vmatpush.msra.mxu0 0.0
      %2470 = vmatpush.msra.mxu0 0.0
      %2471 = vmatpush.msra.mxu0 0.0
      %2472 = vmatpush.msra.mxu0 0.0
      %2473 = vmatpush.msra.mxu0 0.0
      %2474 = vmatpush.msra.mxu0 0.0
      %2475 = vmatpush.msra.mxu0 0.0
      %2476 = vmatpush.msra.mxu0 0.0
      %2477 = vmatpush.msra.mxu0 0.0
      %2478 = vmatpush.msra.mxu0 0.0
      %2479 = vmatpush.msra.mxu0 0.0
      %2480 = vmatpush.msra.mxu0 0.0
      %2481 = vmatpush.msra.mxu0 %v2462
      %2482 = vmatmul.f32.gmra.mxu0 %v2464
      %v2483 = vpop.f32.mrf.mxu0
      %v2484 = vadd.f32 0.0, %v2483
      %2485 = vdwg.mxu0
      %v2486 = vadd.f32 %v2458, %v2484
      %s2487 = scalar_lea.vmem %s23, 136
      %v2488 = vld [vmem:[%s2487] sm:$0xff]
      %2489 = vrot.lane.b32.xlu0 %v2006, 117
      %v2490 = vpop.permute.xlu0 %2489
      %v2492 = vsel %vm1151, %v2488, 0
      %2494 = vmatpush.msra.mxu0 0.0
      %2495 = vmatpush.msra.mxu0 0.0
      %2496 = vmatpush.msra.mxu0 0.0
      %2497 = vmatpush.msra.mxu0 0.0
      %2498 = vmatpush.msra.mxu0 0.0
      %2499 = vmatpush.msra.mxu0 0.0
      %2500 = vmatpush.msra.mxu0 0.0
      %2501 = vmatpush.msra.mxu0 0.0
      %2502 = vmatpush.msra.mxu0 0.0
      %2503 = vmatpush.msra.mxu0 0.0
      %2504 = vmatpush.msra.mxu0 0.0
      %2505 = vmatpush.msra.mxu0 0.0
      %2506 = vmatpush.msra.mxu0 0.0
      %2507 = vmatpush.msra.mxu0 0.0
      %2508 = vmatpush.msra.mxu0 0.0
      %2509 = vmatpush.msra.mxu0 %v2490
      %2510 = vmatmul.f32.gmra.mxu0 %v2492
      %v2511 = vpop.f32.mrf.mxu0
      %v2512 = vadd.f32 0.0, %v2511
      %2513 = vdwg.mxu0
      %v2514 = vadd.f32 %v2486, %v2512
      %v2515 = vmax.f32 %v2514, 0.0
      %v2517 = vperm.slane %v2007, 0
      %v2519 = vmul.f32 %v2515, %v2517
      %s2520 = scalar_lea.vmem %s27, 72
      %v2521 = vld [vmem:[%s2520] sm:$0xff]
      %2522 = vrot.lane.b32.xlu0 %v2519, 11
      %v2523 = vpop.permute.xlu0 %2522
      %2525 = vset.pattern.permute.xlu0 0
      %2526 = vperm.xlu0 %2525, %v2521
      %v2527 = vpop.permute.xlu0 %2526
      %v2529 = vmul.f32 %v2527, %v2523
      %v2530 = vadd.f32 %v2529, 0.0
      %s2531 = scalar_lea.vmem %s27, 80
      %v2532 = vld [vmem:[%s2531] sm:$0xff]
      %2533 = vrot.lane.b32.xlu0 %v2519, 10
      %v2534 = vpop.permute.xlu0 %2533
      %2536 = vset.pattern.permute.xlu0 0
      %2537 = vperm.xlu0 %2536, %v2532
      %v2538 = vpop.permute.xlu0 %2537
      %v2540 = vmul.f32 %v2538, %v2534
      %v2541 = vadd.f32 %v2530, %v2540
      %s2542 = scalar_lea.vmem %s27, 88
      %v2543 = vld [vmem:[%s2542] sm:$0xff]
      %2544 = vrot.lane.b32.xlu0 %v2519, 9
      %v2545 = vpop.permute.xlu0 %2544
      %2547 = vset.pattern.permute.xlu0 0
      %2548 = vperm.xlu0 %2547, %v2543
      %v2549 = vpop.permute.xlu0 %2548
      %v2551 = vmul.f32 %v2549, %v2545
      %v2552 = vadd.f32 %v2541, %v2551
      %s2553 = scalar_lea.vmem %s27, 96
      %v2554 = vld [vmem:[%s2553] sm:$0xff]
      %2555 = vrot.lane.b32.xlu0 %v2519, 1
      %v2556 = vpop.permute.xlu0 %2555
      %2558 = vset.pattern.permute.xlu0 0
      %2559 = vperm.xlu0 %2558, %v2554
      %v2560 = vpop.permute.xlu0 %2559
      %v2562 = vmul.f32 %v2560, %v2556
      %v2563 = vadd.f32 %v2552, %v2562
      %s2564 = scalar_lea.vmem %s27, 104
      %v2565 = vld [vmem:[%s2564] sm:$0xff]
      %2567 = vset.pattern.permute.xlu0 0
      %2568 = vperm.xlu0 %2567, %v2565
      %v2569 = vpop.permute.xlu0 %2568
      %v2571 = vmul.f32 %v2569, %v2519
      %v2572 = vadd.f32 %v2563, %v2571
      %s2573 = scalar_lea.vmem %s27, 112
      %v2574 = vld [vmem:[%s2573] sm:$0xff]
      %2575 = vrot.lane.b32.xlu0 %v2519, 127
      %v2576 = vpop.permute.xlu0 %2575
      %2578 = vset.pattern.permute.xlu0 0
      %2579 = vperm.xlu0 %2578, %v2574
      %v2580 = vpop.permute.xlu0 %2579
      %v2582 = vmul.f32 %v2580, %v2576
      %v2583 = vadd.f32 %v2572, %v2582
      %s2584 = scalar_lea.vmem %s27, 120
      %v2585 = vld [vmem:[%s2584] sm:$0xff]
      %2586 = vrot.lane.b32.xlu0 %v2519, 119
      %v2587 = vpop.permute.xlu0 %2586
      %2589 = vset.pattern.permute.xlu0 0
      %2590 = vperm.xlu0 %2589, %v2585
      %v2591 = vpop.permute.xlu0 %2590
      %v2593 = vmul.f32 %v2591, %v2587
      %v2594 = vadd.f32 %v2583, %v2593
      %s2595 = scalar_lea.vmem %s27, 128
      %v2596 = vld [vmem:[%s2595] sm:$0xff]
      %2597 = vrot.lane.b32.xlu0 %v2519, 118
      %v2598 = vpop.permute.xlu0 %2597
      %2600 = vset.pattern.permute.xlu0 0
      %2601 = vperm.xlu0 %2600, %v2596
      %v2602 = vpop.permute.xlu0 %2601
      %v2604 = vmul.f32 %v2602, %v2598
      %v2605 = vadd.f32 %v2594, %v2604
      %s2606 = scalar_lea.vmem %s27, 136
      %v2607 = vld [vmem:[%s2606] sm:$0xff]
      %2608 = vrot.lane.b32.xlu0 %v2519, 117
      %v2609 = vpop.permute.xlu0 %2608
      %2611 = vset.pattern.permute.xlu0 0
      %2612 = vperm.xlu0 %2611, %v2607
      %v2613 = vpop.permute.xlu0 %2612
      %v2615 = vmul.f32 %v2613, %v2609
      %v2616 = vadd.f32 %v2605, %v2615
      %s2617 = scalar_lea.vmem %s29, 8
      %v2618 = vld [vmem:[%s2617] sm:$0xff]
      %s2619 = scalar_lea.vmem %s31, 8
      %v2620 = vld [vmem:[%s2619] sm:$0xff]
      %2622 = vset.pattern.permute.xlu0 0
      %2623 = vperm.xlu0 %2622, %v2620
      %v2624 = vpop.permute.xlu0 %2623
      %v2627 = vsel %vm1151, %v2618, 0
      %2629 = vmatpush.msra.mxu0 0.0
      %2630 = vmatpush.msra.mxu0 0.0
      %2631 = vmatpush.msra.mxu0 0.0
      %2632 = vmatpush.msra.mxu0 0.0
      %2633 = vmatpush.msra.mxu0 0.0
      %2634 = vmatpush.msra.mxu0 0.0
      %2635 = vmatpush.msra.mxu0 0.0
      %2636 = vmatpush.msra.mxu0 0.0
      %2637 = vmatpush.msra.mxu0 0.0
      %2638 = vmatpush.msra.mxu0 0.0
      %2639 = vmatpush.msra.mxu0 0.0
      %2640 = vmatpush.msra.mxu0 0.0
      %2641 = vmatpush.msra.mxu0 0.0
      %2642 = vmatpush.msra.mxu0 0.0
      %2643 = vmatpush.msra.mxu0 0.0
      %2644 = vmatpush.msra.mxu0 %v2616
      %2645 = vmatmul.f32.gmra.mxu0 %v2627
      %v2646 = vpop.f32.mrf.mxu0
      %v2647 = vadd.f32 %v2624, %v2646
      %2648 = vdwg.mxu0
      %v2649 = vmax.f32 %v2647, 0.0
      %s2650 = scalar_lea.vmem %s33, 32
      %v2651 = vld [vmem:[%s2650] sm:$0xff]
      %v2652 = vld [vmem:[%s2650 + $0x8] sm:$0xff]
      %v2653 = vld [vmem:[%s2650 + $0x10] sm:$0xff]
      %v2654 = vld [vmem:[%s2650 + $0x18] sm:$0xff]
      %s2655 = scalar_lea.vmem %s35, 32
      %v2656 = vld [vmem:[%s2655] sm:$0xff]
      %v2657 = vld [vmem:[%s2655 + $0x8] sm:$0xff]
      %v2658 = vld [vmem:[%s2655 + $0x10] sm:$0xff]
      %v2659 = vld [vmem:[%s2655 + $0x18] sm:$0xff]
      %2661 = vset.pattern.permute.xlu0 0
      %2662 = vperm.xlu0 %2661, %v2656
      %v2663 = vpop.permute.xlu0 %2662
      %2666 = vset.pattern.permute.xlu0 0
      %2667 = vperm.xlu0 %2666, %v2657
      %v2668 = vpop.permute.xlu0 %2667
      %2671 = vset.pattern.permute.xlu0 0
      %2672 = vperm.xlu0 %2671, %v2658
      %v2673 = vpop.permute.xlu0 %2672
      %2676 = vset.pattern.permute.xlu0 0
      %2677 = vperm.xlu0 %2676, %v2659
      %v2678 = vpop.permute.xlu0 %2677
      %v2681 = vsel %vm1151, %v2651, 0
      %v2684 = vsel %vm1151, %v2652, 0
      %v2687 = vsel %vm1151, %v2653, 0
      %v2690 = vsel %vm1151, %v2654, 0
      %2692 = vmatpush.msra.mxu0 0.0
      %2693 = vmatpush.msra.mxu0 0.0
      %2694 = vmatpush.msra.mxu0 0.0
      %2695 = vmatpush.msra.mxu0 0.0
      %2696 = vmatpush.msra.mxu0 0.0
      %2697 = vmatpush.msra.mxu0 0.0
      %2698 = vmatpush.msra.mxu0 0.0
      %2699 = vmatpush.msra.mxu0 0.0
      %2700 = vmatpush.msra.mxu0 0.0
      %2701 = vmatpush.msra.mxu0 0.0
      %2702 = vmatpush.msra.mxu0 0.0
      %2703 = vmatpush.msra.mxu0 0.0
      %2704 = vmatpush.msra.mxu0 0.0
      %2705 = vmatpush.msra.mxu0 0.0
      %2706 = vmatpush.msra.mxu0 0.0
      %2707 = vmatpush.msra.mxu0 %v2649
      %2708 = vmatmul.f32.gmra.mxu0 %v2681
      %v2709 = vpop.f32.mrf.mxu0
      %v2710 = vadd.f32 %v2663, %v2709
      %2711 = vmatmul.f32.gmra.mxu0 %v2684
      %v2712 = vpop.f32.mrf.mxu0
      %v2713 = vadd.f32 %v2668, %v2712
      %2714 = vmatmul.f32.gmra.mxu0 %v2687
      %v2715 = vpop.f32.mrf.mxu0
      %v2716 = vadd.f32 %v2673, %v2715
      %2717 = vmatmul.f32.gmra.mxu0 %v2690
      %v2718 = vpop.f32.mrf.mxu0
      %v2719 = vadd.f32 %v2678, %v2718
      %2720 = vdwg.mxu0
      %v2721 = vmax.f32 %v2710, 0.0
      %v2722 = vmax.f32 %v2713, 0.0
      %v2723 = vmax.f32 %v2716, 0.0
      %v2724 = vmax.f32 %v2719, 0.0
      %v2725 = vld [vmem:[%s19] sm:$0xff]
      %v2726 = vld [vmem:[%s19 + $0x8] sm:$0xff]
      %v2727 = vld [vmem:[%s19 + $0x10] sm:$0xff]
      %v2728 = vld [vmem:[%s19 + $0x18] sm:$0xff]
      %v2729 = vld [vmem:[%s19 + $0x20] sm:$0xff]
      %v2730 = vld [vmem:[%s19 + $0x28] sm:$0xff]
      %v2731 = vld [vmem:[%s19 + $0x30] sm:$0xff]
      %v2732 = vld [vmem:[%s19 + $0x38] sm:$0xff]
      %v2733 = vld [vmem:[%s19 + $0x40] sm:$0xff]
      %v2734 = vld [vmem:[%s19 + $0x48] sm:$0xff]
      %v2735 = vld [vmem:[%s19 + $0x50] sm:$0xff]
      %v2736 = vld [vmem:[%s19 + $0x58] sm:$0xff]
      %v2737 = vld [vmem:[%s19 + $0x60] sm:$0xff]
      %v2738 = vld [vmem:[%s19 + $0x68] sm:$0xff]
      %v2739 = vld [vmem:[%s19 + $0x70] sm:$0xff]
      %v2740 = vld [vmem:[%s19 + $0x78] sm:$0xff]
      %v2741 = vld [vmem:[%s19 + $0x80] sm:$0xff]
      %v2742 = vld [vmem:[%s19 + $0x88] sm:$0xff]
      %v2743 = vld [vmem:[%s19 + $0x90] sm:$0xff]
      %v2744 = vld [vmem:[%s19 + $0x98] sm:$0xff]
      %v2745 = vld [vmem:[%s19 + $0xa0] sm:$0xff]
      %v2746 = vld [vmem:[%s19 + $0xa8] sm:$0xff]
      %v2747 = vld [vmem:[%s19 + $0xb0] sm:$0xff]
      %v2748 = vld [vmem:[%s19 + $0xb8] sm:$0xff]
      %v2749 = vld [vmem:[%s19 + $0xc0] sm:$0xff]
      %v2750 = vld [vmem:[%s19 + $0xc8] sm:$0xff]
      %v2751 = vld [vmem:[%s19 + $0xd0] sm:$0xff]
      %v2752 = vld [vmem:[%s19 + $0xd8] sm:$0xff]
      %v2753 = vld [vmem:[%s19 + $0xe0] sm:$0xff]
      %v2754 = vld [vmem:[%s19 + $0xe8] sm:$0xff]
      %v2755 = vld [vmem:[%s19 + $0xf0] sm:$0xff]
      %v2756 = vld [vmem:[%s19 + $0xf8] sm:$0xff]
      %v2757 = vld [vmem:[%s19 + $0x100] sm:$0xff]
      %v2758 = vld [vmem:[%s19 + $0x108] sm:$0xff]
      %v2759 = vld [vmem:[%s19 + $0x110] sm:$0xff]
      %v2760 = vld [vmem:[%s19 + $0x118] sm:$0xff]
      %v2761 = vld [vmem:[%s19 + $0x120] sm:$0xff]
      %v2762 = vld [vmem:[%s19 + $0x128] sm:$0xff]
      %v2763 = vld [vmem:[%s19 + $0x130] sm:$0xff]
      %v2764 = vld [vmem:[%s19 + $0x138] sm:$0xff]
      %v2765 = vld [vmem:[%s19 + $0x140] sm:$0xff]
      %v2766 = vld [vmem:[%s19 + $0x148] sm:$0xff]
      %v2767 = vld [vmem:[%s19 + $0x150] sm:$0xff]
      %v2768 = vld [vmem:[%s19 + $0x158] sm:$0xff]
      %v2769 = vld [vmem:[%s19 + $0x160] sm:$0xff]
      %v2770 = vld [vmem:[%s19 + $0x168] sm:$0xff]
      %v2771 = vld [vmem:[%s19 + $0x170] sm:$0xff]
      %v2772 = vld [vmem:[%s19 + $0x178] sm:$0xff]
      %s2773 = scalar_lea.vmem %s19, 384
      %v2774 = vld [vmem:[%s2773] sm:$0xff]
      %v2775 = vld [vmem:[%s2773 + $0x8] sm:$0xff]
      %v2776 = vld [vmem:[%s2773 + $0x10] sm:$0xff]
      %v2777 = vld [vmem:[%s2773 + $0x18] sm:$0xff]
      %v2778 = vld [vmem:[%s2773 + $0x20] sm:$0xff]
      %v2779 = vld [vmem:[%s2773 + $0x28] sm:$0xff]
      %v2780 = vld [vmem:[%s2773 + $0x30] sm:$0xff]
      %v2781 = vld [vmem:[%s2773 + $0x38] sm:$0xff]
      %v2782 = vld [vmem:[%s2773 + $0x40] sm:$0xff]
      %v2783 = vld [vmem:[%s2773 + $0x48] sm:$0xff]
      %v2784 = vld [vmem:[%s2773 + $0x50] sm:$0xff]
      %v2785 = vld [vmem:[%s2773 + $0x58] sm:$0xff]
      %v2786 = vld [vmem:[%s2773 + $0x60] sm:$0xff]
      %v2787 = vld [vmem:[%s2773 + $0x68] sm:$0xff]
      %v2788 = vld [vmem:[%s2773 + $0x70] sm:$0xff]
      %v2789 = vld [vmem:[%s2773 + $0x78] sm:$0xff]
      %v2790 = vld [vmem:[%s2773 + $0x80] sm:$0xff]
      %v2791 = vld [vmem:[%s2773 + $0x88] sm:$0xff]
      %v2792 = vld [vmem:[%s2773 + $0x90] sm:$0xff]
      %v2793 = vld [vmem:[%s2773 + $0x98] sm:$0xff]
      %v2794 = vld [vmem:[%s2773 + $0xa0] sm:$0xff]
      %v2795 = vld [vmem:[%s2773 + $0xa8] sm:$0xff]
      %v2796 = vld [vmem:[%s2773 + $0xb0] sm:$0xff]
      %v2797 = vld [vmem:[%s2773 + $0xb8] sm:$0xff]
      %v2798 = vld [vmem:[%s2773 + $0xc0] sm:$0xff]
      %v2799 = vld [vmem:[%s2773 + $0xc8] sm:$0xff]
      %v2800 = vld [vmem:[%s2773 + $0xd0] sm:$0xff]
      %v2801 = vld [vmem:[%s2773 + $0xd8] sm:$0xff]
      %v2802 = vld [vmem:[%s2773 + $0xe0] sm:$0xff]
      %v2803 = vld [vmem:[%s2773 + $0xe8] sm:$0xff]
      %v2804 = vld [vmem:[%s2773 + $0xf0] sm:$0xff]
      %v2805 = vld [vmem:[%s2773 + $0xf8] sm:$0xff]
      %v2806 = vld [vmem:[%s2773 + $0x100] sm:$0xff]
      %v2807 = vld [vmem:[%s2773 + $0x108] sm:$0xff]
      %v2808 = vld [vmem:[%s2773 + $0x110] sm:$0xff]
      %v2809 = vld [vmem:[%s2773 + $0x118] sm:$0xff]
      %v2810 = vld [vmem:[%s2773 + $0x120] sm:$0xff]
      %v2811 = vld [vmem:[%s2773 + $0x128] sm:$0xff]
      %v2812 = vld [vmem:[%s2773 + $0x130] sm:$0xff]
      %v2813 = vld [vmem:[%s2773 + $0x138] sm:$0xff]
      %v2814 = vld [vmem:[%s2773 + $0x140] sm:$0xff]
      %v2815 = vld [vmem:[%s2773 + $0x148] sm:$0xff]
      %v2816 = vld [vmem:[%s2773 + $0x150] sm:$0xff]
      %v2817 = vld [vmem:[%s2773 + $0x158] sm:$0xff]
      %v2818 = vld [vmem:[%s2773 + $0x160] sm:$0xff]
      %v2819 = vld [vmem:[%s2773 + $0x168] sm:$0xff]
      %v2820 = vld [vmem:[%s2773 + $0x170] sm:$0xff]
      %v2821 = vld [vmem:[%s2773 + $0x178] sm:$0xff]
      %2822 = vmatpush.msra.mxu0 %v2819
      %2823 = vmatpush.msra.mxu0 %v2816
      %2824 = vmatpush.msra.mxu0 %v2813
      %2825 = vmatpush.msra.mxu0 %v2810
      %2826 = vmatpush.msra.mxu0 %v2807
      %2827 = vmatpush.msra.mxu0 %v2804
      %2828 = vmatpush.msra.mxu0 %v2801
      %2829 = vmatpush.msra.mxu0 %v2798
      %2830 = vmatpush.msra.mxu0 %v2795
      %2831 = vmatpush.msra.mxu0 %v2792
      %2832 = vmatpush.msra.mxu0 %v2789
      %2833 = vmatpush.msra.mxu0 %v2786
      %2834 = vmatpush.msra.mxu0 %v2783
      %2835 = vmatpush.msra.mxu0 %v2780
      %2836 = vmatpush.msra.mxu0 %v2777
      %2837 = vmatpush.msra.mxu0 %v2774
      %2838 = vmatmul.f32.gmra.mxu0 %v2722
      %v2839 = vpop.f32.mrf.mxu0
      %v2840 = vadd.f32 0.0, %v2839
      %2841 = vdwg.mxu0
      %2842 = vmatpush.msra.mxu0 %v2820
      %2843 = vmatpush.msra.mxu0 %v2817
      %2844 = vmatpush.msra.mxu0 %v2814
      %2845 = vmatpush.msra.mxu0 %v2811
      %2846 = vmatpush.msra.mxu0 %v2808
      %2847 = vmatpush.msra.mxu0 %v2805
      %2848 = vmatpush.msra.mxu0 %v2802
      %2849 = vmatpush.msra.mxu0 %v2799
      %2850 = vmatpush.msra.mxu0 %v2796
      %2851 = vmatpush.msra.mxu0 %v2793
      %2852 = vmatpush.msra.mxu0 %v2790
      %2853 = vmatpush.msra.mxu0 %v2787
      %2854 = vmatpush.msra.mxu0 %v2784
      %2855 = vmatpush.msra.mxu0 %v2781
      %2856 = vmatpush.msra.mxu0 %v2778
      %2857 = vmatpush.msra.mxu0 %v2775
      %2858 = vmatmul.f32.gmra.mxu0 %v2722
      %v2859 = vpop.f32.mrf.mxu0
      %v2860 = vadd.f32 0.0, %v2859
      %2861 = vdwg.mxu0
      %2862 = vmatpush.msra.mxu0 %v2821
      %2863 = vmatpush.msra.mxu0 %v2818
      %2864 = vmatpush.msra.mxu0 %v2815
      %2865 = vmatpush.msra.mxu0 %v2812
      %2866 = vmatpush.msra.mxu0 %v2809
      %2867 = vmatpush.msra.mxu0 %v2806
      %2868 = vmatpush.msra.mxu0 %v2803
      %2869 = vmatpush.msra.mxu0 %v2800
      %2870 = vmatpush.msra.mxu0 %v2797
      %2871 = vmatpush.msra.mxu0 %v2794
      %2872 = vmatpush.msra.mxu0 %v2791
      %2873 = vmatpush.msra.mxu0 %v2788
      %2874 = vmatpush.msra.mxu0 %v2785
      %2875 = vmatpush.msra.mxu0 %v2782
      %2876 = vmatpush.msra.mxu0 %v2779
      %2877 = vmatpush.msra.mxu0 %v2776
      %2878 = vmatmul.f32.gmra.mxu0 %v2722
      %v2879 = vpop.f32.mrf.mxu0
      %v2880 = vadd.f32 0.0, %v2879
      %2881 = vdwg.mxu0
      %2882 = vmatpush.msra.mxu0 %v2770
      %2883 = vmatpush.msra.mxu0 %v2767
      %2884 = vmatpush.msra.mxu0 %v2764
      %2885 = vmatpush.msra.mxu0 %v2761
      %2886 = vmatpush.msra.mxu0 %v2758
      %2887 = vmatpush.msra.mxu0 %v2755
      %2888 = vmatpush.msra.mxu0 %v2752
      %2889 = vmatpush.msra.mxu0 %v2749
      %2890 = vmatpush.msra.mxu0 %v2746
      %2891 = vmatpush.msra.mxu0 %v2743
      %2892 = vmatpush.msra.mxu0 %v2740
      %2893 = vmatpush.msra.mxu0 %v2737
      %2894 = vmatpush.msra.mxu0 %v2734
      %2895 = vmatpush.msra.mxu0 %v2731
      %2896 = vmatpush.msra.mxu0 %v2728
      %2897 = vmatpush.msra.mxu0 %v2725
      %2898 = vmatmul.f32.gmra.mxu0 %v2721
      %v2899 = vpop.f32.mrf.mxu0
      %v2900 = vadd.f32 %v2840, %v2899
      %2901 = vdwg.mxu0
      %2902 = vmatpush.msra.mxu0 %v2771
      %2903 = vmatpush.msra.mxu0 %v2768
      %2904 = vmatpush.msra.mxu0 %v2765
      %2905 = vmatpush.msra.mxu0 %v2762
      %2906 = vmatpush.msra.mxu0 %v2759
      %2907 = vmatpush.msra.mxu0 %v2756
      %2908 = vmatpush.msra.mxu0 %v2753
      %2909 = vmatpush.msra.mxu0 %v2750
      %2910 = vmatpush.msra.mxu0 %v2747
      %2911 = vmatpush.msra.mxu0 %v2744
      %2912 = vmatpush.msra.mxu0 %v2741
      %2913 = vmatpush.msra.mxu0 %v2738
      %2914 = vmatpush.msra.mxu0 %v2735
      %2915 = vmatpush.msra.mxu0 %v2732
      %2916 = vmatpush.msra.mxu0 %v2729
      %2917 = vmatpush.msra.mxu0 %v2726
      %2918 = vmatmul.f32.gmra.mxu0 %v2721
      %v2919 = vpop.f32.mrf.mxu0
      %v2920 = vadd.f32 %v2860, %v2919
      %2921 = vdwg.mxu0
      %2922 = vmatpush.msra.mxu0 %v2772
      %2923 = vmatpush.msra.mxu0 %v2769
      %2924 = vmatpush.msra.mxu0 %v2766
      %2925 = vmatpush.msra.mxu0 %v2763
      %2926 = vmatpush.msra.mxu0 %v2760
      %2927 = vmatpush.msra.mxu0 %v2757
      %2928 = vmatpush.msra.mxu0 %v2754
      %2929 = vmatpush.msra.mxu0 %v2751
      %2930 = vmatpush.msra.mxu0 %v2748
      %2931 = vmatpush.msra.mxu0 %v2745
      %2932 = vmatpush.msra.mxu0 %v2742
      %2933 = vmatpush.msra.mxu0 %v2739
      %2934 = vmatpush.msra.mxu0 %v2736
      %2935 = vmatpush.msra.mxu0 %v2733
      %2936 = vmatpush.msra.mxu0 %v2730
      %2937 = vmatpush.msra.mxu0 %v2727
      %2938 = vmatmul.f32.gmra.mxu0 %v2721
      %v2939 = vpop.f32.mrf.mxu0
      %v2940 = vadd.f32 %v2880, %v2939
      %2941 = vdwg.mxu0
      %s2942 = scalar_lea.vmem %s19, 768
      %v2943 = vld [vmem:[%s2942] sm:$0xff]
      %v2944 = vld [vmem:[%s2942 + $0x8] sm:$0xff]
      %v2945 = vld [vmem:[%s2942 + $0x10] sm:$0xff]
      %v2946 = vld [vmem:[%s2942 + $0x18] sm:$0xff]
      %v2947 = vld [vmem:[%s2942 + $0x20] sm:$0xff]
      %v2948 = vld [vmem:[%s2942 + $0x28] sm:$0xff]
      %v2949 = vld [vmem:[%s2942 + $0x30] sm:$0xff]
      %v2950 = vld [vmem:[%s2942 + $0x38] sm:$0xff]
      %v2951 = vld [vmem:[%s2942 + $0x40] sm:$0xff]
      %v2952 = vld [vmem:[%s2942 + $0x48] sm:$0xff]
      %v2953 = vld [vmem:[%s2942 + $0x50] sm:$0xff]
      %v2954 = vld [vmem:[%s2942 + $0x58] sm:$0xff]
      %v2955 = vld [vmem:[%s2942 + $0x60] sm:$0xff]
      %v2956 = vld [vmem:[%s2942 + $0x68] sm:$0xff]
      %v2957 = vld [vmem:[%s2942 + $0x70] sm:$0xff]
      %v2958 = vld [vmem:[%s2942 + $0x78] sm:$0xff]
      %v2959 = vld [vmem:[%s2942 + $0x80] sm:$0xff]
      %v2960 = vld [vmem:[%s2942 + $0x88] sm:$0xff]
      %v2961 = vld [vmem:[%s2942 + $0x90] sm:$0xff]
      %v2962 = vld [vmem:[%s2942 + $0x98] sm:$0xff]
      %v2963 = vld [vmem:[%s2942 + $0xa0] sm:$0xff]
      %v2964 = vld [vmem:[%s2942 + $0xa8] sm:$0xff]
      %v2965 = vld [vmem:[%s2942 + $0xb0] sm:$0xff]
      %v2966 = vld [vmem:[%s2942 + $0xb8] sm:$0xff]
      %v2967 = vld [vmem:[%s2942 + $0xc0] sm:$0xff]
      %v2968 = vld [vmem:[%s2942 + $0xc8] sm:$0xff]
      %v2969 = vld [vmem:[%s2942 + $0xd0] sm:$0xff]
      %v2970 = vld [vmem:[%s2942 + $0xd8] sm:$0xff]
      %v2971 = vld [vmem:[%s2942 + $0xe0] sm:$0xff]
      %v2972 = vld [vmem:[%s2942 + $0xe8] sm:$0xff]
      %v2973 = vld [vmem:[%s2942 + $0xf0] sm:$0xff]
      %v2974 = vld [vmem:[%s2942 + $0xf8] sm:$0xff]
      %v2975 = vld [vmem:[%s2942 + $0x100] sm:$0xff]
      %v2976 = vld [vmem:[%s2942 + $0x108] sm:$0xff]
      %v2977 = vld [vmem:[%s2942 + $0x110] sm:$0xff]
      %v2978 = vld [vmem:[%s2942 + $0x118] sm:$0xff]
      %v2979 = vld [vmem:[%s2942 + $0x120] sm:$0xff]
      %v2980 = vld [vmem:[%s2942 + $0x128] sm:$0xff]
      %v2981 = vld [vmem:[%s2942 + $0x130] sm:$0xff]
      %v2982 = vld [vmem:[%s2942 + $0x138] sm:$0xff]
      %v2983 = vld [vmem:[%s2942 + $0x140] sm:$0xff]
      %v2984 = vld [vmem:[%s2942 + $0x148] sm:$0xff]
      %v2985 = vld [vmem:[%s2942 + $0x150] sm:$0xff]
      %v2986 = vld [vmem:[%s2942 + $0x158] sm:$0xff]
      %v2987 = vld [vmem:[%s2942 + $0x160] sm:$0xff]
      %v2988 = vld [vmem:[%s2942 + $0x168] sm:$0xff]
      %v2989 = vld [vmem:[%s2942 + $0x170] sm:$0xff]
      %v2990 = vld [vmem:[%s2942 + $0x178] sm:$0xff]
      %2991 = vmatpush.msra.mxu0 %v2988
      %2992 = vmatpush.msra.mxu0 %v2985
      %2993 = vmatpush.msra.mxu0 %v2982
      %2994 = vmatpush.msra.mxu0 %v2979
      %2995 = vmatpush.msra.mxu0 %v2976
      %2996 = vmatpush.msra.mxu0 %v2973
      %2997 = vmatpush.msra.mxu0 %v2970
      %2998 = vmatpush.msra.mxu0 %v2967
      %2999 = vmatpush.msra.mxu0 %v2964
      %3000 = vmatpush.msra.mxu0 %v2961
      %3001 = vmatpush.msra.mxu0 %v2958
      %3002 = vmatpush.msra.mxu0 %v2955
      %3003 = vmatpush.msra.mxu0 %v2952
      %3004 = vmatpush.msra.mxu0 %v2949
      %3005 = vmatpush.msra.mxu0 %v2946
      %3006 = vmatpush.msra.mxu0 %v2943
      %3007 = vmatmul.f32.gmra.mxu0 %v2723
      %v3008 = vpop.f32.mrf.mxu0
      %v3009 = vadd.f32 0.0, %v3008
      %3010 = vdwg.mxu0
      %3011 = vmatpush.msra.mxu0 %v2989
      %3012 = vmatpush.msra.mxu0 %v2986
      %3013 = vmatpush.msra.mxu0 %v2983
      %3014 = vmatpush.msra.mxu0 %v2980
      %3015 = vmatpush.msra.mxu0 %v2977
      %3016 = vmatpush.msra.mxu0 %v2974
      %3017 = vmatpush.msra.mxu0 %v2971
      %3018 = vmatpush.msra.mxu0 %v2968
      %3019 = vmatpush.msra.mxu0 %v2965
      %3020 = vmatpush.msra.mxu0 %v2962
      %3021 = vmatpush.msra.mxu0 %v2959
      %3022 = vmatpush.msra.mxu0 %v2956
      %3023 = vmatpush.msra.mxu0 %v2953
      %3024 = vmatpush.msra.mxu0 %v2950
      %3025 = vmatpush.msra.mxu0 %v2947
      %3026 = vmatpush.msra.mxu0 %v2944
      %3027 = vmatmul.f32.gmra.mxu0 %v2723
      %v3028 = vpop.f32.mrf.mxu0
      %v3029 = vadd.f32 0.0, %v3028
      %3030 = vdwg.mxu0
      %3031 = vmatpush.msra.mxu0 %v2990
      %3032 = vmatpush.msra.mxu0 %v2987
      %3033 = vmatpush.msra.mxu0 %v2984
      %3034 = vmatpush.msra.mxu0 %v2981
      %3035 = vmatpush.msra.mxu0 %v2978
      %3036 = vmatpush.msra.mxu0 %v2975
      %3037 = vmatpush.msra.mxu0 %v2972
      %3038 = vmatpush.msra.mxu0 %v2969
      %3039 = vmatpush.msra.mxu0 %v2966
      %3040 = vmatpush.msra.mxu0 %v2963
      %3041 = vmatpush.msra.mxu0 %v2960
      %3042 = vmatpush.msra.mxu0 %v2957
      %3043 = vmatpush.msra.mxu0 %v2954
      %3044 = vmatpush.msra.mxu0 %v2951
      %3045 = vmatpush.msra.mxu0 %v2948
      %3046 = vmatpush.msra.mxu0 %v2945
      %3047 = vmatmul.f32.gmra.mxu0 %v2723
      %v3048 = vpop.f32.mrf.mxu0
      %v3049 = vadd.f32 0.0, %v3048
      %3050 = vdwg.mxu0
      %v3051 = vadd.f32 %v2900, %v3009
      %v3052 = vadd.f32 %v2920, %v3029
      %v3053 = vadd.f32 %v2940, %v3049
      %s3054 = scalar_lea.vmem %s19, 1152
      %v3055 = vld [vmem:[%s3054] sm:$0xff]
      %v3056 = vld [vmem:[%s3054 + $0x8] sm:$0xff]
      %v3057 = vld [vmem:[%s3054 + $0x10] sm:$0xff]
      %v3058 = vld [vmem:[%s3054 + $0x18] sm:$0xff]
      %v3059 = vld [vmem:[%s3054 + $0x20] sm:$0xff]
      %v3060 = vld [vmem:[%s3054 + $0x28] sm:$0xff]
      %v3061 = vld [vmem:[%s3054 + $0x30] sm:$0xff]
      %v3062 = vld [vmem:[%s3054 + $0x38] sm:$0xff]
      %v3063 = vld [vmem:[%s3054 + $0x40] sm:$0xff]
      %v3064 = vld [vmem:[%s3054 + $0x48] sm:$0xff]
      %v3065 = vld [vmem:[%s3054 + $0x50] sm:$0xff]
      %v3066 = vld [vmem:[%s3054 + $0x58] sm:$0xff]
      %v3067 = vld [vmem:[%s3054 + $0x60] sm:$0xff]
      %v3068 = vld [vmem:[%s3054 + $0x68] sm:$0xff]
      %v3069 = vld [vmem:[%s3054 + $0x70] sm:$0xff]
      %v3070 = vld [vmem:[%s3054 + $0x78] sm:$0xff]
      %v3071 = vld [vmem:[%s3054 + $0x80] sm:$0xff]
      %v3072 = vld [vmem:[%s3054 + $0x88] sm:$0xff]
      %v3073 = vld [vmem:[%s3054 + $0x90] sm:$0xff]
      %v3074 = vld [vmem:[%s3054 + $0x98] sm:$0xff]
      %v3075 = vld [vmem:[%s3054 + $0xa0] sm:$0xff]
      %v3076 = vld [vmem:[%s3054 + $0xa8] sm:$0xff]
      %v3077 = vld [vmem:[%s3054 + $0xb0] sm:$0xff]
      %v3078 = vld [vmem:[%s3054 + $0xb8] sm:$0xff]
      %v3079 = vld [vmem:[%s3054 + $0xc0] sm:$0xff]
      %v3080 = vld [vmem:[%s3054 + $0xc8] sm:$0xff]
      %v3081 = vld [vmem:[%s3054 + $0xd0] sm:$0xff]
      %v3082 = vld [vmem:[%s3054 + $0xd8] sm:$0xff]
      %v3083 = vld [vmem:[%s3054 + $0xe0] sm:$0xff]
      %v3084 = vld [vmem:[%s3054 + $0xe8] sm:$0xff]
      %v3085 = vld [vmem:[%s3054 + $0xf0] sm:$0xff]
      %v3086 = vld [vmem:[%s3054 + $0xf8] sm:$0xff]
      %v3087 = vld [vmem:[%s3054 + $0x100] sm:$0xff]
      %v3088 = vld [vmem:[%s3054 + $0x108] sm:$0xff]
      %v3089 = vld [vmem:[%s3054 + $0x110] sm:$0xff]
      %v3090 = vld [vmem:[%s3054 + $0x118] sm:$0xff]
      %v3091 = vld [vmem:[%s3054 + $0x120] sm:$0xff]
      %v3092 = vld [vmem:[%s3054 + $0x128] sm:$0xff]
      %v3093 = vld [vmem:[%s3054 + $0x130] sm:$0xff]
      %v3094 = vld [vmem:[%s3054 + $0x138] sm:$0xff]
      %v3095 = vld [vmem:[%s3054 + $0x140] sm:$0xff]
      %v3096 = vld [vmem:[%s3054 + $0x148] sm:$0xff]
      %v3097 = vld [vmem:[%s3054 + $0x150] sm:$0xff]
      %v3098 = vld [vmem:[%s3054 + $0x158] sm:$0xff]
      %v3099 = vld [vmem:[%s3054 + $0x160] sm:$0xff]
      %v3100 = vld [vmem:[%s3054 + $0x168] sm:$0xff]
      %v3101 = vld [vmem:[%s3054 + $0x170] sm:$0xff]
      %v3102 = vld [vmem:[%s3054 + $0x178] sm:$0xff]
      %3103 = vmatpush.msra.mxu0 %v3100
      %3104 = vmatpush.msra.mxu0 %v3097
      %3105 = vmatpush.msra.mxu0 %v3094
      %3106 = vmatpush.msra.mxu0 %v3091
      %3107 = vmatpush.msra.mxu0 %v3088
      %3108 = vmatpush.msra.mxu0 %v3085
      %3109 = vmatpush.msra.mxu0 %v3082
      %3110 = vmatpush.msra.mxu0 %v3079
      %3111 = vmatpush.msra.mxu0 %v3076
      %3112 = vmatpush.msra.mxu0 %v3073
      %3113 = vmatpush.msra.mxu0 %v3070
      %3114 = vmatpush.msra.mxu0 %v3067
      %3115 = vmatpush.msra.mxu0 %v3064
      %3116 = vmatpush.msra.mxu0 %v3061
      %3117 = vmatpush.msra.mxu0 %v3058
      %3118 = vmatpush.msra.mxu0 %v3055
      %3119 = vmatmul.f32.gmra.mxu0 %v2724
      %v3120 = vpop.f32.mrf.mxu0
      %v3121 = vadd.f32 0.0, %v3120
      %3122 = vdwg.mxu0
      %3123 = vmatpush.msra.mxu0 %v3101
      %3124 = vmatpush.msra.mxu0 %v3098
      %3125 = vmatpush.msra.mxu0 %v3095
      %3126 = vmatpush.msra.mxu0 %v3092
      %3127 = vmatpush.msra.mxu0 %v3089
      %3128 = vmatpush.msra.mxu0 %v3086
      %3129 = vmatpush.msra.mxu0 %v3083
      %3130 = vmatpush.msra.mxu0 %v3080
      %3131 = vmatpush.msra.mxu0 %v3077
      %3132 = vmatpush.msra.mxu0 %v3074
      %3133 = vmatpush.msra.mxu0 %v3071
      %3134 = vmatpush.msra.mxu0 %v3068
      %3135 = vmatpush.msra.mxu0 %v3065
      %3136 = vmatpush.msra.mxu0 %v3062
      %3137 = vmatpush.msra.mxu0 %v3059
      %3138 = vmatpush.msra.mxu0 %v3056
      %3139 = vmatmul.f32.gmra.mxu0 %v2724
      %v3140 = vpop.f32.mrf.mxu0
      %v3141 = vadd.f32 0.0, %v3140
      %3142 = vdwg.mxu0
      %3143 = vmatpush.msra.mxu0 %v3102
      %3144 = vmatpush.msra.mxu0 %v3099
      %3145 = vmatpush.msra.mxu0 %v3096
      %3146 = vmatpush.msra.mxu0 %v3093
      %3147 = vmatpush.msra.mxu0 %v3090
      %3148 = vmatpush.msra.mxu0 %v3087
      %3149 = vmatpush.msra.mxu0 %v3084
      %3150 = vmatpush.msra.mxu0 %v3081
      %3151 = vmatpush.msra.mxu0 %v3078
      %3152 = vmatpush.msra.mxu0 %v3075
      %3153 = vmatpush.msra.mxu0 %v3072
      %3154 = vmatpush.msra.mxu0 %v3069
      %3155 = vmatpush.msra.mxu0 %v3066
      %3156 = vmatpush.msra.mxu0 %v3063
      %3157 = vmatpush.msra.mxu0 %v3060
      %3158 = vmatpush.msra.mxu0 %v3057
      %3159 = vmatmul.f32.gmra.mxu0 %v2724
      %v3160 = vpop.f32.mrf.mxu0
      %v3161 = vadd.f32 0.0, %v3160
      %3162 = vdwg.mxu0
      %v3163 = vadd.f32 %v3051, %v3121
      %v3164 = vadd.f32 %v3052, %v3141
      %v3165 = vadd.f32 %v3053, %v3161
      %v3166 = vld [vmem:[%s15] sm:$0x7]
      %v3167 = vld [vmem:[%s1133] sm:$0xff]
      %v3168 = vld [vmem:[%s1133 + $0x8] sm:$0xff]
      %v3169 = vld [vmem:[%s1133 + $0x10] sm:$0xff]
      %v3170 = vld [vmem:[%s37] sm:$0xff]
      %3171 = vrot.lane.b32.xlu0 %v3163, 19
      %v3172 = vpop.permute.xlu0 %3171
      %3173 = vrot.lane.b32.xlu0 %v3164, 19
      %v3174 = vpop.permute.xlu0 %3173
      %3175 = vrot.lane.b32.xlu0 %v3165, 19
      %v3176 = vpop.permute.xlu0 %3175
      %v3177 = vlaneseq
      %v3178 = vand.u32 %v3177, 127
      %vm3179 = vcmp.lt.s32.totalorder %v3178, 19
      %v3180 = vsel %vm3179, %v3174, %v3176
      %v3181 = vsel %vm3179, %v3172, %v3174
      %v3182 = vsel %vm3179, %v3176, %v3172
      %3184 = vset.pattern.permute.xlu0 0
      %3185 = vperm.xlu0 %3184, %v3170
      %v3186 = vpop.permute.xlu0 %3185
      %v3188 = vmul.f32 %v3186, %v3182
      %v3189 = vmul.f32 %v3186, %v3181
      %v3190 = vmul.f32 %v3186, %v3180
      %v3191 = vadd.f32 %v3188, 0.0
      %v3192 = vadd.f32 %v3189, 0.0
      %v3193 = vadd.f32 %v3190, 0.0
      %v3194 = vld [vmem:[%s39] sm:$0xff]
      %3195 = vrot.lane.b32.xlu0 %v3167, 19
      %v3196 = vpop.permute.xlu0 %3195
      %3197 = vrot.lane.b32.xlu0 %v3168, 19
      %v3198 = vpop.permute.xlu0 %3197
      %3199 = vrot.lane.b32.xlu0 %v3169, 19
      %v3200 = vpop.permute.xlu0 %3199
      %v3201 = vsel %vm3179, %v3198, %v3200
      %v3202 = vsel %vm3179, %v3196, %v3198
      %v3203 = vsel %vm3179, %v3200, %v3196
      %3205 = vset.pattern.permute.xlu0 0
      %3206 = vperm.xlu0 %3205, %v3194
      %v3207 = vpop.permute.xlu0 %3206
      %v3209 = vmul.f32 %v3207, %v3203
      %v3210 = vmul.f32 %v3207, %v3202
      %v3211 = vmul.f32 %v3207, %v3201
      %v3212 = vadd.f32 %v3209, 0.0
      %v3213 = vadd.f32 %v3210, 0.0
      %v3214 = vadd.f32 %v3211, 0.0
      %s3215 = scalar_lea.vmem %s37, 8
      %v3216 = vld [vmem:[%s3215] sm:$0xff]
      %3217 = vrot.lane.b32.xlu0 %v3163, 18
      %v3218 = vpop.permute.xlu0 %3217
      %3219 = vrot.lane.b32.xlu0 %v3164, 18
      %v3220 = vpop.permute.xlu0 %3219
      %3221 = vrot.lane.b32.xlu0 %v3165, 18
      %v3222 = vpop.permute.xlu0 %3221
      %vm3223 = vcmp.lt.s32.totalorder %v3178, 18
      %v3224 = vsel %vm3223, %v3220, %v3222
      %v3225 = vsel %vm3223, %v3218, %v3220
      %v3226 = vsel %vm3223, %v3222, %v3218
      %3228 = vset.pattern.permute.xlu0 0
      %3229 = vperm.xlu0 %3228, %v3216
      %v3230 = vpop.permute.xlu0 %3229
      %v3232 = vmul.f32 %v3230, %v3226
      %v3233 = vmul.f32 %v3230, %v3225
      %v3234 = vmul.f32 %v3230, %v3224
      %v3235 = vadd.f32 %v3191, %v3232
      %v3236 = vadd.f32 %v3192, %v3233
      %v3237 = vadd.f32 %v3193, %v3234
      %s3238 = scalar_lea.vmem %s39, 8
      %v3239 = vld [vmem:[%s3238] sm:$0xff]
      %3240 = vrot.lane.b32.xlu0 %v3167, 18
      %v3241 = vpop.permute.xlu0 %3240
      %3242 = vrot.lane.b32.xlu0 %v3168, 18
      %v3243 = vpop.permute.xlu0 %3242
      %3244 = vrot.lane.b32.xlu0 %v3169, 18
      %v3245 = vpop.permute.xlu0 %3244
      %v3246 = vsel %vm3223, %v3243, %v3245
      %v3247 = vsel %vm3223, %v3241, %v3243
      %v3248 = vsel %vm3223, %v3245, %v3241
      %3250 = vset.pattern.permute.xlu0 0
      %3251 = vperm.xlu0 %3250, %v3239
      %v3252 = vpop.permute.xlu0 %3251
      %v3254 = vmul.f32 %v3252, %v3248
      %v3255 = vmul.f32 %v3252, %v3247
      %v3256 = vmul.f32 %v3252, %v3246
      %v3257 = vadd.f32 %v3212, %v3254
      %v3258 = vadd.f32 %v3213, %v3255
      %v3259 = vadd.f32 %v3214, %v3256
      %s3260 = scalar_lea.vmem %s37, 16
      %v3261 = vld [vmem:[%s3260] sm:$0xff]
      %3262 = vrot.lane.b32.xlu0 %v3163, 17
      %v3263 = vpop.permute.xlu0 %3262
      %3264 = vrot.lane.b32.xlu0 %v3164, 17
      %v3265 = vpop.permute.xlu0 %3264
      %3266 = vrot.lane.b32.xlu0 %v3165, 17
      %v3267 = vpop.permute.xlu0 %3266
      %vm3268 = vcmp.lt.s32.totalorder %v3178, 17
      %v3269 = vsel %vm3268, %v3265, %v3267
      %v3270 = vsel %vm3268, %v3263, %v3265
      %v3271 = vsel %vm3268, %v3267, %v3263
      %3273 = vset.pattern.permute.xlu0 0
      %3274 = vperm.xlu0 %3273, %v3261
      %v3275 = vpop.permute.xlu0 %3274
      %v3277 = vmul.f32 %v3275, %v3271
      %v3278 = vmul.f32 %v3275, %v3270
      %v3279 = vmul.f32 %v3275, %v3269
      %v3280 = vadd.f32 %v3235, %v3277
      %v3281 = vadd.f32 %v3236, %v3278
      %v3282 = vadd.f32 %v3237, %v3279
      %s3283 = scalar_lea.vmem %s39, 16
      %v3284 = vld [vmem:[%s3283] sm:$0xff]
      %3285 = vrot.lane.b32.xlu0 %v3167, 17
      %v3286 = vpop.permute.xlu0 %3285
      %3287 = vrot.lane.b32.xlu0 %v3168, 17
      %v3288 = vpop.permute.xlu0 %3287
      %3289 = vrot.lane.b32.xlu0 %v3169, 17
      %v3290 = vpop.permute.xlu0 %3289
      %v3291 = vsel %vm3268, %v3288, %v3290
      %v3292 = vsel %vm3268, %v3286, %v3288
      %v3293 = vsel %vm3268, %v3290, %v3286
      %3295 = vset.pattern.permute.xlu0 0
      %3296 = vperm.xlu0 %3295, %v3284
      %v3297 = vpop.permute.xlu0 %3296
      %v3299 = vmul.f32 %v3297, %v3293
      %v3300 = vmul.f32 %v3297, %v3292
      %v3301 = vmul.f32 %v3297, %v3291
      %v3302 = vadd.f32 %v3257, %v3299
      %v3303 = vadd.f32 %v3258, %v3300
      %v3304 = vadd.f32 %v3259, %v3301
      %s3305 = scalar_lea.vmem %s37, 24
      %v3306 = vld [vmem:[%s3305] sm:$0xff]
      %3307 = vrot.lane.b32.xlu0 %v3163, 1
      %v3308 = vpop.permute.xlu0 %3307
      %3309 = vrot.lane.b32.xlu0 %v3164, 1
      %v3310 = vpop.permute.xlu0 %3309
      %3311 = vrot.lane.b32.xlu0 %v3165, 1
      %v3312 = vpop.permute.xlu0 %3311
      %vm3313 = vcmp.lt.s32.totalorder %v3178, 1
      %v3314 = vsel %vm3313, %v3310, %v3312
      %v3315 = vsel %vm3313, %v3308, %v3310
      %v3316 = vsel %vm3313, %v3312, %v3308
      %3318 = vset.pattern.permute.xlu0 0
      %3319 = vperm.xlu0 %3318, %v3306
      %v3320 = vpop.permute.xlu0 %3319
      %v3322 = vmul.f32 %v3320, %v3316
      %v3323 = vmul.f32 %v3320, %v3315
      %v3324 = vmul.f32 %v3320, %v3314
      %v3325 = vadd.f32 %v3280, %v3322
      %v3326 = vadd.f32 %v3281, %v3323
      %v3327 = vadd.f32 %v3282, %v3324
      %s3328 = scalar_lea.vmem %s39, 24
      %v3329 = vld [vmem:[%s3328] sm:$0xff]
      %3330 = vrot.lane.b32.xlu0 %v3167, 1
      %v3331 = vpop.permute.xlu0 %3330
      %3332 = vrot.lane.b32.xlu0 %v3168, 1
      %v3333 = vpop.permute.xlu0 %3332
      %3334 = vrot.lane.b32.xlu0 %v3169, 1
      %v3335 = vpop.permute.xlu0 %3334
      %v3336 = vsel %vm3313, %v3333, %v3335
      %v3337 = vsel %vm3313, %v3331, %v3333
      %v3338 = vsel %vm3313, %v3335, %v3331
      %3340 = vset.pattern.permute.xlu0 0
      %3341 = vperm.xlu0 %3340, %v3329
      %v3342 = vpop.permute.xlu0 %3341
      %v3344 = vmul.f32 %v3342, %v3338
      %v3345 = vmul.f32 %v3342, %v3337
      %v3346 = vmul.f32 %v3342, %v3336
      %v3347 = vadd.f32 %v3302, %v3344
      %v3348 = vadd.f32 %v3303, %v3345
      %v3349 = vadd.f32 %v3304, %v3346
      %s3350 = scalar_lea.vmem %s37, 32
      %v3351 = vld [vmem:[%s3350] sm:$0xff]
      %3353 = vset.pattern.permute.xlu0 0
      %3354 = vperm.xlu0 %3353, %v3351
      %v3355 = vpop.permute.xlu0 %3354
      %v3357 = vmul.f32 %v3355, %v3163
      %v3358 = vmul.f32 %v3355, %v3164
      %v3359 = vmul.f32 %v3355, %v3165
      %v3360 = vadd.f32 %v3325, %v3357
      %v3361 = vadd.f32 %v3326, %v3358
      %v3362 = vadd.f32 %v3327, %v3359
      %s3363 = scalar_lea.vmem %s39, 32
      %v3364 = vld [vmem:[%s3363] sm:$0xff]
      %3366 = vset.pattern.permute.xlu0 0
      %3367 = vperm.xlu0 %3366, %v3364
      %v3368 = vpop.permute.xlu0 %3367
      %v3370 = vmul.f32 %v3368, %v3167
      %v3371 = vmul.f32 %v3368, %v3168
      %v3372 = vmul.f32 %v3368, %v3169
      %v3373 = vadd.f32 %v3347, %v3370
      %v3374 = vadd.f32 %v3348, %v3371
      %v3375 = vadd.f32 %v3349, %v3372
      %s3376 = scalar_lea.vmem %s37, 40
      %v3377 = vld [vmem:[%s3376] sm:$0xff]
      %3378 = vrot.lane.b32.xlu0 %v3163, 127
      %v3379 = vpop.permute.xlu0 %3378
      %3380 = vrot.lane.b32.xlu0 %v3164, 127
      %v3381 = vpop.permute.xlu0 %3380
      %3382 = vrot.lane.b32.xlu0 %v3165, 127
      %v3383 = vpop.permute.xlu0 %3382
      %vm3384 = vcmp.lt.s32.totalorder %v3178, 127
      %v3385 = vsel %vm3384, %v3381, %v3383
      %v3386 = vsel %vm3384, %v3379, %v3381
      %v3387 = vsel %vm3384, %v3383, %v3379
      %3389 = vset.pattern.permute.xlu0 0
      %3390 = vperm.xlu0 %3389, %v3377
      %v3391 = vpop.permute.xlu0 %3390
      %v3393 = vmul.f32 %v3391, %v3386
      %v3394 = vmul.f32 %v3391, %v3385
      %v3395 = vmul.f32 %v3391, %v3387
      %v3396 = vadd.f32 %v3360, %v3393
      %v3397 = vadd.f32 %v3361, %v3394
      %v3398 = vadd.f32 %v3362, %v3395
      %s3399 = scalar_lea.vmem %s39, 40
      %v3400 = vld [vmem:[%s3399] sm:$0xff]
      %3401 = vrot.lane.b32.xlu0 %v3167, 127
      %v3402 = vpop.permute.xlu0 %3401
      %3403 = vrot.lane.b32.xlu0 %v3168, 127
      %v3404 = vpop.permute.xlu0 %3403
      %3405 = vrot.lane.b32.xlu0 %v3169, 127
      %v3406 = vpop.permute.xlu0 %3405
      %v3407 = vsel %vm3384, %v3404, %v3406
      %v3408 = vsel %vm3384, %v3402, %v3404
      %v3409 = vsel %vm3384, %v3406, %v3402
      %3411 = vset.pattern.permute.xlu0 0
      %3412 = vperm.xlu0 %3411, %v3400
      %v3413 = vpop.permute.xlu0 %3412
      %v3415 = vmul.f32 %v3413, %v3408
      %v3416 = vmul.f32 %v3413, %v3407
      %v3417 = vmul.f32 %v3413, %v3409
      %v3418 = vadd.f32 %v3373, %v3415
      %v3419 = vadd.f32 %v3374, %v3416
      %v3420 = vadd.f32 %v3375, %v3417
      %s3421 = scalar_lea.vmem %s37, 48
      %v3422 = vld [vmem:[%s3421] sm:$0xff]
      %3423 = vrot.lane.b32.xlu0 %v3163, 111
      %v3424 = vpop.permute.xlu0 %3423
      %3425 = vrot.lane.b32.xlu0 %v3164, 111
      %v3426 = vpop.permute.xlu0 %3425
      %3427 = vrot.lane.b32.xlu0 %v3165, 111
      %v3428 = vpop.permute.xlu0 %3427
      %vm3429 = vcmp.lt.s32.totalorder %v3178, 111
      %v3430 = vsel %vm3429, %v3426, %v3428
      %v3431 = vsel %vm3429, %v3424, %v3426
      %v3432 = vsel %vm3429, %v3428, %v3424
      %3434 = vset.pattern.permute.xlu0 0
      %3435 = vperm.xlu0 %3434, %v3422
      %v3436 = vpop.permute.xlu0 %3435
      %v3438 = vmul.f32 %v3436, %v3431
      %v3439 = vmul.f32 %v3436, %v3430
      %v3440 = vmul.f32 %v3436, %v3432
      %v3441 = vadd.f32 %v3396, %v3438
      %v3442 = vadd.f32 %v3397, %v3439
      %v3443 = vadd.f32 %v3398, %v3440
      %s3444 = scalar_lea.vmem %s39, 48
      %v3445 = vld [vmem:[%s3444] sm:$0xff]
      %3446 = vrot.lane.b32.xlu0 %v3167, 111
      %v3447 = vpop.permute.xlu0 %3446
      %3448 = vrot.lane.b32.xlu0 %v3168, 111
      %v3449 = vpop.permute.xlu0 %3448
      %3450 = vrot.lane.b32.xlu0 %v3169, 111
      %v3451 = vpop.permute.xlu0 %3450
      %v3452 = vsel %vm3429, %v3449, %v3451
      %v3453 = vsel %vm3429, %v3447, %v3449
      %v3454 = vsel %vm3429, %v3451, %v3447
      %3456 = vset.pattern.permute.xlu0 0
      %3457 = vperm.xlu0 %3456, %v3445
      %v3458 = vpop.permute.xlu0 %3457
      %v3460 = vmul.f32 %v3458, %v3453
      %v3461 = vmul.f32 %v3458, %v3452
      %v3462 = vmul.f32 %v3458, %v3454
      %v3463 = vadd.f32 %v3418, %v3460
      %v3464 = vadd.f32 %v3419, %v3461
      %v3465 = vadd.f32 %v3420, %v3462
      %s3466 = scalar_lea.vmem %s37, 56
      %v3467 = vld [vmem:[%s3466] sm:$0xff]
      %3468 = vrot.lane.b32.xlu0 %v3163, 110
      %v3469 = vpop.permute.xlu0 %3468
      %3470 = vrot.lane.b32.xlu0 %v3164, 110
      %v3471 = vpop.permute.xlu0 %3470
      %3472 = vrot.lane.b32.xlu0 %v3165, 110
      %v3473 = vpop.permute.xlu0 %3472
      %vm3474 = vcmp.lt.s32.totalorder %v3178, 110
      %v3475 = vsel %vm3474, %v3471, %v3473
      %v3476 = vsel %vm3474, %v3469, %v3471
      %v3477 = vsel %vm3474, %v3473, %v3469
      %3479 = vset.pattern.permute.xlu0 0
      %3480 = vperm.xlu0 %3479, %v3467
      %v3481 = vpop.permute.xlu0 %3480
      %v3483 = vmul.f32 %v3481, %v3476
      %v3484 = vmul.f32 %v3481, %v3475
      %v3485 = vmul.f32 %v3481, %v3477
      %v3486 = vadd.f32 %v3441, %v3483
      %v3487 = vadd.f32 %v3442, %v3484
      %v3488 = vadd.f32 %v3443, %v3485
      %s3489 = scalar_lea.vmem %s39, 56
      %v3490 = vld [vmem:[%s3489] sm:$0xff]
      %3491 = vrot.lane.b32.xlu0 %v3167, 110
      %v3492 = vpop.permute.xlu0 %3491
      %3493 = vrot.lane.b32.xlu0 %v3168, 110
      %v3494 = vpop.permute.xlu0 %3493
      %3495 = vrot.lane.b32.xlu0 %v3169, 110
      %v3496 = vpop.permute.xlu0 %3495
      %v3497 = vsel %vm3474, %v3494, %v3496
      %v3498 = vsel %vm3474, %v3492, %v3494
      %v3499 = vsel %vm3474, %v3496, %v3492
      %3501 = vset.pattern.permute.xlu0 0
      %3502 = vperm.xlu0 %3501, %v3490
      %v3503 = vpop.permute.xlu0 %3502
      %v3505 = vmul.f32 %v3503, %v3498
      %v3506 = vmul.f32 %v3503, %v3497
      %v3507 = vmul.f32 %v3503, %v3499
      %v3508 = vadd.f32 %v3463, %v3505
      %v3509 = vadd.f32 %v3464, %v3506
      %v3510 = vadd.f32 %v3465, %v3507
      %s3511 = scalar_lea.vmem %s37, 64
      %v3512 = vld [vmem:[%s3511] sm:$0xff]
      %3513 = vrot.lane.b32.xlu0 %v3163, 109
      %v3514 = vpop.permute.xlu0 %3513
      %3515 = vrot.lane.b32.xlu0 %v3164, 109
      %v3516 = vpop.permute.xlu0 %3515
      %3517 = vrot.lane.b32.xlu0 %v3165, 109
      %v3518 = vpop.permute.xlu0 %3517
      %vm3519 = vcmp.lt.s32.totalorder %v3178, 109
      %v3520 = vsel %vm3519, %v3516, %v3518
      %v3521 = vsel %vm3519, %v3514, %v3516
      %v3522 = vsel %vm3519, %v3518, %v3514
      %3524 = vset.pattern.permute.xlu0 0
      %3525 = vperm.xlu0 %3524, %v3512
      %v3526 = vpop.permute.xlu0 %3525
      %v3528 = vmul.f32 %v3526, %v3521
      %v3529 = vmul.f32 %v3526, %v3520
      %v3530 = vmul.f32 %v3526, %v3522
      %v3531 = vadd.f32 %v3486, %v3528
      %v3532 = vadd.f32 %v3487, %v3529
      %v3533 = vadd.f32 %v3488, %v3530
      %s3534 = scalar_lea.vmem %s39, 64
      %v3535 = vld [vmem:[%s3534] sm:$0xff]
      %3536 = vrot.lane.b32.xlu0 %v3167, 109
      %v3537 = vpop.permute.xlu0 %3536
      %3538 = vrot.lane.b32.xlu0 %v3168, 109
      %v3539 = vpop.permute.xlu0 %3538
      %3540 = vrot.lane.b32.xlu0 %v3169, 109
      %v3541 = vpop.permute.xlu0 %3540
      %v3542 = vsel %vm3519, %v3539, %v3541
      %v3543 = vsel %vm3519, %v3537, %v3539
      %v3544 = vsel %vm3519, %v3541, %v3537
      %3546 = vset.pattern.permute.xlu0 0
      %3547 = vperm.xlu0 %3546, %v3535
      %v3548 = vpop.permute.xlu0 %3547
      %v3550 = vmul.f32 %v3548, %v3543
      %v3551 = vmul.f32 %v3548, %v3542
      %v3552 = vmul.f32 %v3548, %v3544
      %v3553 = vadd.f32 %v3508, %v3550
      %v3554 = vadd.f32 %v3509, %v3551
      %v3555 = vadd.f32 %v3510, %v3552
      %v3556 = vld [vmem:[%s41] sm:$0xff]
      %v3557 = vld [vmem:[%s43] sm:$0xff]
      %v3559 = vsel %vm1151, %v3557, 0
      %3561 = vmatpush.msra.mxu0 0.0
      %3562 = vmatpush.msra.mxu0 0.0
      %3563 = vmatpush.msra.mxu0 0.0
      %3564 = vmatpush.msra.mxu0 0.0
      %3565 = vmatpush.msra.mxu0 0.0
      %3566 = vmatpush.msra.mxu0 0.0
      %3567 = vmatpush.msra.mxu0 0.0
      %3568 = vmatpush.msra.mxu0 0.0
      %3569 = vmatpush.msra.mxu0 0.0
      %3570 = vmatpush.msra.mxu0 0.0
      %3571 = vmatpush.msra.mxu0 0.0
      %3572 = vmatpush.msra.mxu0 0.0
      %3573 = vmatpush.msra.mxu0 0.0
      %3574 = vmatpush.msra.mxu0 0.0
      %3575 = vmatpush.msra.mxu0 0.0
      %3576 = vmatpush.msra.mxu0 %v3553
      %3577 = vmatmul.f32.gmra.mxu0 %v3559
      %v3578 = vpop.f32.mrf.mxu0
      %v3579 = vadd.f32 0.0, %v3578
      %3580 = vdwg.mxu0
      %3581 = vmatpush.msra.mxu0 0.0
      %3582 = vmatpush.msra.mxu0 0.0
      %3583 = vmatpush.msra.mxu0 0.0
      %3584 = vmatpush.msra.mxu0 0.0
      %3585 = vmatpush.msra.mxu0 0.0
      %3586 = vmatpush.msra.mxu0 0.0
      %3587 = vmatpush.msra.mxu0 0.0
      %3588 = vmatpush.msra.mxu0 0.0
      %3589 = vmatpush.msra.mxu0 0.0
      %3590 = vmatpush.msra.mxu0 0.0
      %3591 = vmatpush.msra.mxu0 0.0
      %3592 = vmatpush.msra.mxu0 0.0
      %3593 = vmatpush.msra.mxu0 0.0
      %3594 = vmatpush.msra.mxu0 0.0
      %3595 = vmatpush.msra.mxu0 0.0
      %3596 = vmatpush.msra.mxu0 %v3554
      %3597 = vmatmul.f32.gmra.mxu0 %v3559
      %v3598 = vpop.f32.mrf.mxu0
      %v3599 = vadd.f32 0.0, %v3598
      %3600 = vdwg.mxu0
      %3601 = vmatpush.msra.mxu0 0.0
      %3602 = vmatpush.msra.mxu0 0.0
      %3603 = vmatpush.msra.mxu0 0.0
      %3604 = vmatpush.msra.mxu0 0.0
      %3605 = vmatpush.msra.mxu0 0.0
      %3606 = vmatpush.msra.mxu0 0.0
      %3607 = vmatpush.msra.mxu0 0.0
      %3608 = vmatpush.msra.mxu0 0.0
      %3609 = vmatpush.msra.mxu0 0.0
      %3610 = vmatpush.msra.mxu0 0.0
      %3611 = vmatpush.msra.mxu0 0.0
      %3612 = vmatpush.msra.mxu0 0.0
      %3613 = vmatpush.msra.mxu0 0.0
      %3614 = vmatpush.msra.mxu0 0.0
      %3615 = vmatpush.msra.mxu0 0.0
      %3616 = vmatpush.msra.mxu0 %v3555
      %3617 = vmatmul.f32.gmra.mxu0 %v3559
      %v3618 = vpop.f32.mrf.mxu0
      %v3619 = vadd.f32 0.0, %v3618
      %3620 = vdwg.mxu0
      %v3622 = vsel %vm1151, %v3556, 0
      %3624 = vmatpush.msra.mxu0 0.0
      %3625 = vmatpush.msra.mxu0 0.0
      %3626 = vmatpush.msra.mxu0 0.0
      %3627 = vmatpush.msra.mxu0 0.0
      %3628 = vmatpush.msra.mxu0 0.0
      %3629 = vmatpush.msra.mxu0 0.0
      %3630 = vmatpush.msra.mxu0 0.0
      %3631 = vmatpush.msra.mxu0 0.0
      %3632 = vmatpush.msra.mxu0 0.0
      %3633 = vmatpush.msra.mxu0 0.0
      %3634 = vmatpush.msra.mxu0 0.0
      %3635 = vmatpush.msra.mxu0 0.0
      %3636 = vmatpush.msra.mxu0 0.0
      %3637 = vmatpush.msra.mxu0 0.0
      %3638 = vmatpush.msra.mxu0 0.0
      %3639 = vmatpush.msra.mxu0 %v3531
      %3640 = vmatmul.f32.gmra.mxu0 %v3622
      %v3641 = vpop.f32.mrf.mxu0
      %v3642 = vadd.f32 %v3579, %v3641
      %3643 = vdwg.mxu0
      %3644 = vmatpush.msra.mxu0 0.0
      %3645 = vmatpush.msra.mxu0 0.0
      %3646 = vmatpush.msra.mxu0 0.0
      %3647 = vmatpush.msra.mxu0 0.0
      %3648 = vmatpush.msra.mxu0 0.0
      %3649 = vmatpush.msra.mxu0 0.0
      %3650 = vmatpush.msra.mxu0 0.0
      %3651 = vmatpush.msra.mxu0 0.0
      %3652 = vmatpush.msra.mxu0 0.0
      %3653 = vmatpush.msra.mxu0 0.0
      %3654 = vmatpush.msra.mxu0 0.0
      %3655 = vmatpush.msra.mxu0 0.0
      %3656 = vmatpush.msra.mxu0 0.0
      %3657 = vmatpush.msra.mxu0 0.0
      %3658 = vmatpush.msra.mxu0 0.0
      %3659 = vmatpush.msra.mxu0 %v3532
      %3660 = vmatmul.f32.gmra.mxu0 %v3622
      %v3661 = vpop.f32.mrf.mxu0
      %v3662 = vadd.f32 %v3599, %v3661
      %3663 = vdwg.mxu0
      %3664 = vmatpush.msra.mxu0 0.0
      %3665 = vmatpush.msra.mxu0 0.0
      %3666 = vmatpush.msra.mxu0 0.0
      %3667 = vmatpush.msra.mxu0 0.0
      %3668 = vmatpush.msra.mxu0 0.0
      %3669 = vmatpush.msra.mxu0 0.0
      %3670 = vmatpush.msra.mxu0 0.0
      %3671 = vmatpush.msra.mxu0 0.0
      %3672 = vmatpush.msra.mxu0 0.0
      %3673 = vmatpush.msra.mxu0 0.0
      %3674 = vmatpush.msra.mxu0 0.0
      %3675 = vmatpush.msra.mxu0 0.0
      %3676 = vmatpush.msra.mxu0 0.0
      %3677 = vmatpush.msra.mxu0 0.0
      %3678 = vmatpush.msra.mxu0 0.0
      %3679 = vmatpush.msra.mxu0 %v3533
      %3680 = vmatmul.f32.gmra.mxu0 %v3622
      %v3681 = vpop.f32.mrf.mxu0
      %v3682 = vadd.f32 %v3619, %v3681
      %3683 = vdwg.mxu0
      %v3684 = vld [vmem:[%s45] sm:$0xff]
      %3686 = vset.pattern.permute.xlu0 0
      %3687 = vperm.xlu0 %3686, %v3684
      %v3688 = vpop.permute.xlu0 %3687
      %v3690 = vadd.f32 %v3642, %v3688
      %v3691 = vadd.f32 %v3662, %v3688
      %v3692 = vadd.f32 %v3682, %v3688
      %v3694 = vperm.slane %v3166, 0
      %v3695 = vperm.slane %v3166, 1
      %v3696 = vperm.slane %v3166, 2
      %v3700 = vmul.f32 %v3690, %v3694
      %v3701 = vmul.f32 %v3691, %v3695
      %v3702 = vmul.f32 %v3692, %v3696
      %v3703 = vld [vmem:[%s49] sm:$0xff]
      %v3704 = vld [vmem:[%s47] sm:$0xff]
      %3705 = vrot.lane.b32.xlu0 %v3700, 19
      %v3706 = vpop.permute.xlu0 %3705
      %3707 = vrot.lane.b32.xlu0 %v3701, 19
      %v3708 = vpop.permute.xlu0 %3707
      %3709 = vrot.lane.b32.xlu0 %v3702, 19
      %v3710 = vpop.permute.xlu0 %3709
      %v3711 = vsel %vm3179, %v3708, %v3710
      %v3712 = vsel %vm3179, %v3706, %v3708
      %v3713 = vsel %vm3179, %v3710, %v3706
      %v3715 = vsel %vm1151, %v3704, 0
      %3717 = vmatpush.msra.mxu0 0.0
      %3718 = vmatpush.msra.mxu0 0.0
      %3719 = vmatpush.msra.mxu0 0.0
      %3720 = vmatpush.msra.mxu0 0.0
      %3721 = vmatpush.msra.mxu0 0.0
      %3722 = vmatpush.msra.mxu0 0.0
      %3723 = vmatpush.msra.mxu0 0.0
      %3724 = vmatpush.msra.mxu0 0.0
      %3725 = vmatpush.msra.mxu0 0.0
      %3726 = vmatpush.msra.mxu0 0.0
      %3727 = vmatpush.msra.mxu0 0.0
      %3728 = vmatpush.msra.mxu0 0.0
      %3729 = vmatpush.msra.mxu0 0.0
      %3730 = vmatpush.msra.mxu0 0.0
      %3731 = vmatpush.msra.mxu0 0.0
      %3732 = vmatpush.msra.mxu0 %v3713
      %3733 = vmatmul.f32.gmra.mxu0 %v3715
      %v3734 = vpop.f32.mrf.mxu0
      %v3735 = vadd.f32 0.0, %v3734
      %3736 = vdwg.mxu0
      %3737 = vmatpush.msra.mxu0 0.0
      %3738 = vmatpush.msra.mxu0 0.0
      %3739 = vmatpush.msra.mxu0 0.0
      %3740 = vmatpush.msra.mxu0 0.0
      %3741 = vmatpush.msra.mxu0 0.0
      %3742 = vmatpush.msra.mxu0 0.0
      %3743 = vmatpush.msra.mxu0 0.0
      %3744 = vmatpush.msra.mxu0 0.0
      %3745 = vmatpush.msra.mxu0 0.0
      %3746 = vmatpush.msra.mxu0 0.0
      %3747 = vmatpush.msra.mxu0 0.0
      %3748 = vmatpush.msra.mxu0 0.0
      %3749 = vmatpush.msra.mxu0 0.0
      %3750 = vmatpush.msra.mxu0 0.0
      %3751 = vmatpush.msra.mxu0 0.0
      %3752 = vmatpush.msra.mxu0 %v3712
      %3753 = vmatmul.f32.gmra.mxu0 %v3715
      %v3754 = vpop.f32.mrf.mxu0
      %v3755 = vadd.f32 0.0, %v3754
      %3756 = vdwg.mxu0
      %3757 = vmatpush.msra.mxu0 0.0
      %3758 = vmatpush.msra.mxu0 0.0
      %3759 = vmatpush.msra.mxu0 0.0
      %3760 = vmatpush.msra.mxu0 0.0
      %3761 = vmatpush.msra.mxu0 0.0
      %3762 = vmatpush.msra.mxu0 0.0
      %3763 = vmatpush.msra.mxu0 0.0
      %3764 = vmatpush.msra.mxu0 0.0
      %3765 = vmatpush.msra.mxu0 0.0
      %3766 = vmatpush.msra.mxu0 0.0
      %3767 = vmatpush.msra.mxu0 0.0
      %3768 = vmatpush.msra.mxu0 0.0
      %3769 = vmatpush.msra.mxu0 0.0
      %3770 = vmatpush.msra.mxu0 0.0
      %3771 = vmatpush.msra.mxu0 0.0
      %3772 = vmatpush.msra.mxu0 %v3711
      %3773 = vmatmul.f32.gmra.mxu0 %v3715
      %v3774 = vpop.f32.mrf.mxu0
      %v3775 = vadd.f32 0.0, %v3774
      %3776 = vdwg.mxu0
      %3778 = vset.pattern.permute.xlu0 0
      %3779 = vperm.xlu0 %3778, %v3703
      %v3780 = vpop.permute.xlu0 %3779
      %v3782 = vadd.f32 %v3780, %v3735
      %v3783 = vadd.f32 %v3780, %v3755
      %v3784 = vadd.f32 %v3780, %v3775
      %s3785 = scalar_lea.vmem %s47, 8
      %v3786 = vld [vmem:[%s3785] sm:$0xff]
      %3787 = vrot.lane.b32.xlu0 %v3700, 18
      %v3788 = vpop.permute.xlu0 %3787
      %3789 = vrot.lane.b32.xlu0 %v3701, 18
      %v3790 = vpop.permute.xlu0 %3789
      %3791 = vrot.lane.b32.xlu0 %v3702, 18
      %v3792 = vpop.permute.xlu0 %3791
      %v3793 = vsel %vm3223, %v3790, %v3792
      %v3794 = vsel %vm3223, %v3788, %v3790
      %v3795 = vsel %vm3223, %v3792, %v3788
      %v3797 = vsel %vm1151, %v3786, 0
      %3799 = vmatpush.msra.mxu0 0.0
      %3800 = vmatpush.msra.mxu0 0.0
      %3801 = vmatpush.msra.mxu0 0.0
      %3802 = vmatpush.msra.mxu0 0.0
      %3803 = vmatpush.msra.mxu0 0.0
      %3804 = vmatpush.msra.mxu0 0.0
      %3805 = vmatpush.msra.mxu0 0.0
      %3806 = vmatpush.msra.mxu0 0.0
      %3807 = vmatpush.msra.mxu0 0.0
      %3808 = vmatpush.msra.mxu0 0.0
      %3809 = vmatpush.msra.mxu0 0.0
      %3810 = vmatpush.msra.mxu0 0.0
      %3811 = vmatpush.msra.mxu0 0.0
      %3812 = vmatpush.msra.mxu0 0.0
      %3813 = vmatpush.msra.mxu0 0.0
      %3814 = vmatpush.msra.mxu0 %v3795
      %3815 = vmatmul.f32.gmra.mxu0 %v3797
      %v3816 = vpop.f32.mrf.mxu0
      %v3817 = vadd.f32 0.0, %v3816
      %3818 = vdwg.mxu0
      %3819 = vmatpush.msra.mxu0 0.0
      %3820 = vmatpush.msra.mxu0 0.0
      %3821 = vmatpush.msra.mxu0 0.0
      %3822 = vmatpush.msra.mxu0 0.0
      %3823 = vmatpush.msra.mxu0 0.0
      %3824 = vmatpush.msra.mxu0 0.0
      %3825 = vmatpush.msra.mxu0 0.0
      %3826 = vmatpush.msra.mxu0 0.0
      %3827 = vmatpush.msra.mxu0 0.0
      %3828 = vmatpush.msra.mxu0 0.0
      %3829 = vmatpush.msra.mxu0 0.0
      %3830 = vmatpush.msra.mxu0 0.0
      %3831 = vmatpush.msra.mxu0 0.0
      %3832 = vmatpush.msra.mxu0 0.0
      %3833 = vmatpush.msra.mxu0 0.0
      %3834 = vmatpush.msra.mxu0 %v3794
      %3835 = vmatmul.f32.gmra.mxu0 %v3797
      %v3836 = vpop.f32.mrf.mxu0
      %v3837 = vadd.f32 0.0, %v3836
      %3838 = vdwg.mxu0
      %3839 = vmatpush.msra.mxu0 0.0
      %3840 = vmatpush.msra.mxu0 0.0
      %3841 = vmatpush.msra.mxu0 0.0
      %3842 = vmatpush.msra.mxu0 0.0
      %3843 = vmatpush.msra.mxu0 0.0
      %3844 = vmatpush.msra.mxu0 0.0
      %3845 = vmatpush.msra.mxu0 0.0
      %3846 = vmatpush.msra.mxu0 0.0
      %3847 = vmatpush.msra.mxu0 0.0
      %3848 = vmatpush.msra.mxu0 0.0
      %3849 = vmatpush.msra.mxu0 0.0
      %3850 = vmatpush.msra.mxu0 0.0
      %3851 = vmatpush.msra.mxu0 0.0
      %3852 = vmatpush.msra.mxu0 0.0
      %3853 = vmatpush.msra.mxu0 0.0
      %3854 = vmatpush.msra.mxu0 %v3793
      %3855 = vmatmul.f32.gmra.mxu0 %v3797
      %v3856 = vpop.f32.mrf.mxu0
      %v3857 = vadd.f32 0.0, %v3856
      %3858 = vdwg.mxu0
      %v3859 = vadd.f32 %v3782, %v3817
      %v3860 = vadd.f32 %v3783, %v3837
      %v3861 = vadd.f32 %v3784, %v3857
      %s3862 = scalar_lea.vmem %s47, 16
      %v3863 = vld [vmem:[%s3862] sm:$0xff]
      %3864 = vrot.lane.b32.xlu0 %v3700, 17
      %v3865 = vpop.permute.xlu0 %3864
      %3866 = vrot.lane.b32.xlu0 %v3701, 17
      %v3867 = vpop.permute.xlu0 %3866
      %3868 = vrot.lane.b32.xlu0 %v3702, 17
      %v3869 = vpop.permute.xlu0 %3868
      %v3870 = vsel %vm3268, %v3867, %v3869
      %v3871 = vsel %vm3268, %v3865, %v3867
      %v3872 = vsel %vm3268, %v3869, %v3865
      %v3874 = vsel %vm1151, %v3863, 0
      %3876 = vmatpush.msra.mxu0 0.0
      %3877 = vmatpush.msra.mxu0 0.0
      %3878 = vmatpush.msra.mxu0 0.0
      %3879 = vmatpush.msra.mxu0 0.0
      %3880 = vmatpush.msra.mxu0 0.0
      %3881 = vmatpush.msra.mxu0 0.0
      %3882 = vmatpush.msra.mxu0 0.0
      %3883 = vmatpush.msra.mxu0 0.0
      %3884 = vmatpush.msra.mxu0 0.0
      %3885 = vmatpush.msra.mxu0 0.0
      %3886 = vmatpush.msra.mxu0 0.0
      %3887 = vmatpush.msra.mxu0 0.0
      %3888 = vmatpush.msra.mxu0 0.0
      %3889 = vmatpush.msra.mxu0 0.0
      %3890 = vmatpush.msra.mxu0 0.0
      %3891 = vmatpush.msra.mxu0 %v3872
      %3892 = vmatmul.f32.gmra.mxu0 %v3874
      %v3893 = vpop.f32.mrf.mxu0
      %v3894 = vadd.f32 0.0, %v3893
      %3895 = vdwg.mxu0
      %3896 = vmatpush.msra.mxu0 0.0
      %3897 = vmatpush.msra.mxu0 0.0
      %3898 = vmatpush.msra.mxu0 0.0
      %3899 = vmatpush.msra.mxu0 0.0
      %3900 = vmatpush.msra.mxu0 0.0
      %3901 = vmatpush.msra.mxu0 0.0
      %3902 = vmatpush.msra.mxu0 0.0
      %3903 = vmatpush.msra.mxu0 0.0
      %3904 = vmatpush.msra.mxu0 0.0
      %3905 = vmatpush.msra.mxu0 0.0
      %3906 = vmatpush.msra.mxu0 0.0
      %3907 = vmatpush.msra.mxu0 0.0
      %3908 = vmatpush.msra.mxu0 0.0
      %3909 = vmatpush.msra.mxu0 0.0
      %3910 = vmatpush.msra.mxu0 0.0
      %3911 = vmatpush.msra.mxu0 %v3871
      %3912 = vmatmul.f32.gmra.mxu0 %v3874
      %v3913 = vpop.f32.mrf.mxu0
      %v3914 = vadd.f32 0.0, %v3913
      %3915 = vdwg.mxu0
      %3916 = vmatpush.msra.mxu0 0.0
      %3917 = vmatpush.msra.mxu0 0.0
      %3918 = vmatpush.msra.mxu0 0.0
      %3919 = vmatpush.msra.mxu0 0.0
      %3920 = vmatpush.msra.mxu0 0.0
      %3921 = vmatpush.msra.mxu0 0.0
      %3922 = vmatpush.msra.mxu0 0.0
      %3923 = vmatpush.msra.mxu0 0.0
      %3924 = vmatpush.msra.mxu0 0.0
      %3925 = vmatpush.msra.mxu0 0.0
      %3926 = vmatpush.msra.mxu0 0.0
      %3927 = vmatpush.msra.mxu0 0.0
      %3928 = vmatpush.msra.mxu0 0.0
      %3929 = vmatpush.msra.mxu0 0.0
      %3930 = vmatpush.msra.mxu0 0.0
      %3931 = vmatpush.msra.mxu0 %v3870
      %3932 = vmatmul.f32.gmra.mxu0 %v3874
      %v3933 = vpop.f32.mrf.mxu0
      %v3934 = vadd.f32 0.0, %v3933
      %3935 = vdwg.mxu0
      %v3936 = vadd.f32 %v3859, %v3894
      %v3937 = vadd.f32 %v3860, %v3914
      %v3938 = vadd.f32 %v3861, %v3934
      %s3939 = scalar_lea.vmem %s47, 24
      %v3940 = vld [vmem:[%s3939] sm:$0xff]
      %3941 = vrot.lane.b32.xlu0 %v3700, 1
      %v3942 = vpop.permute.xlu0 %3941
      %3943 = vrot.lane.b32.xlu0 %v3701, 1
      %v3944 = vpop.permute.xlu0 %3943
      %3945 = vrot.lane.b32.xlu0 %v3702, 1
      %v3946 = vpop.permute.xlu0 %3945
      %v3947 = vsel %vm3313, %v3944, %v3946
      %v3948 = vsel %vm3313, %v3942, %v3944
      %v3949 = vsel %vm3313, %v3946, %v3942
      %v3951 = vsel %vm1151, %v3940, 0
      %3953 = vmatpush.msra.mxu0 0.0
      %3954 = vmatpush.msra.mxu0 0.0
      %3955 = vmatpush.msra.mxu0 0.0
      %3956 = vmatpush.msra.mxu0 0.0
      %3957 = vmatpush.msra.mxu0 0.0
      %3958 = vmatpush.msra.mxu0 0.0
      %3959 = vmatpush.msra.mxu0 0.0
      %3960 = vmatpush.msra.mxu0 0.0
      %3961 = vmatpush.msra.mxu0 0.0
      %3962 = vmatpush.msra.mxu0 0.0
      %3963 = vmatpush.msra.mxu0 0.0
      %3964 = vmatpush.msra.mxu0 0.0
      %3965 = vmatpush.msra.mxu0 0.0
      %3966 = vmatpush.msra.mxu0 0.0
      %3967 = vmatpush.msra.mxu0 0.0
      %3968 = vmatpush.msra.mxu0 %v3949
      %3969 = vmatmul.f32.gmra.mxu0 %v3951
      %v3970 = vpop.f32.mrf.mxu0
      %v3971 = vadd.f32 0.0, %v3970
      %3972 = vdwg.mxu0
      %3973 = vmatpush.msra.mxu0 0.0
      %3974 = vmatpush.msra.mxu0 0.0
      %3975 = vmatpush.msra.mxu0 0.0
      %3976 = vmatpush.msra.mxu0 0.0
      %3977 = vmatpush.msra.mxu0 0.0
      %3978 = vmatpush.msra.mxu0 0.0
      %3979 = vmatpush.msra.mxu0 0.0
      %3980 = vmatpush.msra.mxu0 0.0
      %3981 = vmatpush.msra.mxu0 0.0
      %3982 = vmatpush.msra.mxu0 0.0
      %3983 = vmatpush.msra.mxu0 0.0
      %3984 = vmatpush.msra.mxu0 0.0
      %3985 = vmatpush.msra.mxu0 0.0
      %3986 = vmatpush.msra.mxu0 0.0
      %3987 = vmatpush.msra.mxu0 0.0
      %3988 = vmatpush.msra.mxu0 %v3948
      %3989 = vmatmul.f32.gmra.mxu0 %v3951
      %v3990 = vpop.f32.mrf.mxu0
      %v3991 = vadd.f32 0.0, %v3990
      %3992 = vdwg.mxu0
      %3993 = vmatpush.msra.mxu0 0.0
      %3994 = vmatpush.msra.mxu0 0.0
      %3995 = vmatpush.msra.mxu0 0.0
      %3996 = vmatpush.msra.mxu0 0.0
      %3997 = vmatpush.msra.mxu0 0.0
      %3998 = vmatpush.msra.mxu0 0.0
      %3999 = vmatpush.msra.mxu0 0.0
      %4000 = vmatpush.msra.mxu0 0.0
      %4001 = vmatpush.msra.mxu0 0.0
      %4002 = vmatpush.msra.mxu0 0.0
      %4003 = vmatpush.msra.mxu0 0.0
      %4004 = vmatpush.msra.mxu0 0.0
      %4005 = vmatpush.msra.mxu0 0.0
      %4006 = vmatpush.msra.mxu0 0.0
      %4007 = vmatpush.msra.mxu0 0.0
      %4008 = vmatpush.msra.mxu0 %v3947
      %4009 = vmatmul.f32.gmra.mxu0 %v3951
      %v4010 = vpop.f32.mrf.mxu0
      %v4011 = vadd.f32 0.0, %v4010
      %4012 = vdwg.mxu0
      %v4013 = vadd.f32 %v3936, %v3971
      %v4014 = vadd.f32 %v3937, %v3991
      %v4015 = vadd.f32 %v3938, %v4011
      %s4016 = scalar_lea.vmem %s47, 32
      %v4017 = vld [vmem:[%s4016] sm:$0xff]
      %v4019 = vsel %vm1151, %v4017, 0
      %4021 = vmatpush.msra.mxu0 0.0
      %4022 = vmatpush.msra.mxu0 0.0
      %4023 = vmatpush.msra.mxu0 0.0
      %4024 = vmatpush.msra.mxu0 0.0
      %4025 = vmatpush.msra.mxu0 0.0
      %4026 = vmatpush.msra.mxu0 0.0
      %4027 = vmatpush.msra.mxu0 0.0
      %4028 = vmatpush.msra.mxu0 0.0
      %4029 = vmatpush.msra.mxu0 0.0
      %4030 = vmatpush.msra.mxu0 0.0
      %4031 = vmatpush.msra.mxu0 0.0
      %4032 = vmatpush.msra.mxu0 0.0
      %4033 = vmatpush.msra.mxu0 0.0
      %4034 = vmatpush.msra.mxu0 0.0
      %4035 = vmatpush.msra.mxu0 0.0
      %4036 = vmatpush.msra.mxu0 %v3700
      %4037 = vmatmul.f32.gmra.mxu0 %v4019
      %v4038 = vpop.f32.mrf.mxu0
      %v4039 = vadd.f32 0.0, %v4038
      %4040 = vdwg.mxu0
      %4041 = vmatpush.msra.mxu0 0.0
      %4042 = vmatpush.msra.mxu0 0.0
      %4043 = vmatpush.msra.mxu0 0.0
      %4044 = vmatpush.msra.mxu0 0.0
      %4045 = vmatpush.msra.mxu0 0.0
      %4046 = vmatpush.msra.mxu0 0.0
      %4047 = vmatpush.msra.mxu0 0.0
      %4048 = vmatpush.msra.mxu0 0.0
      %4049 = vmatpush.msra.mxu0 0.0
      %4050 = vmatpush.msra.mxu0 0.0
      %4051 = vmatpush.msra.mxu0 0.0
      %4052 = vmatpush.msra.mxu0 0.0
      %4053 = vmatpush.msra.mxu0 0.0
      %4054 = vmatpush.msra.mxu0 0.0
      %4055 = vmatpush.msra.mxu0 0.0
      %4056 = vmatpush.msra.mxu0 %v3701
      %4057 = vmatmul.f32.gmra.mxu0 %v4019
      %v4058 = vpop.f32.mrf.mxu0
      %v4059 = vadd.f32 0.0, %v4058
      %4060 = vdwg.mxu0
      %4061 = vmatpush.msra.mxu0 0.0
      %4062 = vmatpush.msra.mxu0 0.0
      %4063 = vmatpush.msra.mxu0 0.0
      %4064 = vmatpush.msra.mxu0 0.0
      %4065 = vmatpush.msra.mxu0 0.0
      %4066 = vmatpush.msra.mxu0 0.0
      %4067 = vmatpush.msra.mxu0 0.0
      %4068 = vmatpush.msra.mxu0 0.0
      %4069 = vmatpush.msra.mxu0 0.0
      %4070 = vmatpush.msra.mxu0 0.0
      %4071 = vmatpush.msra.mxu0 0.0
      %4072 = vmatpush.msra.mxu0 0.0
      %4073 = vmatpush.msra.mxu0 0.0
      %4074 = vmatpush.msra.mxu0 0.0
      %4075 = vmatpush.msra.mxu0 0.0
      %4076 = vmatpush.msra.mxu0 %v3702
      %4077 = vmatmul.f32.gmra.mxu0 %v4019
      %v4078 = vpop.f32.mrf.mxu0
      %v4079 = vadd.f32 0.0, %v4078
      %4080 = vdwg.mxu0
      %v4081 = vadd.f32 %v4013, %v4039
      %v4082 = vadd.f32 %v4014, %v4059
      %v4083 = vadd.f32 %v4015, %v4079
      %s4084 = scalar_lea.vmem %s47, 40
      %v4085 = vld [vmem:[%s4084] sm:$0xff]
      %4086 = vrot.lane.b32.xlu0 %v3700, 127
      %v4087 = vpop.permute.xlu0 %4086
      %4088 = vrot.lane.b32.xlu0 %v3701, 127
      %v4089 = vpop.permute.xlu0 %4088
      %4090 = vrot.lane.b32.xlu0 %v3702, 127
      %v4091 = vpop.permute.xlu0 %4090
      %v4092 = vsel %vm3384, %v4089, %v4091
      %v4093 = vsel %vm3384, %v4087, %v4089
      %v4094 = vsel %vm3384, %v4091, %v4087
      %v4096 = vsel %vm1151, %v4085, 0
      %4098 = vmatpush.msra.mxu0 0.0
      %4099 = vmatpush.msra.mxu0 0.0
      %4100 = vmatpush.msra.mxu0 0.0
      %4101 = vmatpush.msra.mxu0 0.0
      %4102 = vmatpush.msra.mxu0 0.0
      %4103 = vmatpush.msra.mxu0 0.0
      %4104 = vmatpush.msra.mxu0 0.0
      %4105 = vmatpush.msra.mxu0 0.0
      %4106 = vmatpush.msra.mxu0 0.0
      %4107 = vmatpush.msra.mxu0 0.0
      %4108 = vmatpush.msra.mxu0 0.0
      %4109 = vmatpush.msra.mxu0 0.0
      %4110 = vmatpush.msra.mxu0 0.0
      %4111 = vmatpush.msra.mxu0 0.0
      %4112 = vmatpush.msra.mxu0 0.0
      %4113 = vmatpush.msra.mxu0 %v4093
      %4114 = vmatmul.f32.gmra.mxu0 %v4096
      %v4115 = vpop.f32.mrf.mxu0
      %v4116 = vadd.f32 0.0, %v4115
      %4117 = vdwg.mxu0
      %4118 = vmatpush.msra.mxu0 0.0
      %4119 = vmatpush.msra.mxu0 0.0
      %4120 = vmatpush.msra.mxu0 0.0
      %4121 = vmatpush.msra.mxu0 0.0
      %4122 = vmatpush.msra.mxu0 0.0
      %4123 = vmatpush.msra.mxu0 0.0
      %4124 = vmatpush.msra.mxu0 0.0
      %4125 = vmatpush.msra.mxu0 0.0
      %4126 = vmatpush.msra.mxu0 0.0
      %4127 = vmatpush.msra.mxu0 0.0
      %4128 = vmatpush.msra.mxu0 0.0
      %4129 = vmatpush.msra.mxu0 0.0
      %4130 = vmatpush.msra.mxu0 0.0
      %4131 = vmatpush.msra.mxu0 0.0
      %4132 = vmatpush.msra.mxu0 0.0
      %4133 = vmatpush.msra.mxu0 %v4092
      %4134 = vmatmul.f32.gmra.mxu0 %v4096
      %v4135 = vpop.f32.mrf.mxu0
      %v4136 = vadd.f32 0.0, %v4135
      %4137 = vdwg.mxu0
      %4138 = vmatpush.msra.mxu0 0.0
      %4139 = vmatpush.msra.mxu0 0.0
      %4140 = vmatpush.msra.mxu0 0.0
      %4141 = vmatpush.msra.mxu0 0.0
      %4142 = vmatpush.msra.mxu0 0.0
      %4143 = vmatpush.msra.mxu0 0.0
      %4144 = vmatpush.msra.mxu0 0.0
      %4145 = vmatpush.msra.mxu0 0.0
      %4146 = vmatpush.msra.mxu0 0.0
      %4147 = vmatpush.msra.mxu0 0.0
      %4148 = vmatpush.msra.mxu0 0.0
      %4149 = vmatpush.msra.mxu0 0.0
      %4150 = vmatpush.msra.mxu0 0.0
      %4151 = vmatpush.msra.mxu0 0.0
      %4152 = vmatpush.msra.mxu0 0.0
      %4153 = vmatpush.msra.mxu0 %v4094
      %4154 = vmatmul.f32.gmra.mxu0 %v4096
      %v4155 = vpop.f32.mrf.mxu0
      %v4156 = vadd.f32 0.0, %v4155
      %4157 = vdwg.mxu0
      %v4158 = vadd.f32 %v4081, %v4116
      %v4159 = vadd.f32 %v4082, %v4136
      %v4160 = vadd.f32 %v4083, %v4156
      %s4161 = scalar_lea.vmem %s47, 48
      %v4162 = vld [vmem:[%s4161] sm:$0xff]
      %4163 = vrot.lane.b32.xlu0 %v3700, 111
      %v4164 = vpop.permute.xlu0 %4163
      %4165 = vrot.lane.b32.xlu0 %v3701, 111
      %v4166 = vpop.permute.xlu0 %4165
      %4167 = vrot.lane.b32.xlu0 %v3702, 111
      %v4168 = vpop.permute.xlu0 %4167
      %v4169 = vsel %vm3429, %v4166, %v4168
      %v4170 = vsel %vm3429, %v4164, %v4166
      %v4171 = vsel %vm3429, %v4168, %v4164
      %v4173 = vsel %vm1151, %v4162, 0
      %4175 = vmatpush.msra.mxu0 0.0
      %4176 = vmatpush.msra.mxu0 0.0
      %4177 = vmatpush.msra.mxu0 0.0
      %4178 = vmatpush.msra.mxu0 0.0
      %4179 = vmatpush.msra.mxu0 0.0
      %4180 = vmatpush.msra.mxu0 0.0
      %4181 = vmatpush.msra.mxu0 0.0
      %4182 = vmatpush.msra.mxu0 0.0
      %4183 = vmatpush.msra.mxu0 0.0
      %4184 = vmatpush.msra.mxu0 0.0
      %4185 = vmatpush.msra.mxu0 0.0
      %4186 = vmatpush.msra.mxu0 0.0
      %4187 = vmatpush.msra.mxu0 0.0
      %4188 = vmatpush.msra.mxu0 0.0
      %4189 = vmatpush.msra.mxu0 0.0
      %4190 = vmatpush.msra.mxu0 %v4170
      %4191 = vmatmul.f32.gmra.mxu0 %v4173
      %v4192 = vpop.f32.mrf.mxu0
      %v4193 = vadd.f32 0.0, %v4192
      %4194 = vdwg.mxu0
      %4195 = vmatpush.msra.mxu0 0.0
      %4196 = vmatpush.msra.mxu0 0.0
      %4197 = vmatpush.msra.mxu0 0.0
      %4198 = vmatpush.msra.mxu0 0.0
      %4199 = vmatpush.msra.mxu0 0.0
      %4200 = vmatpush.msra.mxu0 0.0
      %4201 = vmatpush.msra.mxu0 0.0
      %4202 = vmatpush.msra.mxu0 0.0
      %4203 = vmatpush.msra.mxu0 0.0
      %4204 = vmatpush.msra.mxu0 0.0
      %4205 = vmatpush.msra.mxu0 0.0
      %4206 = vmatpush.msra.mxu0 0.0
      %4207 = vmatpush.msra.mxu0 0.0
      %4208 = vmatpush.msra.mxu0 0.0
      %4209 = vmatpush.msra.mxu0 0.0
      %4210 = vmatpush.msra.mxu0 %v4169
      %4211 = vmatmul.f32.gmra.mxu0 %v4173
      %v4212 = vpop.f32.mrf.mxu0
      %v4213 = vadd.f32 0.0, %v4212
      %4214 = vdwg.mxu0
      %4215 = vmatpush.msra.mxu0 0.0
      %4216 = vmatpush.msra.mxu0 0.0
      %4217 = vmatpush.msra.mxu0 0.0
      %4218 = vmatpush.msra.mxu0 0.0
      %4219 = vmatpush.msra.mxu0 0.0
      %4220 = vmatpush.msra.mxu0 0.0
      %4221 = vmatpush.msra.mxu0 0.0
      %4222 = vmatpush.msra.mxu0 0.0
      %4223 = vmatpush.msra.mxu0 0.0
      %4224 = vmatpush.msra.mxu0 0.0
      %4225 = vmatpush.msra.mxu0 0.0
      %4226 = vmatpush.msra.mxu0 0.0
      %4227 = vmatpush.msra.mxu0 0.0
      %4228 = vmatpush.msra.mxu0 0.0
      %4229 = vmatpush.msra.mxu0 0.0
      %4230 = vmatpush.msra.mxu0 %v4171
      %4231 = vmatmul.f32.gmra.mxu0 %v4173
      %v4232 = vpop.f32.mrf.mxu0
      %v4233 = vadd.f32 0.0, %v4232
      %4234 = vdwg.mxu0
      %v4235 = vadd.f32 %v4158, %v4193
      %v4236 = vadd.f32 %v4159, %v4213
      %v4237 = vadd.f32 %v4160, %v4233
      %s4238 = scalar_lea.vmem %s47, 56
      %v4239 = vld [vmem:[%s4238] sm:$0xff]
      %4240 = vrot.lane.b32.xlu0 %v3700, 110
      %v4241 = vpop.permute.xlu0 %4240
      %4242 = vrot.lane.b32.xlu0 %v3701, 110
      %v4243 = vpop.permute.xlu0 %4242
      %4244 = vrot.lane.b32.xlu0 %v3702, 110
      %v4245 = vpop.permute.xlu0 %4244
      %v4246 = vsel %vm3474, %v4243, %v4245
      %v4247 = vsel %vm3474, %v4241, %v4243
      %v4248 = vsel %vm3474, %v4245, %v4241
      %v4250 = vsel %vm1151, %v4239, 0
      %4252 = vmatpush.msra.mxu0 0.0
      %4253 = vmatpush.msra.mxu0 0.0
      %4254 = vmatpush.msra.mxu0 0.0
      %4255 = vmatpush.msra.mxu0 0.0
      %4256 = vmatpush.msra.mxu0 0.0
      %4257 = vmatpush.msra.mxu0 0.0
      %4258 = vmatpush.msra.mxu0 0.0
      %4259 = vmatpush.msra.mxu0 0.0
      %4260 = vmatpush.msra.mxu0 0.0
      %4261 = vmatpush.msra.mxu0 0.0
      %4262 = vmatpush.msra.mxu0 0.0
      %4263 = vmatpush.msra.mxu0 0.0
      %4264 = vmatpush.msra.mxu0 0.0
      %4265 = vmatpush.msra.mxu0 0.0
      %4266 = vmatpush.msra.mxu0 0.0
      %4267 = vmatpush.msra.mxu0 %v4247
      %4268 = vmatmul.f32.gmra.mxu0 %v4250
      %v4269 = vpop.f32.mrf.mxu0
      %v4270 = vadd.f32 0.0, %v4269
      %4271 = vdwg.mxu0
      %4272 = vmatpush.msra.mxu0 0.0
      %4273 = vmatpush.msra.mxu0 0.0
      %4274 = vmatpush.msra.mxu0 0.0
      %4275 = vmatpush.msra.mxu0 0.0
      %4276 = vmatpush.msra.mxu0 0.0
      %4277 = vmatpush.msra.mxu0 0.0
      %4278 = vmatpush.msra.mxu0 0.0
      %4279 = vmatpush.msra.mxu0 0.0
      %4280 = vmatpush.msra.mxu0 0.0
      %4281 = vmatpush.msra.mxu0 0.0
      %4282 = vmatpush.msra.mxu0 0.0
      %4283 = vmatpush.msra.mxu0 0.0
      %4284 = vmatpush.msra.mxu0 0.0
      %4285 = vmatpush.msra.mxu0 0.0
      %4286 = vmatpush.msra.mxu0 0.0
      %4287 = vmatpush.msra.mxu0 %v4246
      %4288 = vmatmul.f32.gmra.mxu0 %v4250
      %v4289 = vpop.f32.mrf.mxu0
      %v4290 = vadd.f32 0.0, %v4289
      %4291 = vdwg.mxu0
      %4292 = vmatpush.msra.mxu0 0.0
      %4293 = vmatpush.msra.mxu0 0.0
      %4294 = vmatpush.msra.mxu0 0.0
      %4295 = vmatpush.msra.mxu0 0.0
      %4296 = vmatpush.msra.mxu0 0.0
      %4297 = vmatpush.msra.mxu0 0.0
      %4298 = vmatpush.msra.mxu0 0.0
      %4299 = vmatpush.msra.mxu0 0.0
      %4300 = vmatpush.msra.mxu0 0.0
      %4301 = vmatpush.msra.mxu0 0.0
      %4302 = vmatpush.msra.mxu0 0.0
      %4303 = vmatpush.msra.mxu0 0.0
      %4304 = vmatpush.msra.mxu0 0.0
      %4305 = vmatpush.msra.mxu0 0.0
      %4306 = vmatpush.msra.mxu0 0.0
      %4307 = vmatpush.msra.mxu0 %v4248
      %4308 = vmatmul.f32.gmra.mxu0 %v4250
      %v4309 = vpop.f32.mrf.mxu0
      %v4310 = vadd.f32 0.0, %v4309
      %4311 = vdwg.mxu0
      %v4312 = vadd.f32 %v4235, %v4270
      %v4313 = vadd.f32 %v4236, %v4290
      %v4314 = vadd.f32 %v4237, %v4310
      %s4315 = scalar_lea.vmem %s47, 64
      %v4316 = vld [vmem:[%s4315] sm:$0xff]
      %4317 = vrot.lane.b32.xlu0 %v3700, 109
      %v4318 = vpop.permute.xlu0 %4317
      %4319 = vrot.lane.b32.xlu0 %v3701, 109
      %v4320 = vpop.permute.xlu0 %4319
      %4321 = vrot.lane.b32.xlu0 %v3702, 109
      %v4322 = vpop.permute.xlu0 %4321
      %v4323 = vsel %vm3519, %v4320, %v4322
      %v4324 = vsel %vm3519, %v4318, %v4320
      %v4325 = vsel %vm3519, %v4322, %v4318
      %v4327 = vsel %vm1151, %v4316, 0
      %4329 = vmatpush.msra.mxu0 0.0
      %4330 = vmatpush.msra.mxu0 0.0
      %4331 = vmatpush.msra.mxu0 0.0
      %4332 = vmatpush.msra.mxu0 0.0
      %4333 = vmatpush.msra.mxu0 0.0
      %4334 = vmatpush.msra.mxu0 0.0
      %4335 = vmatpush.msra.mxu0 0.0
      %4336 = vmatpush.msra.mxu0 0.0
      %4337 = vmatpush.msra.mxu0 0.0
      %4338 = vmatpush.msra.mxu0 0.0
      %4339 = vmatpush.msra.mxu0 0.0
      %4340 = vmatpush.msra.mxu0 0.0
      %4341 = vmatpush.msra.mxu0 0.0
      %4342 = vmatpush.msra.mxu0 0.0
      %4343 = vmatpush.msra.mxu0 0.0
      %4344 = vmatpush.msra.mxu0 %v4324
      %4345 = vmatmul.f32.gmra.mxu0 %v4327
      %v4346 = vpop.f32.mrf.mxu0
      %v4347 = vadd.f32 0.0, %v4346
      %4348 = vdwg.mxu0
      %4349 = vmatpush.msra.mxu0 0.0
      %4350 = vmatpush.msra.mxu0 0.0
      %4351 = vmatpush.msra.mxu0 0.0
      %4352 = vmatpush.msra.mxu0 0.0
      %4353 = vmatpush.msra.mxu0 0.0
      %4354 = vmatpush.msra.mxu0 0.0
      %4355 = vmatpush.msra.mxu0 0.0
      %4356 = vmatpush.msra.mxu0 0.0
      %4357 = vmatpush.msra.mxu0 0.0
      %4358 = vmatpush.msra.mxu0 0.0
      %4359 = vmatpush.msra.mxu0 0.0
      %4360 = vmatpush.msra.mxu0 0.0
      %4361 = vmatpush.msra.mxu0 0.0
      %4362 = vmatpush.msra.mxu0 0.0
      %4363 = vmatpush.msra.mxu0 0.0
      %4364 = vmatpush.msra.mxu0 %v4323
      %4365 = vmatmul.f32.gmra.mxu0 %v4327
      %v4366 = vpop.f32.mrf.mxu0
      %v4367 = vadd.f32 0.0, %v4366
      %4368 = vdwg.mxu0
      %4369 = vmatpush.msra.mxu0 0.0
      %4370 = vmatpush.msra.mxu0 0.0
      %4371 = vmatpush.msra.mxu0 0.0
      %4372 = vmatpush.msra.mxu0 0.0
      %4373 = vmatpush.msra.mxu0 0.0
      %4374 = vmatpush.msra.mxu0 0.0
      %4375 = vmatpush.msra.mxu0 0.0
      %4376 = vmatpush.msra.mxu0 0.0
      %4377 = vmatpush.msra.mxu0 0.0
      %4378 = vmatpush.msra.mxu0 0.0
      %4379 = vmatpush.msra.mxu0 0.0
      %4380 = vmatpush.msra.mxu0 0.0
      %4381 = vmatpush.msra.mxu0 0.0
      %4382 = vmatpush.msra.mxu0 0.0
      %4383 = vmatpush.msra.mxu0 0.0
      %4384 = vmatpush.msra.mxu0 %v4325
      %4385 = vmatmul.f32.gmra.mxu0 %v4327
      %v4386 = vpop.f32.mrf.mxu0
      %v4387 = vadd.f32 0.0, %v4386
      %4388 = vdwg.mxu0
      %v4389 = vadd.f32 %v4312, %v4347
      %v4390 = vadd.f32 %v4313, %v4367
      %v4391 = vadd.f32 %v4314, %v4387
      %v4392 = vmax.f32 %v4389, 0.0
      %v4393 = vmax.f32 %v4390, 0.0
      %v4394 = vmax.f32 %v4391, 0.0
      %v4395 = vld [vmem:[%s51] sm:$0xff]
      %4397 = vset.pattern.permute.xlu0 0
      %4398 = vperm.xlu0 %4397, %v4395
      %v4399 = vpop.permute.xlu0 %4398
      %v4401 = vmul.f32 %v4392, %v4399
      %v4402 = vmul.f32 %v4393, %v4399
      %v4403 = vmul.f32 %v4394, %v4399
      %v4404 = vld [vmem:[%s53] sm:$0xff]
      %4406 = vset.pattern.permute.xlu0 0
      %4407 = vperm.xlu0 %4406, %v4404
      %v4408 = vpop.permute.xlu0 %4407
      %v4410 = vadd.f32 %v4401, %v4408
      %v4411 = vadd.f32 %v4402, %v4408
      %v4412 = vadd.f32 %v4403, %v4408
      %v4413 = vmax.f32 %v4410, 0.0
      %v4414 = vmax.f32 %v4411, 0.0
      %v4415 = vmax.f32 %v4412, 0.0
      %v4416 = vmul.f32 %v4413, %v3694
      %v4417 = vmul.f32 %v4414, %v3695
      %v4418 = vmul.f32 %v4415, %v3696
      %v4419 = vld [vmem:[%s55] sm:$0xff]
      %4420 = vrot.lane.b32.xlu0 %v4416, 19
      %v4421 = vpop.permute.xlu0 %4420
      %4422 = vrot.lane.b32.xlu0 %v4417, 19
      %v4423 = vpop.permute.xlu0 %4422
      %4424 = vrot.lane.b32.xlu0 %v4418, 19
      %v4425 = vpop.permute.xlu0 %4424
      %v4426 = vsel %vm3179, %v4423, %v4425
      %v4427 = vsel %vm3179, %v4421, %v4423
      %v4428 = vsel %vm3179, %v4425, %v4421
      %4430 = vset.pattern.permute.xlu0 0
      %4431 = vperm.xlu0 %4430, %v4419
      %v4432 = vpop.permute.xlu0 %4431
      %v4434 = vmul.f32 %v4432, %v4428
      %v4435 = vmul.f32 %v4432, %v4427
      %v4436 = vmul.f32 %v4432, %v4426
      %v4437 = vadd.f32 %v4434, 0.0
      %v4438 = vadd.f32 %v4435, 0.0
      %v4439 = vadd.f32 %v4436, 0.0
      %s4440 = scalar_lea.vmem %s55, 8
      %v4441 = vld [vmem:[%s4440] sm:$0xff]
      %4442 = vrot.lane.b32.xlu0 %v4416, 18
      %v4443 = vpop.permute.xlu0 %4442
      %4444 = vrot.lane.b32.xlu0 %v4417, 18
      %v4445 = vpop.permute.xlu0 %4444
      %4446 = vrot.lane.b32.xlu0 %v4418, 18
      %v4447 = vpop.permute.xlu0 %4446
      %v4448 = vsel %vm3223, %v4445, %v4447
      %v4449 = vsel %vm3223, %v4443, %v4445
      %v4450 = vsel %vm3223, %v4447, %v4443
      %4452 = vset.pattern.permute.xlu0 0
      %4453 = vperm.xlu0 %4452, %v4441
      %v4454 = vpop.permute.xlu0 %4453
      %v4456 = vmul.f32 %v4454, %v4450
      %v4457 = vmul.f32 %v4454, %v4449
      %v4458 = vmul.f32 %v4454, %v4448
      %v4459 = vadd.f32 %v4437, %v4456
      %v4460 = vadd.f32 %v4438, %v4457
      %v4461 = vadd.f32 %v4439, %v4458
      %s4462 = scalar_lea.vmem %s55, 16
      %v4463 = vld [vmem:[%s4462] sm:$0xff]
      %4464 = vrot.lane.b32.xlu0 %v4416, 17
      %v4465 = vpop.permute.xlu0 %4464
      %4466 = vrot.lane.b32.xlu0 %v4417, 17
      %v4467 = vpop.permute.xlu0 %4466
      %4468 = vrot.lane.b32.xlu0 %v4418, 17
      %v4469 = vpop.permute.xlu0 %4468
      %v4470 = vsel %vm3268, %v4467, %v4469
      %v4471 = vsel %vm3268, %v4465, %v4467
      %v4472 = vsel %vm3268, %v4469, %v4465
      %4474 = vset.pattern.permute.xlu0 0
      %4475 = vperm.xlu0 %4474, %v4463
      %v4476 = vpop.permute.xlu0 %4475
      %v4478 = vmul.f32 %v4476, %v4472
      %v4479 = vmul.f32 %v4476, %v4471
      %v4480 = vmul.f32 %v4476, %v4470
      %v4481 = vadd.f32 %v4459, %v4478
      %v4482 = vadd.f32 %v4460, %v4479
      %v4483 = vadd.f32 %v4461, %v4480
      %s4484 = scalar_lea.vmem %s55, 24
      %v4485 = vld [vmem:[%s4484] sm:$0xff]
      %4486 = vrot.lane.b32.xlu0 %v4416, 1
      %v4487 = vpop.permute.xlu0 %4486
      %4488 = vrot.lane.b32.xlu0 %v4417, 1
      %v4489 = vpop.permute.xlu0 %4488
      %4490 = vrot.lane.b32.xlu0 %v4418, 1
      %v4491 = vpop.permute.xlu0 %4490
      %v4492 = vsel %vm3313, %v4489, %v4491
      %v4493 = vsel %vm3313, %v4487, %v4489
      %v4494 = vsel %vm3313, %v4491, %v4487
      %4496 = vset.pattern.permute.xlu0 0
      %4497 = vperm.xlu0 %4496, %v4485
      %v4498 = vpop.permute.xlu0 %4497
      %v4500 = vmul.f32 %v4498, %v4494
      %v4501 = vmul.f32 %v4498, %v4493
      %v4502 = vmul.f32 %v4498, %v4492
      %v4503 = vadd.f32 %v4481, %v4500
      %v4504 = vadd.f32 %v4482, %v4501
      %v4505 = vadd.f32 %v4483, %v4502
      %s4506 = scalar_lea.vmem %s55, 32
      %v4507 = vld [vmem:[%s4506] sm:$0xff]
      %4509 = vset.pattern.permute.xlu0 0
      %4510 = vperm.xlu0 %4509, %v4507
      %v4511 = vpop.permute.xlu0 %4510
      %v4513 = vmul.f32 %v4511, %v4416
      %v4514 = vmul.f32 %v4511, %v4417
      %v4515 = vmul.f32 %v4511, %v4418
      %v4516 = vadd.f32 %v4503, %v4513
      %v4517 = vadd.f32 %v4504, %v4514
      %v4518 = vadd.f32 %v4505, %v4515
      %s4519 = scalar_lea.vmem %s55, 40
      %v4520 = vld [vmem:[%s4519] sm:$0xff]
      %4521 = vrot.lane.b32.xlu0 %v4416, 127
      %v4522 = vpop.permute.xlu0 %4521
      %4523 = vrot.lane.b32.xlu0 %v4417, 127
      %v4524 = vpop.permute.xlu0 %4523
      %4525 = vrot.lane.b32.xlu0 %v4418, 127
      %v4526 = vpop.permute.xlu0 %4525
      %v4527 = vsel %vm3384, %v4524, %v4526
      %v4528 = vsel %vm3384, %v4522, %v4524
      %v4529 = vsel %vm3384, %v4526, %v4522
      %4531 = vset.pattern.permute.xlu0 0
      %4532 = vperm.xlu0 %4531, %v4520
      %v4533 = vpop.permute.xlu0 %4532
      %v4535 = vmul.f32 %v4533, %v4528
      %v4536 = vmul.f32 %v4533, %v4527
      %v4537 = vmul.f32 %v4533, %v4529
      %v4538 = vadd.f32 %v4516, %v4535
      %v4539 = vadd.f32 %v4517, %v4536
      %v4540 = vadd.f32 %v4518, %v4537
      %s4541 = scalar_lea.vmem %s55, 48
      %v4542 = vld [vmem:[%s4541] sm:$0xff]
      %4543 = vrot.lane.b32.xlu0 %v4416, 111
      %v4544 = vpop.permute.xlu0 %4543
      %4545 = vrot.lane.b32.xlu0 %v4417, 111
      %v4546 = vpop.permute.xlu0 %4545
      %4547 = vrot.lane.b32.xlu0 %v4418, 111
      %v4548 = vpop.permute.xlu0 %4547
      %v4549 = vsel %vm3429, %v4546, %v4548
      %v4550 = vsel %vm3429, %v4544, %v4546
      %v4551 = vsel %vm3429, %v4548, %v4544
      %4553 = vset.pattern.permute.xlu0 0
      %4554 = vperm.xlu0 %4553, %v4542
      %v4555 = vpop.permute.xlu0 %4554
      %v4557 = vmul.f32 %v4555, %v4550
      %v4558 = vmul.f32 %v4555, %v4549
      %v4559 = vmul.f32 %v4555, %v4551
      %v4560 = vadd.f32 %v4538, %v4557
      %v4561 = vadd.f32 %v4539, %v4558
      %v4562 = vadd.f32 %v4540, %v4559
      %s4563 = scalar_lea.vmem %s55, 56
      %v4564 = vld [vmem:[%s4563] sm:$0xff]
      %4565 = vrot.lane.b32.xlu0 %v4416, 110
      %v4566 = vpop.permute.xlu0 %4565
      %4567 = vrot.lane.b32.xlu0 %v4417, 110
      %v4568 = vpop.permute.xlu0 %4567
      %4569 = vrot.lane.b32.xlu0 %v4418, 110
      %v4570 = vpop.permute.xlu0 %4569
      %v4571 = vsel %vm3474, %v4568, %v4570
      %v4572 = vsel %vm3474, %v4566, %v4568
      %v4573 = vsel %vm3474, %v4570, %v4566
      %4575 = vset.pattern.permute.xlu0 0
      %4576 = vperm.xlu0 %4575, %v4564
      %v4577 = vpop.permute.xlu0 %4576
      %v4579 = vmul.f32 %v4577, %v4572
      %v4580 = vmul.f32 %v4577, %v4571
      %v4581 = vmul.f32 %v4577, %v4573
      %v4582 = vadd.f32 %v4560, %v4579
      %v4583 = vadd.f32 %v4561, %v4580
      %v4584 = vadd.f32 %v4562, %v4581
      %s4585 = scalar_lea.vmem %s55, 64
      %v4586 = vld [vmem:[%s4585] sm:$0xff]
      %4587 = vrot.lane.b32.xlu0 %v4416, 109
      %v4588 = vpop.permute.xlu0 %4587
      %4589 = vrot.lane.b32.xlu0 %v4417, 109
      %v4590 = vpop.permute.xlu0 %4589
      %4591 = vrot.lane.b32.xlu0 %v4418, 109
      %v4592 = vpop.permute.xlu0 %4591
      %v4593 = vsel %vm3519, %v4590, %v4592
      %v4594 = vsel %vm3519, %v4588, %v4590
      %v4595 = vsel %vm3519, %v4592, %v4588
      %4597 = vset.pattern.permute.xlu0 0
      %4598 = vperm.xlu0 %4597, %v4586
      %v4599 = vpop.permute.xlu0 %4598
      %v4601 = vmul.f32 %v4599, %v4594
      %v4602 = vmul.f32 %v4599, %v4593
      %v4603 = vmul.f32 %v4599, %v4595
      %v4604 = vadd.f32 %v4582, %v4601
      %v4605 = vadd.f32 %v4583, %v4602
      %v4606 = vadd.f32 %v4584, %v4603
      %v4607 = vld [vmem:[%s57] sm:$0xff]
      %v4608 = vld [vmem:[%s59] sm:$0xff]
      %4610 = vset.pattern.permute.xlu0 0
      %4611 = vperm.xlu0 %4610, %v4608
      %v4612 = vpop.permute.xlu0 %4611
      %v4615 = vsel %vm1151, %v4607, 0
      %4617 = vmatpush.msra.mxu0 0.0
      %4618 = vmatpush.msra.mxu0 0.0
      %4619 = vmatpush.msra.mxu0 0.0
      %4620 = vmatpush.msra.mxu0 0.0
      %4621 = vmatpush.msra.mxu0 0.0
      %4622 = vmatpush.msra.mxu0 0.0
      %4623 = vmatpush.msra.mxu0 0.0
      %4624 = vmatpush.msra.mxu0 0.0
      %4625 = vmatpush.msra.mxu0 0.0
      %4626 = vmatpush.msra.mxu0 0.0
      %4627 = vmatpush.msra.mxu0 0.0
      %4628 = vmatpush.msra.mxu0 0.0
      %4629 = vmatpush.msra.mxu0 0.0
      %4630 = vmatpush.msra.mxu0 0.0
      %4631 = vmatpush.msra.mxu0 0.0
      %4632 = vmatpush.msra.mxu0 %v4604
      %4633 = vmatmul.f32.gmra.mxu0 %v4615
      %v4634 = vpop.f32.mrf.mxu0
      %v4635 = vadd.f32 %v4612, %v4634
      %4636 = vdwg.mxu0
      %4637 = vmatpush.msra.mxu0 0.0
      %4638 = vmatpush.msra.mxu0 0.0
      %4639 = vmatpush.msra.mxu0 0.0
      %4640 = vmatpush.msra.mxu0 0.0
      %4641 = vmatpush.msra.mxu0 0.0
      %4642 = vmatpush.msra.mxu0 0.0
      %4643 = vmatpush.msra.mxu0 0.0
      %4644 = vmatpush.msra.mxu0 0.0
      %4645 = vmatpush.msra.mxu0 0.0
      %4646 = vmatpush.msra.mxu0 0.0
      %4647 = vmatpush.msra.mxu0 0.0
      %4648 = vmatpush.msra.mxu0 0.0
      %4649 = vmatpush.msra.mxu0 0.0
      %4650 = vmatpush.msra.mxu0 0.0
      %4651 = vmatpush.msra.mxu0 0.0
      %4652 = vmatpush.msra.mxu0 %v4605
      %4653 = vmatmul.f32.gmra.mxu0 %v4615
      %v4654 = vpop.f32.mrf.mxu0
      %v4655 = vadd.f32 %v4612, %v4654
      %4656 = vdwg.mxu0
      %4657 = vmatpush.msra.mxu0 0.0
      %4658 = vmatpush.msra.mxu0 0.0
      %4659 = vmatpush.msra.mxu0 0.0
      %4660 = vmatpush.msra.mxu0 0.0
      %4661 = vmatpush.msra.mxu0 0.0
      %4662 = vmatpush.msra.mxu0 0.0
      %4663 = vmatpush.msra.mxu0 0.0
      %4664 = vmatpush.msra.mxu0 0.0
      %4665 = vmatpush.msra.mxu0 0.0
      %4666 = vmatpush.msra.mxu0 0.0
      %4667 = vmatpush.msra.mxu0 0.0
      %4668 = vmatpush.msra.mxu0 0.0
      %4669 = vmatpush.msra.mxu0 0.0
      %4670 = vmatpush.msra.mxu0 0.0
      %4671 = vmatpush.msra.mxu0 0.0
      %4672 = vmatpush.msra.mxu0 %v4606
      %4673 = vmatmul.f32.gmra.mxu0 %v4615
      %v4674 = vpop.f32.mrf.mxu0
      %v4675 = vadd.f32 %v4612, %v4674
      %4676 = vdwg.mxu0
      %v4677 = vmax.f32 %v4635, 0.0
      %v4678 = vmax.f32 %v4655, 0.0
      %v4679 = vmax.f32 %v4675, 0.0
      %v4680 = vmul.f32 %v4677, %v3694
      %v4681 = vmul.f32 %v4678, %v3695
      %v4682 = vmul.f32 %v4679, %v3696
      %v4683 = vld [vmem:[%s1138] sm:$0xff]
      %v4684 = vld [vmem:[%s1138 + $0x8] sm:$0xff]
      %v4685 = vld [vmem:[%s1138 + $0x10] sm:$0xff]
      %v4686 = vld [vmem:[%s1138 + $0x18] sm:$0xff]
      %v4687 = vld [vmem:[%s1138 + $0x20] sm:$0xff]
      %v4688 = vld [vmem:[%s1138 + $0x28] sm:$0xff]
      %v4689 = vld [vmem:[%s1138 + $0x30] sm:$0xff]
      %v4690 = vld [vmem:[%s1138 + $0x38] sm:$0xff]
      %v4691 = vld [vmem:[%s1138 + $0x40] sm:$0xff]
      %v4692 = vld [vmem:[%s1138 + $0x48] sm:$0xff]
      %v4693 = vld [vmem:[%s1138 + $0x50] sm:$0xff]
      %v4694 = vld [vmem:[%s1138 + $0x58] sm:$0xff]
      %v4695 = vld [vmem:[%s61] sm:$0x3]
      %v4699 = vrot.slane %v4680, 6
      %v4700 = vrot.slane %v4681, 6
      %v4701 = vrot.slane %v4682, 6
      %4705 = vrot.lane.b32.xlu0 %v4699, 19
      %v4706 = vpop.permute.xlu0 %4705
      %4707 = vrot.lane.b32.xlu0 %v4700, 19
      %v4708 = vpop.permute.xlu0 %4707
      %4709 = vrot.lane.b32.xlu0 %v4701, 19
      %v4710 = vpop.permute.xlu0 %4709
      %v4711 = vsel %vm3179, %v4708, %v4710
      %v4712 = vsel %vm3179, %v4706, %v4708
      %v4713 = vsel %vm3179, %v4710, %v4706
      %4715 = vset.pattern.permute.xlu0 0
      %4716 = vperm.xlu0 %4715, %v4695
      %v4717 = vpop.permute.xlu0 %4716
      %v4719 = vmul.f32 %v4717, %v4713
      %v4720 = vmul.f32 %v4717, %v4712
      %v4721 = vmul.f32 %v4717, %v4711
      %v4722 = vadd.f32 %v4719, 0.0
      %v4723 = vadd.f32 %v4720, 0.0
      %v4724 = vadd.f32 %v4721, 0.0
      %v4725 = vld [vmem:[%s63] sm:$0xff]
      %4726 = vrot.lane.b32.xlu0 %v4692, 19
      %v4727 = vpop.permute.xlu0 %4726
      %4728 = vrot.lane.b32.xlu0 %v4693, 19
      %v4729 = vpop.permute.xlu0 %4728
      %4730 = vrot.lane.b32.xlu0 %v4694, 19
      %v4731 = vpop.permute.xlu0 %4730
      %v4732 = vsel %vm3179, %v4729, %v4731
      %v4733 = vsel %vm3179, %v4727, %v4729
      %v4734 = vsel %vm3179, %v4731, %v4727
      %4736 = vset.pattern.permute.xlu0 0
      %4737 = vperm.xlu0 %4736, %v4725
      %v4738 = vpop.permute.xlu0 %4737
      %v4740 = vmul.f32 %v4738, %v4734
      %v4741 = vmul.f32 %v4738, %v4733
      %v4742 = vmul.f32 %v4738, %v4732
      %v4743 = vadd.f32 %v4740, 0.0
      %v4744 = vadd.f32 %v4741, 0.0
      %v4745 = vadd.f32 %v4742, 0.0
      %s4746 = scalar_lea.vmem %s61, 2
      %v4747 = vld [vmem:[%s4746] sm:$0x3]
      %v4748 = vrot.slane %v4680, 4
      %v4749 = vrot.slane %v4681, 4
      %v4750 = vrot.slane %v4682, 4
      %4754 = vrot.lane.b32.xlu0 %v4748, 18
      %v4755 = vpop.permute.xlu0 %4754
      %4756 = vrot.lane.b32.xlu0 %v4749, 18
      %v4757 = vpop.permute.xlu0 %4756
      %4758 = vrot.lane.b32.xlu0 %v4750, 18
      %v4759 = vpop.permute.xlu0 %4758
      %v4760 = vsel %vm3223, %v4757, %v4759
      %v4761 = vsel %vm3223, %v4755, %v4757
      %v4762 = vsel %vm3223, %v4759, %v4755
      %4764 = vset.pattern.permute.xlu0 0
      %4765 = vperm.xlu0 %4764, %v4747
      %v4766 = vpop.permute.xlu0 %4765
      %v4768 = vmul.f32 %v4766, %v4762
      %v4769 = vmul.f32 %v4766, %v4761
      %v4770 = vmul.f32 %v4766, %v4760
      %v4771 = vadd.f32 %v4722, %v4768
      %v4772 = vadd.f32 %v4723, %v4769
      %v4773 = vadd.f32 %v4724, %v4770
      %s4774 = scalar_lea.vmem %s63, 8
      %v4775 = vld [vmem:[%s4774] sm:$0xff]
      %4776 = vrot.lane.b32.xlu0 %v4689, 18
      %v4777 = vpop.permute.xlu0 %4776
      %4778 = vrot.lane.b32.xlu0 %v4690, 18
      %v4779 = vpop.permute.xlu0 %4778
      %4780 = vrot.lane.b32.xlu0 %v4691, 18
      %v4781 = vpop.permute.xlu0 %4780
      %v4782 = vsel %vm3223, %v4779, %v4781
      %v4783 = vsel %vm3223, %v4777, %v4779
      %v4784 = vsel %vm3223, %v4781, %v4777
      %4786 = vset.pattern.permute.xlu0 0
      %4787 = vperm.xlu0 %4786, %v4775
      %v4788 = vpop.permute.xlu0 %4787
      %v4790 = vmul.f32 %v4788, %v4784
      %v4791 = vmul.f32 %v4788, %v4783
      %v4792 = vmul.f32 %v4788, %v4782
      %v4793 = vadd.f32 %v4743, %v4790
      %v4794 = vadd.f32 %v4744, %v4791
      %v4795 = vadd.f32 %v4745, %v4792
      %s4796 = scalar_lea.vmem %s61, 4
      %v4797 = vld [vmem:[%s4796] sm:$0x3]
      %4798 = vrot.lane.b32.xlu0 %v4699, 18
      %v4799 = vpop.permute.xlu0 %4798
      %4800 = vrot.lane.b32.xlu0 %v4700, 18
      %v4801 = vpop.permute.xlu0 %4800
      %4802 = vrot.lane.b32.xlu0 %v4701, 18
      %v4803 = vpop.permute.xlu0 %4802
      %v4804 = vsel %vm3223, %v4801, %v4803
      %v4805 = vsel %vm3223, %v4799, %v4801
      %v4806 = vsel %vm3223, %v4803, %v4799
      %4808 = vset.pattern.permute.xlu0 0
      %4809 = vperm.xlu0 %4808, %v4797
      %v4810 = vpop.permute.xlu0 %4809
      %v4812 = vmul.f32 %v4810, %v4806
      %v4813 = vmul.f32 %v4810, %v4805
      %v4814 = vmul.f32 %v4810, %v4804
      %v4815 = vadd.f32 %v4771, %v4812
      %v4816 = vadd.f32 %v4772, %v4813
      %v4817 = vadd.f32 %v4773, %v4814
      %s4818 = scalar_lea.vmem %s63, 16
      %v4819 = vld [vmem:[%s4818] sm:$0xff]
      %4820 = vrot.lane.b32.xlu0 %v4692, 18
      %v4821 = vpop.permute.xlu0 %4820
      %4822 = vrot.lane.b32.xlu0 %v4693, 18
      %v4823 = vpop.permute.xlu0 %4822
      %4824 = vrot.lane.b32.xlu0 %v4694, 18
      %v4825 = vpop.permute.xlu0 %4824
      %v4826 = vsel %vm3223, %v4823, %v4825
      %v4827 = vsel %vm3223, %v4821, %v4823
      %v4828 = vsel %vm3223, %v4825, %v4821
      %4830 = vset.pattern.permute.xlu0 0
      %4831 = vperm.xlu0 %4830, %v4819
      %v4832 = vpop.permute.xlu0 %4831
      %v4834 = vmul.f32 %v4832, %v4828
      %v4835 = vmul.f32 %v4832, %v4827
      %v4836 = vmul.f32 %v4832, %v4826
      %v4837 = vadd.f32 %v4793, %v4834
      %v4838 = vadd.f32 %v4794, %v4835
      %v4839 = vadd.f32 %v4795, %v4836
      %s4840 = scalar_lea.vmem %s61, 6
      %v4841 = vld [vmem:[%s4840] sm:$0x3]
      %v4842 = vrot.slane %v4680, 2
      %v4843 = vrot.slane %v4681, 2
      %v4844 = vrot.slane %v4682, 2
      %4848 = vrot.lane.b32.xlu0 %v4842, 1
      %v4849 = vpop.permute.xlu0 %4848
      %4850 = vrot.lane.b32.xlu0 %v4843, 1
      %v4851 = vpop.permute.xlu0 %4850
      %4852 = vrot.lane.b32.xlu0 %v4844, 1
      %v4853 = vpop.permute.xlu0 %4852
      %v4854 = vsel %vm3313, %v4851, %v4853
      %v4855 = vsel %vm3313, %v4849, %v4851
      %v4856 = vsel %vm3313, %v4853, %v4849
      %4858 = vset.pattern.permute.xlu0 0
      %4859 = vperm.xlu0 %4858, %v4841
      %v4860 = vpop.permute.xlu0 %4859
      %v4862 = vmul.f32 %v4860, %v4856
      %v4863 = vmul.f32 %v4860, %v4855
      %v4864 = vmul.f32 %v4860, %v4854
      %v4865 = vadd.f32 %v4815, %v4862
      %v4866 = vadd.f32 %v4816, %v4863
      %v4867 = vadd.f32 %v4817, %v4864
      %s4868 = scalar_lea.vmem %s63, 24
      %v4869 = vld [vmem:[%s4868] sm:$0xff]
      %4870 = vrot.lane.b32.xlu0 %v4686, 1
      %v4871 = vpop.permute.xlu0 %4870
      %4872 = vrot.lane.b32.xlu0 %v4687, 1
      %v4873 = vpop.permute.xlu0 %4872
      %4874 = vrot.lane.b32.xlu0 %v4688, 1
      %v4875 = vpop.permute.xlu0 %4874
      %v4876 = vsel %vm3313, %v4873, %v4875
      %v4877 = vsel %vm3313, %v4871, %v4873
      %v4878 = vsel %vm3313, %v4875, %v4871
      %4880 = vset.pattern.permute.xlu0 0
      %4881 = vperm.xlu0 %4880, %v4869
      %v4882 = vpop.permute.xlu0 %4881
      %v4884 = vmul.f32 %v4882, %v4878
      %v4885 = vmul.f32 %v4882, %v4877
      %v4886 = vmul.f32 %v4882, %v4876
      %v4887 = vadd.f32 %v4837, %v4884
      %v4888 = vadd.f32 %v4838, %v4885
      %v4889 = vadd.f32 %v4839, %v4886
      %s4890 = scalar_lea.vmem %s61, 8
      %v4891 = vld [vmem:[%s4890] sm:$0x3]
      %4893 = vset.pattern.permute.xlu0 0
      %4894 = vperm.xlu0 %4893, %v4891
      %v4895 = vpop.permute.xlu0 %4894
      %v4897 = vmul.f32 %v4895, %v4680
      %v4898 = vmul.f32 %v4895, %v4681
      %v4899 = vmul.f32 %v4895, %v4682
      %v4900 = vadd.f32 %v4865, %v4897
      %v4901 = vadd.f32 %v4866, %v4898
      %v4902 = vadd.f32 %v4867, %v4899
      %s4903 = scalar_lea.vmem %s63, 32
      %v4904 = vld [vmem:[%s4903] sm:$0xff]
      %4906 = vset.pattern.permute.xlu0 0
      %4907 = vperm.xlu0 %4906, %v4904
      %v4908 = vpop.permute.xlu0 %4907
      %v4910 = vmul.f32 %v4908, %v4683
      %v4911 = vmul.f32 %v4908, %v4684
      %v4912 = vmul.f32 %v4908, %v4685
      %v4913 = vadd.f32 %v4887, %v4910
      %v4914 = vadd.f32 %v4888, %v4911
      %v4915 = vadd.f32 %v4889, %v4912
      %s4916 = scalar_lea.vmem %s61, 10
      %v4917 = vld [vmem:[%s4916] sm:$0x3]
      %4919 = vset.pattern.permute.xlu0 0
      %4920 = vperm.xlu0 %4919, %v4917
      %v4921 = vpop.permute.xlu0 %4920
      %v4923 = vmul.f32 %v4921, %v4842
      %v4924 = vmul.f32 %v4921, %v4843
      %v4925 = vmul.f32 %v4921, %v4844
      %v4926 = vadd.f32 %v4900, %v4923
      %v4927 = vadd.f32 %v4901, %v4924
      %v4928 = vadd.f32 %v4902, %v4925
      %s4929 = scalar_lea.vmem %s63, 40
      %v4930 = vld [vmem:[%s4929] sm:$0xff]
      %4932 = vset.pattern.permute.xlu0 0
      %4933 = vperm.xlu0 %4932, %v4930
      %v4934 = vpop.permute.xlu0 %4933
      %v4936 = vmul.f32 %v4934, %v4686
      %v4937 = vmul.f32 %v4934, %v4687
      %v4938 = vmul.f32 %v4934, %v4688
      %v4939 = vadd.f32 %v4913, %v4936
      %v4940 = vadd.f32 %v4914, %v4937
      %v4941 = vadd.f32 %v4915, %v4938
      %s4942 = scalar_lea.vmem %s61, 12
      %v4943 = vld [vmem:[%s4942] sm:$0x3]
      %4944 = vrot.lane.b32.xlu0 %v4699, 1
      %v4945 = vpop.permute.xlu0 %4944
      %4946 = vrot.lane.b32.xlu0 %v4700, 1
      %v4947 = vpop.permute.xlu0 %4946
      %4948 = vrot.lane.b32.xlu0 %v4701, 1
      %v4949 = vpop.permute.xlu0 %4948
      %v4950 = vsel %vm3313, %v4947, %v4949
      %v4951 = vsel %vm3313, %v4945, %v4947
      %v4952 = vsel %vm3313, %v4949, %v4945
      %4954 = vset.pattern.permute.xlu0 0
      %4955 = vperm.xlu0 %4954, %v4943
      %v4956 = vpop.permute.xlu0 %4955
      %v4958 = vmul.f32 %v4956, %v4952
      %v4959 = vmul.f32 %v4956, %v4951
      %v4960 = vmul.f32 %v4956, %v4950
      %v4961 = vadd.f32 %v4926, %v4958
      %v4962 = vadd.f32 %v4927, %v4959
      %v4963 = vadd.f32 %v4928, %v4960
      %s4964 = scalar_lea.vmem %s63, 48
      %v4965 = vld [vmem:[%s4964] sm:$0xff]
      %4966 = vrot.lane.b32.xlu0 %v4692, 1
      %v4967 = vpop.permute.xlu0 %4966
      %4968 = vrot.lane.b32.xlu0 %v4693, 1
      %v4969 = vpop.permute.xlu0 %4968
      %4970 = vrot.lane.b32.xlu0 %v4694, 1
      %v4971 = vpop.permute.xlu0 %4970
      %v4972 = vsel %vm3313, %v4969, %v4971
      %v4973 = vsel %vm3313, %v4967, %v4969
      %v4974 = vsel %vm3313, %v4971, %v4967
      %4976 = vset.pattern.permute.xlu0 0
      %4977 = vperm.xlu0 %4976, %v4965
      %v4978 = vpop.permute.xlu0 %4977
      %v4980 = vmul.f32 %v4978, %v4974
      %v4981 = vmul.f32 %v4978, %v4973
      %v4982 = vmul.f32 %v4978, %v4972
      %v4983 = vadd.f32 %v4939, %v4980
      %v4984 = vadd.f32 %v4940, %v4981
      %v4985 = vadd.f32 %v4941, %v4982
      %s4986 = scalar_lea.vmem %s61, 14
      %v4987 = vld [vmem:[%s4986] sm:$0x3]
      %4989 = vset.pattern.permute.xlu0 0
      %4990 = vperm.xlu0 %4989, %v4987
      %v4991 = vpop.permute.xlu0 %4990
      %v4993 = vmul.f32 %v4991, %v4748
      %v4994 = vmul.f32 %v4991, %v4749
      %v4995 = vmul.f32 %v4991, %v4750
      %v4996 = vadd.f32 %v4961, %v4993
      %v4997 = vadd.f32 %v4962, %v4994
      %v4998 = vadd.f32 %v4963, %v4995
      %s4999 = scalar_lea.vmem %s63, 56
      %v5000 = vld [vmem:[%s4999] sm:$0xff]
      %5002 = vset.pattern.permute.xlu0 0
      %5003 = vperm.xlu0 %5002, %v5000
      %v5004 = vpop.permute.xlu0 %5003
      %v5006 = vmul.f32 %v5004, %v4689
      %v5007 = vmul.f32 %v5004, %v4690
      %v5008 = vmul.f32 %v5004, %v4691
      %v5009 = vadd.f32 %v4983, %v5006
      %v5010 = vadd.f32 %v4984, %v5007
      %v5011 = vadd.f32 %v4985, %v5008
      %s5012 = scalar_lea.vmem %s61, 16
      %v5013 = vld [vmem:[%s5012] sm:$0x3]
      %5015 = vset.pattern.permute.xlu0 0
      %5016 = vperm.xlu0 %5015, %v5013
      %v5017 = vpop.permute.xlu0 %5016
      %v5019 = vmul.f32 %v5017, %v4699
      %v5020 = vmul.f32 %v5017, %v4700
      %v5021 = vmul.f32 %v5017, %v4701
      %v5022 = vadd.f32 %v4996, %v5019
      %v5023 = vadd.f32 %v4997, %v5020
      %v5024 = vadd.f32 %v4998, %v5021
      %s5025 = scalar_lea.vmem %s63, 64
      %v5026 = vld [vmem:[%s5025] sm:$0xff]
      %5028 = vset.pattern.permute.xlu0 0
      %5029 = vperm.xlu0 %5028, %v5026
      %v5030 = vpop.permute.xlu0 %5029
      %v5032 = vmul.f32 %v5030, %v4692
      %v5033 = vmul.f32 %v5030, %v4693
      %v5034 = vmul.f32 %v5030, %v4694
      %v5035 = vadd.f32 %v5009, %v5032
      %v5036 = vadd.f32 %v5010, %v5033
      %v5037 = vadd.f32 %v5011, %v5034
      %v5038 = vld [vmem:[%s65] sm:$0x3]
      %5040 = vset.pattern.permute.xlu0 0
      %5041 = vperm.xlu0 %5040, %v5038
      %v5042 = vpop.permute.xlu0 %5041
      %v5044 = vmul.f32 %v5042, %v5022
      %v5045 = vmul.f32 %v5042, %v5023
      %v5046 = vmul.f32 %v5042, %v5024
      %vm5047 = vcmask 1041408
      %v5048 = vsel %vm5047, %v5044, 0.0
      %v5049 = vrot.slane %v5048, 4
      %v5050 = vadd.f32 %v5048, %v5049
      %v5051 = vrot.slane %v5050, 2
      %v5052 = vadd.f32 %v5050, %v5051
      %v5053 = vrot.slane %v5052, 1
      %v5054 = vadd.f32 %v5052, %v5053
      %v5055 = vsel %vm5047, %v5045, 0.0
      %v5056 = vrot.slane %v5055, 4
      %v5057 = vadd.f32 %v5055, %v5056
      %v5058 = vrot.slane %v5057, 2
      %v5059 = vadd.f32 %v5057, %v5058
      %v5060 = vrot.slane %v5059, 1
      %v5061 = vadd.f32 %v5059, %v5060
      %v5062 = vsel %vm5047, %v5046, 0.0
      %v5063 = vrot.slane %v5062, 4
      %v5064 = vadd.f32 %v5062, %v5063
      %v5065 = vrot.slane %v5064, 2
      %v5066 = vadd.f32 %v5064, %v5065
      %v5067 = vrot.slane %v5066, 1
      %v5068 = vadd.f32 %v5066, %v5067
      %v5069 = vld [vmem:[%s67] sm:$0xff]
      %5071 = vset.pattern.permute.xlu0 0
      %5072 = vperm.xlu0 %5071, %v5069
      %v5073 = vpop.permute.xlu0 %5072
      %v5075 = vmul.f32 %v5073, %v5035
      %v5076 = vmul.f32 %v5073, %v5036
      %v5077 = vmul.f32 %v5073, %v5037
      %v5078 = vrot.slane %v5075, 4
      %v5079 = vadd.f32 %v5075, %v5078
      %v5080 = vrot.slane %v5079, 2
      %v5081 = vadd.f32 %v5079, %v5080
      %v5082 = vrot.slane %v5081, 1
      %v5083 = vadd.f32 %v5081, %v5082
      %v5084 = vrot.slane %v5076, 4
      %v5085 = vadd.f32 %v5076, %v5084
      %v5086 = vrot.slane %v5085, 2
      %v5087 = vadd.f32 %v5085, %v5086
      %v5088 = vrot.slane %v5087, 1
      %v5089 = vadd.f32 %v5087, %v5088
      %v5090 = vrot.slane %v5077, 4
      %v5091 = vadd.f32 %v5077, %v5090
      %v5092 = vrot.slane %v5091, 2
      %v5093 = vadd.f32 %v5091, %v5092
      %v5094 = vrot.slane %v5093, 1
      %v5095 = vadd.f32 %v5093, %v5094
      %v5096 = vadd.f32 %v5054, %v5083
      %v5097 = vadd.f32 %v5061, %v5089
      %v5098 = vadd.f32 %v5068, %v5095
      %v5099 = vld [vmem:[#allocation2] sm:$0x1]
      %5101 = vset.pattern.permute.xlu0 0
      %5102 = vperm.xlu0 %5101, %v5099
      %v5103 = vpop.permute.xlu0 %5102
      %v5105 = vperm.slane %v5103, 0
      %v5106 = vadd.f32 %v5096, %v5105
      %v5107 = vadd.f32 %v5097, %v5105
      %v5108 = vadd.f32 %v5098, %v5105
      %v5109 = vxor.u32 %v5106, 2147483648
      %v5110 = vxor.u32 %v5107, 2147483648
      %v5111 = vxor.u32 %v5108, 2147483648
      %v5112 = vmul.f32 %v5109, 1.442695
      %v5113 = vpow.pop %v5112
      %v5114 = vmul.f32 %v5110, 1.442695
      %v5115 = vpow.pop %v5114
      %v5116 = vmul.f32 %v5111, 1.442695
      %v5117 = vpow.pop %v5116
      %v5118 = vadd.f32 %v5113, 1.0
      %v5119 = vadd.f32 %v5115, 1.0
      %v5120 = vadd.f32 %v5117, 1.0
      %v5121 = vrcp.pop %v5118
      %v5122 = vmul.f32 %v5118, %v5121
      %v5123 = vsub.f32 1.0, %v5122
      %v5124 = vmul.f32 %v5121, %v5123
      %v5125 = vadd.f32 %v5121, %v5124
      %vm5126 = vweird.f32 %v5118
      %vm5127 = vweird.f32 %v5121
      %vm5128 = vmor %vm5126, %vm5127
      %v5129 = vsel %vm5128, %v5121, %v5125
      %v5130 = vand.u32 2147483647, %v5118
      %vm5131 = vcmp.eq.f32.partialorder %v5130, 8.507059e+37
      %v5132 = vand.u32 %v5118, 2147483648
      %v5133 = vor.u32 1.1754944e-38, %v5132
      %v5134 = vsel %vm5131, %v5133, %v5129
      %v5135 = vmul.f32 1.0, %v5134
      %v5136 = vrcp.pop %v5119
      %v5137 = vmul.f32 %v5119, %v5136
      %v5138 = vsub.f32 1.0, %v5137
      %v5139 = vmul.f32 %v5136, %v5138
      %v5140 = vadd.f32 %v5136, %v5139
      %vm5141 = vweird.f32 %v5119
      %vm5142 = vweird.f32 %v5136
      %vm5143 = vmor %vm5141, %vm5142
      %v5144 = vsel %vm5143, %v5136, %v5140
      %v5145 = vand.u32 2147483647, %v5119
      %vm5146 = vcmp.eq.f32.partialorder %v5145, 8.507059e+37
      %v5147 = vand.u32 %v5119, 2147483648
      %v5148 = vor.u32 1.1754944e-38, %v5147
      %v5149 = vsel %vm5146, %v5148, %v5144
      %v5150 = vmul.f32 1.0, %v5149
      %v5151 = vrcp.pop %v5120
      %v5152 = vmul.f32 %v5120, %v5151
      %v5153 = vsub.f32 1.0, %v5152
      %v5154 = vmul.f32 %v5151, %v5153
      %v5155 = vadd.f32 %v5151, %v5154
      %vm5156 = vweird.f32 %v5120
      %vm5157 = vweird.f32 %v5151
      %vm5158 = vmor %vm5156, %vm5157
      %v5159 = vsel %vm5158, %v5151, %v5155
      %v5160 = vand.u32 2147483647, %v5120
      %vm5161 = vcmp.eq.f32.partialorder %v5160, 8.507059e+37
      %v5162 = vand.u32 %v5120, 2147483648
      %v5163 = vor.u32 1.1754944e-38, %v5162
      %v5164 = vsel %vm5161, %v5163, %v5159
      %v5165 = vmul.f32 1.0, %v5164
      %v5169 = vrot.slane %v5150, 7
      %v5170 = vrot.slane %v5165, 6
      %vm5171 = vcmask 1040384
      %v5172 = vsel %vm5171, %v5135, %v5169
      %v5173 = vsel %vm5047, %v5172, %v5170
      %v5175 = vlaneseq
      %vm5176 = vcmp.ge.s32.totalorder %v5175, 0
      %vm5177 = vcmp.lt.s32.totalorder %v5175, 384
      %vm5178 = vmand %vm5176, %vm5177
      %5179 = vst.msk [vmem:[%s1143] ss:$4 sm:$0x7] %vm5178, %v5173
      %v5180 = vld [vmem:[%s61] sm:$0x3]
      %5182 = vset.pattern.permute.xlu0 0
      %5183 = vperm.xlu0 %5182, %v5180
      %v5184 = vpop.permute.xlu0 %5183
      %v5186 = vmul.f32 %v5184, %v4762
      %v5187 = vmul.f32 %v5184, %v4761
      %v5188 = vmul.f32 %v5184, %v4760
      %v5189 = vadd.f32 %v5186, 0.0
      %v5190 = vadd.f32 %v5187, 0.0
      %v5191 = vadd.f32 %v5188, 0.0
      %v5192 = vld [vmem:[%s63] sm:$0xff]
      %5194 = vset.pattern.permute.xlu0 0
      %5195 = vperm.xlu0 %5194, %v5192
      %v5196 = vpop.permute.xlu0 %5195
      %v5198 = vmul.f32 %v5196, %v4784
      %v5199 = vmul.f32 %v5196, %v4783
      %v5200 = vmul.f32 %v5196, %v4782
      %v5201 = vadd.f32 %v5198, 0.0
      %v5202 = vadd.f32 %v5199, 0.0
      %v5203 = vadd.f32 %v5200, 0.0
      %v5204 = vld [vmem:[%s4746] sm:$0x3]
      %5206 = vset.pattern.permute.xlu0 0
      %5207 = vperm.xlu0 %5206, %v5204
      %v5208 = vpop.permute.xlu0 %5207
      %v5210 = vmul.f32 %v5208, %v4806
      %v5211 = vmul.f32 %v5208, %v4805
      %v5212 = vmul.f32 %v5208, %v4804
      %v5213 = vadd.f32 %v5189, %v5210
      %v5214 = vadd.f32 %v5190, %v5211
      %v5215 = vadd.f32 %v5191, %v5212
      %v5216 = vld [vmem:[%s4774] sm:$0xff]
      %5218 = vset.pattern.permute.xlu0 0
      %5219 = vperm.xlu0 %5218, %v5216
      %v5220 = vpop.permute.xlu0 %5219
      %v5222 = vmul.f32 %v5220, %v4828
      %v5223 = vmul.f32 %v5220, %v4827
      %v5224 = vmul.f32 %v5220, %v4826
      %v5225 = vadd.f32 %v5201, %v5222
      %v5226 = vadd.f32 %v5202, %v5223
      %v5227 = vadd.f32 %v5203, %v5224
      %v5228 = vld [vmem:[%s4796] sm:$0x3]
      %5229 = vrot.lane.b32.xlu0 %v4748, 17
      %v5230 = vpop.permute.xlu0 %5229
      %5231 = vrot.lane.b32.xlu0 %v4749, 17
      %v5232 = vpop.permute.xlu0 %5231
      %5233 = vrot.lane.b32.xlu0 %v4750, 17
      %v5234 = vpop.permute.xlu0 %5233
      %v5235 = vsel %vm3268, %v5232, %v5234
      %v5236 = vsel %vm3268, %v5230, %v5232
      %v5237 = vsel %vm3268, %v5234, %v5230
      %5239 = vset.pattern.permute.xlu0 0
      %5240 = vperm.xlu0 %5239, %v5228
      %v5241 = vpop.permute.xlu0 %5240
      %v5243 = vmul.f32 %v5241, %v5237
      %v5244 = vmul.f32 %v5241, %v5236
      %v5245 = vmul.f32 %v5241, %v5235
      %v5246 = vadd.f32 %v5213, %v5243
      %v5247 = vadd.f32 %v5214, %v5244
      %v5248 = vadd.f32 %v5215, %v5245
      %v5249 = vld [vmem:[%s4818] sm:$0xff]
      %5250 = vrot.lane.b32.xlu0 %v4689, 17
      %v5251 = vpop.permute.xlu0 %5250
      %5252 = vrot.lane.b32.xlu0 %v4690, 17
      %v5253 = vpop.permute.xlu0 %5252
      %5254 = vrot.lane.b32.xlu0 %v4691, 17
      %v5255 = vpop.permute.xlu0 %5254
      %v5256 = vsel %vm3268, %v5253, %v5255
      %v5257 = vsel %vm3268, %v5251, %v5253
      %v5258 = vsel %vm3268, %v5255, %v5251
      %5260 = vset.pattern.permute.xlu0 0
      %5261 = vperm.xlu0 %5260, %v5249
      %v5262 = vpop.permute.xlu0 %5261
      %v5264 = vmul.f32 %v5262, %v5258
      %v5265 = vmul.f32 %v5262, %v5257
      %v5266 = vmul.f32 %v5262, %v5256
      %v5267 = vadd.f32 %v5225, %v5264
      %v5268 = vadd.f32 %v5226, %v5265
      %v5269 = vadd.f32 %v5227, %v5266
      %v5270 = vld [vmem:[%s4840] sm:$0x3]
      %5272 = vset.pattern.permute.xlu0 0
      %5273 = vperm.xlu0 %5272, %v5270
      %v5274 = vpop.permute.xlu0 %5273
      %v5276 = vmul.f32 %v5274, %v4680
      %v5277 = vmul.f32 %v5274, %v4681
      %v5278 = vmul.f32 %v5274, %v4682
      %v5279 = vadd.f32 %v5246, %v5276
      %v5280 = vadd.f32 %v5247, %v5277
      %v5281 = vadd.f32 %v5248, %v5278
      %v5282 = vld [vmem:[%s4868] sm:$0xff]
      %5284 = vset.pattern.permute.xlu0 0
      %5285 = vperm.xlu0 %5284, %v5282
      %v5286 = vpop.permute.xlu0 %5285
      %v5288 = vmul.f32 %v5286, %v4683
      %v5289 = vmul.f32 %v5286, %v4684
      %v5290 = vmul.f32 %v5286, %v4685
      %v5291 = vadd.f32 %v5267, %v5288
      %v5292 = vadd.f32 %v5268, %v5289
      %v5293 = vadd.f32 %v5269, %v5290
      %v5294 = vld [vmem:[%s4890] sm:$0x3]
      %5296 = vset.pattern.permute.xlu0 0
      %5297 = vperm.xlu0 %5296, %v5294
      %v5298 = vpop.permute.xlu0 %5297
      %v5300 = vmul.f32 %v5298, %v4842
      %v5301 = vmul.f32 %v5298, %v4843
      %v5302 = vmul.f32 %v5298, %v4844
      %v5303 = vadd.f32 %v5279, %v5300
      %v5304 = vadd.f32 %v5280, %v5301
      %v5305 = vadd.f32 %v5281, %v5302
      %v5306 = vld [vmem:[%s4903] sm:$0xff]
      %5308 = vset.pattern.permute.xlu0 0
      %5309 = vperm.xlu0 %5308, %v5306
      %v5310 = vpop.permute.xlu0 %5309
      %v5312 = vmul.f32 %v5310, %v4686
      %v5313 = vmul.f32 %v5310, %v4687
      %v5314 = vmul.f32 %v5310, %v4688
      %v5315 = vadd.f32 %v5291, %v5312
      %v5316 = vadd.f32 %v5292, %v5313
      %v5317 = vadd.f32 %v5293, %v5314
      %v5318 = vld [vmem:[%s4916] sm:$0x3]
      %5319 = vrot.lane.b32.xlu0 %v4680, 127
      %v5320 = vpop.permute.xlu0 %5319
      %5321 = vrot.lane.b32.xlu0 %v4681, 127
      %v5322 = vpop.permute.xlu0 %5321
      %5323 = vrot.lane.b32.xlu0 %v4682, 127
      %v5324 = vpop.permute.xlu0 %5323
      %v5325 = vsel %vm3384, %v5322, %v5324
      %v5326 = vsel %vm3384, %v5320, %v5322
      %v5327 = vsel %vm3384, %v5324, %v5320
      %5329 = vset.pattern.permute.xlu0 0
      %5330 = vperm.xlu0 %5329, %v5318
      %v5331 = vpop.permute.xlu0 %5330
      %v5333 = vmul.f32 %v5331, %v5326
      %v5334 = vmul.f32 %v5331, %v5325
      %v5335 = vmul.f32 %v5331, %v5327
      %v5336 = vadd.f32 %v5303, %v5333
      %v5337 = vadd.f32 %v5304, %v5334
      %v5338 = vadd.f32 %v5305, %v5335
      %v5339 = vld [vmem:[%s4929] sm:$0xff]
      %5340 = vrot.lane.b32.xlu0 %v4683, 127
      %v5341 = vpop.permute.xlu0 %5340
      %5342 = vrot.lane.b32.xlu0 %v4684, 127
      %v5343 = vpop.permute.xlu0 %5342
      %5344 = vrot.lane.b32.xlu0 %v4685, 127
      %v5345 = vpop.permute.xlu0 %5344
      %v5346 = vsel %vm3384, %v5343, %v5345
      %v5347 = vsel %vm3384, %v5341, %v5343
      %v5348 = vsel %vm3384, %v5345, %v5341
      %5350 = vset.pattern.permute.xlu0 0
      %5351 = vperm.xlu0 %5350, %v5339
      %v5352 = vpop.permute.xlu0 %5351
      %v5354 = vmul.f32 %v5352, %v5347
      %v5355 = vmul.f32 %v5352, %v5346
      %v5356 = vmul.f32 %v5352, %v5348
      %v5357 = vadd.f32 %v5315, %v5354
      %v5358 = vadd.f32 %v5316, %v5355
      %v5359 = vadd.f32 %v5317, %v5356
      %v5360 = vld [vmem:[%s4942] sm:$0x3]
      %5362 = vset.pattern.permute.xlu0 0
      %5363 = vperm.xlu0 %5362, %v5360
      %v5364 = vpop.permute.xlu0 %5363
      %v5366 = vmul.f32 %v5364, %v4748
      %v5367 = vmul.f32 %v5364, %v4749
      %v5368 = vmul.f32 %v5364, %v4750
      %v5369 = vadd.f32 %v5336, %v5366
      %v5370 = vadd.f32 %v5337, %v5367
      %v5371 = vadd.f32 %v5338, %v5368
      %v5372 = vld [vmem:[%s4964] sm:$0xff]
      %5374 = vset.pattern.permute.xlu0 0
      %5375 = vperm.xlu0 %5374, %v5372
      %v5376 = vpop.permute.xlu0 %5375
      %v5378 = vmul.f32 %v5376, %v4689
      %v5379 = vmul.f32 %v5376, %v4690
      %v5380 = vmul.f32 %v5376, %v4691
      %v5381 = vadd.f32 %v5357, %v5378
      %v5382 = vadd.f32 %v5358, %v5379
      %v5383 = vadd.f32 %v5359, %v5380
      %v5384 = vld [vmem:[%s4986] sm:$0x3]
      %5386 = vset.pattern.permute.xlu0 0
      %5387 = vperm.xlu0 %5386, %v5384
      %v5388 = vpop.permute.xlu0 %5387
      %v5390 = vmul.f32 %v5388, %v4699
      %v5391 = vmul.f32 %v5388, %v4700
      %v5392 = vmul.f32 %v5388, %v4701
      %v5393 = vadd.f32 %v5369, %v5390
      %v5394 = vadd.f32 %v5370, %v5391
      %v5395 = vadd.f32 %v5371, %v5392
      %v5396 = vld [vmem:[%s4999] sm:$0xff]
      %5398 = vset.pattern.permute.xlu0 0
      %5399 = vperm.xlu0 %5398, %v5396
      %v5400 = vpop.permute.xlu0 %5399
      %v5402 = vmul.f32 %v5400, %v4692
      %v5403 = vmul.f32 %v5400, %v4693
      %v5404 = vmul.f32 %v5400, %v4694
      %v5405 = vadd.f32 %v5381, %v5402
      %v5406 = vadd.f32 %v5382, %v5403
      %v5407 = vadd.f32 %v5383, %v5404
      %v5408 = vld [vmem:[%s5012] sm:$0x3]
      %5409 = vrot.lane.b32.xlu0 %v4748, 127
      %v5410 = vpop.permute.xlu0 %5409
      %5411 = vrot.lane.b32.xlu0 %v4749, 127
      %v5412 = vpop.permute.xlu0 %5411
      %5413 = vrot.lane.b32.xlu0 %v4750, 127
      %v5414 = vpop.permute.xlu0 %5413
      %v5415 = vsel %vm3384, %v5412, %v5414
      %v5416 = vsel %vm3384, %v5410, %v5412
      %v5417 = vsel %vm3384, %v5414, %v5410
      %5419 = vset.pattern.permute.xlu0 0
      %5420 = vperm.xlu0 %5419, %v5408
      %v5421 = vpop.permute.xlu0 %5420
      %v5423 = vmul.f32 %v5421, %v5416
      %v5424 = vmul.f32 %v5421, %v5415
      %v5425 = vmul.f32 %v5421, %v5417
      %v5426 = vadd.f32 %v5393, %v5423
      %v5427 = vadd.f32 %v5394, %v5424
      %v5428 = vadd.f32 %v5395, %v5425
      %v5429 = vld [vmem:[%s5025] sm:$0xff]
      %5430 = vrot.lane.b32.xlu0 %v4689, 127
      %v5431 = vpop.permute.xlu0 %5430
      %5432 = vrot.lane.b32.xlu0 %v4690, 127
      %v5433 = vpop.permute.xlu0 %5432
      %5434 = vrot.lane.b32.xlu0 %v4691, 127
      %v5435 = vpop.permute.xlu0 %5434
      %v5436 = vsel %vm3384, %v5433, %v5435
      %v5437 = vsel %vm3384, %v5431, %v5433
      %v5438 = vsel %vm3384, %v5435, %v5431
      %5440 = vset.pattern.permute.xlu0 0
      %5441 = vperm.xlu0 %5440, %v5429
      %v5442 = vpop.permute.xlu0 %5441
      %v5444 = vmul.f32 %v5442, %v5437
      %v5445 = vmul.f32 %v5442, %v5436
      %v5446 = vmul.f32 %v5442, %v5438
      %v5447 = vadd.f32 %v5405, %v5444
      %v5448 = vadd.f32 %v5406, %v5445
      %v5449 = vadd.f32 %v5407, %v5446
      %v5450 = vld [vmem:[%s65] sm:$0x3]
      %5452 = vset.pattern.permute.xlu0 0
      %5453 = vperm.xlu0 %5452, %v5450
      %v5454 = vpop.permute.xlu0 %5453
      %v5456 = vmul.f32 %v5454, %v5426
      %v5457 = vmul.f32 %v5454, %v5427
      %v5458 = vmul.f32 %v5454, %v5428
      %v5459 = vsel %vm5047, %v5456, 0.0
      %v5460 = vrot.slane %v5459, 4
      %v5461 = vadd.f32 %v5459, %v5460
      %v5462 = vrot.slane %v5461, 2
      %v5463 = vadd.f32 %v5461, %v5462
      %v5464 = vrot.slane %v5463, 1
      %v5465 = vadd.f32 %v5463, %v5464
      %v5466 = vsel %vm5047, %v5457, 0.0
      %v5467 = vrot.slane %v5466, 4
      %v5468 = vadd.f32 %v5466, %v5467
      %v5469 = vrot.slane %v5468, 2
      %v5470 = vadd.f32 %v5468, %v5469
      %v5471 = vrot.slane %v5470, 1
      %v5472 = vadd.f32 %v5470, %v5471
      %v5473 = vsel %vm5047, %v5458, 0.0
      %v5474 = vrot.slane %v5473, 4
      %v5475 = vadd.f32 %v5473, %v5474
      %v5476 = vrot.slane %v5475, 2
      %v5477 = vadd.f32 %v5475, %v5476
      %v5478 = vrot.slane %v5477, 1
      %v5479 = vadd.f32 %v5477, %v5478
      %v5480 = vld [vmem:[%s67] sm:$0xff]
      %5482 = vset.pattern.permute.xlu0 0
      %5483 = vperm.xlu0 %5482, %v5480
      %v5484 = vpop.permute.xlu0 %5483
      %v5486 = vmul.f32 %v5484, %v5447
      %v5487 = vmul.f32 %v5484, %v5448
      %v5488 = vmul.f32 %v5484, %v5449
      %v5489 = vrot.slane %v5486, 4
      %v5490 = vadd.f32 %v5486, %v5489
      %v5491 = vrot.slane %v5490, 2
      %v5492 = vadd.f32 %v5490, %v5491
      %v5493 = vrot.slane %v5492, 1
      %v5494 = vadd.f32 %v5492, %v5493
      %v5495 = vrot.slane %v5487, 4
      %v5496 = vadd.f32 %v5487, %v5495
      %v5497 = vrot.slane %v5496, 2
      %v5498 = vadd.f32 %v5496, %v5497
      %v5499 = vrot.slane %v5498, 1
      %v5500 = vadd.f32 %v5498, %v5499
      %v5501 = vrot.slane %v5488, 4
      %v5502 = vadd.f32 %v5488, %v5501
      %v5503 = vrot.slane %v5502, 2
      %v5504 = vadd.f32 %v5502, %v5503
      %v5505 = vrot.slane %v5504, 1
      %v5506 = vadd.f32 %v5504, %v5505
      %v5507 = vadd.f32 %v5465, %v5494
      %v5508 = vadd.f32 %v5472, %v5500
      %v5509 = vadd.f32 %v5479, %v5506
      %v5510 = vld [vmem:[#allocation2] sm:$0x1]
      %5512 = vset.pattern.permute.xlu0 0
      %5513 = vperm.xlu0 %5512, %v5510
      %v5514 = vpop.permute.xlu0 %5513
      %v5516 = vperm.slane %v5514, 0
      %v5517 = vadd.f32 %v5507, %v5516
      %v5518 = vadd.f32 %v5508, %v5516
      %v5519 = vadd.f32 %v5509, %v5516
      %v5520 = vxor.u32 %v5517, 2147483648
      %v5521 = vxor.u32 %v5518, 2147483648
      %v5522 = vxor.u32 %v5519, 2147483648
      %v5523 = vmul.f32 %v5520, 1.442695
      %v5524 = vpow.pop %v5523
      %v5525 = vmul.f32 %v5521, 1.442695
      %v5526 = vpow.pop %v5525
      %v5527 = vmul.f32 %v5522, 1.442695
      %v5528 = vpow.pop %v5527
      %v5529 = vadd.f32 %v5524, 1.0
      %v5530 = vadd.f32 %v5526, 1.0
      %v5531 = vadd.f32 %v5528, 1.0
      %v5532 = vrcp.pop %v5529
      %v5533 = vmul.f32 %v5529, %v5532
      %v5534 = vsub.f32 1.0, %v5533
      %v5535 = vmul.f32 %v5532, %v5534
      %v5536 = vadd.f32 %v5532, %v5535
      %vm5537 = vweird.f32 %v5529
      %vm5538 = vweird.f32 %v5532
      %vm5539 = vmor %vm5537, %vm5538
      %v5540 = vsel %vm5539, %v5532, %v5536
      %v5541 = vand.u32 2147483647, %v5529
      %vm5542 = vcmp.eq.f32.partialorder %v5541, 8.507059e+37
      %v5543 = vand.u32 %v5529, 2147483648
      %v5544 = vor.u32 1.1754944e-38, %v5543
      %v5545 = vsel %vm5542, %v5544, %v5540
      %v5546 = vmul.f32 1.0, %v5545
      %v5547 = vrcp.pop %v5530
      %v5548 = vmul.f32 %v5530, %v5547
      %v5549 = vsub.f32 1.0, %v5548
      %v5550 = vmul.f32 %v5547, %v5549
      %v5551 = vadd.f32 %v5547, %v5550
      %vm5552 = vweird.f32 %v5530
      %vm5553 = vweird.f32 %v5547
      %vm5554 = vmor %vm5552, %vm5553
      %v5555 = vsel %vm5554, %v5547, %v5551
      %v5556 = vand.u32 2147483647, %v5530
      %vm5557 = vcmp.eq.f32.partialorder %v5556, 8.507059e+37
      %v5558 = vand.u32 %v5530, 2147483648
      %v5559 = vor.u32 1.1754944e-38, %v5558
      %v5560 = vsel %vm5557, %v5559, %v5555
      %v5561 = vmul.f32 1.0, %v5560
      %v5562 = vrcp.pop %v5531
      %v5563 = vmul.f32 %v5531, %v5562
      %v5564 = vsub.f32 1.0, %v5563
      %v5565 = vmul.f32 %v5562, %v5564
      %v5566 = vadd.f32 %v5562, %v5565
      %vm5567 = vweird.f32 %v5531
      %vm5568 = vweird.f32 %v5562
      %vm5569 = vmor %vm5567, %vm5568
      %v5570 = vsel %vm5569, %v5562, %v5566
      %v5571 = vand.u32 2147483647, %v5531
      %vm5572 = vcmp.eq.f32.partialorder %v5571, 8.507059e+37
      %v5573 = vand.u32 %v5531, 2147483648
      %v5574 = vor.u32 1.1754944e-38, %v5573
      %v5575 = vsel %vm5572, %v5574, %v5570
      %v5576 = vmul.f32 1.0, %v5575
      %v5580 = vrot.slane %v5561, 7
      %v5581 = vrot.slane %v5576, 6
      %v5582 = vsel %vm5171, %v5546, %v5580
      %v5583 = vsel %vm5047, %v5582, %v5581
      %s5585 = scalar_lea.vmem %s1143, 1
      %5586 = vst.msk [vmem:[%s5585] ss:$4 sm:$0x7] %vm5178, %v5583
      %v5587 = vld [vmem:[%s61] sm:$0x3]
      %5589 = vset.pattern.permute.xlu0 0
      %5590 = vperm.xlu0 %5589, %v5587
      %v5591 = vpop.permute.xlu0 %5590
      %v5593 = vmul.f32 %v5591, %v4856
      %v5594 = vmul.f32 %v5591, %v4855
      %v5595 = vmul.f32 %v5591, %v4854
      %v5596 = vadd.f32 %v5593, 0.0
      %v5597 = vadd.f32 %v5594, 0.0
      %v5598 = vadd.f32 %v5595, 0.0
      %v5599 = vld [vmem:[%s63] sm:$0xff]
      %5601 = vset.pattern.permute.xlu0 0
      %5602 = vperm.xlu0 %5601, %v5599
      %v5603 = vpop.permute.xlu0 %5602
      %v5605 = vmul.f32 %v5603, %v4878
      %v5606 = vmul.f32 %v5603, %v4877
      %v5607 = vmul.f32 %v5603, %v4876
      %v5608 = vadd.f32 %v5605, 0.0
      %v5609 = vadd.f32 %v5606, 0.0
      %v5610 = vadd.f32 %v5607, 0.0
      %v5611 = vld [vmem:[%s4746] sm:$0x3]
      %5613 = vset.pattern.permute.xlu0 0
      %5614 = vperm.xlu0 %5613, %v5611
      %v5615 = vpop.permute.xlu0 %5614
      %v5617 = vmul.f32 %v5615, %v4680
      %v5618 = vmul.f32 %v5615, %v4681
      %v5619 = vmul.f32 %v5615, %v4682
      %v5620 = vadd.f32 %v5596, %v5617
      %v5621 = vadd.f32 %v5597, %v5618
      %v5622 = vadd.f32 %v5598, %v5619
      %v5623 = vld [vmem:[%s4774] sm:$0xff]
      %5625 = vset.pattern.permute.xlu0 0
      %5626 = vperm.xlu0 %5625, %v5623
      %v5627 = vpop.permute.xlu0 %5626
      %v5629 = vmul.f32 %v5627, %v4683
      %v5630 = vmul.f32 %v5627, %v4684
      %v5631 = vmul.f32 %v5627, %v4685
      %v5632 = vadd.f32 %v5608, %v5629
      %v5633 = vadd.f32 %v5609, %v5630
      %v5634 = vadd.f32 %v5610, %v5631
      %v5635 = vld [vmem:[%s4796] sm:$0x3]
      %5637 = vset.pattern.permute.xlu0 0
      %5638 = vperm.xlu0 %5637, %v5635
      %v5639 = vpop.permute.xlu0 %5638
      %v5641 = vmul.f32 %v5639, %v4842
      %v5642 = vmul.f32 %v5639, %v4843
      %v5643 = vmul.f32 %v5639, %v4844
      %v5644 = vadd.f32 %v5620, %v5641
      %v5645 = vadd.f32 %v5621, %v5642
      %v5646 = vadd.f32 %v5622, %v5643
      %v5647 = vld [vmem:[%s4818] sm:$0xff]
      %5649 = vset.pattern.permute.xlu0 0
      %5650 = vperm.xlu0 %5649, %v5647
      %v5651 = vpop.permute.xlu0 %5650
      %v5653 = vmul.f32 %v5651, %v4686
      %v5654 = vmul.f32 %v5651, %v4687
      %v5655 = vmul.f32 %v5651, %v4688
      %v5656 = vadd.f32 %v5632, %v5653
      %v5657 = vadd.f32 %v5633, %v5654
      %v5658 = vadd.f32 %v5634, %v5655
      %v5659 = vld [vmem:[%s4840] sm:$0x3]
      %5661 = vset.pattern.permute.xlu0 0
      %5662 = vperm.xlu0 %5661, %v5659
      %v5663 = vpop.permute.xlu0 %5662
      %v5665 = vmul.f32 %v5663, %v4952
      %v5666 = vmul.f32 %v5663, %v4951
      %v5667 = vmul.f32 %v5663, %v4950
      %v5668 = vadd.f32 %v5644, %v5665
      %v5669 = vadd.f32 %v5645, %v5666
      %v5670 = vadd.f32 %v5646, %v5667
      %v5671 = vld [vmem:[%s4868] sm:$0xff]
      %5673 = vset.pattern.permute.xlu0 0
      %5674 = vperm.xlu0 %5673, %v5671
      %v5675 = vpop.permute.xlu0 %5674
      %v5677 = vmul.f32 %v5675, %v4974
      %v5678 = vmul.f32 %v5675, %v4973
      %v5679 = vmul.f32 %v5675, %v4972
      %v5680 = vadd.f32 %v5656, %v5677
      %v5681 = vadd.f32 %v5657, %v5678
      %v5682 = vadd.f32 %v5658, %v5679
      %v5683 = vld [vmem:[%s4890] sm:$0x3]
      %5685 = vset.pattern.permute.xlu0 0
      %5686 = vperm.xlu0 %5685, %v5683
      %v5687 = vpop.permute.xlu0 %5686
      %v5689 = vmul.f32 %v5687, %v4748
      %v5690 = vmul.f32 %v5687, %v4749
      %v5691 = vmul.f32 %v5687, %v4750
      %v5692 = vadd.f32 %v5668, %v5689
      %v5693 = vadd.f32 %v5669, %v5690
      %v5694 = vadd.f32 %v5670, %v5691
      %v5695 = vld [vmem:[%s4903] sm:$0xff]
      %5697 = vset.pattern.permute.xlu0 0
      %5698 = vperm.xlu0 %5697, %v5695
      %v5699 = vpop.permute.xlu0 %5698
      %v5701 = vmul.f32 %v5699, %v4689
      %v5702 = vmul.f32 %v5699, %v4690
      %v5703 = vmul.f32 %v5699, %v4691
      %v5704 = vadd.f32 %v5680, %v5701
      %v5705 = vadd.f32 %v5681, %v5702
      %v5706 = vadd.f32 %v5682, %v5703
      %v5707 = vld [vmem:[%s4916] sm:$0x3]
      %5709 = vset.pattern.permute.xlu0 0
      %5710 = vperm.xlu0 %5709, %v5707
      %v5711 = vpop.permute.xlu0 %5710
      %v5713 = vmul.f32 %v5711, %v4699
      %v5714 = vmul.f32 %v5711, %v4700
      %v5715 = vmul.f32 %v5711, %v4701
      %v5716 = vadd.f32 %v5692, %v5713
      %v5717 = vadd.f32 %v5693, %v5714
      %v5718 = vadd.f32 %v5694, %v5715
      %v5719 = vld [vmem:[%s4929] sm:$0xff]
      %5721 = vset.pattern.permute.xlu0 0
      %5722 = vperm.xlu0 %5721, %v5719
      %v5723 = vpop.permute.xlu0 %5722
      %v5725 = vmul.f32 %v5723, %v4692
      %v5726 = vmul.f32 %v5723, %v4693
      %v5727 = vmul.f32 %v5723, %v4694
      %v5728 = vadd.f32 %v5704, %v5725
      %v5729 = vadd.f32 %v5705, %v5726
      %v5730 = vadd.f32 %v5706, %v5727
      %v5731 = vld [vmem:[%s4942] sm:$0x3]
      %5732 = vrot.lane.b32.xlu0 %v4842, 111
      %v5733 = vpop.permute.xlu0 %5732
      %5734 = vrot.lane.b32.xlu0 %v4843, 111
      %v5735 = vpop.permute.xlu0 %5734
      %5736 = vrot.lane.b32.xlu0 %v4844, 111
      %v5737 = vpop.permute.xlu0 %5736
      %v5738 = vsel %vm3429, %v5735, %v5737
      %v5739 = vsel %vm3429, %v5733, %v5735
      %v5740 = vsel %vm3429, %v5737, %v5733
      %5742 = vset.pattern.permute.xlu0 0
      %5743 = vperm.xlu0 %5742, %v5731
      %v5744 = vpop.permute.xlu0 %5743
      %v5746 = vmul.f32 %v5744, %v5739
      %v5747 = vmul.f32 %v5744, %v5738
      %v5748 = vmul.f32 %v5744, %v5740
      %v5749 = vadd.f32 %v5716, %v5746
      %v5750 = vadd.f32 %v5717, %v5747
      %v5751 = vadd.f32 %v5718, %v5748
      %v5752 = vld [vmem:[%s4964] sm:$0xff]
      %5753 = vrot.lane.b32.xlu0 %v4686, 111
      %v5754 = vpop.permute.xlu0 %5753
      %5755 = vrot.lane.b32.xlu0 %v4687, 111
      %v5756 = vpop.permute.xlu0 %5755
      %5757 = vrot.lane.b32.xlu0 %v4688, 111
      %v5758 = vpop.permute.xlu0 %5757
      %v5759 = vsel %vm3429, %v5756, %v5758
      %v5760 = vsel %vm3429, %v5754, %v5756
      %v5761 = vsel %vm3429, %v5758, %v5754
      %5763 = vset.pattern.permute.xlu0 0
      %5764 = vperm.xlu0 %5763, %v5752
      %v5765 = vpop.permute.xlu0 %5764
      %v5767 = vmul.f32 %v5765, %v5760
      %v5768 = vmul.f32 %v5765, %v5759
      %v5769 = vmul.f32 %v5765, %v5761
      %v5770 = vadd.f32 %v5728, %v5767
      %v5771 = vadd.f32 %v5729, %v5768
      %v5772 = vadd.f32 %v5730, %v5769
      %v5773 = vld [vmem:[%s4986] sm:$0x3]
      %5774 = vrot.lane.b32.xlu0 %v4680, 110
      %v5775 = vpop.permute.xlu0 %5774
      %5776 = vrot.lane.b32.xlu0 %v4681, 110
      %v5777 = vpop.permute.xlu0 %5776
      %5778 = vrot.lane.b32.xlu0 %v4682, 110
      %v5779 = vpop.permute.xlu0 %5778
      %v5780 = vsel %vm3474, %v5777, %v5779
      %v5781 = vsel %vm3474, %v5775, %v5777
      %v5782 = vsel %vm3474, %v5779, %v5775
      %5784 = vset.pattern.permute.xlu0 0
      %5785 = vperm.xlu0 %5784, %v5773
      %v5786 = vpop.permute.xlu0 %5785
      %v5788 = vmul.f32 %v5786, %v5781
      %v5789 = vmul.f32 %v5786, %v5780
      %v5790 = vmul.f32 %v5786, %v5782
      %v5791 = vadd.f32 %v5749, %v5788
      %v5792 = vadd.f32 %v5750, %v5789
      %v5793 = vadd.f32 %v5751, %v5790
      %v5794 = vld [vmem:[%s4999] sm:$0xff]
      %5795 = vrot.lane.b32.xlu0 %v4683, 110
      %v5796 = vpop.permute.xlu0 %5795
      %5797 = vrot.lane.b32.xlu0 %v4684, 110
      %v5798 = vpop.permute.xlu0 %5797
      %5799 = vrot.lane.b32.xlu0 %v4685, 110
      %v5800 = vpop.permute.xlu0 %5799
      %v5801 = vsel %vm3474, %v5798, %v5800
      %v5802 = vsel %vm3474, %v5796, %v5798
      %v5803 = vsel %vm3474, %v5800, %v5796
      %5805 = vset.pattern.permute.xlu0 0
      %5806 = vperm.xlu0 %5805, %v5794
      %v5807 = vpop.permute.xlu0 %5806
      %v5809 = vmul.f32 %v5807, %v5802
      %v5810 = vmul.f32 %v5807, %v5801
      %v5811 = vmul.f32 %v5807, %v5803
      %v5812 = vadd.f32 %v5770, %v5809
      %v5813 = vadd.f32 %v5771, %v5810
      %v5814 = vadd.f32 %v5772, %v5811
      %v5815 = vld [vmem:[%s5012] sm:$0x3]
      %5816 = vrot.lane.b32.xlu0 %v4842, 110
      %v5817 = vpop.permute.xlu0 %5816
      %5818 = vrot.lane.b32.xlu0 %v4843, 110
      %v5819 = vpop.permute.xlu0 %5818
      %5820 = vrot.lane.b32.xlu0 %v4844, 110
      %v5821 = vpop.permute.xlu0 %5820
      %v5822 = vsel %vm3474, %v5819, %v5821
      %v5823 = vsel %vm3474, %v5817, %v5819
      %v5824 = vsel %vm3474, %v5821, %v5817
      %5826 = vset.pattern.permute.xlu0 0
      %5827 = vperm.xlu0 %5826, %v5815
      %v5828 = vpop.permute.xlu0 %5827
      %v5830 = vmul.f32 %v5828, %v5823
      %v5831 = vmul.f32 %v5828, %v5822
      %v5832 = vmul.f32 %v5828, %v5824
      %v5833 = vadd.f32 %v5791, %v5830
      %v5834 = vadd.f32 %v5792, %v5831
      %v5835 = vadd.f32 %v5793, %v5832
      %v5836 = vld [vmem:[%s5025] sm:$0xff]
      %5837 = vrot.lane.b32.xlu0 %v4686, 110
      %v5838 = vpop.permute.xlu0 %5837
      %5839 = vrot.lane.b32.xlu0 %v4687, 110
      %v5840 = vpop.permute.xlu0 %5839
      %5841 = vrot.lane.b32.xlu0 %v4688, 110
      %v5842 = vpop.permute.xlu0 %5841
      %v5843 = vsel %vm3474, %v5840, %v5842
      %v5844 = vsel %vm3474, %v5838, %v5840
      %v5845 = vsel %vm3474, %v5842, %v5838
      %5847 = vset.pattern.permute.xlu0 0
      %5848 = vperm.xlu0 %5847, %v5836
      %v5849 = vpop.permute.xlu0 %5848
      %v5851 = vmul.f32 %v5849, %v5844
      %v5852 = vmul.f32 %v5849, %v5843
      %v5853 = vmul.f32 %v5849, %v5845
      %v5854 = vadd.f32 %v5812, %v5851
      %v5855 = vadd.f32 %v5813, %v5852
      %v5856 = vadd.f32 %v5814, %v5853
      %v5857 = vld [vmem:[%s65] sm:$0x3]
      %5859 = vset.pattern.permute.xlu0 0
      %5860 = vperm.xlu0 %5859, %v5857
      %v5861 = vpop.permute.xlu0 %5860
      %v5863 = vmul.f32 %v5861, %v5833
      %v5864 = vmul.f32 %v5861, %v5834
      %v5865 = vmul.f32 %v5861, %v5835
      %v5866 = vsel %vm5047, %v5863, 0.0
      %v5867 = vrot.slane %v5866, 4
      %v5868 = vadd.f32 %v5866, %v5867
      %v5869 = vrot.slane %v5868, 2
      %v5870 = vadd.f32 %v5868, %v5869
      %v5871 = vrot.slane %v5870, 1
      %v5872 = vadd.f32 %v5870, %v5871
      %v5873 = vsel %vm5047, %v5864, 0.0
      %v5874 = vrot.slane %v5873, 4
      %v5875 = vadd.f32 %v5873, %v5874
      %v5876 = vrot.slane %v5875, 2
      %v5877 = vadd.f32 %v5875, %v5876
      %v5878 = vrot.slane %v5877, 1
      %v5879 = vadd.f32 %v5877, %v5878
      %v5880 = vsel %vm5047, %v5865, 0.0
      %v5881 = vrot.slane %v5880, 4
      %v5882 = vadd.f32 %v5880, %v5881
      %v5883 = vrot.slane %v5882, 2
      %v5884 = vadd.f32 %v5882, %v5883
      %v5885 = vrot.slane %v5884, 1
      %v5886 = vadd.f32 %v5884, %v5885
      %v5887 = vld [vmem:[%s67] sm:$0xff]
      %5889 = vset.pattern.permute.xlu0 0
      %5890 = vperm.xlu0 %5889, %v5887
      %v5891 = vpop.permute.xlu0 %5890
      %v5893 = vmul.f32 %v5891, %v5854
      %v5894 = vmul.f32 %v5891, %v5855
      %v5895 = vmul.f32 %v5891, %v5856
      %v5896 = vrot.slane %v5893, 4
      %v5897 = vadd.f32 %v5893, %v5896
      %v5898 = vrot.slane %v5897, 2
      %v5899 = vadd.f32 %v5897, %v5898
      %v5900 = vrot.slane %v5899, 1
      %v5901 = vadd.f32 %v5899, %v5900
      %v5902 = vrot.slane %v5894, 4
      %v5903 = vadd.f32 %v5894, %v5902
      %v5904 = vrot.slane %v5903, 2
      %v5905 = vadd.f32 %v5903, %v5904
      %v5906 = vrot.slane %v5905, 1
      %v5907 = vadd.f32 %v5905, %v5906
      %v5908 = vrot.slane %v5895, 4
      %v5909 = vadd.f32 %v5895, %v5908
      %v5910 = vrot.slane %v5909, 2
      %v5911 = vadd.f32 %v5909, %v5910
      %v5912 = vrot.slane %v5911, 1
      %v5913 = vadd.f32 %v5911, %v5912
      %v5914 = vadd.f32 %v5872, %v5901
      %v5915 = vadd.f32 %v5879, %v5907
      %v5916 = vadd.f32 %v5886, %v5913
      %v5917 = vld [vmem:[#allocation2] sm:$0x1]
      %5919 = vset.pattern.permute.xlu0 0
      %5920 = vperm.xlu0 %5919, %v5917
      %v5921 = vpop.permute.xlu0 %5920
      %v5923 = vperm.slane %v5921, 0
      %v5924 = vadd.f32 %v5914, %v5923
      %v5925 = vadd.f32 %v5915, %v5923
      %v5926 = vadd.f32 %v5916, %v5923
      %v5927 = vxor.u32 %v5924, 2147483648
      %v5928 = vxor.u32 %v5925, 2147483648
      %v5929 = vxor.u32 %v5926, 2147483648
      %v5930 = vmul.f32 %v5927, 1.442695
      %v5931 = vpow.pop %v5930
      %v5932 = vmul.f32 %v5928, 1.442695
      %v5933 = vpow.pop %v5932
      %v5934 = vmul.f32 %v5929, 1.442695
      %v5935 = vpow.pop %v5934
      %v5936 = vadd.f32 %v5931, 1.0
      %v5937 = vadd.f32 %v5933, 1.0
      %v5938 = vadd.f32 %v5935, 1.0
      %v5939 = vrcp.pop %v5936
      %v5940 = vmul.f32 %v5936, %v5939
      %v5941 = vsub.f32 1.0, %v5940
      %v5942 = vmul.f32 %v5939, %v5941
      %v5943 = vadd.f32 %v5939, %v5942
      %vm5944 = vweird.f32 %v5936
      %vm5945 = vweird.f32 %v5939
      %vm5946 = vmor %vm5944, %vm5945
      %v5947 = vsel %vm5946, %v5939, %v5943
      %v5948 = vand.u32 2147483647, %v5936
      %vm5949 = vcmp.eq.f32.partialorder %v5948, 8.507059e+37
      %v5950 = vand.u32 %v5936, 2147483648
      %v5951 = vor.u32 1.1754944e-38, %v5950
      %v5952 = vsel %vm5949, %v5951, %v5947
      %v5953 = vmul.f32 1.0, %v5952
      %v5954 = vrcp.pop %v5937
      %v5955 = vmul.f32 %v5937, %v5954
      %v5956 = vsub.f32 1.0, %v5955
      %v5957 = vmul.f32 %v5954, %v5956
      %v5958 = vadd.f32 %v5954, %v5957
      %vm5959 = vweird.f32 %v5937
      %vm5960 = vweird.f32 %v5954
      %vm5961 = vmor %vm5959, %vm5960
      %v5962 = vsel %vm5961, %v5954, %v5958
      %v5963 = vand.u32 2147483647, %v5937
      %vm5964 = vcmp.eq.f32.partialorder %v5963, 8.507059e+37
      %v5965 = vand.u32 %v5937, 2147483648
      %v5966 = vor.u32 1.1754944e-38, %v5965
      %v5967 = vsel %vm5964, %v5966, %v5962
      %v5968 = vmul.f32 1.0, %v5967
      %v5969 = vrcp.pop %v5938
      %v5970 = vmul.f32 %v5938, %v5969
      %v5971 = vsub.f32 1.0, %v5970
      %v5972 = vmul.f32 %v5969, %v5971
      %v5973 = vadd.f32 %v5969, %v5972
      %vm5974 = vweird.f32 %v5938
      %vm5975 = vweird.f32 %v5969
      %vm5976 = vmor %vm5974, %vm5975
      %v5977 = vsel %vm5976, %v5969, %v5973
      %v5978 = vand.u32 2147483647, %v5938
      %vm5979 = vcmp.eq.f32.partialorder %v5978, 8.507059e+37
      %v5980 = vand.u32 %v5938, 2147483648
      %v5981 = vor.u32 1.1754944e-38, %v5980
      %v5982 = vsel %vm5979, %v5981, %v5977
      %v5983 = vmul.f32 1.0, %v5982
      %v5987 = vrot.slane %v5968, 7
      %v5988 = vrot.slane %v5983, 6
      %v5989 = vsel %vm5171, %v5953, %v5987
      %v5990 = vsel %vm5047, %v5989, %v5988
      %s5992 = scalar_lea.vmem %s1143, 2
      %5993 = vst.msk [vmem:[%s5992] ss:$4 sm:$0x7] %vm5178, %v5990
      %v5994 = vld [vmem:[%s61] sm:$0x3]
      %5996 = vset.pattern.permute.xlu0 0
      %5997 = vperm.xlu0 %5996, %v5994
      %v5998 = vpop.permute.xlu0 %5997
      %v6000 = vmul.f32 %v5998, %v4680
      %v6001 = vmul.f32 %v5998, %v4681
      %v6002 = vmul.f32 %v5998, %v4682
      %v6003 = vadd.f32 %v6000, 0.0
      %v6004 = vadd.f32 %v6001, 0.0
      %v6005 = vadd.f32 %v6002, 0.0
      %v6006 = vld [vmem:[%s63] sm:$0xff]
      %6008 = vset.pattern.permute.xlu0 0
      %6009 = vperm.xlu0 %6008, %v6006
      %v6010 = vpop.permute.xlu0 %6009
      %v6012 = vmul.f32 %v6010, %v4683
      %v6013 = vmul.f32 %v6010, %v4684
      %v6014 = vmul.f32 %v6010, %v4685
      %v6015 = vadd.f32 %v6012, 0.0
      %v6016 = vadd.f32 %v6013, 0.0
      %v6017 = vadd.f32 %v6014, 0.0
      %v6018 = vld [vmem:[%s4746] sm:$0x3]
      %6020 = vset.pattern.permute.xlu0 0
      %6021 = vperm.xlu0 %6020, %v6018
      %v6022 = vpop.permute.xlu0 %6021
      %v6024 = vmul.f32 %v6022, %v4842
      %v6025 = vmul.f32 %v6022, %v4843
      %v6026 = vmul.f32 %v6022, %v4844
      %v6027 = vadd.f32 %v6003, %v6024
      %v6028 = vadd.f32 %v6004, %v6025
      %v6029 = vadd.f32 %v6005, %v6026
      %v6030 = vld [vmem:[%s4774] sm:$0xff]
      %6032 = vset.pattern.permute.xlu0 0
      %6033 = vperm.xlu0 %6032, %v6030
      %v6034 = vpop.permute.xlu0 %6033
      %v6036 = vmul.f32 %v6034, %v4686
      %v6037 = vmul.f32 %v6034, %v4687
      %v6038 = vmul.f32 %v6034, %v4688
      %v6039 = vadd.f32 %v6015, %v6036
      %v6040 = vadd.f32 %v6016, %v6037
      %v6041 = vadd.f32 %v6017, %v6038
      %v6042 = vld [vmem:[%s4796] sm:$0x3]
      %6044 = vset.pattern.permute.xlu0 0
      %6045 = vperm.xlu0 %6044, %v6042
      %v6046 = vpop.permute.xlu0 %6045
      %v6048 = vmul.f32 %v6046, %v5326
      %v6049 = vmul.f32 %v6046, %v5325
      %v6050 = vmul.f32 %v6046, %v5327
      %v6051 = vadd.f32 %v6027, %v6048
      %v6052 = vadd.f32 %v6028, %v6049
      %v6053 = vadd.f32 %v6029, %v6050
      %v6054 = vld [vmem:[%s4818] sm:$0xff]
      %6056 = vset.pattern.permute.xlu0 0
      %6057 = vperm.xlu0 %6056, %v6054
      %v6058 = vpop.permute.xlu0 %6057
      %v6060 = vmul.f32 %v6058, %v5347
      %v6061 = vmul.f32 %v6058, %v5346
      %v6062 = vmul.f32 %v6058, %v5348
      %v6063 = vadd.f32 %v6039, %v6060
      %v6064 = vadd.f32 %v6040, %v6061
      %v6065 = vadd.f32 %v6041, %v6062
      %v6066 = vld [vmem:[%s4840] sm:$0x3]
      %6068 = vset.pattern.permute.xlu0 0
      %6069 = vperm.xlu0 %6068, %v6066
      %v6070 = vpop.permute.xlu0 %6069
      %v6072 = vmul.f32 %v6070, %v4748
      %v6073 = vmul.f32 %v6070, %v4749
      %v6074 = vmul.f32 %v6070, %v4750
      %v6075 = vadd.f32 %v6051, %v6072
      %v6076 = vadd.f32 %v6052, %v6073
      %v6077 = vadd.f32 %v6053, %v6074
      %v6078 = vld [vmem:[%s4868] sm:$0xff]
      %6080 = vset.pattern.permute.xlu0 0
      %6081 = vperm.xlu0 %6080, %v6078
      %v6082 = vpop.permute.xlu0 %6081
      %v6084 = vmul.f32 %v6082, %v4689
      %v6085 = vmul.f32 %v6082, %v4690
      %v6086 = vmul.f32 %v6082, %v4691
      %v6087 = vadd.f32 %v6063, %v6084
      %v6088 = vadd.f32 %v6064, %v6085
      %v6089 = vadd.f32 %v6065, %v6086
      %v6090 = vld [vmem:[%s4890] sm:$0x3]
      %6092 = vset.pattern.permute.xlu0 0
      %6093 = vperm.xlu0 %6092, %v6090
      %v6094 = vpop.permute.xlu0 %6093
      %v6096 = vmul.f32 %v6094, %v4699
      %v6097 = vmul.f32 %v6094, %v4700
      %v6098 = vmul.f32 %v6094, %v4701
      %v6099 = vadd.f32 %v6075, %v6096
      %v6100 = vadd.f32 %v6076, %v6097
      %v6101 = vadd.f32 %v6077, %v6098
      %v6102 = vld [vmem:[%s4903] sm:$0xff]
      %6104 = vset.pattern.permute.xlu0 0
      %6105 = vperm.xlu0 %6104, %v6102
      %v6106 = vpop.permute.xlu0 %6105
      %v6108 = vmul.f32 %v6106, %v4692
      %v6109 = vmul.f32 %v6106, %v4693
      %v6110 = vmul.f32 %v6106, %v4694
      %v6111 = vadd.f32 %v6087, %v6108
      %v6112 = vadd.f32 %v6088, %v6109
      %v6113 = vadd.f32 %v6089, %v6110
      %v6114 = vld [vmem:[%s4916] sm:$0x3]
      %6116 = vset.pattern.permute.xlu0 0
      %6117 = vperm.xlu0 %6116, %v6114
      %v6118 = vpop.permute.xlu0 %6117
      %v6120 = vmul.f32 %v6118, %v5416
      %v6121 = vmul.f32 %v6118, %v5415
      %v6122 = vmul.f32 %v6118, %v5417
      %v6123 = vadd.f32 %v6099, %v6120
      %v6124 = vadd.f32 %v6100, %v6121
      %v6125 = vadd.f32 %v6101, %v6122
      %v6126 = vld [vmem:[%s4929] sm:$0xff]
      %6128 = vset.pattern.permute.xlu0 0
      %6129 = vperm.xlu0 %6128, %v6126
      %v6130 = vpop.permute.xlu0 %6129
      %v6132 = vmul.f32 %v6130, %v5437
      %v6133 = vmul.f32 %v6130, %v5436
      %v6134 = vmul.f32 %v6130, %v5438
      %v6135 = vadd.f32 %v6111, %v6132
      %v6136 = vadd.f32 %v6112, %v6133
      %v6137 = vadd.f32 %v6113, %v6134
      %v6138 = vld [vmem:[%s4942] sm:$0x3]
      %6140 = vset.pattern.permute.xlu0 0
      %6141 = vperm.xlu0 %6140, %v6138
      %v6142 = vpop.permute.xlu0 %6141
      %v6144 = vmul.f32 %v6142, %v5781
      %v6145 = vmul.f32 %v6142, %v5780
      %v6146 = vmul.f32 %v6142, %v5782
      %v6147 = vadd.f32 %v6123, %v6144
      %v6148 = vadd.f32 %v6124, %v6145
      %v6149 = vadd.f32 %v6125, %v6146
      %v6150 = vld [vmem:[%s4964] sm:$0xff]
      %6152 = vset.pattern.permute.xlu0 0
      %6153 = vperm.xlu0 %6152, %v6150
      %v6154 = vpop.permute.xlu0 %6153
      %v6156 = vmul.f32 %v6154, %v5802
      %v6157 = vmul.f32 %v6154, %v5801
      %v6158 = vmul.f32 %v6154, %v5803
      %v6159 = vadd.f32 %v6135, %v6156
      %v6160 = vadd.f32 %v6136, %v6157
      %v6161 = vadd.f32 %v6137, %v6158
      %v6162 = vld [vmem:[%s4986] sm:$0x3]
      %6164 = vset.pattern.permute.xlu0 0
      %6165 = vperm.xlu0 %6164, %v6162
      %v6166 = vpop.permute.xlu0 %6165
      %v6168 = vmul.f32 %v6166, %v5823
      %v6169 = vmul.f32 %v6166, %v5822
      %v6170 = vmul.f32 %v6166, %v5824
      %v6171 = vadd.f32 %v6147, %v6168
      %v6172 = vadd.f32 %v6148, %v6169
      %v6173 = vadd.f32 %v6149, %v6170
      %v6174 = vld [vmem:[%s4999] sm:$0xff]
      %6176 = vset.pattern.permute.xlu0 0
      %6177 = vperm.xlu0 %6176, %v6174
      %v6178 = vpop.permute.xlu0 %6177
      %v6180 = vmul.f32 %v6178, %v5844
      %v6181 = vmul.f32 %v6178, %v5843
      %v6182 = vmul.f32 %v6178, %v5845
      %v6183 = vadd.f32 %v6159, %v6180
      %v6184 = vadd.f32 %v6160, %v6181
      %v6185 = vadd.f32 %v6161, %v6182
      %v6186 = vld [vmem:[%s5012] sm:$0x3]
      %6187 = vrot.lane.b32.xlu0 %v4680, 109
      %v6188 = vpop.permute.xlu0 %6187
      %6189 = vrot.lane.b32.xlu0 %v4681, 109
      %v6190 = vpop.permute.xlu0 %6189
      %6191 = vrot.lane.b32.xlu0 %v4682, 109
      %v6192 = vpop.permute.xlu0 %6191
      %v6193 = vsel %vm3519, %v6190, %v6192
      %v6194 = vsel %vm3519, %v6188, %v6190
      %v6195 = vsel %vm3519, %v6192, %v6188
      %6197 = vset.pattern.permute.xlu0 0
      %6198 = vperm.xlu0 %6197, %v6186
      %v6199 = vpop.permute.xlu0 %6198
      %v6201 = vmul.f32 %v6199, %v6194
      %v6202 = vmul.f32 %v6199, %v6193
      %v6203 = vmul.f32 %v6199, %v6195
      %v6204 = vadd.f32 %v6171, %v6201
      %v6205 = vadd.f32 %v6172, %v6202
      %v6206 = vadd.f32 %v6173, %v6203
      %v6207 = vld [vmem:[%s5025] sm:$0xff]
      %6208 = vrot.lane.b32.xlu0 %v4683, 109
      %v6209 = vpop.permute.xlu0 %6208
      %6210 = vrot.lane.b32.xlu0 %v4684, 109
      %v6211 = vpop.permute.xlu0 %6210
      %6212 = vrot.lane.b32.xlu0 %v4685, 109
      %v6213 = vpop.permute.xlu0 %6212
      %v6214 = vsel %vm3519, %v6211, %v6213
      %v6215 = vsel %vm3519, %v6209, %v6211
      %v6216 = vsel %vm3519, %v6213, %v6209
      %6218 = vset.pattern.permute.xlu0 0
      %6219 = vperm.xlu0 %6218, %v6207
      %v6220 = vpop.permute.xlu0 %6219
      %v6222 = vmul.f32 %v6220, %v6215
      %v6223 = vmul.f32 %v6220, %v6214
      %v6224 = vmul.f32 %v6220, %v6216
      %v6225 = vadd.f32 %v6183, %v6222
      %v6226 = vadd.f32 %v6184, %v6223
      %v6227 = vadd.f32 %v6185, %v6224
      %v6228 = vld [vmem:[%s65] sm:$0x3]
      %6230 = vset.pattern.permute.xlu0 0
      %6231 = vperm.xlu0 %6230, %v6228
      %v6232 = vpop.permute.xlu0 %6231
      %v6234 = vmul.f32 %v6232, %v6204
      %v6235 = vmul.f32 %v6232, %v6205
      %v6236 = vmul.f32 %v6232, %v6206
      %v6237 = vsel %vm5047, %v6234, 0.0
      %v6238 = vrot.slane %v6237, 4
      %v6239 = vadd.f32 %v6237, %v6238
      %v6240 = vrot.slane %v6239, 2
      %v6241 = vadd.f32 %v6239, %v6240
      %v6242 = vrot.slane %v6241, 1
      %v6243 = vadd.f32 %v6241, %v6242
      %v6244 = vsel %vm5047, %v6235, 0.0
      %v6245 = vrot.slane %v6244, 4
      %v6246 = vadd.f32 %v6244, %v6245
      %v6247 = vrot.slane %v6246, 2
      %v6248 = vadd.f32 %v6246, %v6247
      %v6249 = vrot.slane %v6248, 1
      %v6250 = vadd.f32 %v6248, %v6249
      %v6251 = vsel %vm5047, %v6236, 0.0
      %v6252 = vrot.slane %v6251, 4
      %v6253 = vadd.f32 %v6251, %v6252
      %v6254 = vrot.slane %v6253, 2
      %v6255 = vadd.f32 %v6253, %v6254
      %v6256 = vrot.slane %v6255, 1
      %v6257 = vadd.f32 %v6255, %v6256
      %v6258 = vld [vmem:[%s67] sm:$0xff]
      %6260 = vset.pattern.permute.xlu0 0
      %6261 = vperm.xlu0 %6260, %v6258
      %v6262 = vpop.permute.xlu0 %6261
      %v6264 = vmul.f32 %v6262, %v6225
      %v6265 = vmul.f32 %v6262, %v6226
      %v6266 = vmul.f32 %v6262, %v6227
      %v6267 = vrot.slane %v6264, 4
      %v6268 = vadd.f32 %v6264, %v6267
      %v6269 = vrot.slane %v6268, 2
      %v6270 = vadd.f32 %v6268, %v6269
      %v6271 = vrot.slane %v6270, 1
      %v6272 = vadd.f32 %v6270, %v6271
      %v6273 = vrot.slane %v6265, 4
      %v6274 = vadd.f32 %v6265, %v6273
      %v6275 = vrot.slane %v6274, 2
      %v6276 = vadd.f32 %v6274, %v6275
      %v6277 = vrot.slane %v6276, 1
      %v6278 = vadd.f32 %v6276, %v6277
      %v6279 = vrot.slane %v6266, 4
      %v6280 = vadd.f32 %v6266, %v6279
      %v6281 = vrot.slane %v6280, 2
      %v6282 = vadd.f32 %v6280, %v6281
      %v6283 = vrot.slane %v6282, 1
      %v6284 = vadd.f32 %v6282, %v6283
      %v6285 = vadd.f32 %v6243, %v6272
      %v6286 = vadd.f32 %v6250, %v6278
      %v6287 = vadd.f32 %v6257, %v6284
      %v6288 = vld [vmem:[#allocation2] sm:$0x1]
      %6290 = vset.pattern.permute.xlu0 0
      %6291 = vperm.xlu0 %6290, %v6288
      %v6292 = vpop.permute.xlu0 %6291
      %v6294 = vperm.slane %v6292, 0
      %v6295 = vadd.f32 %v6285, %v6294
      %v6296 = vadd.f32 %v6286, %v6294
      %v6297 = vadd.f32 %v6287, %v6294
      %v6298 = vxor.u32 %v6295, 2147483648
      %v6299 = vxor.u32 %v6296, 2147483648
      %v6300 = vxor.u32 %v6297, 2147483648
      %v6301 = vmul.f32 %v6298, 1.442695
      %v6302 = vpow.pop %v6301
      %v6303 = vmul.f32 %v6299, 1.442695
      %v6304 = vpow.pop %v6303
      %v6305 = vmul.f32 %v6300, 1.442695
      %v6306 = vpow.pop %v6305
      %v6307 = vadd.f32 %v6302, 1.0
      %v6308 = vadd.f32 %v6304, 1.0
      %v6309 = vadd.f32 %v6306, 1.0
      %v6310 = vrcp.pop %v6307
      %v6311 = vmul.f32 %v6307, %v6310
      %v6312 = vsub.f32 1.0, %v6311
      %v6313 = vmul.f32 %v6310, %v6312
      %v6314 = vadd.f32 %v6310, %v6313
      %vm6315 = vweird.f32 %v6307
      %vm6316 = vweird.f32 %v6310
      %vm6317 = vmor %vm6315, %vm6316
      %v6318 = vsel %vm6317, %v6310, %v6314
      %v6319 = vand.u32 2147483647, %v6307
      %vm6320 = vcmp.eq.f32.partialorder %v6319, 8.507059e+37
      %v6321 = vand.u32 %v6307, 2147483648
      %v6322 = vor.u32 1.1754944e-38, %v6321
      %v6323 = vsel %vm6320, %v6322, %v6318
      %v6324 = vmul.f32 1.0, %v6323
      %v6325 = vrcp.pop %v6308
      %v6326 = vmul.f32 %v6308, %v6325
      %v6327 = vsub.f32 1.0, %v6326
      %v6328 = vmul.f32 %v6325, %v6327
      %v6329 = vadd.f32 %v6325, %v6328
      %vm6330 = vweird.f32 %v6308
      %vm6331 = vweird.f32 %v6325
      %vm6332 = vmor %vm6330, %vm6331
      %v6333 = vsel %vm6332, %v6325, %v6329
      %v6334 = vand.u32 2147483647, %v6308
      %vm6335 = vcmp.eq.f32.partialorder %v6334, 8.507059e+37
      %v6336 = vand.u32 %v6308, 2147483648
      %v6337 = vor.u32 1.1754944e-38, %v6336
      %v6338 = vsel %vm6335, %v6337, %v6333
      %v6339 = vmul.f32 1.0, %v6338
      %v6340 = vrcp.pop %v6309
      %v6341 = vmul.f32 %v6309, %v6340
      %v6342 = vsub.f32 1.0, %v6341
      %v6343 = vmul.f32 %v6340, %v6342
      %v6344 = vadd.f32 %v6340, %v6343
      %vm6345 = vweird.f32 %v6309
      %vm6346 = vweird.f32 %v6340
      %vm6347 = vmor %vm6345, %vm6346
      %v6348 = vsel %vm6347, %v6340, %v6344
      %v6349 = vand.u32 2147483647, %v6309
      %vm6350 = vcmp.eq.f32.partialorder %v6349, 8.507059e+37
      %v6351 = vand.u32 %v6309, 2147483648
      %v6352 = vor.u32 1.1754944e-38, %v6351
      %v6353 = vsel %vm6350, %v6352, %v6348
      %v6354 = vmul.f32 1.0, %v6353
      %v6358 = vrot.slane %v6339, 7
      %v6359 = vrot.slane %v6354, 6
      %v6360 = vsel %vm5171, %v6324, %v6358
      %v6361 = vsel %vm5047, %v6360, %v6359
      %s6363 = scalar_lea.vmem %s1143, 3
      %6364 = vst.msk [vmem:[%s6363] ss:$4 sm:$0x7] %vm5178, %v6361
      %p6365 = scmp.lt.s32.totalorder %s84, 1
      %s6366 = scalar_select %p6365, %s84, 1
      %s6367 = smul.addr %s6366, 3
      %s6368 = smul.addr %s6367, 4
      %s6369 = scalar_lea.vmem %s71, %s6368
      // Predicated region
      $region161: #{decoder_forward.1} parent=159 // pred_check
        %p6370 = pneg %p862
      $region162: #{decoder_forward.1} parent=159 // pred_check_branch
        %6372 = sbr.rel (%p6370) target = $region164
      $region163: #{decoder_forward.1} parent=159 // pred_region
        _
      $region164: #{decoder_forward.1} parent=159 // pred_fallthru
        _
    $region160: #{decoder_forward.1} parent=5 // pred_fallthru
      _
    %p6373 = scmp.le.s32.totalorder 2, %s79
    // Predicated region
    $region165: #{decoder_forward.1} parent=5 // pred_check
      %p6374 = pneg %p6373
    $region166: #{decoder_forward.1} parent=5 // pred_check_branch
      %6376 = sbr.rel (%p6374) target = $region168
    $region167: #{decoder_forward.1} parent=5 // pred_region
      %s6377 = ssub.s32 %s79, 2
      // Predicated region
      $region169: #{decoder_forward.1} parent=167 // pred_check
        %p6378 = pneg %p868
      $region170: #{decoder_forward.1} parent=167 // pred_check_branch
        %6380 = sbr.rel (%p6378) target = $region172
      $region171: #{decoder_forward.1} parent=167 // pred_region
        %p6381 = scmp.lt.s32.totalorder %s85, 1
        %s6382 = scalar_select %p6381, %s85, 1
        %s6383 = smul.addr %s6382, 3
        %s6384 = smul.addr %s6383, 4
        %s6385 = scalar_lea.vmem %s71, %s6384
      $region172: #{decoder_forward.1} parent=167 // pred_fallthru
        _
    $region168: #{decoder_forward.1} parent=5 // pred_fallthru
      _
  $region6: #{decoder_forward.1} parent=0 // loop_footer
    %s83 = sadd.s32 1, %s79
  $region7: #{decoder_forward.1} parent=0 // loop_footer_branch
    %78 = sbr.rel target = $region3
  $region8: #{decoder_forward.1} parent=0 // loop_exit
    _

</llo_original>
